<compile_context>
chip_gen: v7x
topology: tpu7x:2x2x1
jax: 0.10.0
libtpu: 0.0.40
codegen_flags: <defaults>
</compile_context>

<pallas_src>
import functools

import numpy as np
import jax
import jax.numpy as jnp
from jax.experimental import pallas as pl
from jax.experimental.pallas import tpu as pltpu


# ------------------------------ static layout --------------------------------

def _rup8(n):
    return -(-n // 8) * 8


def _layout(feature_num, output_fc_pc_num):
    """Static description of the two packed weight slabs."""
    f, n = feature_num, output_fc_pc_num

    # linear slab: column-orientation (out, in) blocks; bias in the LAST column
    lin_dims = [(2 * n, f, True), (3 * n, 2 * n, True),
                (4 * n, 3 * n, True), (3 * n, 4 * n, False)]
    lin_cols = max(i for _, i, _ in lin_dims) + 1
    lin_meta, r = [], 0
    for o, i, relu in lin_dims:
        lin_meta.append((r, o, i, relu))
        r += _rup8(o)
    lin_shape = (r, lin_cols)

    # conv slab: stacked-tap deconv weights + head weights; bias in LAST column
    cout_real = [f, f // 2, f // 4, f // 8, f // 8, f // 8]
    cout_p = [max(_rup8(c), 8) for c in cout_real]      # pad channels to >=8
    cin_p = [f] + cout_p[:-1]
    conv_cols = max(cin_p) + 1
    dec_meta, r = [], 0
    for k in range(6):
        dec_meta.append((r, cout_p[k], cin_p[k]))
        r += 4 * cout_p[k]
    head_meta = []
    cp = cout_p[-1]
    for _ in range(3):
        head_meta.append((r, r + 8, cp))
        r += 16
    conv_shape = (r, conv_cols)
    return (tuple(lin_meta), tuple(dec_meta), tuple(head_meta),
            lin_shape, conv_shape)


# ----------------------------- fused Pallas kernel ----------------------------

def _decoder_kernel(x_ref, lw_ref, cw_ref, lin_ref, pc4_ref, pc5_ref, pc6_ref,
                    *, lin_meta, dec_meta, head_meta, lin_bcol, conv_bcol):
    """One grid step = one batch element; everything VMEM resident, column
    orientation (channels on sublanes, positions on lanes)."""

    def mm(a, b):
        return jnp.dot(a, b, preferred_element_type=jnp.float32)

    col = x_ref[0]                                     # (feature_num, 1)

    # ---------------- DecoderLinear: 3 x (linear+relu) + linear ---------------
    h = col
    for (r0, o, i, relu) in lin_meta:
        w = lw_ref[r0:r0 + o, 0:i]
        b = lw_ref[r0:r0 + o, lin_bcol:lin_bcol + 1]
        h = mm(w, h) + b
        if relu:
            h = jnp.maximum(h, 0.0)
    lin_ref[0] = h                                     # (3*n, 1)

    # ---------------- DecoderConv ---------------------------------------------
    def head(a, hm):
        r1, r2, cp = hm
        w1 = cw_ref[r1:r1 + cp, 0:cp]
        b1 = cw_ref[r1:r1 + cp, conv_bcol:conv_bcol + 1]
        w2 = cw_ref[r2:r2 + 8, 0:cp]
        b2 = cw_ref[r2:r2 + 8, conv_bcol:conv_bcol + 1]
        hid = jnp.maximum(mm(w1, a) + b1, 0.0)
        return mm(w2, hid) + b2                        # (8, r); rows 3..7 = 0 pad

    act = col                                          # (cin, positions)
    npos = 1
    for k, (r0, cop, cip) in enumerate(dec_meta):
        # ConvTranspose2d(k=2, s=2) + ReLU: 4 taps stacked on rows -> ONE matmul
        w = cw_ref[r0:r0 + 4 * cop, 0:cip]
        b = cw_ref[r0:r0 + 4 * cop, conv_bcol:conv_bcol + 1]
        y = jnp.maximum(mm(w, act) + b, 0.0)           # (4*cop, npos)
        if k < 5:
            # next activation: tap d -> lane block d (kept as a value; spatial
            # interleave deferred to one static gather outside the kernel)
            act = jnp.concatenate(
                [y[d * cop:(d + 1) * cop, :] for d in range(4)], axis=1)
            npos *= 4
            if k == 3:
                pc4_ref[0] = head(act, head_meta[0])   # 16x16 head
            elif k == 4:
                pc5_ref[0] = head(act, head_meta[1])   # 32x32 head
        else:
            # last layer: fuse the pc6 head per tap; write lane-aligned chunks
            for d in range(4):
                tap = y[d * cop:(d + 1) * cop, :]      # (cop, npos)
                pc6_ref[0, :, d * npos:(d + 1) * npos] = head(tap, head_meta[2])


def _decoder_pallas_call(x, lin_slab, conv_slab, feature_num, output_fc_pc_num):
    B, F = x.shape
    lin_meta, dec_meta, head_meta, lin_shape, conv_shape = _layout(
        feature_num, output_fc_pc_num)
    assert tuple(lin_slab.shape) == lin_shape
    assert tuple(conv_slab.shape) == conv_shape
    n3 = 3 * output_fc_pc_num

    kernel = functools.partial(
        _decoder_kernel, lin_meta=lin_meta, dec_meta=dec_meta,
        head_meta=head_meta, lin_bcol=lin_shape[1] - 1,
        conv_bcol=conv_shape[1] - 1)

    out_shape = (
        jax.ShapeDtypeStruct((B, n3, 1), jnp.float32),
        jax.ShapeDtypeStruct((B, 8, 256), jnp.float32),
        jax.ShapeDtypeStruct((B, 8, 1024), jnp.float32),
        jax.ShapeDtypeStruct((B, 8, 4096), jnp.float32),
    )
    grid_spec = pltpu.PrefetchScalarGridSpec(
        num_scalar_prefetch=0,
        grid=(B,),
        in_specs=[
            pl.BlockSpec((1, F, 1), lambda i: (i, 0, 0)),
            pl.BlockSpec(lin_shape, lambda i: (0, 0)),     # fetched once
            pl.BlockSpec(conv_shape, lambda i: (0, 0)),    # fetched once
        ],
        out_specs=(
            pl.BlockSpec((1, n3, 1), lambda i: (i, 0, 0)),
            pl.BlockSpec((1, 8, 256), lambda i: (i, 0, 0)),
            pl.BlockSpec((1, 8, 1024), lambda i: (i, 0, 0)),
            pl.BlockSpec((1, 8, 4096), lambda i: (i, 0, 0)),
        ),
    )
    return pl.pallas_call(
        kernel,
        out_shape=out_shape,
        grid_spec=grid_spec,
        compiler_params=pltpu.CompilerParams(
            dimension_semantics=("parallel",),
            vmem_limit_bytes=32 * 1024 * 1024),
    )(x.reshape(B, F, 1), lin_slab, conv_slab)


# ------------------------- output position un-shuffle -------------------------

def _build_perm(levels):
    """Map row-major spatial index q = h*2^L + w to the kernel lane index
    p = sum_k d_k * 4^(k-1), d_k = 2*h_bit + w_bit (layer 1 = MSB of h, w)."""
    side = 1 << levels
    h = np.arange(side)[:, None]
    w = np.arange(side)[None, :]
    p = np.zeros((side, side), np.int64)
    for k in range(1, levels + 1):
        di = (h >> (levels - k)) & 1
        dj = (w >> (levels - k)) & 1
        p += (2 * di + dj) * 4 ** (k - 1)
    return p.reshape(-1).astype(np.int32)


# ------------------------------ Decoder forward -------------------------------

def decoder_forward(lin_slab, conv_slab, x, *, feature_num, output_fc_pc_num):
    """x: (B, feature_num) f32.  Returns (cat([linear_pc, pc6], 2), pc4, pc5, pc6)."""
    B = x.shape[0]
    lin, pc4, pc5, pc6 = _decoder_pallas_call(x, lin_slab, conv_slab,
                                              feature_num, output_fc_pc_num)
    linear_pc = lin.reshape(B, 3, output_fc_pc_num)        # torch .view(-1, 3, n)

    # batch-independent static gathers (single XLA take per head, no transposes)
    conv_pc4 = jnp.take(pc4[:, :3, :], jnp.asarray(_build_perm(4)), axis=2)
    conv_pc5 = jnp.take(pc5[:, :3, :], jnp.asarray(_build_perm(5)), axis=2)
    conv_pc6 = jnp.take(pc6[:, :3, :], jnp.asarray(_build_perm(6)), axis=2)

    out = jnp.concatenate([linear_pc, conv_pc6], axis=2)   # (B, 3, 64 + 4096)
    return out, conv_pc4, conv_pc5, conv_pc6


# ----------------------------- parameter handling -----------------------------

def init_params(key, feature_num, output_fc_pc_num):
    """Random params in the real PyTorch layouts:
       Linear (out,in), ConvTranspose2d (cin,cout,2,2), Conv2d (out,in,1,1)."""
    f, n = feature_num, output_fc_pc_num

    def linear(k, fin, fout, uniform_bias=False):
        kw, kb = jax.random.split(k)
        w = jax.random.normal(kw, (fout, fin), jnp.float32) / float(np.sqrt(fin))
        b = (jax.random.uniform(kb, (fout,), jnp.float32, -1.0, 1.0) if uniform_bias
             else jax.random.normal(kb, (fout,), jnp.float32) * 0.01)
        return {"w": w, "b": b}

    def upconv(k, cin, cout):
        kw, kb = jax.random.split(k)
        w = jax.random.normal(kw, (cin, cout, 2, 2), jnp.float32) / float(np.sqrt(4.0 * cin))
        b = jax.random.normal(kb, (cout,), jnp.float32) * 0.01
        return {"w": w, "b": b}

    def conv1x1(k, cin, cout, uniform_bias=False):
        kw, kb = jax.random.split(k)
        w = jax.random.normal(kw, (cout, cin, 1, 1), jnp.float32) / float(np.sqrt(cin))
        b = (jax.random.uniform(kb, (cout,), jnp.float32, -1.0, 1.0) if uniform_bias
             else jax.random.normal(kb, (cout,), jnp.float32) * 0.01)
        return {"w": w, "b": b}

    ks = jax.random.split(key, 16)
    return {
        "linear1": linear(ks[0], f, 2 * n),
        "linear2": linear(ks[1], 2 * n, 3 * n),
        "linear3": linear(ks[2], 3 * n, 4 * n),
        "linear_out": linear(ks[3], 4 * n, 3 * n, uniform_bias=True),
        "deconv1": upconv(ks[4], f, f),
        "deconv2": upconv(ks[5], f, f // 2),
        "deconv3": upconv(ks[6], f // 2, f // 4),
        "deconv4": upconv(ks[7], f // 4, f // 8),
        "conv2pc4": {"conv1": conv1x1(ks[8], f // 8, f // 8),
                     "conv2": conv1x1(ks[9], f // 8, 3, uniform_bias=True)},
        "deconv5": upconv(ks[10], f // 8, f // 8),
        "conv2pc5": {"conv1": conv1x1(ks[11], f // 8, f // 8),
                     "conv2": conv1x1(ks[12], f // 8, 3, uniform_bias=True)},
        "deconv6": upconv(ks[13], f // 8, f // 8),
        "conv2pc6": {"conv1": conv1x1(ks[14], f // 8, f // 8),
                     "conv2": conv1x1(ks[15], f // 8, 3, uniform_bias=True)},
    }


def pack_params(params, feature_num, output_fc_pc_num):
    """Build the two kernel-ready VMEM slabs (done once, outside jit)."""
    lin_meta, dec_meta, head_meta, lin_shape, conv_shape = _layout(
        feature_num, output_fc_pc_num)

    lin_slab = np.zeros(lin_shape, np.float32)
    bl = lin_shape[1] - 1
    for (r0, o, i, _), nm in zip(lin_meta,
                                 ("linear1", "linear2", "linear3", "linear_out")):
        lin_slab[r0:r0 + o, :i] = np.asarray(params[nm]["w"])       # (out, in)
        lin_slab[r0:r0 + o, bl] = np.asarray(params[nm]["b"])

    conv_slab = np.zeros(conv_shape, np.float32)
    bc = conv_shape[1] - 1
    for (r0, cop, cip), nm in zip(dec_meta,
                                  ("deconv1", "deconv2", "deconv3",
                                   "deconv4", "deconv5", "deconv6")):
        w = np.asarray(params[nm]["w"])            # (cin, cout, 2, 2) PyTorch layout
        b = np.asarray(params[nm]["b"])
        ci, co = w.shape[0], w.shape[1]
        for d in range(4):
            di, dj = d // 2, d % 2
            conv_slab[r0 + d * cop:r0 + d * cop + co, :ci] = w[:, :, di, dj].T
            conv_slab[r0 + d * cop:r0 + d * cop + co, bc] = b
    for (r1, r2, _), nm in zip(head_meta, ("conv2pc4", "conv2pc5", "conv2pc6")):
        p = params[nm]
        w1 = np.asarray(p["conv1"]["w"])[:, :, 0, 0]
        w2 = np.asarray(p["conv2"]["w"])[:, :, 0, 0]
        c = w1.shape[0]
        conv_slab[r1:r1 + c, :c] = w1
        conv_slab[r1:r1 + c, bc] = np.asarray(p["conv1"]["b"])
        conv_slab[r2:r2 + 3, :c] = w2
        conv_slab[r2:r2 + 3, bc] = np.asarray(p["conv2"]["b"])

    return jnp.asarray(lin_slab), jnp.asarray(conv_slab)


# -------------------------- pure-JAX reference (check) ------------------------

def reference_forward(params, x, *, feature_num, output_fc_pc_num):
    B = x.shape[0]

    def linear(h, p, relu):
        y = h @ p["w"].T + p["b"]
        return jnp.maximum(y, 0.0) if relu else y

    h = linear(x, params["linear1"], True)
    h = linear(h, params["linear2"], True)
    h = linear(h, params["linear3"], True)
    h = linear(h, params["linear_out"], False)
    linear_pc = h.reshape(B, 3, output_fc_pc_num)

    def up_conv(c, p):
        # c NHWC; w (cin, cout, 2, 2) (ConvTranspose2d k=2, s=2)
        y = jnp.einsum("bhwi,iojk->bhjwko", c, p["w"])
        b_, H, _, W, _, co = y.shape
        y = y.reshape(b_, 2 * H, 2 * W, co) + p["b"]
        return jnp.maximum(y, 0.0)

    def conv_to_pc(c, p):
        w1 = p["conv1"]["w"][:, :, 0, 0]
        w2 = p["conv2"]["w"][:, :, 0, 0]
        hm = jnp.maximum(jnp.einsum("bhwi,oi->bhwo", c, w1) + p["conv1"]["b"], 0.0)
        return jnp.einsum("bhwi,oi->bhwo", hm, w2) + p["conv2"]["b"]

    c = x.reshape(B, 1, 1, feature_num)
    c = up_conv(c, params["deconv1"]); c = up_conv(c, params["deconv2"])
    c = up_conv(c, params["deconv3"]); c = up_conv(c, params["deconv4"])
    pc4 = conv_to_pc(c, params["conv2pc4"])
    c = up_conv(c, params["deconv5"]); pc5 = conv_to_pc(c, params["conv2pc5"])
    c = up_conv(c, params["deconv6"]); pc6 = conv_to_pc(c, params["conv2pc6"])

    conv_pc4 = pc4.transpose(0, 3, 1, 2).reshape(B, 3, 256)
    conv_pc5 = pc5.transpose(0, 3, 1, 2).reshape(B, 3, 1024)
    conv_pc6 = pc6.transpose(0, 3, 1, 2).reshape(B, 3, 4096)
    out = jnp.concatenate([linear_pc, conv_pc6], axis=2)
    return out, conv_pc4, conv_pc5, conv_pc6


# ----------------------------------- main -------------------------------------

if __name__ == "__main__":
    FEATURE_NUM = 32            # opt.feature_num (divisible by 8)
    OUTPUT_FC_PC_NUM = 64       # opt.output_fc_pc_num > 0
    OUTPUT_CONV_PC_NUM = 4096   # fixed by the 6 UpConv layers
    BATCH = 2

    key = jax.random.PRNGKey(0)
    k_param, k_in = jax.random.split(key)
    params = init_params(k_param, FEATURE_NUM, OUTPUT_FC_PC_NUM)
    x = jax.random.normal(k_in, (BATCH, FEATURE_NUM), jnp.float32)

    lin_slab, conv_slab = pack_params(params, FEATURE_NUM, OUTPUT_FC_PC_NUM)

    fwd = jax.jit(functools.partial(decoder_forward,
                                    feature_num=FEATURE_NUM,
                                    output_fc_pc_num=OUTPUT_FC_PC_NUM))
    out, pc4, pc5, pc6 = fwd(lin_slab, conv_slab, x)
    jax.block_until_ready(out)

    assert out.shape == (BATCH, 3, OUTPUT_FC_PC_NUM + OUTPUT_CONV_PC_NUM), out.shape
    assert pc4.shape == (BATCH, 3, 256) and pc5.shape == (BATCH, 3, 1024)
    assert pc6.shape == (BATCH, 3, 4096)
    assert bool(jnp.all(jnp.isfinite(out)))

    # numerical check against a pure-JAX reference (loose tolerance: MXU f32
    # emulation precision may differ slightly from XLA's dot lowering).
    ref = jax.jit(functools.partial(reference_forward,
                                    feature_num=FEATURE_NUM,
                                    output_fc_pc_num=OUTPUT_FC_PC_NUM))(params, x)
    for got, want, name in zip((out, pc4, pc5, pc6), ref,
                               ("out", "pc4", "pc5", "pc6")):
        err = float(jnp.max(jnp.abs(got - want)))
        assert err < 2e-2, f"{name}: max abs err {err}"

    print("KERNEL_OK")
</pallas_src>

<mosaic_0001>
module attributes {stable_mosaic.version = 11 : i64} {
  func.func private @main(%arg0: i32) attributes {dimension_semantics = [#tpu.dimension_semantics<core_parallel>], iteration_bounds = array<i64: 2>, tpu.core_type = #tpu.core_type<sc_scalar_subcore>, window_params = []} {
    return
  }
}

module attributes {stable_mosaic.version = 11 : i64} {
  func.func private @main(%arg0: i32) attributes {dimension_semantics = [#tpu.dimension_semantics<core_parallel>], iteration_bounds = array<i64: 2>, tpu.core_type = #tpu.core_type<sc_scalar_subcore>, window_params = []} {
    return
  }
}

module attributes {stable_mosaic.version = 11 : i64} {
  func.func @_decoder_kernel(%arg0: i32, %arg1: memref<1x32x1xf32, #tpu.memory_space<vmem>>, %arg2: memref<768x257xf32, #tpu.memory_space<vmem>>, %arg3: memref<368x33xf32, #tpu.memory_space<vmem>>, %arg4: memref<1x192x1xf32, #tpu.memory_space<vmem>>, %arg5: memref<1x8x256xf32, #tpu.memory_space<vmem>>, %arg6: memref<1x8x1024xf32, #tpu.memory_space<vmem>>, %arg7: memref<1x8x4096xf32, #tpu.memory_space<vmem>>) attributes {dimension_semantics = [#tpu.dimension_semantics<parallel>], iteration_bounds = array<i64: 2>, scalar_prefetch = 0 : i64, scratch_operands = 0 : i64, tpu.core_type = #tpu.core_type<tc>, window_params = [{transform_indices = @transform_0, window_bounds = array<i64: 1, 32, 1>}, {pipeline_mode = #tpu.pipeline_mode<synchronous>, transform_indices = @transform_1, window_bounds = array<i64: 768, 257>}, {pipeline_mode = #tpu.pipeline_mode<synchronous>, transform_indices = @transform_2, window_bounds = array<i64: 368, 33>}, {transform_indices = @transform_3, window_bounds = array<i64: 1, 192, 1>}, {transform_indices = @transform_4, window_bounds = array<i64: 1, 8, 256>}, {transform_indices = @transform_5, window_bounds = array<i64: 1, 8, 1024>}, {transform_indices = @transform_6, window_bounds = array<i64: 1, 8, 4096>}]} {
    %c0 = arith.constant 0 : index
    %c0_0 = arith.constant 0 : index
    %c0_1 = arith.constant 0 : index
    %0 = vector.load %arg1[%c0, %c0_0, %c0_1] : memref<1x32x1xf32, #tpu.memory_space<vmem>>, vector<1x32x1xf32>
    %1 = vector.shape_cast %0 : vector<1x32x1xf32> to vector<32x1xf32>
    %c0_2 = arith.constant 0 : index
    %c0_3 = arith.constant 0 : index
    %2 = vector.load %arg2[%c0_2, %c0_3] : memref<768x257xf32, #tpu.memory_space<vmem>>, vector<128x32xf32>
    %c0_4 = arith.constant 0 : index
    %c256 = arith.constant 256 : index
    %3 = vector.load %arg2[%c0_4, %c256] : memref<768x257xf32, #tpu.memory_space<vmem>>, vector<128x1xf32>
    %cst = arith.constant dense<0.000000e+00> : vector<128x1xf32>
    %4 = tpu.matmul %2, %1, %cst {dimension_numbers = #tpu.dot_dimension_numbers<[1], [0], [0], [1], [0, 0, 1, 1], [], []>} : vector<128x32xf32>, vector<32x1xf32>, vector<128x1xf32> -> vector<128x1xf32>
    %5 = arith.addf %4, %3 : vector<128x1xf32>
    %cst_5 = arith.constant 0.000000e+00 : f32
    %6 = vector.broadcast %cst_5 : f32 to vector<128x1xf32>
    %7 = arith.maximumf %5, %6 : vector<128x1xf32>
    %c128 = arith.constant 128 : index
    %c0_6 = arith.constant 0 : index
    %8 = vector.load %arg2[%c128, %c0_6] : memref<768x257xf32, #tpu.memory_space<vmem>>, vector<192x128xf32>
    %c128_7 = arith.constant 128 : index
    %c256_8 = arith.constant 256 : index
    %9 = vector.load %arg2[%c128_7, %c256_8] : memref<768x257xf32, #tpu.memory_space<vmem>>, vector<192x1xf32>
    %cst_9 = arith.constant dense<0.000000e+00> : vector<192x1xf32>
    %10 = tpu.matmul %8, %7, %cst_9 {dimension_numbers = #tpu.dot_dimension_numbers<[1], [0], [0], [1], [0, 0, 1, 1], [], []>} : vector<192x128xf32>, vector<128x1xf32>, vector<192x1xf32> -> vector<192x1xf32>
    %11 = arith.addf %10, %9 : vector<192x1xf32>
    %cst_10 = arith.constant 0.000000e+00 : f32
    %12 = vector.broadcast %cst_10 : f32 to vector<192x1xf32>
    %13 = arith.maximumf %11, %12 : vector<192x1xf32>
    %c320 = arith.constant 320 : index
    %c0_11 = arith.constant 0 : index
    %14 = vector.load %arg2[%c320, %c0_11] : memref<768x257xf32, #tpu.memory_space<vmem>>, vector<256x192xf32>
    %c320_12 = arith.constant 320 : index
    %c256_13 = arith.constant 256 : index
    %15 = vector.load %arg2[%c320_12, %c256_13] : memref<768x257xf32, #tpu.memory_space<vmem>>, vector<256x1xf32>
    %cst_14 = arith.constant dense<0.000000e+00> : vector<256x1xf32>
    %16 = tpu.matmul %14, %13, %cst_14 {dimension_numbers = #tpu.dot_dimension_numbers<[1], [0], [0], [1], [0, 0, 1, 1], [], []>} : vector<256x192xf32>, vector<192x1xf32>, vector<256x1xf32> -> vector<256x1xf32>
    %17 = arith.addf %16, %15 : vector<256x1xf32>
    %cst_15 = arith.constant 0.000000e+00 : f32
    %18 = vector.broadcast %cst_15 : f32 to vector<256x1xf32>
    %19 = arith.maximumf %17, %18 : vector<256x1xf32>
    %c576 = arith.constant 576 : index
    %c0_16 = arith.constant 0 : index
    %20 = vector.load %arg2[%c576, %c0_16] : memref<768x257xf32, #tpu.memory_space<vmem>>, vector<192x256xf32>
    %c576_17 = arith.constant 576 : index
    %c256_18 = arith.constant 256 : index
    %21 = vector.load %arg2[%c576_17, %c256_18] : memref<768x257xf32, #tpu.memory_space<vmem>>, vector<192x1xf32>
    %cst_19 = arith.constant dense<0.000000e+00> : vector<192x1xf32>
    %22 = tpu.matmul %20, %19, %cst_19 {dimension_numbers = #tpu.dot_dimension_numbers<[1], [0], [0], [1], [0, 0, 1, 1], [], []>} : vector<192x256xf32>, vector<256x1xf32>, vector<192x1xf32> -> vector<192x1xf32>
    %23 = arith.addf %22, %21 : vector<192x1xf32>
    %c0_20 = arith.constant 0 : index
    %c0_21 = arith.constant 0 : index
    %c0_22 = arith.constant 0 : index
    %24 = vector.load %arg4[%c0_20, %c0_21, %c0_22] : memref<1x192x1xf32, #tpu.memory_space<vmem>>, vector<1x192x1xf32>
    %25 = vector.shape_cast %24 : vector<1x192x1xf32> to vector<192x1xf32>
    %26 = vector.shape_cast %23 : vector<192x1xf32> to vector<1x192x1xf32>
    tpu.vector_store %arg4[%c0_20, %c0_21, %c0_22], %26 {strides = array<i32>} : memref<1x192x1xf32, #tpu.memory_space<vmem>>, vector<1x192x1xf32>,
    %c0_23 = arith.constant 0 : index
    %c0_24 = arith.constant 0 : index
    %27 = vector.load %arg3[%c0_23, %c0_24] : memref<368x33xf32, #tpu.memory_space<vmem>>, vector<128x32xf32>
    %c0_25 = arith.constant 0 : index
    %c32 = arith.constant 32 : index
    %28 = vector.load %arg3[%c0_25, %c32] : memref<368x33xf32, #tpu.memory_space<vmem>>, vector<128x1xf32>
    %cst_26 = arith.constant dense<0.000000e+00> : vector<128x1xf32>
    %29 = tpu.matmul %27, %1, %cst_26 {dimension_numbers = #tpu.dot_dimension_numbers<[1], [0], [0], [1], [0, 0, 1, 1], [], []>} : vector<128x32xf32>, vector<32x1xf32>, vector<128x1xf32> -> vector<128x1xf32>
    %30 = arith.addf %29, %28 : vector<128x1xf32>
    %cst_27 = arith.constant 0.000000e+00 : f32
    %31 = vector.broadcast %cst_27 : f32 to vector<128x1xf32>
    %32 = arith.maximumf %30, %31 : vector<128x1xf32>
    %33 = vector.extract_strided_slice %32 {offsets = [0, 0], sizes = [32, 1], strides = [1, 1]} : vector<128x1xf32> to vector<32x1xf32>
    %34 = vector.extract_strided_slice %32 {offsets = [32, 0], sizes = [32, 1], strides = [1, 1]} : vector<128x1xf32> to vector<32x1xf32>
    %35 = vector.extract_strided_slice %32 {offsets = [64, 0], sizes = [32, 1], strides = [1, 1]} : vector<128x1xf32> to vector<32x1xf32>
    %36 = vector.extract_strided_slice %32 {offsets = [96, 0], sizes = [32, 1], strides = [1, 1]} : vector<128x1xf32> to vector<32x1xf32>
    %37 = tpu.concatenate %33, %34, %35, %36 in 1 : vector<32x1xf32>, vector<32x1xf32>, vector<32x1xf32>, vector<32x1xf32> -> vector<32x4xf32>
    %c128_28 = arith.constant 128 : index
    %c0_29 = arith.constant 0 : index
    %38 = vector.load %arg3[%c128_28, %c0_29] : memref<368x33xf32, #tpu.memory_space<vmem>>, vector<64x32xf32>
    %c128_30 = arith.constant 128 : index
    %c32_31 = arith.constant 32 : index
    %39 = vector.load %arg3[%c128_30, %c32_31] : memref<368x33xf32, #tpu.memory_space<vmem>>, vector<64x1xf32>
    %cst_32 = arith.constant dense<0.000000e+00> : vector<64x4xf32>
    %40 = tpu.matmul %38, %37, %cst_32 {dimension_numbers = #tpu.dot_dimension_numbers<[1], [0], [0], [1], [0, 0, 1, 1], [], []>} : vector<64x32xf32>, vector<32x4xf32>, vector<64x4xf32> -> vector<64x4xf32>
    %41 = vector.broadcast %39 : vector<64x1xf32> to vector<64x4xf32>
    %42 = arith.addf %40, %41 : vector<64x4xf32>
    %cst_33 = arith.constant 0.000000e+00 : f32
    %43 = vector.broadcast %cst_33 : f32 to vector<64x4xf32>
    %44 = arith.maximumf %42, %43 : vector<64x4xf32>
    %45 = vector.extract_strided_slice %44 {offsets = [0, 0], sizes = [16, 4], strides = [1, 1]} : vector<64x4xf32> to vector<16x4xf32>
    %46 = vector.extract_strided_slice %44 {offsets = [16, 0], sizes = [16, 4], strides = [1, 1]} : vector<64x4xf32> to vector<16x4xf32>
    %47 = vector.extract_strided_slice %44 {offsets = [32, 0], sizes = [16, 4], strides = [1, 1]} : vector<64x4xf32> to vector<16x4xf32>
    %48 = vector.extract_strided_slice %44 {offsets = [48, 0], sizes = [16, 4], strides = [1, 1]} : vector<64x4xf32> to vector<16x4xf32>
    %49 = tpu.concatenate %45, %46, %47, %48 in 1 : vector<16x4xf32>, vector<16x4xf32>, vector<16x4xf32>, vector<16x4xf32> -> vector<16x16xf32>
    %c192 = arith.constant 192 : index
    %c0_34 = arith.constant 0 : index
    %50 = vector.load %arg3[%c192, %c0_34] : memref<368x33xf32, #tpu.memory_space<vmem>>, vector<32x16xf32>
    %c192_35 = arith.constant 192 : index
    %c32_36 = arith.constant 32 : index
    %51 = vector.load %arg3[%c192_35, %c32_36] : memref<368x33xf32, #tpu.memory_space<vmem>>, vector<32x1xf32>
    %cst_37 = arith.constant dense<0.000000e+00> : vector<32x16xf32>
    %52 = tpu.matmul %50, %49, %cst_37 {dimension_numbers = #tpu.dot_dimension_numbers<[1], [0], [0], [1], [0, 0, 1, 1], [], []>} : vector<32x16xf32>, vector<16x16xf32>, vector<32x16xf32> -> vector<32x16xf32>
    %53 = vector.broadcast %51 : vector<32x1xf32> to vector<32x16xf32>
    %54 = arith.addf %52, %53 : vector<32x16xf32>
    %cst_38 = arith.constant 0.000000e+00 : f32
    %55 = vector.broadcast %cst_38 : f32 to vector<32x16xf32>
    %56 = arith.maximumf %54, %55 : vector<32x16xf32>
    %57 = vector.extract_strided_slice %56 {offsets = [0, 0], sizes = [8, 16], strides = [1, 1]} : vector<32x16xf32> to vector<8x16xf32>
    %58 = vector.extract_strided_slice %56 {offsets = [8, 0], sizes = [8, 16], strides = [1, 1]} : vector<32x16xf32> to vector<8x16xf32>
    %59 = vector.extract_strided_slice %56 {offsets = [16, 0], sizes = [8, 16], strides = [1, 1]} : vector<32x16xf32> to vector<8x16xf32>
    %60 = vector.extract_strided_slice %56 {offsets = [24, 0], sizes = [8, 16], strides = [1, 1]} : vector<32x16xf32> to vector<8x16xf32>
    %61 = tpu.concatenate %57, %58, %59, %60 in 1 : vector<8x16xf32>, vector<8x16xf32>, vector<8x16xf32>, vector<8x16xf32> -> vector<8x64xf32>
    %c224 = arith.constant 224 : index
    %c0_39 = arith.constant 0 : index
    %62 = vector.load %arg3[%c224, %c0_39] : memref<368x33xf32, #tpu.memory_space<vmem>>, vector<32x8xf32>
    %c224_40 = arith.constant 224 : index
    %c32_41 = arith.constant 32 : index
    %63 = vector.load %arg3[%c224_40, %c32_41] : memref<368x33xf32, #tpu.memory_space<vmem>>, vector<32x1xf32>
    %cst_42 = arith.constant dense<0.000000e+00> : vector<32x64xf32>
    %64 = tpu.matmul %62, %61, %cst_42 {dimension_numbers = #tpu.dot_dimension_numbers<[1], [0], [0], [1], [0, 0, 1, 1], [], []>} : vector<32x8xf32>, vector<8x64xf32>, vector<32x64xf32> -> vector<32x64xf32>
    %65 = vector.broadcast %63 : vector<32x1xf32> to vector<32x64xf32>
    %66 = arith.addf %64, %65 : vector<32x64xf32>
    %cst_43 = arith.constant 0.000000e+00 : f32
    %67 = vector.broadcast %cst_43 : f32 to vector<32x64xf32>
    %68 = arith.maximumf %66, %67 : vector<32x64xf32>
    %69 = vector.extract_strided_slice %68 {offsets = [0, 0], sizes = [8, 64], strides = [1, 1]} : vector<32x64xf32> to vector<8x64xf32>
    %70 = vector.extract_strided_slice %68 {offsets = [8, 0], sizes = [8, 64], strides = [1, 1]} : vector<32x64xf32> to vector<8x64xf32>
    %71 = vector.extract_strided_slice %68 {offsets = [16, 0], sizes = [8, 64], strides = [1, 1]} : vector<32x64xf32> to vector<8x64xf32>
    %72 = vector.extract_strided_slice %68 {offsets = [24, 0], sizes = [8, 64], strides = [1, 1]} : vector<32x64xf32> to vector<8x64xf32>
    %73 = tpu.concatenate %69, %70, %71, %72 in 1 : vector<8x64xf32>, vector<8x64xf32>, vector<8x64xf32>, vector<8x64xf32> -> vector<8x256xf32>
    %c320_44 = arith.constant 320 : index
    %c0_45 = arith.constant 0 : index
    %74 = vector.load %arg3[%c320_44, %c0_45] : memref<368x33xf32, #tpu.memory_space<vmem>>, vector<8x8xf32>
    %c320_46 = arith.constant 320 : index
    %c32_47 = arith.constant 32 : index
    %75 = vector.load %arg3[%c320_46, %c32_47] : memref<368x33xf32, #tpu.memory_space<vmem>>, vector<8x1xf32>
    %c328 = arith.constant 328 : index
    %c0_48 = arith.constant 0 : index
    %76 = vector.load %arg3[%c328, %c0_48] : memref<368x33xf32, #tpu.memory_space<vmem>>, vector<8x8xf32>
    %c328_49 = arith.constant 328 : index
    %c32_50 = arith.constant 32 : index
    %77 = vector.load %arg3[%c328_49, %c32_50] : memref<368x33xf32, #tpu.memory_space<vmem>>, vector<8x1xf32>
    %cst_51 = arith.constant dense<0.000000e+00> : vector<8x256xf32>
    %78 = tpu.matmul %74, %73, %cst_51 {dimension_numbers = #tpu.dot_dimension_numbers<[1], [0], [0], [1], [0, 0, 1, 1], [], []>} : vector<8x8xf32>, vector<8x256xf32>, vector<8x256xf32> -> vector<8x256xf32>
    %79 = vector.broadcast %75 : vector<8x1xf32> to vector<8x256xf32>
    %80 = arith.addf %78, %79 : vector<8x256xf32>
    %cst_52 = arith.constant 0.000000e+00 : f32
    %81 = vector.broadcast %cst_52 : f32 to vector<8x256xf32>
    %82 = arith.maximumf %80, %81 : vector<8x256xf32>
    %cst_53 = arith.constant dense<0.000000e+00> : vector<8x256xf32>
    %83 = tpu.matmul %76, %82, %cst_53 {dimension_numbers = #tpu.dot_dimension_numbers<[1], [0], [0], [1], [0, 0, 1, 1], [], []>} : vector<8x8xf32>, vector<8x256xf32>, vector<8x256xf32> -> vector<8x256xf32>
    %84 = vector.broadcast %77 : vector<8x1xf32> to vector<8x256xf32>
    %85 = arith.addf %83, %84 : vector<8x256xf32>
    %c0_54 = arith.constant 0 : index
    %c0_55 = arith.constant 0 : index
    %c0_56 = arith.constant 0 : index
    %86 = vector.load %arg5[%c0_54, %c0_55, %c0_56] : memref<1x8x256xf32, #tpu.memory_space<vmem>>, vector<1x8x256xf32>
    %87 = vector.shape_cast %86 : vector<1x8x256xf32> to vector<8x256xf32>
    %88 = vector.shape_cast %85 : vector<8x256xf32> to vector<1x8x256xf32>
    tpu.vector_store %arg5[%c0_54, %c0_55, %c0_56], %88 {strides = array<i32>} : memref<1x8x256xf32, #tpu.memory_space<vmem>>, vector<1x8x256xf32>,
    %c256_57 = arith.constant 256 : index
    %c0_58 = arith.constant 0 : index
    %89 = vector.load %arg3[%c256_57, %c0_58] : memref<368x33xf32, #tpu.memory_space<vmem>>, vector<32x8xf32>
    %c256_59 = arith.constant 256 : index
    %c32_60 = arith.constant 32 : index
    %90 = vector.load %arg3[%c256_59, %c32_60] : memref<368x33xf32, #tpu.memory_space<vmem>>, vector<32x1xf32>
    %cst_61 = arith.constant dense<0.000000e+00> : vector<32x256xf32>
    %91 = tpu.matmul %89, %73, %cst_61 {dimension_numbers = #tpu.dot_dimension_numbers<[1], [0], [0], [1], [0, 0, 1, 1], [], []>} : vector<32x8xf32>, vector<8x256xf32>, vector<32x256xf32> -> vector<32x256xf32>
    %92 = vector.broadcast %90 : vector<32x1xf32> to vector<32x256xf32>
    %93 = arith.addf %91, %92 : vector<32x256xf32>
    %cst_62 = arith.constant 0.000000e+00 : f32
    %94 = vector.broadcast %cst_62 : f32 to vector<32x256xf32>
    %95 = arith.maximumf %93, %94 : vector<32x256xf32>
    %96 = vector.extract_strided_slice %95 {offsets = [0, 0], sizes = [8, 256], strides = [1, 1]} : vector<32x256xf32> to vector<8x256xf32>
    %97 = vector.extract_strided_slice %95 {offsets = [8, 0], sizes = [8, 256], strides = [1, 1]} : vector<32x256xf32> to vector<8x256xf32>
    %98 = vector.extract_strided_slice %95 {offsets = [16, 0], sizes = [8, 256], strides = [1, 1]} : vector<32x256xf32> to vector<8x256xf32>
    %99 = vector.extract_strided_slice %95 {offsets = [24, 0], sizes = [8, 256], strides = [1, 1]} : vector<32x256xf32> to vector<8x256xf32>
    %100 = tpu.concatenate %96, %97, %98, %99 in 1 : vector<8x256xf32>, vector<8x256xf32>, vector<8x256xf32>, vector<8x256xf32> -> vector<8x1024xf32>
    %c336 = arith.constant 336 : index
    %c0_63 = arith.constant 0 : index
    %101 = vector.load %arg3[%c336, %c0_63] : memref<368x33xf32, #tpu.memory_space<vmem>>, vector<8x8xf32>
    %c336_64 = arith.constant 336 : index
    %c32_65 = arith.constant 32 : index
    %102 = vector.load %arg3[%c336_64, %c32_65] : memref<368x33xf32, #tpu.memory_space<vmem>>, vector<8x1xf32>
    %c344 = arith.constant 344 : index
    %c0_66 = arith.constant 0 : index
    %103 = vector.load %arg3[%c344, %c0_66] : memref<368x33xf32, #tpu.memory_space<vmem>>, vector<8x8xf32>
    %c344_67 = arith.constant 344 : index
    %c32_68 = arith.constant 32 : index
    %104 = vector.load %arg3[%c344_67, %c32_68] : memref<368x33xf32, #tpu.memory_space<vmem>>, vector<8x1xf32>
    %cst_69 = arith.constant dense<0.000000e+00> : vector<8x1024xf32>
    %105 = tpu.matmul %101, %100, %cst_69 {dimension_numbers = #tpu.dot_dimension_numbers<[1], [0], [0], [1], [0, 0, 1, 1], [], []>} : vector<8x8xf32>, vector<8x1024xf32>, vector<8x1024xf32> -> vector<8x1024xf32>
    %106 = vector.broadcast %102 : vector<8x1xf32> to vector<8x1024xf32>
    %107 = arith.addf %105, %106 : vector<8x1024xf32>
    %cst_70 = arith.constant 0.000000e+00 : f32
    %108 = vector.broadcast %cst_70 : f32 to vector<8x1024xf32>
    %109 = arith.maximumf %107, %108 : vector<8x1024xf32>
    %cst_71 = arith.constant dense<0.000000e+00> : vector<8x1024xf32>
    %110 = tpu.matmul %103, %109, %cst_71 {dimension_numbers = #tpu.dot_dimension_numbers<[1], [0], [0], [1], [0, 0, 1, 1], [], []>} : vector<8x8xf32>, vector<8x1024xf32>, vector<8x1024xf32> -> vector<8x1024xf32>
    %111 = vector.broadcast %104 : vector<8x1xf32> to vector<8x1024xf32>
    %112 = arith.addf %110, %111 : vector<8x1024xf32>
    %c0_72 = arith.constant 0 : index
    %c0_73 = arith.constant 0 : index
    %c0_74 = arith.constant 0 : index
    %113 = vector.load %arg6[%c0_72, %c0_73, %c0_74] : memref<1x8x1024xf32, #tpu.memory_space<vmem>>, vector<1x8x1024xf32>
    %114 = vector.shape_cast %113 : vector<1x8x1024xf32> to vector<8x1024xf32>
    %115 = vector.shape_cast %112 : vector<8x1024xf32> to vector<1x8x1024xf32>
    tpu.vector_store %arg6[%c0_72, %c0_73, %c0_74], %115 {strides = array<i32>} : memref<1x8x1024xf32, #tpu.memory_space<vmem>>, vector<1x8x1024xf32>,
    %c288 = arith.constant 288 : index
    %c0_75 = arith.constant 0 : index
    %116 = vector.load %arg3[%c288, %c0_75] : memref<368x33xf32, #tpu.memory_space<vmem>>, vector<32x8xf32>
    %c288_76 = arith.constant 288 : index
    %c32_77 = arith.constant 32 : index
    %117 = vector.load %arg3[%c288_76, %c32_77] : memref<368x33xf32, #tpu.memory_space<vmem>>, vector<32x1xf32>
    %cst_78 = arith.constant dense<0.000000e+00> : vector<32x1024xf32>
    %118 = tpu.matmul %116, %100, %cst_78 {dimension_numbers = #tpu.dot_dimension_numbers<[1], [0], [0], [1], [0, 0, 1, 1], [], []>} : vector<32x8xf32>, vector<8x1024xf32>, vector<32x1024xf32> -> vector<32x1024xf32>
    %119 = vector.broadcast %117 : vector<32x1xf32> to vector<32x1024xf32>
    %120 = arith.addf %118, %119 : vector<32x1024xf32>
    %cst_79 = arith.constant 0.000000e+00 : f32
    %121 = vector.broadcast %cst_79 : f32 to vector<32x1024xf32>
    %122 = arith.maximumf %120, %121 : vector<32x1024xf32>
    %123 = vector.extract_strided_slice %122 {offsets = [0, 0], sizes = [8, 1024], strides = [1, 1]} : vector<32x1024xf32> to vector<8x1024xf32>
    %c352 = arith.constant 352 : index
    %c0_80 = arith.constant 0 : index
    %124 = vector.load %arg3[%c352, %c0_80] : memref<368x33xf32, #tpu.memory_space<vmem>>, vector<8x8xf32>
    %c352_81 = arith.constant 352 : index
    %c32_82 = arith.constant 32 : index
    %125 = vector.load %arg3[%c352_81, %c32_82] : memref<368x33xf32, #tpu.memory_space<vmem>>, vector<8x1xf32>
    %c360 = arith.constant 360 : index
    %c0_83 = arith.constant 0 : index
    %126 = vector.load %arg3[%c360, %c0_83] : memref<368x33xf32, #tpu.memory_space<vmem>>, vector<8x8xf32>
    %c360_84 = arith.constant 360 : index
    %c32_85 = arith.constant 32 : index
    %127 = vector.load %arg3[%c360_84, %c32_85] : memref<368x33xf32, #tpu.memory_space<vmem>>, vector<8x1xf32>
    %cst_86 = arith.constant dense<0.000000e+00> : vector<8x1024xf32>
    %128 = tpu.matmul %124, %123, %cst_86 {dimension_numbers = #tpu.dot_dimension_numbers<[1], [0], [0], [1], [0, 0, 1, 1], [], []>} : vector<8x8xf32>, vector<8x1024xf32>, vector<8x1024xf32> -> vector<8x1024xf32>
    %129 = vector.broadcast %125 : vector<8x1xf32> to vector<8x1024xf32>
    %130 = arith.addf %128, %129 : vector<8x1024xf32>
    %cst_87 = arith.constant 0.000000e+00 : f32
    %131 = vector.broadcast %cst_87 : f32 to vector<8x1024xf32>
    %132 = arith.maximumf %130, %131 : vector<8x1024xf32>
    %cst_88 = arith.constant dense<0.000000e+00> : vector<8x1024xf32>
    %133 = tpu.matmul %126, %132, %cst_88 {dimension_numbers = #tpu.dot_dimension_numbers<[1], [0], [0], [1], [0, 0, 1, 1], [], []>} : vector<8x8xf32>, vector<8x1024xf32>, vector<8x1024xf32> -> vector<8x1024xf32>
    %134 = vector.broadcast %127 : vector<8x1xf32> to vector<8x1024xf32>
    %135 = arith.addf %133, %134 : vector<8x1024xf32>
    %c0_89 = arith.constant 0 : index
    %c0_90 = arith.constant 0 : index
    %c0_91 = arith.constant 0 : index
    %136 = vector.load %arg7[%c0_89, %c0_90, %c0_91] : memref<1x8x4096xf32, #tpu.memory_space<vmem>>, vector<1x8x1024xf32>
    %137 = vector.shape_cast %136 : vector<1x8x1024xf32> to vector<8x1024xf32>
    %138 = vector.shape_cast %135 : vector<8x1024xf32> to vector<1x8x1024xf32>
    tpu.vector_store %arg7[%c0_89, %c0_90, %c0_91], %138 {strides = array<i32>} : memref<1x8x4096xf32, #tpu.memory_space<vmem>>, vector<1x8x1024xf32>,
    %139 = vector.extract_strided_slice %122 {offsets = [8, 0], sizes = [8, 1024], strides = [1, 1]} : vector<32x1024xf32> to vector<8x1024xf32>
    %c352_92 = arith.constant 352 : index
    %c0_93 = arith.constant 0 : index
    %140 = vector.load %arg3[%c352_92, %c0_93] : memref<368x33xf32, #tpu.memory_space<vmem>>, vector<8x8xf32>
    %c352_94 = arith.constant 352 : index
    %c32_95 = arith.constant 32 : index
    %141 = vector.load %arg3[%c352_94, %c32_95] : memref<368x33xf32, #tpu.memory_space<vmem>>, vector<8x1xf32>
    %c360_96 = arith.constant 360 : index
    %c0_97 = arith.constant 0 : index
    %142 = vector.load %arg3[%c360_96, %c0_97] : memref<368x33xf32, #tpu.memory_space<vmem>>, vector<8x8xf32>
    %c360_98 = arith.constant 360 : index
    %c32_99 = arith.constant 32 : index
    %143 = vector.load %arg3[%c360_98, %c32_99] : memref<368x33xf32, #tpu.memory_space<vmem>>, vector<8x1xf32>
    %cst_100 = arith.constant dense<0.000000e+00> : vector<8x1024xf32>
    %144 = tpu.matmul %140, %139, %cst_100 {dimension_numbers = #tpu.dot_dimension_numbers<[1], [0], [0], [1], [0, 0, 1, 1], [], []>} : vector<8x8xf32>, vector<8x1024xf32>, vector<8x1024xf32> -> vector<8x1024xf32>
    %145 = vector.broadcast %141 : vector<8x1xf32> to vector<8x1024xf32>
    %146 = arith.addf %144, %145 : vector<8x1024xf32>
    %cst_101 = arith.constant 0.000000e+00 : f32
    %147 = vector.broadcast %cst_101 : f32 to vector<8x1024xf32>
    %148 = arith.maximumf %146, %147 : vector<8x1024xf32>
    %cst_102 = arith.constant dense<0.000000e+00> : vector<8x1024xf32>
    %149 = tpu.matmul %142, %148, %cst_102 {dimension_numbers = #tpu.dot_dimension_numbers<[1], [0], [0], [1], [0, 0, 1, 1], [], []>} : vector<8x8xf32>, vector<8x1024xf32>, vector<8x1024xf32> -> vector<8x1024xf32>
    %150 = vector.broadcast %143 : vector<8x1xf32> to vector<8x1024xf32>
    %151 = arith.addf %149, %150 : vector<8x1024xf32>
    %c0_103 = arith.constant 0 : index
    %c0_104 = arith.constant 0 : index
    %c1024 = arith.constant 1024 : index
    %152 = vector.load %arg7[%c0_103, %c0_104, %c1024] : memref<1x8x4096xf32, #tpu.memory_space<vmem>>, vector<1x8x1024xf32>
    %153 = vector.shape_cast %152 : vector<1x8x1024xf32> to vector<8x1024xf32>
    %154 = vector.shape_cast %151 : vector<8x1024xf32> to vector<1x8x1024xf32>
    tpu.vector_store %arg7[%c0_103, %c0_104, %c1024], %154 {strides = array<i32>} : memref<1x8x4096xf32, #tpu.memory_space<vmem>>, vector<1x8x1024xf32>,
    %155 = vector.extract_strided_slice %122 {offsets = [16, 0], sizes = [8, 1024], strides = [1, 1]} : vector<32x1024xf32> to vector<8x1024xf32>
    %c352_105 = arith.constant 352 : index
    %c0_106 = arith.constant 0 : index
    %156 = vector.load %arg3[%c352_105, %c0_106] : memref<368x33xf32, #tpu.memory_space<vmem>>, vector<8x8xf32>
    %c352_107 = arith.constant 352 : index
    %c32_108 = arith.constant 32 : index
    %157 = vector.load %arg3[%c352_107, %c32_108] : memref<368x33xf32, #tpu.memory_space<vmem>>, vector<8x1xf32>
    %c360_109 = arith.constant 360 : index
    %c0_110 = arith.constant 0 : index
    %158 = vector.load %arg3[%c360_109, %c0_110] : memref<368x33xf32, #tpu.memory_space<vmem>>, vector<8x8xf32>
    %c360_111 = arith.constant 360 : index
    %c32_112 = arith.constant 32 : index
    %159 = vector.load %arg3[%c360_111, %c32_112] : memref<368x33xf32, #tpu.memory_space<vmem>>, vector<8x1xf32>
    %cst_113 = arith.constant dense<0.000000e+00> : vector<8x1024xf32>
    %160 = tpu.matmul %156, %155, %cst_113 {dimension_numbers = #tpu.dot_dimension_numbers<[1], [0], [0], [1], [0, 0, 1, 1], [], []>} : vector<8x8xf32>, vector<8x1024xf32>, vector<8x1024xf32> -> vector<8x1024xf32>
    %161 = vector.broadcast %157 : vector<8x1xf32> to vector<8x1024xf32>
    %162 = arith.addf %160, %161 : vector<8x1024xf32>
    %cst_114 = arith.constant 0.000000e+00 : f32
    %163 = vector.broadcast %cst_114 : f32 to vector<8x1024xf32>
    %164 = arith.maximumf %162, %163 : vector<8x1024xf32>
    %cst_115 = arith.constant dense<0.000000e+00> : vector<8x1024xf32>
    %165 = tpu.matmul %158, %164, %cst_115 {dimension_numbers = #tpu.dot_dimension_numbers<[1], [0], [0], [1], [0, 0, 1, 1], [], []>} : vector<8x8xf32>, vector<8x1024xf32>, vector<8x1024xf32> -> vector<8x1024xf32>
    %166 = vector.broadcast %159 : vector<8x1xf32> to vector<8x1024xf32>
    %167 = arith.addf %165, %166 : vector<8x1024xf32>
    %c0_116 = arith.constant 0 : index
    %c0_117 = arith.constant 0 : index
    %c2048 = arith.constant 2048 : index
    %168 = vector.load %arg7[%c0_116, %c0_117, %c2048] : memref<1x8x4096xf32, #tpu.memory_space<vmem>>, vector<1x8x1024xf32>
    %169 = vector.shape_cast %168 : vector<1x8x1024xf32> to vector<8x1024xf32>
    %170 = vector.shape_cast %167 : vector<8x1024xf32> to vector<1x8x1024xf32>
    tpu.vector_store %arg7[%c0_116, %c0_117, %c2048], %170 {strides = array<i32>} : memref<1x8x4096xf32, #tpu.memory_space<vmem>>, vector<1x8x1024xf32>,
    %171 = vector.extract_strided_slice %122 {offsets = [24, 0], sizes = [8, 1024], strides = [1, 1]} : vector<32x1024xf32> to vector<8x1024xf32>
    %c352_118 = arith.constant 352 : index
    %c0_119 = arith.constant 0 : index
    %172 = vector.load %arg3[%c352_118, %c0_119] : memref<368x33xf32, #tpu.memory_space<vmem>>, vector<8x8xf32>
    %c352_120 = arith.constant 352 : index
    %c32_121 = arith.constant 32 : index
    %173 = vector.load %arg3[%c352_120, %c32_121] : memref<368x33xf32, #tpu.memory_space<vmem>>, vector<8x1xf32>
    %c360_122 = arith.constant 360 : index
    %c0_123 = arith.constant 0 : index
    %174 = vector.load %arg3[%c360_122, %c0_123] : memref<368x33xf32, #tpu.memory_space<vmem>>, vector<8x8xf32>
    %c360_124 = arith.constant 360 : index
    %c32_125 = arith.constant 32 : index
    %175 = vector.load %arg3[%c360_124, %c32_125] : memref<368x33xf32, #tpu.memory_space<vmem>>, vector<8x1xf32>
    %cst_126 = arith.constant dense<0.000000e+00> : vector<8x1024xf32>
    %176 = tpu.matmul %172, %171, %cst_126 {dimension_numbers = #tpu.dot_dimension_numbers<[1], [0], [0], [1], [0, 0, 1, 1], [], []>} : vector<8x8xf32>, vector<8x1024xf32>, vector<8x1024xf32> -> vector<8x1024xf32>
    %177 = vector.broadcast %173 : vector<8x1xf32> to vector<8x1024xf32>
    %178 = arith.addf %176, %177 : vector<8x1024xf32>
    %cst_127 = arith.constant 0.000000e+00 : f32
    %179 = vector.broadcast %cst_127 : f32 to vector<8x1024xf32>
    %180 = arith.maximumf %178, %179 : vector<8x1024xf32>
    %cst_128 = arith.constant dense<0.000000e+00> : vector<8x1024xf32>
    %181 = tpu.matmul %174, %180, %cst_128 {dimension_numbers = #tpu.dot_dimension_numbers<[1], [0], [0], [1], [0, 0, 1, 1], [], []>} : vector<8x8xf32>, vector<8x1024xf32>, vector<8x1024xf32> -> vector<8x1024xf32>
    %182 = vector.broadcast %175 : vector<8x1xf32> to vector<8x1024xf32>
    %183 = arith.addf %181, %182 : vector<8x1024xf32>
    %c0_129 = arith.constant 0 : index
    %c0_130 = arith.constant 0 : index
    %c3072 = arith.constant 3072 : index
    %184 = vector.load %arg7[%c0_129, %c0_130, %c3072] : memref<1x8x4096xf32, #tpu.memory_space<vmem>>, vector<1x8x1024xf32>
    %185 = vector.shape_cast %184 : vector<1x8x1024xf32> to vector<8x1024xf32>
    %186 = vector.shape_cast %183 : vector<8x1024xf32> to vector<1x8x1024xf32>
    tpu.vector_store %arg7[%c0_129, %c0_130, %c3072], %186 {strides = array<i32>} : memref<1x8x4096xf32, #tpu.memory_space<vmem>>, vector<1x8x1024xf32>,
    return
  }
  func.func @transform_0(%arg0: i32) -> (i32, i32, i32) {
    %c0_i32 = arith.constant 0 : i32
    %c0_i32_0 = arith.constant 0 : i32
    %c0_i32_1 = arith.constant 0 : i32
    return %arg0, %c0_i32, %c0_i32_0 : i32, i32, i32
  }
  func.func @transform_1(%arg0: i32) -> (i32, i32) {
    %c0_i32 = arith.constant 0 : i32
    %c0_i32_0 = arith.constant 0 : i32
    %c0_i32_1 = arith.constant 0 : i32
    return %c0_i32, %c0_i32_0 : i32, i32
  }
  func.func @transform_2(%arg0: i32) -> (i32, i32) {
    %c0_i32 = arith.constant 0 : i32
    %c0_i32_0 = arith.constant 0 : i32
    %c0_i32_1 = arith.constant 0 : i32
    return %c0_i32, %c0_i32_0 : i32, i32
  }
  func.func @transform_3(%arg0: i32) -> (i32, i32, i32) {
    %c0_i32 = arith.constant 0 : i32
    %c0_i32_0 = arith.constant 0 : i32
    %c0_i32_1 = arith.constant 0 : i32
    return %arg0, %c0_i32, %c0_i32_0 : i32, i32, i32
  }
  func.func @transform_4(%arg0: i32) -> (i32, i32, i32) {
    %c0_i32 = arith.constant 0 : i32
    %c0_i32_0 = arith.constant 0 : i32
    %c0_i32_1 = arith.constant 0 : i32
    return %arg0, %c0_i32, %c0_i32_0 : i32, i32, i32
  }
  func.func @transform_5(%arg0: i32) -> (i32, i32, i32) {
    %c0_i32 = arith.constant 0 : i32
    %c0_i32_0 = arith.constant 0 : i32
    %c0_i32_1 = arith.constant 0 : i32
    return %arg0, %c0_i32, %c0_i32_0 : i32, i32, i32
  }
  func.func @transform_6(%arg0: i32) -> (i32, i32, i32) {
    %c0_i32 = arith.constant 0 : i32
    %c0_i32_0 = arith.constant 0 : i32
    %c0_i32_1 = arith.constant 0 : i32
    return %arg0, %c0_i32, %c0_i32_0 : i32, i32, i32
  }
}

</mosaic_0001>

<llo_original>
// kernel: decoder_forward.1
$region0: #{decoder_forward.1}
  #allocation0 [shape = 'u32[]', space=smem, size = 0x4, offset = 0x4, fixed_abs, tag = 'smem constant byte address 0x4 - core index']
  #allocation1 [shape = 'u32[144,128]{1,0:T(1,128)}', space=vmem, size = 0x12000, scoped, tag = 'internal scratch']
  %s0 = inlined_call_operand.vmem [shape: f32[2,32,1], index: 0, kind: input, shape index: {}]
  %s1 = inlined_call_operand.vmem [shape: f32[768,257], index: 1, kind: input, shape index: {}]
  %s2 = inlined_call_operand.vmem [shape: f32[368,33], index: 2, kind: input, shape index: {}]
  %s3 = inlined_call_operand.vmem [shape: f32[2,192,1], index: 3, kind: output, shape index: {0}]
  %s4 = inlined_call_operand.vmem [shape: f32[2,8,256], index: 4, kind: output, shape index: {1}]
  %s5 = inlined_call_operand.vmem [shape: f32[2,8,1024], index: 5, kind: output, shape index: {2}]
  %s6 = inlined_call_operand.vmem [shape: f32[2,8,4096], index: 6, kind: output, shape index: {3}]
  %7 = xla_tuple %s3, %s4, %s5, %s6
  %s8 = sld [smem:[#allocation0]]
  $region69: #{decoder_forward.1} parent=0
    _
  %s10 = ssub.s32 1, %s8
  %s11 = scalar_select 0, %s10, %s8
  loop: start=0, step=1, limit=4
  $region2: #{decoder_forward.1} parent=0 // loop_pre_header
    _
  $region3: #{decoder_forward.1} parent=0 // loop_header
    %s13 = sphi 0, %s17
    %p14 = scmp.ge.s32.totalorder %s13, 4
    %s23 = sphi 0, %s25
    %s26 = sphi 0, %s23
    %s27 = sphi 0, %s26
    %s43 = sphi 0, %s27
    %s47 = sphi 0, %s47
    %s49 = sphi 0, %s47
    %s50 = sphi 0, %s49
    %s64 = sphi 0, %s50
    %s68 = sphi 0, %s68
    %s70 = sphi 0, %s68
    %s71 = sphi 0, %s70
    %s85 = sphi 0, %s71
    %s91 = sphi 0, %s93
    %s94 = sphi 0, %s91
    %s95 = sphi 0, %s94
    %s111 = sphi 0, %s95
    %s117 = sphi 0, %s119
    %s120 = sphi 0, %s117
    %s121 = sphi 0, %s120
    %s137 = sphi 0, %s121
    %s143 = sphi 0, %s145
    %s146 = sphi 0, %s143
    %s147 = sphi 0, %s146
    %s163 = sphi 0, %s147
    %s169 = sphi 0, %s171
    %s172 = sphi 0, %s169
    %s173 = sphi 0, %s172
    %s189 = sphi 0, %s173
  $region4: #{decoder_forward.1} parent=0 // loop_header_branch
    %16 = sbr.rel (%p14) target = $region8
  $region5: #{decoder_forward.1} parent=0 // loop_body
    %s18 = ssub.s32 %s13, 1
    %s19 = ssub.s32 %s13, 2
    %s20 = sadd.s32 %s13, 1
    %s21 = ssub.s32 %s13, %s20
    %p22 = scmp.eq.s32.totalorder %s21, 0
    %s24 = sadd.s32 %s23, 1
    %s25 = scalar_select %p22, %s23, %s24
    %p28 = pneg %p22
    %p29 = scmp.eq.s32.totalorder %s13, 1
    %p30 = por %p28, %p29
    %p31 = scmp.ne.s32.totalorder %s23, %s26
    %p32 = scmp.eq.s32.totalorder %s13, 0
    %p33 = por %p31, %p32
    %p34 = scmp.ne.s32.totalorder %s23, %s26
    %p35 = scmp.eq.s32.totalorder %s18, 1
    %p36 = por %p34, %p35
    %p37 = scmp.ne.s32.totalorder %s26, %s27
    %p38 = scmp.eq.s32.totalorder %s18, 0
    %p39 = por %p37, %p38
    %p40 = scmp.ne.s32.totalorder %s26, %s27
    %p41 = scmp.eq.s32.totalorder %s19, 1
    %p42 = por %p40, %p41
    %p44 = scmp.ne.s32.totalorder %s27, %s43
    %p45 = scmp.eq.s32.totalorder %s19, 0
    %p46 = por %p44, %p45
    %s48 = sadd.s32 %s47, 1
    %p51 = scmp.eq.s32.totalorder %s13, 1
    %p52 = scmp.ne.s32.totalorder %s47, %s49
    %p53 = scmp.eq.s32.totalorder %s13, 0
    %p54 = por %p52, %p53
    %p55 = scmp.ne.s32.totalorder %s47, %s49
    %p56 = scmp.eq.s32.totalorder %s18, 1
    %p57 = por %p55, %p56
    %p58 = scmp.ne.s32.totalorder %s49, %s50
    %p59 = scmp.eq.s32.totalorder %s18, 0
    %p60 = por %p58, %p59
    %p61 = scmp.ne.s32.totalorder %s49, %s50
    %p62 = scmp.eq.s32.totalorder %s19, 1
    %p63 = por %p61, %p62
    %p65 = scmp.ne.s32.totalorder %s50, %s64
    %p66 = scmp.eq.s32.totalorder %s19, 0
    %p67 = por %p65, %p66
    %s69 = sadd.s32 %s68, 1
    %p72 = scmp.eq.s32.totalorder %s13, 1
    %p73 = scmp.ne.s32.totalorder %s68, %s70
    %p74 = scmp.eq.s32.totalorder %s13, 0
    %p75 = por %p73, %p74
    %p76 = scmp.ne.s32.totalorder %s68, %s70
    %p77 = scmp.eq.s32.totalorder %s18, 1
    %p78 = por %p76, %p77
    %p79 = scmp.ne.s32.totalorder %s70, %s71
    %p80 = scmp.eq.s32.totalorder %s18, 0
    %p81 = por %p79, %p80
    %p82 = scmp.ne.s32.totalorder %s70, %s71
    %p83 = scmp.eq.s32.totalorder %s19, 1
    %p84 = por %p82, %p83
    %p86 = scmp.ne.s32.totalorder %s71, %s85
    %p87 = scmp.eq.s32.totalorder %s19, 0
    %p88 = por %p86, %p87
    %s89 = ssub.s32 %s13, %s20
    %p90 = scmp.eq.s32.totalorder %s89, 0
    %s92 = sadd.s32 %s91, 1
    %s93 = scalar_select %p90, %s91, %s92
    %p96 = pneg %p90
    %p97 = scmp.eq.s32.totalorder %s13, 1
    %p98 = por %p96, %p97
    %p99 = scmp.ne.s32.totalorder %s91, %s94
    %p100 = scmp.eq.s32.totalorder %s13, 0
    %p101 = por %p99, %p100
    %p102 = scmp.ne.s32.totalorder %s91, %s94
    %p103 = scmp.eq.s32.totalorder %s18, 1
    %p104 = por %p102, %p103
    %p105 = scmp.ne.s32.totalorder %s94, %s95
    %p106 = scmp.eq.s32.totalorder %s18, 0
    %p107 = por %p105, %p106
    %p108 = scmp.ne.s32.totalorder %s94, %s95
    %p109 = scmp.eq.s32.totalorder %s19, 1
    %p110 = por %p108, %p109
    %p112 = scmp.ne.s32.totalorder %s95, %s111
    %p113 = scmp.eq.s32.totalorder %s19, 0
    %p114 = por %p112, %p113
    %s115 = ssub.s32 %s13, %s20
    %p116 = scmp.eq.s32.totalorder %s115, 0
    %s118 = sadd.s32 %s117, 1
    %s119 = scalar_select %p116, %s117, %s118
    %p122 = pneg %p116
    %p123 = scmp.eq.s32.totalorder %s13, 1
    %p124 = por %p122, %p123
    %p125 = scmp.ne.s32.totalorder %s117, %s120
    %p126 = scmp.eq.s32.totalorder %s13, 0
    %p127 = por %p125, %p126
    %p128 = scmp.ne.s32.totalorder %s117, %s120
    %p129 = scmp.eq.s32.totalorder %s18, 1
    %p130 = por %p128, %p129
    %p131 = scmp.ne.s32.totalorder %s120, %s121
    %p132 = scmp.eq.s32.totalorder %s18, 0
    %p133 = por %p131, %p132
    %p134 = scmp.ne.s32.totalorder %s120, %s121
    %p135 = scmp.eq.s32.totalorder %s19, 1
    %p136 = por %p134, %p135
    %p138 = scmp.ne.s32.totalorder %s121, %s137
    %p139 = scmp.eq.s32.totalorder %s19, 0
    %p140 = por %p138, %p139
    %s141 = ssub.s32 %s13, %s20
    %p142 = scmp.eq.s32.totalorder %s141, 0
    %s144 = sadd.s32 %s143, 1
    %s145 = scalar_select %p142, %s143, %s144
    %p148 = pneg %p142
    %p149 = scmp.eq.s32.totalorder %s13, 1
    %p150 = por %p148, %p149
    %p151 = scmp.ne.s32.totalorder %s143, %s146
    %p152 = scmp.eq.s32.totalorder %s13, 0
    %p153 = por %p151, %p152
    %p154 = scmp.ne.s32.totalorder %s143, %s146
    %p155 = scmp.eq.s32.totalorder %s18, 1
    %p156 = por %p154, %p155
    %p157 = scmp.ne.s32.totalorder %s146, %s147
    %p158 = scmp.eq.s32.totalorder %s18, 0
    %p159 = por %p157, %p158
    %p160 = scmp.ne.s32.totalorder %s146, %s147
    %p161 = scmp.eq.s32.totalorder %s19, 1
    %p162 = por %p160, %p161
    %p164 = scmp.ne.s32.totalorder %s147, %s163
    %p165 = scmp.eq.s32.totalorder %s19, 0
    %p166 = por %p164, %p165
    %s167 = ssub.s32 %s13, %s20
    %p168 = scmp.eq.s32.totalorder %s167, 0
    %s170 = sadd.s32 %s169, 1
    %s171 = scalar_select %p168, %s169, %s170
    %p174 = pneg %p168
    %p175 = scmp.eq.s32.totalorder %s13, 1
    %p176 = por %p174, %p175
    %p177 = scmp.ne.s32.totalorder %s169, %s172
    %p178 = scmp.eq.s32.totalorder %s13, 0
    %p179 = por %p177, %p178
    %p180 = scmp.ne.s32.totalorder %s169, %s172
    %p181 = scmp.eq.s32.totalorder %s18, 1
    %p182 = por %p180, %p181
    %p183 = scmp.ne.s32.totalorder %s172, %s173
    %p184 = scmp.eq.s32.totalorder %s18, 0
    %p185 = por %p183, %p184
    %p186 = scmp.ne.s32.totalorder %s172, %s173
    %p187 = scmp.eq.s32.totalorder %s19, 1
    %p188 = por %p186, %p187
    %p190 = scmp.ne.s32.totalorder %s173, %s189
    %p191 = scmp.eq.s32.totalorder %s19, 0
    %p192 = por %p190, %p191
    %p193 = scmp.le.s32.totalorder 1, %s13
    %p194 = scmp.lt.s32.totalorder %s13, 3
    %p195 = pnand %p193, %p194
    %p196 = pneg %p195
    // Predicated region
    $region9: #{decoder_forward.1} parent=5 // pred_check
      _
    $region10: #{decoder_forward.1} parent=5 // pred_check_branch
      %198 = sbr.rel (%p195) target = $region12
    $region11: #{decoder_forward.1} parent=5 // pred_region
      %s199 = ssub.s32 %s13, 1
      // Predicated region
      $region13: #{decoder_forward.1} parent=11 // pred_check
        %p200 = pneg %p60
      $region14: #{decoder_forward.1} parent=11 // pred_check_branch
        %202 = sbr.rel (%p200) target = $region16
      $region15: #{decoder_forward.1} parent=11 // pred_region
        _
      $region16: #{decoder_forward.1} parent=11 // pred_fallthru
        _
      // Predicated region
      $region17: #{decoder_forward.1} parent=11 // pred_check
        %p203 = pneg %p81
      $region18: #{decoder_forward.1} parent=11 // pred_check_branch
        %205 = sbr.rel (%p203) target = $region20
      $region19: #{decoder_forward.1} parent=11 // pred_region
        _
      $region20: #{decoder_forward.1} parent=11 // pred_fallthru
        _
    $region12: #{decoder_forward.1} parent=5 // pred_fallthru
      _
    %p206 = scmp.lt.s32.totalorder %s13, 2
    // Predicated region
    $region21: #{decoder_forward.1} parent=5 // pred_check
      %p207 = pneg %p206
    $region22: #{decoder_forward.1} parent=5 // pred_check_branch
      %209 = sbr.rel (%p207) target = $region24
    $region23: #{decoder_forward.1} parent=5 // pred_region
      // Predicated region
      $region25: #{decoder_forward.1} parent=23 // pred_check
        %p210 = pneg %p33
      $region26: #{decoder_forward.1} parent=23 // pred_check_branch
        %212 = sbr.rel (%p210) target = $region28
      $region27: #{decoder_forward.1} parent=23 // pred_region
        %p213 = scmp.lt.s32.totalorder %s13, 1
        %s214 = scalar_select %p213, %s13, 1
        %s215 = smul.addr %s214, 4
        %s216 = smul.addr %s215, 8
        %s217 = scalar_lea.vmem %s0, %s216
      $region28: #{decoder_forward.1} parent=23 // pred_fallthru
        _
    $region24: #{decoder_forward.1} parent=5 // pred_fallthru
      _
    %p218 = scmp.le.s32.totalorder 1, %s13
    %p219 = scmp.lt.s32.totalorder %s13, 3
    %p220 = pnand %p218, %p219
    %p221 = pneg %p220
    // Predicated region
    $region29: #{decoder_forward.1} parent=5 // pred_check
      _
    $region30: #{decoder_forward.1} parent=5 // pred_check_branch
      %223 = sbr.rel (%p220) target = $region32
    $region31: #{decoder_forward.1} parent=5 // pred_region
      %s224 = ssub.s32 %s13, 1
      %p225 = scmp.lt.s32.totalorder %s18, 1
      %s226 = scalar_select %p225, %s18, 1
      %s227 = smul.addr %s226, 4
      %s228 = smul.addr %s227, 8
      %s229 = scalar_lea.vmem %s0, %s228
      %p230 = pneg %p39
      %p231 = pneg %p36
      %p232 = pneg %p60
      %p233 = pneg %p57
      %p234 = pneg %p81
      %p235 = pneg %p78
      %p236 = pneg %p107
      %p237 = pneg %p104
      %p238 = scmp.lt.s32.totalorder %s18, 1
      %s239 = scalar_select %p238, %s18, 1
      %s240 = smul.addr %s239, 24
      %s241 = smul.addr %s240, 8
      %s242 = scalar_lea.vmem %s3, %s241
      %p243 = pneg %p133
      %p244 = pneg %p130
      %p245 = scmp.lt.s32.totalorder %s18, 1
      %s246 = scalar_select %p245, %s18, 1
      %s247 = smul.addr %s246, 2
      %s248 = smul.addr %s247, 8
      %s249 = scalar_lea.vmem %s4, %s248
      %p250 = pneg %p159
      %p251 = pneg %p156
      %p252 = scmp.lt.s32.totalorder %s18, 1
      %s253 = scalar_select %p252, %s18, 1
      %s254 = smul.addr %s253, 8
      %s255 = smul.addr %s254, 8
      %s256 = scalar_lea.vmem %s5, %s255
      %p257 = pneg %p185
      %p258 = pneg %p182
      %p259 = scmp.lt.s32.totalorder %s18, 1
      %s260 = scalar_select %p259, %s18, 1
      %s261 = smul.addr %s260, 32
      %s262 = smul.addr %s261, 8
      %s263 = scalar_lea.vmem %s6, %s262
      %p264 = scmp.lt.s32.totalorder %s18, 1
      %s265 = scalar_select %p264, %s18, 1
      %s266 = smul.addr %s265, 4
      %s267 = smul.addr %s266, 8
      %s268 = scalar_lea.vmem %s0, %s267
      %p269 = scmp.lt.s32.totalorder %s18, 1
      %s270 = scalar_select %p269, %s18, 1
      %s271 = smul.addr %s270, 24
      %s272 = smul.addr %s271, 8
      %s273 = scalar_lea.vmem %s3, %s272
      %p274 = scmp.lt.s32.totalorder %s18, 1
      %s275 = scalar_select %p274, %s18, 1
      %s276 = smul.addr %s275, 2
      %s277 = smul.addr %s276, 8
      %s278 = scalar_lea.vmem %s4, %s277
      %p279 = scmp.lt.s32.totalorder %s18, 1
      %s280 = scalar_select %p279, %s18, 1
      %s281 = smul.addr %s280, 8
      %s282 = smul.addr %s281, 8
      %s283 = scalar_lea.vmem %s5, %s282
      %p284 = scmp.lt.s32.totalorder %s18, 1
      %s285 = scalar_select %p284, %s18, 1
      %s286 = smul.addr %s285, 32
      %s287 = smul.addr %s286, 8
      %s288 = scalar_lea.vmem %s6, %s287
      %v289 = vld [vmem:[%s268] sm:$0xff]
      %v290 = vld [vmem:[%s268 + $0x8] sm:$0xff]
      %v291 = vld [vmem:[%s268 + $0x10] sm:$0xff]
      %v292 = vld [vmem:[%s268 + $0x18] sm:$0xff]
      %v293 = vld [vmem:[%s1] sm:$0xff]
      %v294 = vld [vmem:[%s1 + $0x18] sm:$0xff]
      %v295 = vld [vmem:[%s1 + $0x30] sm:$0xff]
      %v296 = vld [vmem:[%s1 + $0x48] sm:$0xff]
      %v297 = vld [vmem:[%s1 + $0x60] sm:$0xff]
      %v298 = vld [vmem:[%s1 + $0x78] sm:$0xff]
      %v299 = vld [vmem:[%s1 + $0x90] sm:$0xff]
      %v300 = vld [vmem:[%s1 + $0xa8] sm:$0xff]
      %v301 = vld [vmem:[%s1 + $0xc0] sm:$0xff]
      %v302 = vld [vmem:[%s1 + $0xd8] sm:$0xff]
      %v303 = vld [vmem:[%s1 + $0xf0] sm:$0xff]
      %v304 = vld [vmem:[%s1 + $0x108] sm:$0xff]
      %v305 = vld [vmem:[%s1 + $0x120] sm:$0xff]
      %v306 = vld [vmem:[%s1 + $0x138] sm:$0xff]
      %v307 = vld [vmem:[%s1 + $0x150] sm:$0xff]
      %v308 = vld [vmem:[%s1 + $0x168] sm:$0xff]
      %v309 = vld [vmem:[%s1 + $0x10] sm:$0xff]
      %v310 = vld [vmem:[%s1 + $0x28] sm:$0xff]
      %v311 = vld [vmem:[%s1 + $0x40] sm:$0xff]
      %v312 = vld [vmem:[%s1 + $0x58] sm:$0xff]
      %v313 = vld [vmem:[%s1 + $0x70] sm:$0xff]
      %v314 = vld [vmem:[%s1 + $0x88] sm:$0xff]
      %v315 = vld [vmem:[%s1 + $0xa0] sm:$0xff]
      %v316 = vld [vmem:[%s1 + $0xb8] sm:$0xff]
      %v317 = vld [vmem:[%s1 + $0xd0] sm:$0xff]
      %v318 = vld [vmem:[%s1 + $0xe8] sm:$0xff]
      %v319 = vld [vmem:[%s1 + $0x100] sm:$0xff]
      %v320 = vld [vmem:[%s1 + $0x118] sm:$0xff]
      %v321 = vld [vmem:[%s1 + $0x130] sm:$0xff]
      %v322 = vld [vmem:[%s1 + $0x148] sm:$0xff]
      %v323 = vld [vmem:[%s1 + $0x160] sm:$0xff]
      %v324 = vld [vmem:[%s1 + $0x178] sm:$0xff]
      %vm325 = vcmask 261120
      %v327 = vsel %vm325, %v293, 0
      %v330 = vsel %vm325, %v294, 0
      %v333 = vsel %vm325, %v295, 0
      %v336 = vsel %vm325, %v296, 0
      %v339 = vsel %vm325, %v297, 0
      %v342 = vsel %vm325, %v298, 0
      %v345 = vsel %vm325, %v299, 0
      %v348 = vsel %vm325, %v300, 0
      %v351 = vsel %vm325, %v301, 0
      %v354 = vsel %vm325, %v302, 0
      %v357 = vsel %vm325, %v303, 0
      %v360 = vsel %vm325, %v304, 0
      %v363 = vsel %vm325, %v305, 0
      %v366 = vsel %vm325, %v306, 0
      %v369 = vsel %vm325, %v307, 0
      %v372 = vsel %vm325, %v308, 0
      %374 = vmatprep.subr.mxu0 0.0
      %375 = vmatpush1.msra.mxu0 %v289
      %376 = vmatprep.subr.mxu0 0.0
      %377 = vmatpush1.msra.mxu0 %v290
      %378 = vmatprep.subr.mxu0 0.0
      %379 = vmatpush1.msra.mxu0 %v291
      %380 = vmatprep.subr.mxu0 0.0
      %381 = vmatpush1.msra.mxu0 %v292
      %382 = vmatprep.subr.mxu0 0.0
      %383 = vmatpush1.msra.mxu0 0.0
      %384 = vmatprep.subr.mxu0 0.0
      %385 = vmatpush1.msra.mxu0 0.0
      %386 = vmatprep.subr.mxu0 0.0
      %387 = vmatpush1.msra.mxu0 0.0
      %388 = vmatprep.subr.mxu0 0.0
      %389 = vmatpush1.msra.mxu0 0.0
      %390 = vmatprep.subr.mxu0 0.0
      %391 = vmatpush1.msra.mxu0 0.0
      %392 = vmatprep.subr.mxu0 0.0
      %393 = vmatpush1.msra.mxu0 0.0
      %394 = vmatprep.subr.mxu0 0.0
      %395 = vmatpush1.msra.mxu0 0.0
      %396 = vmatprep.subr.mxu0 0.0
      %397 = vmatpush1.msra.mxu0 0.0
      %398 = vmatprep.subr.mxu0 0.0
      %399 = vmatpush1.msra.mxu0 0.0
      %400 = vmatprep.subr.mxu0 0.0
      %401 = vmatpush1.msra.mxu0 0.0
      %402 = vmatprep.subr.mxu0 0.0
      %403 = vmatpush1.msra.mxu0 0.0
      %404 = vmatprep.subr.mxu0 0.0
      %405 = vmatpush1.msra.mxu0 0.0
      %406 = vmatprep.subr.mxu0 0.0
      %407 = vmatpush1.msra.mxu0 0.0
      %408 = vmatprep.subr.mxu0 0.0
      %409 = vmatpush1.msra.mxu0 0.0
      %410 = vmatprep.subr.mxu0 0.0
      %411 = vmatpush1.msra.mxu0 0.0
      %412 = vmatprep.subr.mxu0 0.0
      %413 = vmatpush1.msra.mxu0 0.0
      %414 = vmatprep.subr.mxu0 0.0
      %415 = vmatpush1.msra.mxu0 0.0
      %416 = vmatprep.subr.mxu0 0.0
      %417 = vmatpush1.msra.mxu0 0.0
      %418 = vmatprep.subr.mxu0 0.0
      %419 = vmatpush1.msra.mxu0 0.0
      %420 = vmatprep.subr.mxu0 0.0
      %421 = vmatpush1.msra.mxu0 0.0
      %422 = vmatprep.subr.mxu0 0.0
      %423 = vmatpush1.msra.mxu0 0.0
      %424 = vmatprep.subr.mxu0 0.0
      %425 = vmatpush1.msra.mxu0 0.0
      %426 = vmatprep.subr.mxu0 0.0
      %427 = vmatpush1.msra.mxu0 0.0
      %428 = vmatprep.subr.mxu0 0.0
      %429 = vmatpush1.msra.mxu0 0.0
      %430 = vmatprep.subr.mxu0 0.0
      %431 = vmatpush1.msra.mxu0 0.0
      %432 = vmatprep.subr.mxu0 0.0
      %433 = vmatpush1.msra.mxu0 0.0
      %434 = vmatprep.subr.mxu0 0.0
      %435 = vmatpush1.msra.mxu0 0.0
      %436 = vmatprep.subr.mxu0 0.0
      %437 = vmatpush1.msra.mxu0 0.0
      %438 = vmatprep.mubr.f32.mxu0 0.0
      %439 = vmatmul.mubr.f32.gmra.mrb[0].mxu0 %v327
      %v440 = vpop.f32.mrb[0].mxu0
      %v441 = vadd.f32 %v309, %v440
      %v442 = vpop.f32.mrb[0].mxu0
      %443 = vmatprep.mubr.f32.mxu0 0.0
      %444 = vmatmul.mubr.f32.gmra.mrb[0].mxu0 %v330
      %v445 = vpop.f32.mrb[0].mxu0
      %v446 = vadd.f32 %v310, %v445
      %v447 = vpop.f32.mrb[0].mxu0
      %448 = vmatprep.mubr.f32.mxu0 0.0
      %449 = vmatmul.mubr.f32.gmra.mrb[0].mxu0 %v333
      %v450 = vpop.f32.mrb[0].mxu0
      %v451 = vadd.f32 %v311, %v450
      %v452 = vpop.f32.mrb[0].mxu0
      %453 = vmatprep.mubr.f32.mxu0 0.0
      %454 = vmatmul.mubr.f32.gmra.mrb[0].mxu0 %v336
      %v455 = vpop.f32.mrb[0].mxu0
      %v456 = vadd.f32 %v312, %v455
      %v457 = vpop.f32.mrb[0].mxu0
      %458 = vmatprep.mubr.f32.mxu0 0.0
      %459 = vmatmul.mubr.f32.gmra.mrb[0].mxu0 %v339
      %v460 = vpop.f32.mrb[0].mxu0
      %v461 = vadd.f32 %v313, %v460
      %v462 = vpop.f32.mrb[0].mxu0
      %463 = vmatprep.mubr.f32.mxu0 0.0
      %464 = vmatmul.mubr.f32.gmra.mrb[0].mxu0 %v342
      %v465 = vpop.f32.mrb[0].mxu0
      %v466 = vadd.f32 %v314, %v465
      %v467 = vpop.f32.mrb[0].mxu0
      %468 = vmatprep.mubr.f32.mxu0 0.0
      %469 = vmatmul.mubr.f32.gmra.mrb[0].mxu0 %v345
      %v470 = vpop.f32.mrb[0].mxu0
      %v471 = vadd.f32 %v315, %v470
      %v472 = vpop.f32.mrb[0].mxu0
      %473 = vmatprep.mubr.f32.mxu0 0.0
      %474 = vmatmul.mubr.f32.gmra.mrb[0].mxu0 %v348
      %v475 = vpop.f32.mrb[0].mxu0
      %v476 = vadd.f32 %v316, %v475
      %v477 = vpop.f32.mrb[0].mxu0
      %478 = vmatprep.mubr.f32.mxu0 0.0
      %479 = vmatmul.mubr.f32.gmra.mrb[0].mxu0 %v351
      %v480 = vpop.f32.mrb[0].mxu0
      %v481 = vadd.f32 %v317, %v480
      %v482 = vpop.f32.mrb[0].mxu0
      %483 = vmatprep.mubr.f32.mxu0 0.0
      %484 = vmatmul.mubr.f32.gmra.mrb[0].mxu0 %v354
      %v485 = vpop.f32.mrb[0].mxu0
      %v486 = vadd.f32 %v318, %v485
      %v487 = vpop.f32.mrb[0].mxu0
      %488 = vmatprep.mubr.f32.mxu0 0.0
      %489 = vmatmul.mubr.f32.gmra.mrb[0].mxu0 %v357
      %v490 = vpop.f32.mrb[0].mxu0
      %v491 = vadd.f32 %v319, %v490
      %v492 = vpop.f32.mrb[0].mxu0
      %493 = vmatprep.mubr.f32.mxu0 0.0
      %494 = vmatmul.mubr.f32.gmra.mrb[0].mxu0 %v360
      %v495 = vpop.f32.mrb[0].mxu0
      %v496 = vadd.f32 %v320, %v495
      %v497 = vpop.f32.mrb[0].mxu0
      %498 = vmatprep.mubr.f32.mxu0 0.0
      %499 = vmatmul.mubr.f32.gmra.mrb[0].mxu0 %v363
      %v500 = vpop.f32.mrb[0].mxu0
      %v501 = vadd.f32 %v321, %v500
      %v502 = vpop.f32.mrb[0].mxu0
      %503 = vmatprep.mubr.f32.mxu0 0.0
      %504 = vmatmul.mubr.f32.gmra.mrb[0].mxu0 %v366
      %v505 = vpop.f32.mrb[0].mxu0
      %v506 = vadd.f32 %v322, %v505
      %v507 = vpop.f32.mrb[0].mxu0
      %508 = vmatprep.mubr.f32.mxu0 0.0
      %509 = vmatmul.mubr.f32.gmra.mrb[0].mxu0 %v369
      %v510 = vpop.f32.mrb[0].mxu0
      %v511 = vadd.f32 %v323, %v510
      %v512 = vpop.f32.mrb[0].mxu0
      %513 = vmatprep.mubr.f32.mxu0 0.0
      %514 = vmatmul.mubr.f32.gmra.mrb[0].mxu0 %v372
      %v515 = vpop.f32.mrb[0].mxu0
      %v516 = vadd.f32 %v324, %v515
      %v517 = vpop.f32.mrb[0].mxu0
      %518 = vdwg.mxu0
      %v519 = vmax.f32 %v441, 0.0
      %v520 = vmax.f32 %v446, 0.0
      %v521 = vmax.f32 %v451, 0.0
      %v522 = vmax.f32 %v456, 0.0
      %v523 = vmax.f32 %v461, 0.0
      %v524 = vmax.f32 %v466, 0.0
      %v525 = vmax.f32 %v471, 0.0
      %v526 = vmax.f32 %v476, 0.0
      %v527 = vmax.f32 %v481, 0.0
      %v528 = vmax.f32 %v486, 0.0
      %v529 = vmax.f32 %v491, 0.0
      %v530 = vmax.f32 %v496, 0.0
      %v531 = vmax.f32 %v501, 0.0
      %v532 = vmax.f32 %v506, 0.0
      %v533 = vmax.f32 %v511, 0.0
      %v534 = vmax.f32 %v516, 0.0
      %v535 = vld [vmem:[%s1 + $0x180] sm:$0xff]
      %v536 = vld [vmem:[%s1 + $0x198] sm:$0xff]
      %v537 = vld [vmem:[%s1 + $0x1b0] sm:$0xff]
      %v538 = vld [vmem:[%s1 + $0x1c8] sm:$0xff]
      %v539 = vld [vmem:[%s1 + $0x1e0] sm:$0xff]
      %v540 = vld [vmem:[%s1 + $0x1f8] sm:$0xff]
      %v541 = vld [vmem:[%s1 + $0x210] sm:$0xff]
      %v542 = vld [vmem:[%s1 + $0x228] sm:$0xff]
      %v543 = vld [vmem:[%s1 + $0x240] sm:$0xff]
      %v544 = vld [vmem:[%s1 + $0x258] sm:$0xff]
      %v545 = vld [vmem:[%s1 + $0x270] sm:$0xff]
      %v546 = vld [vmem:[%s1 + $0x288] sm:$0xff]
      %v547 = vld [vmem:[%s1 + $0x2a0] sm:$0xff]
      %v548 = vld [vmem:[%s1 + $0x2b8] sm:$0xff]
      %v549 = vld [vmem:[%s1 + $0x2d0] sm:$0xff]
      %v550 = vld [vmem:[%s1 + $0x2e8] sm:$0xff]
      %v551 = vld [vmem:[%s1 + $0x300] sm:$0xff]
      %v552 = vld [vmem:[%s1 + $0x318] sm:$0xff]
      %v553 = vld [vmem:[%s1 + $0x330] sm:$0xff]
      %v554 = vld [vmem:[%s1 + $0x348] sm:$0xff]
      %v555 = vld [vmem:[%s1 + $0x360] sm:$0xff]
      %v556 = vld [vmem:[%s1 + $0x378] sm:$0xff]
      %v557 = vld [vmem:[%s1 + $0x390] sm:$0xff]
      %v558 = vld [vmem:[%s1 + $0x3a8] sm:$0xff]
      %v559 = vld [vmem:[%s1 + $0x190] sm:$0xff]
      %v560 = vld [vmem:[%s1 + $0x1a8] sm:$0xff]
      %v561 = vld [vmem:[%s1 + $0x1c0] sm:$0xff]
      %v562 = vld [vmem:[%s1 + $0x1d8] sm:$0xff]
      %v563 = vld [vmem:[%s1 + $0x1f0] sm:$0xff]
      %v564 = vld [vmem:[%s1 + $0x208] sm:$0xff]
      %v565 = vld [vmem:[%s1 + $0x220] sm:$0xff]
      %v566 = vld [vmem:[%s1 + $0x238] sm:$0xff]
      %v567 = vld [vmem:[%s1 + $0x250] sm:$0xff]
      %v568 = vld [vmem:[%s1 + $0x268] sm:$0xff]
      %v569 = vld [vmem:[%s1 + $0x280] sm:$0xff]
      %v570 = vld [vmem:[%s1 + $0x298] sm:$0xff]
      %v571 = vld [vmem:[%s1 + $0x2b0] sm:$0xff]
      %v572 = vld [vmem:[%s1 + $0x2c8] sm:$0xff]
      %v573 = vld [vmem:[%s1 + $0x2e0] sm:$0xff]
      %v574 = vld [vmem:[%s1 + $0x2f8] sm:$0xff]
      %v575 = vld [vmem:[%s1 + $0x310] sm:$0xff]
      %v576 = vld [vmem:[%s1 + $0x328] sm:$0xff]
      %v577 = vld [vmem:[%s1 + $0x340] sm:$0xff]
      %v578 = vld [vmem:[%s1 + $0x358] sm:$0xff]
      %v579 = vld [vmem:[%s1 + $0x370] sm:$0xff]
      %v580 = vld [vmem:[%s1 + $0x388] sm:$0xff]
      %v581 = vld [vmem:[%s1 + $0x3a0] sm:$0xff]
      %v582 = vld [vmem:[%s1 + $0x3b8] sm:$0xff]
      %583 = vmatprep.subr.mxu0 0.0
      %584 = vmatpush1.msra.mxu0 %v519
      %585 = vmatprep.subr.mxu0 0.0
      %586 = vmatpush1.msra.mxu0 %v520
      %587 = vmatprep.subr.mxu0 0.0
      %588 = vmatpush1.msra.mxu0 %v521
      %589 = vmatprep.subr.mxu0 0.0
      %590 = vmatpush1.msra.mxu0 %v522
      %591 = vmatprep.subr.mxu0 0.0
      %592 = vmatpush1.msra.mxu0 %v523
      %593 = vmatprep.subr.mxu0 0.0
      %594 = vmatpush1.msra.mxu0 %v524
      %595 = vmatprep.subr.mxu0 0.0
      %596 = vmatpush1.msra.mxu0 %v525
      %597 = vmatprep.subr.mxu0 0.0
      %598 = vmatpush1.msra.mxu0 %v526
      %599 = vmatprep.subr.mxu0 0.0
      %600 = vmatpush1.msra.mxu0 %v527
      %601 = vmatprep.subr.mxu0 0.0
      %602 = vmatpush1.msra.mxu0 %v528
      %603 = vmatprep.subr.mxu0 0.0
      %604 = vmatpush1.msra.mxu0 %v529
      %605 = vmatprep.subr.mxu0 0.0
      %606 = vmatpush1.msra.mxu0 %v530
      %607 = vmatprep.subr.mxu0 0.0
      %608 = vmatpush1.msra.mxu0 %v531
      %609 = vmatprep.subr.mxu0 0.0
      %610 = vmatpush1.msra.mxu0 %v532
      %611 = vmatprep.subr.mxu0 0.0
      %612 = vmatpush1.msra.mxu0 %v533
      %613 = vmatprep.subr.mxu0 0.0
      %614 = vmatpush1.msra.mxu0 %v534
      %615 = vmatprep.subr.mxu0 0.0
      %616 = vmatpush1.msra.mxu0 0.0
      %617 = vmatprep.subr.mxu0 0.0
      %618 = vmatpush1.msra.mxu0 0.0
      %619 = vmatprep.subr.mxu0 0.0
      %620 = vmatpush1.msra.mxu0 0.0
      %621 = vmatprep.subr.mxu0 0.0
      %622 = vmatpush1.msra.mxu0 0.0
      %623 = vmatprep.subr.mxu0 0.0
      %624 = vmatpush1.msra.mxu0 0.0
      %625 = vmatprep.subr.mxu0 0.0
      %626 = vmatpush1.msra.mxu0 0.0
      %627 = vmatprep.subr.mxu0 0.0
      %628 = vmatpush1.msra.mxu0 0.0
      %629 = vmatprep.subr.mxu0 0.0
      %630 = vmatpush1.msra.mxu0 0.0
      %631 = vmatprep.subr.mxu0 0.0
      %632 = vmatpush1.msra.mxu0 0.0
      %633 = vmatprep.subr.mxu0 0.0
      %634 = vmatpush1.msra.mxu0 0.0
      %635 = vmatprep.subr.mxu0 0.0
      %636 = vmatpush1.msra.mxu0 0.0
      %637 = vmatprep.subr.mxu0 0.0
      %638 = vmatpush1.msra.mxu0 0.0
      %639 = vmatprep.subr.mxu0 0.0
      %640 = vmatpush1.msra.mxu0 0.0
      %641 = vmatprep.subr.mxu0 0.0
      %642 = vmatpush1.msra.mxu0 0.0
      %643 = vmatprep.subr.mxu0 0.0
      %644 = vmatpush1.msra.mxu0 0.0
      %645 = vmatprep.subr.mxu0 0.0
      %646 = vmatpush1.msra.mxu0 0.0
      %647 = vmatprep.mubr.f32.mxu0 0.0
      %648 = vmatmul.mubr.f32.gmra.mrb[0].mxu0 %v535
      %v649 = vpop.f32.mrb[0].mxu0
      %v650 = vadd.f32 %v559, %v649
      %v651 = vpop.f32.mrb[0].mxu0
      %652 = vmatprep.mubr.f32.mxu0 0.0
      %653 = vmatmul.mubr.f32.gmra.mrb[0].mxu0 %v536
      %v654 = vpop.f32.mrb[0].mxu0
      %v655 = vadd.f32 %v560, %v654
      %v656 = vpop.f32.mrb[0].mxu0
      %657 = vmatprep.mubr.f32.mxu0 0.0
      %658 = vmatmul.mubr.f32.gmra.mrb[0].mxu0 %v537
      %v659 = vpop.f32.mrb[0].mxu0
      %v660 = vadd.f32 %v561, %v659
      %v661 = vpop.f32.mrb[0].mxu0
      %662 = vmatprep.mubr.f32.mxu0 0.0
      %663 = vmatmul.mubr.f32.gmra.mrb[0].mxu0 %v538
      %v664 = vpop.f32.mrb[0].mxu0
      %v665 = vadd.f32 %v562, %v664
      %v666 = vpop.f32.mrb[0].mxu0
      %667 = vmatprep.mubr.f32.mxu0 0.0
      %668 = vmatmul.mubr.f32.gmra.mrb[0].mxu0 %v539
      %v669 = vpop.f32.mrb[0].mxu0
      %v670 = vadd.f32 %v563, %v669
      %v671 = vpop.f32.mrb[0].mxu0
      %672 = vmatprep.mubr.f32.mxu0 0.0
      %673 = vmatmul.mubr.f32.gmra.mrb[0].mxu0 %v540
      %v674 = vpop.f32.mrb[0].mxu0
      %v675 = vadd.f32 %v564, %v674
      %v676 = vpop.f32.mrb[0].mxu0
      %677 = vmatprep.mubr.f32.mxu0 0.0
      %678 = vmatmul.mubr.f32.gmra.mrb[0].mxu0 %v541
      %v679 = vpop.f32.mrb[0].mxu0
      %v680 = vadd.f32 %v565, %v679
      %v681 = vpop.f32.mrb[0].mxu0
      %682 = vmatprep.mubr.f32.mxu0 0.0
      %683 = vmatmul.mubr.f32.gmra.mrb[0].mxu0 %v542
      %v684 = vpop.f32.mrb[0].mxu0
      %v685 = vadd.f32 %v566, %v684
      %v686 = vpop.f32.mrb[0].mxu0
      %687 = vmatprep.mubr.f32.mxu0 0.0
      %688 = vmatmul.mubr.f32.gmra.mrb[0].mxu0 %v543
      %v689 = vpop.f32.mrb[0].mxu0
      %v690 = vadd.f32 %v567, %v689
      %v691 = vpop.f32.mrb[0].mxu0
      %692 = vmatprep.mubr.f32.mxu0 0.0
      %693 = vmatmul.mubr.f32.gmra.mrb[0].mxu0 %v544
      %v694 = vpop.f32.mrb[0].mxu0
      %v695 = vadd.f32 %v568, %v694
      %v696 = vpop.f32.mrb[0].mxu0
      %697 = vmatprep.mubr.f32.mxu0 0.0
      %698 = vmatmul.mubr.f32.gmra.mrb[0].mxu0 %v545
      %v699 = vpop.f32.mrb[0].mxu0
      %v700 = vadd.f32 %v569, %v699
      %v701 = vpop.f32.mrb[0].mxu0
      %702 = vmatprep.mubr.f32.mxu0 0.0
      %703 = vmatmul.mubr.f32.gmra.mrb[0].mxu0 %v546
      %v704 = vpop.f32.mrb[0].mxu0
      %v705 = vadd.f32 %v570, %v704
      %v706 = vpop.f32.mrb[0].mxu0
      %707 = vmatprep.mubr.f32.mxu0 0.0
      %708 = vmatmul.mubr.f32.gmra.mrb[0].mxu0 %v547
      %v709 = vpop.f32.mrb[0].mxu0
      %v710 = vadd.f32 %v571, %v709
      %v711 = vpop.f32.mrb[0].mxu0
      %712 = vmatprep.mubr.f32.mxu0 0.0
      %713 = vmatmul.mubr.f32.gmra.mrb[0].mxu0 %v548
      %v714 = vpop.f32.mrb[0].mxu0
      %v715 = vadd.f32 %v572, %v714
      %v716 = vpop.f32.mrb[0].mxu0
      %717 = vmatprep.mubr.f32.mxu0 0.0
      %718 = vmatmul.mubr.f32.gmra.mrb[0].mxu0 %v549
      %v719 = vpop.f32.mrb[0].mxu0
      %v720 = vadd.f32 %v573, %v719
      %v721 = vpop.f32.mrb[0].mxu0
      %722 = vmatprep.mubr.f32.mxu0 0.0
      %723 = vmatmul.mubr.f32.gmra.mrb[0].mxu0 %v550
      %v724 = vpop.f32.mrb[0].mxu0
      %v725 = vadd.f32 %v574, %v724
      %v726 = vpop.f32.mrb[0].mxu0
      %727 = vmatprep.mubr.f32.mxu0 0.0
      %728 = vmatmul.mubr.f32.gmra.mrb[0].mxu0 %v551
      %v729 = vpop.f32.mrb[0].mxu0
      %v730 = vadd.f32 %v575, %v729
      %v731 = vpop.f32.mrb[0].mxu0
      %732 = vmatprep.mubr.f32.mxu0 0.0
      %733 = vmatmul.mubr.f32.gmra.mrb[0].mxu0 %v552
      %v734 = vpop.f32.mrb[0].mxu0
      %v735 = vadd.f32 %v576, %v734
      %v736 = vpop.f32.mrb[0].mxu0
      %737 = vmatprep.mubr.f32.mxu0 0.0
      %738 = vmatmul.mubr.f32.gmra.mrb[0].mxu0 %v553
      %v739 = vpop.f32.mrb[0].mxu0
      %v740 = vadd.f32 %v577, %v739
      %v741 = vpop.f32.mrb[0].mxu0
      %742 = vmatprep.mubr.f32.mxu0 0.0
      %743 = vmatmul.mubr.f32.gmra.mrb[0].mxu0 %v554
      %v744 = vpop.f32.mrb[0].mxu0
      %v745 = vadd.f32 %v578, %v744
      %v746 = vpop.f32.mrb[0].mxu0
      %747 = vmatprep.mubr.f32.mxu0 0.0
      %748 = vmatmul.mubr.f32.gmra.mrb[0].mxu0 %v555
      %v749 = vpop.f32.mrb[0].mxu0
      %v750 = vadd.f32 %v579, %v749
      %v751 = vpop.f32.mrb[0].mxu0
      %752 = vmatprep.mubr.f32.mxu0 0.0
      %753 = vmatmul.mubr.f32.gmra.mrb[0].mxu0 %v556
      %v754 = vpop.f32.mrb[0].mxu0
      %v755 = vadd.f32 %v580, %v754
      %v756 = vpop.f32.mrb[0].mxu0
      %757 = vmatprep.mubr.f32.mxu0 0.0
      %758 = vmatmul.mubr.f32.gmra.mrb[0].mxu0 %v557
      %v759 = vpop.f32.mrb[0].mxu0
      %v760 = vadd.f32 %v581, %v759
      %v761 = vpop.f32.mrb[0].mxu0
      %762 = vmatprep.mubr.f32.mxu0 0.0
      %763 = vmatmul.mubr.f32.gmra.mrb[0].mxu0 %v558
      %v764 = vpop.f32.mrb[0].mxu0
      %v765 = vadd.f32 %v582, %v764
      %v766 = vpop.f32.mrb[0].mxu0
      %767 = vdwg.mxu0
      %v768 = vmax.f32 %v650, 0.0
      %v769 = vmax.f32 %v655, 0.0
      %v770 = vmax.f32 %v660, 0.0
      %v771 = vmax.f32 %v665, 0.0
      %v772 = vmax.f32 %v670, 0.0
      %v773 = vmax.f32 %v675, 0.0
      %v774 = vmax.f32 %v680, 0.0
      %v775 = vmax.f32 %v685, 0.0
      %v776 = vmax.f32 %v690, 0.0
      %v777 = vmax.f32 %v695, 0.0
      %v778 = vmax.f32 %v700, 0.0
      %v779 = vmax.f32 %v705, 0.0
      %v780 = vmax.f32 %v710, 0.0
      %v781 = vmax.f32 %v715, 0.0
      %v782 = vmax.f32 %v720, 0.0
      %v783 = vmax.f32 %v725, 0.0
      %v784 = vmax.f32 %v730, 0.0
      %v785 = vmax.f32 %v735, 0.0
      %v786 = vmax.f32 %v740, 0.0
      %v787 = vmax.f32 %v745, 0.0
      %v788 = vmax.f32 %v750, 0.0
      %v789 = vmax.f32 %v755, 0.0
      %v790 = vmax.f32 %v760, 0.0
      %v791 = vmax.f32 %v765, 0.0
      %v792 = vld [vmem:[%s1 + $0x3c0] sm:$0xff]
      %v793 = vld [vmem:[%s1 + $0x3c8] sm:$0xff]
      %v794 = vld [vmem:[%s1 + $0x3d8] sm:$0xff]
      %v795 = vld [vmem:[%s1 + $0x3e0] sm:$0xff]
      %v796 = vld [vmem:[%s1 + $0x3f0] sm:$0xff]
      %v797 = vld [vmem:[%s1 + $0x3f8] sm:$0xff]
      %v798 = vld [vmem:[%s1 + $0x408] sm:$0xff]
      %v799 = vld [vmem:[%s1 + $0x410] sm:$0xff]
      %v800 = vld [vmem:[%s1 + $0x420] sm:$0xff]
      %v801 = vld [vmem:[%s1 + $0x428] sm:$0xff]
      %v802 = vld [vmem:[%s1 + $0x438] sm:$0xff]
      %v803 = vld [vmem:[%s1 + $0x440] sm:$0xff]
      %v804 = vld [vmem:[%s1 + $0x450] sm:$0xff]
      %v805 = vld [vmem:[%s1 + $0x458] sm:$0xff]
      %v806 = vld [vmem:[%s1 + $0x468] sm:$0xff]
      %v807 = vld [vmem:[%s1 + $0x470] sm:$0xff]
      %v808 = vld [vmem:[%s1 + $0x480] sm:$0xff]
      %v809 = vld [vmem:[%s1 + $0x488] sm:$0xff]
      %v810 = vld [vmem:[%s1 + $0x498] sm:$0xff]
      %v811 = vld [vmem:[%s1 + $0x4a0] sm:$0xff]
      %v812 = vld [vmem:[%s1 + $0x4b0] sm:$0xff]
      %v813 = vld [vmem:[%s1 + $0x4b8] sm:$0xff]
      %v814 = vld [vmem:[%s1 + $0x4c8] sm:$0xff]
      %v815 = vld [vmem:[%s1 + $0x4d0] sm:$0xff]
      %v816 = vld [vmem:[%s1 + $0x4e0] sm:$0xff]
      %v817 = vld [vmem:[%s1 + $0x4e8] sm:$0xff]
      %v818 = vld [vmem:[%s1 + $0x4f8] sm:$0xff]
      %v819 = vld [vmem:[%s1 + $0x500] sm:$0xff]
      %v820 = vld [vmem:[%s1 + $0x510] sm:$0xff]
      %v821 = vld [vmem:[%s1 + $0x518] sm:$0xff]
      %v822 = vld [vmem:[%s1 + $0x528] sm:$0xff]
      %v823 = vld [vmem:[%s1 + $0x530] sm:$0xff]
      %v824 = vld [vmem:[%s1 + $0x540] sm:$0xff]
      %v825 = vld [vmem:[%s1 + $0x548] sm:$0xff]
      %v826 = vld [vmem:[%s1 + $0x558] sm:$0xff]
      %v827 = vld [vmem:[%s1 + $0x560] sm:$0xff]
      %v828 = vld [vmem:[%s1 + $0x570] sm:$0xff]
      %v829 = vld [vmem:[%s1 + $0x578] sm:$0xff]
      %v830 = vld [vmem:[%s1 + $0x588] sm:$0xff]
      %v831 = vld [vmem:[%s1 + $0x590] sm:$0xff]
      %v832 = vld [vmem:[%s1 + $0x5a0] sm:$0xff]
      %v833 = vld [vmem:[%s1 + $0x5a8] sm:$0xff]
      %v834 = vld [vmem:[%s1 + $0x5b8] sm:$0xff]
      %v835 = vld [vmem:[%s1 + $0x5c0] sm:$0xff]
      %v836 = vld [vmem:[%s1 + $0x5d0] sm:$0xff]
      %v837 = vld [vmem:[%s1 + $0x5d8] sm:$0xff]
      %v838 = vld [vmem:[%s1 + $0x5e8] sm:$0xff]
      %v839 = vld [vmem:[%s1 + $0x5f0] sm:$0xff]
      %v840 = vld [vmem:[%s1 + $0x600] sm:$0xff]
      %v841 = vld [vmem:[%s1 + $0x608] sm:$0xff]
      %v842 = vld [vmem:[%s1 + $0x618] sm:$0xff]
      %v843 = vld [vmem:[%s1 + $0x620] sm:$0xff]
      %v844 = vld [vmem:[%s1 + $0x630] sm:$0xff]
      %v845 = vld [vmem:[%s1 + $0x638] sm:$0xff]
      %v846 = vld [vmem:[%s1 + $0x648] sm:$0xff]
      %v847 = vld [vmem:[%s1 + $0x650] sm:$0xff]
      %v848 = vld [vmem:[%s1 + $0x660] sm:$0xff]
      %v849 = vld [vmem:[%s1 + $0x668] sm:$0xff]
      %v850 = vld [vmem:[%s1 + $0x678] sm:$0xff]
      %v851 = vld [vmem:[%s1 + $0x680] sm:$0xff]
      %v852 = vld [vmem:[%s1 + $0x690] sm:$0xff]
      %v853 = vld [vmem:[%s1 + $0x698] sm:$0xff]
      %v854 = vld [vmem:[%s1 + $0x6a8] sm:$0xff]
      %v855 = vld [vmem:[%s1 + $0x6b0] sm:$0xff]
      %v856 = vld [vmem:[%s1 + $0x3d0] sm:$0xff]
      %v857 = vld [vmem:[%s1 + $0x3e8] sm:$0xff]
      %v858 = vld [vmem:[%s1 + $0x400] sm:$0xff]
      %v859 = vld [vmem:[%s1 + $0x418] sm:$0xff]
      %v860 = vld [vmem:[%s1 + $0x430] sm:$0xff]
      %v861 = vld [vmem:[%s1 + $0x448] sm:$0xff]
      %v862 = vld [vmem:[%s1 + $0x460] sm:$0xff]
      %v863 = vld [vmem:[%s1 + $0x478] sm:$0xff]
      %v864 = vld [vmem:[%s1 + $0x490] sm:$0xff]
      %v865 = vld [vmem:[%s1 + $0x4a8] sm:$0xff]
      %v866 = vld [vmem:[%s1 + $0x4c0] sm:$0xff]
      %v867 = vld [vmem:[%s1 + $0x4d8] sm:$0xff]
      %v868 = vld [vmem:[%s1 + $0x4f0] sm:$0xff]
      %v869 = vld [vmem:[%s1 + $0x508] sm:$0xff]
      %v870 = vld [vmem:[%s1 + $0x520] sm:$0xff]
      %v871 = vld [vmem:[%s1 + $0x538] sm:$0xff]
      %v872 = vld [vmem:[%s1 + $0x550] sm:$0xff]
      %v873 = vld [vmem:[%s1 + $0x568] sm:$0xff]
      %v874 = vld [vmem:[%s1 + $0x580] sm:$0xff]
      %v875 = vld [vmem:[%s1 + $0x598] sm:$0xff]
      %v876 = vld [vmem:[%s1 + $0x5b0] sm:$0xff]
      %v877 = vld [vmem:[%s1 + $0x5c8] sm:$0xff]
      %v878 = vld [vmem:[%s1 + $0x5e0] sm:$0xff]
      %v879 = vld [vmem:[%s1 + $0x5f8] sm:$0xff]
      %v880 = vld [vmem:[%s1 + $0x610] sm:$0xff]
      %v881 = vld [vmem:[%s1 + $0x628] sm:$0xff]
      %v882 = vld [vmem:[%s1 + $0x640] sm:$0xff]
      %v883 = vld [vmem:[%s1 + $0x658] sm:$0xff]
      %v884 = vld [vmem:[%s1 + $0x670] sm:$0xff]
      %v885 = vld [vmem:[%s1 + $0x688] sm:$0xff]
      %v886 = vld [vmem:[%s1 + $0x6a0] sm:$0xff]
      %v887 = vld [vmem:[%s1 + $0x6b8] sm:$0xff]
      %vm888 = vcmask 523264
      %v890 = vsel %vm888, %v793, 0
      %v893 = vsel %vm888, %v795, 0
      %v896 = vsel %vm888, %v797, 0
      %v899 = vsel %vm888, %v799, 0
      %v902 = vsel %vm888, %v801, 0
      %v905 = vsel %vm888, %v803, 0
      %v908 = vsel %vm888, %v805, 0
      %v911 = vsel %vm888, %v807, 0
      %v914 = vsel %vm888, %v809, 0
      %v917 = vsel %vm888, %v811, 0
      %v920 = vsel %vm888, %v813, 0
      %v923 = vsel %vm888, %v815, 0
      %v926 = vsel %vm888, %v817, 0
      %v929 = vsel %vm888, %v819, 0
      %v932 = vsel %vm888, %v821, 0
      %v935 = vsel %vm888, %v823, 0
      %v938 = vsel %vm888, %v825, 0
      %v941 = vsel %vm888, %v827, 0
      %v944 = vsel %vm888, %v829, 0
      %v947 = vsel %vm888, %v831, 0
      %v950 = vsel %vm888, %v833, 0
      %v953 = vsel %vm888, %v835, 0
      %v956 = vsel %vm888, %v837, 0
      %v959 = vsel %vm888, %v839, 0
      %v962 = vsel %vm888, %v841, 0
      %v965 = vsel %vm888, %v843, 0
      %v968 = vsel %vm888, %v845, 0
      %v971 = vsel %vm888, %v847, 0
      %v974 = vsel %vm888, %v849, 0
      %v977 = vsel %vm888, %v851, 0
      %v980 = vsel %vm888, %v853, 0
      %v983 = vsel %vm888, %v855, 0
      %985 = vmatprep.subr.mxu0 0.0
      %986 = vmatpush1.msra.mxu0 %v768
      %987 = vmatprep.subr.mxu0 0.0
      %988 = vmatpush1.msra.mxu0 %v769
      %989 = vmatprep.subr.mxu0 0.0
      %990 = vmatpush1.msra.mxu0 %v770
      %991 = vmatprep.subr.mxu0 0.0
      %992 = vmatpush1.msra.mxu0 %v771
      %993 = vmatprep.subr.mxu0 0.0
      %994 = vmatpush1.msra.mxu0 %v772
      %995 = vmatprep.subr.mxu0 0.0
      %996 = vmatpush1.msra.mxu0 %v773
      %997 = vmatprep.subr.mxu0 0.0
      %998 = vmatpush1.msra.mxu0 %v774
      %999 = vmatprep.subr.mxu0 0.0
      %1000 = vmatpush1.msra.mxu0 %v775
      %1001 = vmatprep.subr.mxu0 0.0
      %1002 = vmatpush1.msra.mxu0 %v776
      %1003 = vmatprep.subr.mxu0 0.0
      %1004 = vmatpush1.msra.mxu0 %v777
      %1005 = vmatprep.subr.mxu0 0.0
      %1006 = vmatpush1.msra.mxu0 %v778
      %1007 = vmatprep.subr.mxu0 0.0
      %1008 = vmatpush1.msra.mxu0 %v779
      %1009 = vmatprep.subr.mxu0 0.0
      %1010 = vmatpush1.msra.mxu0 %v780
      %1011 = vmatprep.subr.mxu0 0.0
      %1012 = vmatpush1.msra.mxu0 %v781
      %1013 = vmatprep.subr.mxu0 0.0
      %1014 = vmatpush1.msra.mxu0 %v782
      %1015 = vmatprep.subr.mxu0 0.0
      %1016 = vmatpush1.msra.mxu0 %v783
      %1017 = vmatprep.subr.mxu0 0.0
      %1018 = vmatpush1.msra.mxu0 %v784
      %1019 = vmatprep.subr.mxu0 0.0
      %1020 = vmatpush1.msra.mxu0 %v785
      %1021 = vmatprep.subr.mxu0 0.0
      %1022 = vmatpush1.msra.mxu0 %v786
      %1023 = vmatprep.subr.mxu0 0.0
      %1024 = vmatpush1.msra.mxu0 %v787
      %1025 = vmatprep.subr.mxu0 0.0
      %1026 = vmatpush1.msra.mxu0 %v788
      %1027 = vmatprep.subr.mxu0 0.0
      %1028 = vmatpush1.msra.mxu0 %v789
      %1029 = vmatprep.subr.mxu0 0.0
      %1030 = vmatpush1.msra.mxu0 %v790
      %1031 = vmatprep.subr.mxu0 0.0
      %1032 = vmatpush1.msra.mxu0 %v791
      %1033 = vmatprep.subr.mxu0 0.0
      %1034 = vmatpush1.msra.mxu0 0.0
      %1035 = vmatprep.subr.mxu0 0.0
      %1036 = vmatpush1.msra.mxu0 0.0
      %1037 = vmatprep.subr.mxu0 0.0
      %1038 = vmatpush1.msra.mxu0 0.0
      %1039 = vmatprep.subr.mxu0 0.0
      %1040 = vmatpush1.msra.mxu0 0.0
      %1041 = vmatprep.subr.mxu0 0.0
      %1042 = vmatpush1.msra.mxu0 0.0
      %1043 = vmatprep.subr.mxu0 0.0
      %1044 = vmatpush1.msra.mxu0 0.0
      %1045 = vmatprep.subr.mxu0 0.0
      %1046 = vmatpush1.msra.mxu0 0.0
      %1047 = vmatprep.subr.mxu0 0.0
      %1048 = vmatpush1.msra.mxu0 0.0
      %1049 = vmatprep.mubr.f32.mxu0 %v890
      %1050 = vmatmul.mubr.f32.gmra.mrb[0].mxu0 %v792
      %v1051 = vpop.f32.mrb[0].mxu0
      %v1052 = vadd.f32 %v856, %v1051
      %v1053 = vpop.f32.mrb[0].mxu0
      %1054 = vmatprep.mubr.f32.mxu0 %v893
      %1055 = vmatmul.mubr.f32.gmra.mrb[0].mxu0 %v794
      %v1056 = vpop.f32.mrb[0].mxu0
      %v1057 = vadd.f32 %v857, %v1056
      %v1058 = vpop.f32.mrb[0].mxu0
      %1059 = vmatprep.mubr.f32.mxu0 %v896
      %1060 = vmatmul.mubr.f32.gmra.mrb[0].mxu0 %v796
      %v1061 = vpop.f32.mrb[0].mxu0
      %v1062 = vadd.f32 %v858, %v1061
      %v1063 = vpop.f32.mrb[0].mxu0
      %1064 = vmatprep.mubr.f32.mxu0 %v899
      %1065 = vmatmul.mubr.f32.gmra.mrb[0].mxu0 %v798
      %v1066 = vpop.f32.mrb[0].mxu0
      %v1067 = vadd.f32 %v859, %v1066
      %v1068 = vpop.f32.mrb[0].mxu0
      %1069 = vmatprep.mubr.f32.mxu0 %v902
      %1070 = vmatmul.mubr.f32.gmra.mrb[0].mxu0 %v800
      %v1071 = vpop.f32.mrb[0].mxu0
      %v1072 = vadd.f32 %v860, %v1071
      %v1073 = vpop.f32.mrb[0].mxu0
      %1074 = vmatprep.mubr.f32.mxu0 %v905
      %1075 = vmatmul.mubr.f32.gmra.mrb[0].mxu0 %v802
      %v1076 = vpop.f32.mrb[0].mxu0
      %v1077 = vadd.f32 %v861, %v1076
      %v1078 = vpop.f32.mrb[0].mxu0
      %1079 = vmatprep.mubr.f32.mxu0 %v908
      %1080 = vmatmul.mubr.f32.gmra.mrb[0].mxu0 %v804
      %v1081 = vpop.f32.mrb[0].mxu0
      %v1082 = vadd.f32 %v862, %v1081
      %v1083 = vpop.f32.mrb[0].mxu0
      %1084 = vmatprep.mubr.f32.mxu0 %v911
      %1085 = vmatmul.mubr.f32.gmra.mrb[0].mxu0 %v806
      %v1086 = vpop.f32.mrb[0].mxu0
      %v1087 = vadd.f32 %v863, %v1086
      %v1088 = vpop.f32.mrb[0].mxu0
      %1089 = vmatprep.mubr.f32.mxu0 %v914
      %1090 = vmatmul.mubr.f32.gmra.mrb[0].mxu0 %v808
      %v1091 = vpop.f32.mrb[0].mxu0
      %v1092 = vadd.f32 %v864, %v1091
      %v1093 = vpop.f32.mrb[0].mxu0
      %1094 = vmatprep.mubr.f32.mxu0 %v917
      %1095 = vmatmul.mubr.f32.gmra.mrb[0].mxu0 %v810
      %v1096 = vpop.f32.mrb[0].mxu0
      %v1097 = vadd.f32 %v865, %v1096
      %v1098 = vpop.f32.mrb[0].mxu0
      %1099 = vmatprep.mubr.f32.mxu0 %v920
      %1100 = vmatmul.mubr.f32.gmra.mrb[0].mxu0 %v812
      %v1101 = vpop.f32.mrb[0].mxu0
      %v1102 = vadd.f32 %v866, %v1101
      %v1103 = vpop.f32.mrb[0].mxu0
      %1104 = vmatprep.mubr.f32.mxu0 %v923
      %1105 = vmatmul.mubr.f32.gmra.mrb[0].mxu0 %v814
      %v1106 = vpop.f32.mrb[0].mxu0
      %v1107 = vadd.f32 %v867, %v1106
      %v1108 = vpop.f32.mrb[0].mxu0
      %1109 = vmatprep.mubr.f32.mxu0 %v926
      %1110 = vmatmul.mubr.f32.gmra.mrb[0].mxu0 %v816
      %v1111 = vpop.f32.mrb[0].mxu0
      %v1112 = vadd.f32 %v868, %v1111
      %v1113 = vpop.f32.mrb[0].mxu0
      %1114 = vmatprep.mubr.f32.mxu0 %v929
      %1115 = vmatmul.mubr.f32.gmra.mrb[0].mxu0 %v818
      %v1116 = vpop.f32.mrb[0].mxu0
      %v1117 = vadd.f32 %v869, %v1116
      %v1118 = vpop.f32.mrb[0].mxu0
      %1119 = vmatprep.mubr.f32.mxu0 %v932
      %1120 = vmatmul.mubr.f32.gmra.mrb[0].mxu0 %v820
      %v1121 = vpop.f32.mrb[0].mxu0
      %v1122 = vadd.f32 %v870, %v1121
      %v1123 = vpop.f32.mrb[0].mxu0
      %1124 = vmatprep.mubr.f32.mxu0 %v935
      %1125 = vmatmul.mubr.f32.gmra.mrb[0].mxu0 %v822
      %v1126 = vpop.f32.mrb[0].mxu0
      %v1127 = vadd.f32 %v871, %v1126
      %v1128 = vpop.f32.mrb[0].mxu0
      %1129 = vmatprep.mubr.f32.mxu0 %v938
      %1130 = vmatmul.mubr.f32.gmra.mrb[0].mxu0 %v824
      %v1131 = vpop.f32.mrb[0].mxu0
      %v1132 = vadd.f32 %v872, %v1131
      %v1133 = vpop.f32.mrb[0].mxu0
      %1134 = vmatprep.mubr.f32.mxu0 %v941
      %1135 = vmatmul.mubr.f32.gmra.mrb[0].mxu0 %v826
      %v1136 = vpop.f32.mrb[0].mxu0
      %v1137 = vadd.f32 %v873, %v1136
      %v1138 = vpop.f32.mrb[0].mxu0
      %1139 = vmatprep.mubr.f32.mxu0 %v944
      %1140 = vmatmul.mubr.f32.gmra.mrb[0].mxu0 %v828
      %v1141 = vpop.f32.mrb[0].mxu0
      %v1142 = vadd.f32 %v874, %v1141
      %v1143 = vpop.f32.mrb[0].mxu0
      %1144 = vmatprep.mubr.f32.mxu0 %v947
      %1145 = vmatmul.mubr.f32.gmra.mrb[0].mxu0 %v830
      %v1146 = vpop.f32.mrb[0].mxu0
      %v1147 = vadd.f32 %v875, %v1146
      %v1148 = vpop.f32.mrb[0].mxu0
      %1149 = vmatprep.mubr.f32.mxu0 %v950
      %1150 = vmatmul.mubr.f32.gmra.mrb[0].mxu0 %v832
      %v1151 = vpop.f32.mrb[0].mxu0
      %v1152 = vadd.f32 %v876, %v1151
      %v1153 = vpop.f32.mrb[0].mxu0
      %1154 = vmatprep.mubr.f32.mxu0 %v953
      %1155 = vmatmul.mubr.f32.gmra.mrb[0].mxu0 %v834
      %v1156 = vpop.f32.mrb[0].mxu0
      %v1157 = vadd.f32 %v877, %v1156
      %v1158 = vpop.f32.mrb[0].mxu0
      %1159 = vmatprep.mubr.f32.mxu0 %v956
      %1160 = vmatmul.mubr.f32.gmra.mrb[0].mxu0 %v836
      %v1161 = vpop.f32.mrb[0].mxu0
      %v1162 = vadd.f32 %v878, %v1161
      %v1163 = vpop.f32.mrb[0].mxu0
      %1164 = vmatprep.mubr.f32.mxu0 %v959
      %1165 = vmatmul.mubr.f32.gmra.mrb[0].mxu0 %v838
      %v1166 = vpop.f32.mrb[0].mxu0
      %v1167 = vadd.f32 %v879, %v1166
      %v1168 = vpop.f32.mrb[0].mxu0
      %1169 = vmatprep.mubr.f32.mxu0 %v962
      %1170 = vmatmul.mubr.f32.gmra.mrb[0].mxu0 %v840
      %v1171 = vpop.f32.mrb[0].mxu0
      %v1172 = vadd.f32 %v880, %v1171
      %v1173 = vpop.f32.mrb[0].mxu0
      %1174 = vmatprep.mubr.f32.mxu0 %v965
      %1175 = vmatmul.mubr.f32.gmra.mrb[0].mxu0 %v842
      %v1176 = vpop.f32.mrb[0].mxu0
      %v1177 = vadd.f32 %v881, %v1176
      %v1178 = vpop.f32.mrb[0].mxu0
      %1179 = vmatprep.mubr.f32.mxu0 %v968
      %1180 = vmatmul.mubr.f32.gmra.mrb[0].mxu0 %v844
      %v1181 = vpop.f32.mrb[0].mxu0
      %v1182 = vadd.f32 %v882, %v1181
      %v1183 = vpop.f32.mrb[0].mxu0
      %1184 = vmatprep.mubr.f32.mxu0 %v971
      %1185 = vmatmul.mubr.f32.gmra.mrb[0].mxu0 %v846
      %v1186 = vpop.f32.mrb[0].mxu0
      %v1187 = vadd.f32 %v883, %v1186
      %v1188 = vpop.f32.mrb[0].mxu0
      %1189 = vmatprep.mubr.f32.mxu0 %v974
      %1190 = vmatmul.mubr.f32.gmra.mrb[0].mxu0 %v848
      %v1191 = vpop.f32.mrb[0].mxu0
      %v1192 = vadd.f32 %v884, %v1191
      %v1193 = vpop.f32.mrb[0].mxu0
      %1194 = vmatprep.mubr.f32.mxu0 %v977
      %1195 = vmatmul.mubr.f32.gmra.mrb[0].mxu0 %v850
      %v1196 = vpop.f32.mrb[0].mxu0
      %v1197 = vadd.f32 %v885, %v1196
      %v1198 = vpop.f32.mrb[0].mxu0
      %1199 = vmatprep.mubr.f32.mxu0 %v980
      %1200 = vmatmul.mubr.f32.gmra.mrb[0].mxu0 %v852
      %v1201 = vpop.f32.mrb[0].mxu0
      %v1202 = vadd.f32 %v886, %v1201
      %v1203 = vpop.f32.mrb[0].mxu0
      %1204 = vmatprep.mubr.f32.mxu0 %v983
      %1205 = vmatmul.mubr.f32.gmra.mrb[0].mxu0 %v854
      %v1206 = vpop.f32.mrb[0].mxu0
      %v1207 = vadd.f32 %v887, %v1206
      %v1208 = vpop.f32.mrb[0].mxu0
      %1209 = vdwg.mxu0
      %v1210 = vmax.f32 %v1052, 0.0
      %v1211 = vmax.f32 %v1057, 0.0
      %v1212 = vmax.f32 %v1062, 0.0
      %v1213 = vmax.f32 %v1067, 0.0
      %v1214 = vmax.f32 %v1072, 0.0
      %v1215 = vmax.f32 %v1077, 0.0
      %v1216 = vmax.f32 %v1082, 0.0
      %v1217 = vmax.f32 %v1087, 0.0
      %v1218 = vmax.f32 %v1092, 0.0
      %v1219 = vmax.f32 %v1097, 0.0
      %v1220 = vmax.f32 %v1102, 0.0
      %v1221 = vmax.f32 %v1107, 0.0
      %v1222 = vmax.f32 %v1112, 0.0
      %v1223 = vmax.f32 %v1117, 0.0
      %v1224 = vmax.f32 %v1122, 0.0
      %v1225 = vmax.f32 %v1127, 0.0
      %v1226 = vmax.f32 %v1132, 0.0
      %v1227 = vmax.f32 %v1137, 0.0
      %v1228 = vmax.f32 %v1142, 0.0
      %v1229 = vmax.f32 %v1147, 0.0
      %v1230 = vmax.f32 %v1152, 0.0
      %v1231 = vmax.f32 %v1157, 0.0
      %v1232 = vmax.f32 %v1162, 0.0
      %v1233 = vmax.f32 %v1167, 0.0
      %v1234 = vmax.f32 %v1172, 0.0
      %v1235 = vmax.f32 %v1177, 0.0
      %v1236 = vmax.f32 %v1182, 0.0
      %v1237 = vmax.f32 %v1187, 0.0
      %v1238 = vmax.f32 %v1192, 0.0
      %v1239 = vmax.f32 %v1197, 0.0
      %v1240 = vmax.f32 %v1202, 0.0
      %v1241 = vmax.f32 %v1207, 0.0
      %v1242 = vld [vmem:[%s1 + $0x6c0] sm:$0xff]
      %v1243 = vld [vmem:[%s1 + $0x6c8] sm:$0xff]
      %v1244 = vld [vmem:[%s1 + $0x6d8] sm:$0xff]
      %v1245 = vld [vmem:[%s1 + $0x6e0] sm:$0xff]
      %v1246 = vld [vmem:[%s1 + $0x6f0] sm:$0xff]
      %v1247 = vld [vmem:[%s1 + $0x6f8] sm:$0xff]
      %v1248 = vld [vmem:[%s1 + $0x708] sm:$0xff]
      %v1249 = vld [vmem:[%s1 + $0x710] sm:$0xff]
      %v1250 = vld [vmem:[%s1 + $0x720] sm:$0xff]
      %v1251 = vld [vmem:[%s1 + $0x728] sm:$0xff]
      %v1252 = vld [vmem:[%s1 + $0x738] sm:$0xff]
      %v1253 = vld [vmem:[%s1 + $0x740] sm:$0xff]
      %v1254 = vld [vmem:[%s1 + $0x750] sm:$0xff]
      %v1255 = vld [vmem:[%s1 + $0x758] sm:$0xff]
      %v1256 = vld [vmem:[%s1 + $0x768] sm:$0xff]
      %v1257 = vld [vmem:[%s1 + $0x770] sm:$0xff]
      %v1258 = vld [vmem:[%s1 + $0x780] sm:$0xff]
      %v1259 = vld [vmem:[%s1 + $0x788] sm:$0xff]
      %v1260 = vld [vmem:[%s1 + $0x798] sm:$0xff]
      %v1261 = vld [vmem:[%s1 + $0x7a0] sm:$0xff]
      %v1262 = vld [vmem:[%s1 + $0x7b0] sm:$0xff]
      %v1263 = vld [vmem:[%s1 + $0x7b8] sm:$0xff]
      %v1264 = vld [vmem:[%s1 + $0x7c8] sm:$0xff]
      %v1265 = vld [vmem:[%s1 + $0x7d0] sm:$0xff]
      %v1266 = vld [vmem:[%s1 + $0x7e0] sm:$0xff]
      %v1267 = vld [vmem:[%s1 + $0x7e8] sm:$0xff]
      %v1268 = vld [vmem:[%s1 + $0x7f8] sm:$0xff]
      %v1269 = vld [vmem:[%s1 + $0x800] sm:$0xff]
      %v1270 = vld [vmem:[%s1 + $0x810] sm:$0xff]
      %v1271 = vld [vmem:[%s1 + $0x818] sm:$0xff]
      %v1272 = vld [vmem:[%s1 + $0x828] sm:$0xff]
      %v1273 = vld [vmem:[%s1 + $0x830] sm:$0xff]
      %v1274 = vld [vmem:[%s1 + $0x840] sm:$0xff]
      %v1275 = vld [vmem:[%s1 + $0x848] sm:$0xff]
      %v1276 = vld [vmem:[%s1 + $0x858] sm:$0xff]
      %v1277 = vld [vmem:[%s1 + $0x860] sm:$0xff]
      %v1278 = vld [vmem:[%s1 + $0x870] sm:$0xff]
      %v1279 = vld [vmem:[%s1 + $0x878] sm:$0xff]
      %v1280 = vld [vmem:[%s1 + $0x888] sm:$0xff]
      %v1281 = vld [vmem:[%s1 + $0x890] sm:$0xff]
      %v1282 = vld [vmem:[%s1 + $0x8a0] sm:$0xff]
      %v1283 = vld [vmem:[%s1 + $0x8a8] sm:$0xff]
      %v1284 = vld [vmem:[%s1 + $0x8b8] sm:$0xff]
      %v1285 = vld [vmem:[%s1 + $0x8c0] sm:$0xff]
      %v1286 = vld [vmem:[%s1 + $0x8d0] sm:$0xff]
      %v1287 = vld [vmem:[%s1 + $0x8d8] sm:$0xff]
      %v1288 = vld [vmem:[%s1 + $0x8e8] sm:$0xff]
      %v1289 = vld [vmem:[%s1 + $0x8f0] sm:$0xff]
      %v1290 = vld [vmem:[%s1 + $0x6d0] sm:$0xff]
      %v1291 = vld [vmem:[%s1 + $0x6e8] sm:$0xff]
      %v1292 = vld [vmem:[%s1 + $0x700] sm:$0xff]
      %v1293 = vld [vmem:[%s1 + $0x718] sm:$0xff]
      %v1294 = vld [vmem:[%s1 + $0x730] sm:$0xff]
      %v1295 = vld [vmem:[%s1 + $0x748] sm:$0xff]
      %v1296 = vld [vmem:[%s1 + $0x760] sm:$0xff]
      %v1297 = vld [vmem:[%s1 + $0x778] sm:$0xff]
      %v1298 = vld [vmem:[%s1 + $0x790] sm:$0xff]
      %v1299 = vld [vmem:[%s1 + $0x7a8] sm:$0xff]
      %v1300 = vld [vmem:[%s1 + $0x7c0] sm:$0xff]
      %v1301 = vld [vmem:[%s1 + $0x7d8] sm:$0xff]
      %v1302 = vld [vmem:[%s1 + $0x7f0] sm:$0xff]
      %v1303 = vld [vmem:[%s1 + $0x808] sm:$0xff]
      %v1304 = vld [vmem:[%s1 + $0x820] sm:$0xff]
      %v1305 = vld [vmem:[%s1 + $0x838] sm:$0xff]
      %v1306 = vld [vmem:[%s1 + $0x850] sm:$0xff]
      %v1307 = vld [vmem:[%s1 + $0x868] sm:$0xff]
      %v1308 = vld [vmem:[%s1 + $0x880] sm:$0xff]
      %v1309 = vld [vmem:[%s1 + $0x898] sm:$0xff]
      %v1310 = vld [vmem:[%s1 + $0x8b0] sm:$0xff]
      %v1311 = vld [vmem:[%s1 + $0x8c8] sm:$0xff]
      %v1312 = vld [vmem:[%s1 + $0x8e0] sm:$0xff]
      %v1313 = vld [vmem:[%s1 + $0x8f8] sm:$0xff]
      %1314 = vmatprep.subr.mxu0 0.0
      %1315 = vmatpush1.msra.mxu0 %v1210
      %1316 = vmatprep.subr.mxu0 0.0
      %1317 = vmatpush1.msra.mxu0 %v1211
      %1318 = vmatprep.subr.mxu0 0.0
      %1319 = vmatpush1.msra.mxu0 %v1212
      %1320 = vmatprep.subr.mxu0 0.0
      %1321 = vmatpush1.msra.mxu0 %v1213
      %1322 = vmatprep.subr.mxu0 0.0
      %1323 = vmatpush1.msra.mxu0 %v1214
      %1324 = vmatprep.subr.mxu0 0.0
      %1325 = vmatpush1.msra.mxu0 %v1215
      %1326 = vmatprep.subr.mxu0 0.0
      %1327 = vmatpush1.msra.mxu0 %v1216
      %1328 = vmatprep.subr.mxu0 0.0
      %1329 = vmatpush1.msra.mxu0 %v1217
      %1330 = vmatprep.subr.mxu0 0.0
      %1331 = vmatpush1.msra.mxu0 %v1218
      %1332 = vmatprep.subr.mxu0 0.0
      %1333 = vmatpush1.msra.mxu0 %v1219
      %1334 = vmatprep.subr.mxu0 0.0
      %1335 = vmatpush1.msra.mxu0 %v1220
      %1336 = vmatprep.subr.mxu0 0.0
      %1337 = vmatpush1.msra.mxu0 %v1221
      %1338 = vmatprep.subr.mxu0 0.0
      %1339 = vmatpush1.msra.mxu0 %v1222
      %1340 = vmatprep.subr.mxu0 0.0
      %1341 = vmatpush1.msra.mxu0 %v1223
      %1342 = vmatprep.subr.mxu0 0.0
      %1343 = vmatpush1.msra.mxu0 %v1224
      %1344 = vmatprep.subr.mxu0 0.0
      %1345 = vmatpush1.msra.mxu0 %v1225
      %1346 = vmatprep.subr.mxu0 0.0
      %1347 = vmatpush1.msra.mxu0 %v1226
      %1348 = vmatprep.subr.mxu0 0.0
      %1349 = vmatpush1.msra.mxu0 %v1227
      %1350 = vmatprep.subr.mxu0 0.0
      %1351 = vmatpush1.msra.mxu0 %v1228
      %1352 = vmatprep.subr.mxu0 0.0
      %1353 = vmatpush1.msra.mxu0 %v1229
      %1354 = vmatprep.subr.mxu0 0.0
      %1355 = vmatpush1.msra.mxu0 %v1230
      %1356 = vmatprep.subr.mxu0 0.0
      %1357 = vmatpush1.msra.mxu0 %v1231
      %1358 = vmatprep.subr.mxu0 0.0
      %1359 = vmatpush1.msra.mxu0 %v1232
      %1360 = vmatprep.subr.mxu0 0.0
      %1361 = vmatpush1.msra.mxu0 %v1233
      %1362 = vmatprep.subr.mxu0 0.0
      %1363 = vmatpush1.msra.mxu0 %v1234
      %1364 = vmatprep.subr.mxu0 0.0
      %1365 = vmatpush1.msra.mxu0 %v1235
      %1366 = vmatprep.subr.mxu0 0.0
      %1367 = vmatpush1.msra.mxu0 %v1236
      %1368 = vmatprep.subr.mxu0 0.0
      %1369 = vmatpush1.msra.mxu0 %v1237
      %1370 = vmatprep.subr.mxu0 0.0
      %1371 = vmatpush1.msra.mxu0 %v1238
      %1372 = vmatprep.subr.mxu0 0.0
      %1373 = vmatpush1.msra.mxu0 %v1239
      %1374 = vmatprep.subr.mxu0 0.0
      %1375 = vmatpush1.msra.mxu0 %v1240
      %1376 = vmatprep.subr.mxu0 0.0
      %1377 = vmatpush1.msra.mxu0 %v1241
      %1378 = vmatprep.mubr.f32.mxu0 %v1243
      %1379 = vmatmul.mubr.f32.gmra.mrb[0].mxu0 %v1242
      %v1380 = vpop.f32.mrb[0].mxu0
      %v1381 = vadd.f32 %v1290, %v1380
      %v1382 = vpop.f32.mrb[0].mxu0
      %1383 = vmatprep.mubr.f32.mxu0 %v1245
      %1384 = vmatmul.mubr.f32.gmra.mrb[0].mxu0 %v1244
      %v1385 = vpop.f32.mrb[0].mxu0
      %v1386 = vadd.f32 %v1291, %v1385
      %v1387 = vpop.f32.mrb[0].mxu0
      %1388 = vmatprep.mubr.f32.mxu0 %v1247
      %1389 = vmatmul.mubr.f32.gmra.mrb[0].mxu0 %v1246
      %v1390 = vpop.f32.mrb[0].mxu0
      %v1391 = vadd.f32 %v1292, %v1390
      %v1392 = vpop.f32.mrb[0].mxu0
      %1393 = vmatprep.mubr.f32.mxu0 %v1249
      %1394 = vmatmul.mubr.f32.gmra.mrb[0].mxu0 %v1248
      %v1395 = vpop.f32.mrb[0].mxu0
      %v1396 = vadd.f32 %v1293, %v1395
      %v1397 = vpop.f32.mrb[0].mxu0
      %1398 = vmatprep.mubr.f32.mxu0 %v1251
      %1399 = vmatmul.mubr.f32.gmra.mrb[0].mxu0 %v1250
      %v1400 = vpop.f32.mrb[0].mxu0
      %v1401 = vadd.f32 %v1294, %v1400
      %v1402 = vpop.f32.mrb[0].mxu0
      %1403 = vmatprep.mubr.f32.mxu0 %v1253
      %1404 = vmatmul.mubr.f32.gmra.mrb[0].mxu0 %v1252
      %v1405 = vpop.f32.mrb[0].mxu0
      %v1406 = vadd.f32 %v1295, %v1405
      %v1407 = vpop.f32.mrb[0].mxu0
      %1408 = vmatprep.mubr.f32.mxu0 %v1255
      %1409 = vmatmul.mubr.f32.gmra.mrb[0].mxu0 %v1254
      %v1410 = vpop.f32.mrb[0].mxu0
      %v1411 = vadd.f32 %v1296, %v1410
      %v1412 = vpop.f32.mrb[0].mxu0
      %1413 = vmatprep.mubr.f32.mxu0 %v1257
      %1414 = vmatmul.mubr.f32.gmra.mrb[0].mxu0 %v1256
      %v1415 = vpop.f32.mrb[0].mxu0
      %v1416 = vadd.f32 %v1297, %v1415
      %v1417 = vpop.f32.mrb[0].mxu0
      %1418 = vmatprep.mubr.f32.mxu0 %v1259
      %1419 = vmatmul.mubr.f32.gmra.mrb[0].mxu0 %v1258
      %v1420 = vpop.f32.mrb[0].mxu0
      %v1421 = vadd.f32 %v1298, %v1420
      %v1422 = vpop.f32.mrb[0].mxu0
      %1423 = vmatprep.mubr.f32.mxu0 %v1261
      %1424 = vmatmul.mubr.f32.gmra.mrb[0].mxu0 %v1260
      %v1425 = vpop.f32.mrb[0].mxu0
      %v1426 = vadd.f32 %v1299, %v1425
      %v1427 = vpop.f32.mrb[0].mxu0
      %1428 = vmatprep.mubr.f32.mxu0 %v1263
      %1429 = vmatmul.mubr.f32.gmra.mrb[0].mxu0 %v1262
      %v1430 = vpop.f32.mrb[0].mxu0
      %v1431 = vadd.f32 %v1300, %v1430
      %v1432 = vpop.f32.mrb[0].mxu0
      %1433 = vmatprep.mubr.f32.mxu0 %v1265
      %1434 = vmatmul.mubr.f32.gmra.mrb[0].mxu0 %v1264
      %v1435 = vpop.f32.mrb[0].mxu0
      %v1436 = vadd.f32 %v1301, %v1435
      %v1437 = vpop.f32.mrb[0].mxu0
      %1438 = vmatprep.mubr.f32.mxu0 %v1267
      %1439 = vmatmul.mubr.f32.gmra.mrb[0].mxu0 %v1266
      %v1440 = vpop.f32.mrb[0].mxu0
      %v1441 = vadd.f32 %v1302, %v1440
      %v1442 = vpop.f32.mrb[0].mxu0
      %1443 = vmatprep.mubr.f32.mxu0 %v1269
      %1444 = vmatmul.mubr.f32.gmra.mrb[0].mxu0 %v1268
      %v1445 = vpop.f32.mrb[0].mxu0
      %v1446 = vadd.f32 %v1303, %v1445
      %v1447 = vpop.f32.mrb[0].mxu0
      %1448 = vmatprep.mubr.f32.mxu0 %v1271
      %1449 = vmatmul.mubr.f32.gmra.mrb[0].mxu0 %v1270
      %v1450 = vpop.f32.mrb[0].mxu0
      %v1451 = vadd.f32 %v1304, %v1450
      %v1452 = vpop.f32.mrb[0].mxu0
      %1453 = vmatprep.mubr.f32.mxu0 %v1273
      %1454 = vmatmul.mubr.f32.gmra.mrb[0].mxu0 %v1272
      %v1455 = vpop.f32.mrb[0].mxu0
      %v1456 = vadd.f32 %v1305, %v1455
      %v1457 = vpop.f32.mrb[0].mxu0
      %1458 = vmatprep.mubr.f32.mxu0 %v1275
      %1459 = vmatmul.mubr.f32.gmra.mrb[0].mxu0 %v1274
      %v1460 = vpop.f32.mrb[0].mxu0
      %v1461 = vadd.f32 %v1306, %v1460
      %v1462 = vpop.f32.mrb[0].mxu0
      %1463 = vmatprep.mubr.f32.mxu0 %v1277
      %1464 = vmatmul.mubr.f32.gmra.mrb[0].mxu0 %v1276
      %v1465 = vpop.f32.mrb[0].mxu0
      %v1466 = vadd.f32 %v1307, %v1465
      %v1467 = vpop.f32.mrb[0].mxu0
      %1468 = vmatprep.mubr.f32.mxu0 %v1279
      %1469 = vmatmul.mubr.f32.gmra.mrb[0].mxu0 %v1278
      %v1470 = vpop.f32.mrb[0].mxu0
      %v1471 = vadd.f32 %v1308, %v1470
      %v1472 = vpop.f32.mrb[0].mxu0
      %1473 = vmatprep.mubr.f32.mxu0 %v1281
      %1474 = vmatmul.mubr.f32.gmra.mrb[0].mxu0 %v1280
      %v1475 = vpop.f32.mrb[0].mxu0
      %v1476 = vadd.f32 %v1309, %v1475
      %v1477 = vpop.f32.mrb[0].mxu0
      %1478 = vmatprep.mubr.f32.mxu0 %v1283
      %1479 = vmatmul.mubr.f32.gmra.mrb[0].mxu0 %v1282
      %v1480 = vpop.f32.mrb[0].mxu0
      %v1481 = vadd.f32 %v1310, %v1480
      %v1482 = vpop.f32.mrb[0].mxu0
      %1483 = vmatprep.mubr.f32.mxu0 %v1285
      %1484 = vmatmul.mubr.f32.gmra.mrb[0].mxu0 %v1284
      %v1485 = vpop.f32.mrb[0].mxu0
      %v1486 = vadd.f32 %v1311, %v1485
      %v1487 = vpop.f32.mrb[0].mxu0
      %1488 = vmatprep.mubr.f32.mxu0 %v1287
      %1489 = vmatmul.mubr.f32.gmra.mrb[0].mxu0 %v1286
      %v1490 = vpop.f32.mrb[0].mxu0
      %v1491 = vadd.f32 %v1312, %v1490
      %v1492 = vpop.f32.mrb[0].mxu0
      %1493 = vmatprep.mubr.f32.mxu0 %v1289
      %1494 = vmatmul.mubr.f32.gmra.mrb[0].mxu0 %v1288
      %v1495 = vpop.f32.mrb[0].mxu0
      %v1496 = vadd.f32 %v1313, %v1495
      %v1497 = vpop.f32.mrb[0].mxu0
      %1498 = vdwg.mxu0
      %vm1499 = vcmask 7168
      %1500 = vst.msk [vmem:[%s273] sm:$0xff] %vm1499, %v1381
      %1501 = vst.msk [vmem:[%s273 + $0x8] sm:$0xff] %vm1499, %v1386
      %1502 = vst.msk [vmem:[%s273 + $0x10] sm:$0xff] %vm1499, %v1391
      %1503 = vst.msk [vmem:[%s273 + $0x18] sm:$0xff] %vm1499, %v1396
      %1504 = vst.msk [vmem:[%s273 + $0x20] sm:$0xff] %vm1499, %v1401
      %1505 = vst.msk [vmem:[%s273 + $0x28] sm:$0xff] %vm1499, %v1406
      %1506 = vst.msk [vmem:[%s273 + $0x30] sm:$0xff] %vm1499, %v1411
      %1507 = vst.msk [vmem:[%s273 + $0x38] sm:$0xff] %vm1499, %v1416
      %1508 = vst.msk [vmem:[%s273 + $0x40] sm:$0xff] %vm1499, %v1421
      %1509 = vst.msk [vmem:[%s273 + $0x48] sm:$0xff] %vm1499, %v1426
      %1510 = vst.msk [vmem:[%s273 + $0x50] sm:$0xff] %vm1499, %v1431
      %1511 = vst.msk [vmem:[%s273 + $0x58] sm:$0xff] %vm1499, %v1436
      %1512 = vst.msk [vmem:[%s273 + $0x60] sm:$0xff] %vm1499, %v1441
      %1513 = vst.msk [vmem:[%s273 + $0x68] sm:$0xff] %vm1499, %v1446
      %1514 = vst.msk [vmem:[%s273 + $0x70] sm:$0xff] %vm1499, %v1451
      %1515 = vst.msk [vmem:[%s273 + $0x78] sm:$0xff] %vm1499, %v1456
      %1516 = vst.msk [vmem:[%s273 + $0x80] sm:$0xff] %vm1499, %v1461
      %1517 = vst.msk [vmem:[%s273 + $0x88] sm:$0xff] %vm1499, %v1466
      %1518 = vst.msk [vmem:[%s273 + $0x90] sm:$0xff] %vm1499, %v1471
      %1519 = vst.msk [vmem:[%s273 + $0x98] sm:$0xff] %vm1499, %v1476
      %1520 = vst.msk [vmem:[%s273 + $0xa0] sm:$0xff] %vm1499, %v1481
      %1521 = vst.msk [vmem:[%s273 + $0xa8] sm:$0xff] %vm1499, %v1486
      %1522 = vst.msk [vmem:[%s273 + $0xb0] sm:$0xff] %vm1499, %v1491
      %1523 = vst.msk [vmem:[%s273 + $0xb8] sm:$0xff] %vm1499, %v1496
      %v1524 = vld [vmem:[%s2] sm:$0xff]
      %v1525 = vld [vmem:[%s2 + $0x8] sm:$0xff]
      %v1526 = vld [vmem:[%s2 + $0x10] sm:$0xff]
      %v1527 = vld [vmem:[%s2 + $0x18] sm:$0xff]
      %v1528 = vld [vmem:[%s2 + $0x20] sm:$0xff]
      %v1529 = vld [vmem:[%s2 + $0x28] sm:$0xff]
      %v1530 = vld [vmem:[%s2 + $0x30] sm:$0xff]
      %v1531 = vld [vmem:[%s2 + $0x38] sm:$0xff]
      %v1532 = vld [vmem:[%s2 + $0x40] sm:$0xff]
      %v1533 = vld [vmem:[%s2 + $0x48] sm:$0xff]
      %v1534 = vld [vmem:[%s2 + $0x50] sm:$0xff]
      %v1535 = vld [vmem:[%s2 + $0x58] sm:$0xff]
      %v1536 = vld [vmem:[%s2 + $0x60] sm:$0xff]
      %v1537 = vld [vmem:[%s2 + $0x68] sm:$0xff]
      %v1538 = vld [vmem:[%s2 + $0x70] sm:$0xff]
      %v1539 = vld [vmem:[%s2 + $0x78] sm:$0xff]
      %1556 = vrot.lane.b32.xlu0 %v1524, 96
      %v1557 = vpop.permute.xlu0 %1556
      %1558 = vrot.lane.b32.xlu0 %v1525, 96
      %v1559 = vpop.permute.xlu0 %1558
      %1560 = vrot.lane.b32.xlu0 %v1526, 96
      %v1561 = vpop.permute.xlu0 %1560
      %1562 = vrot.lane.b32.xlu0 %v1527, 96
      %v1563 = vpop.permute.xlu0 %1562
      %1564 = vrot.lane.b32.xlu0 %v1528, 96
      %v1565 = vpop.permute.xlu0 %1564
      %1566 = vrot.lane.b32.xlu0 %v1529, 96
      %v1567 = vpop.permute.xlu0 %1566
      %1568 = vrot.lane.b32.xlu0 %v1530, 96
      %v1569 = vpop.permute.xlu0 %1568
      %1570 = vrot.lane.b32.xlu0 %v1531, 96
      %v1571 = vpop.permute.xlu0 %1570
      %1572 = vrot.lane.b32.xlu0 %v1532, 96
      %v1573 = vpop.permute.xlu0 %1572
      %1574 = vrot.lane.b32.xlu0 %v1533, 96
      %v1575 = vpop.permute.xlu0 %1574
      %1576 = vrot.lane.b32.xlu0 %v1534, 96
      %v1577 = vpop.permute.xlu0 %1576
      %1578 = vrot.lane.b32.xlu0 %v1535, 96
      %v1579 = vpop.permute.xlu0 %1578
      %1580 = vrot.lane.b32.xlu0 %v1536, 96
      %v1581 = vpop.permute.xlu0 %1580
      %1582 = vrot.lane.b32.xlu0 %v1537, 96
      %v1583 = vpop.permute.xlu0 %1582
      %1584 = vrot.lane.b32.xlu0 %v1538, 96
      %v1585 = vpop.permute.xlu0 %1584
      %1586 = vrot.lane.b32.xlu0 %v1539, 96
      %v1587 = vpop.permute.xlu0 %1586
      %v1604 = vsel %vm325, %v1524, 0
      %v1606 = vsel %vm325, %v1525, 0
      %v1608 = vsel %vm325, %v1526, 0
      %v1610 = vsel %vm325, %v1527, 0
      %v1612 = vsel %vm325, %v1528, 0
      %v1614 = vsel %vm325, %v1529, 0
      %v1616 = vsel %vm325, %v1530, 0
      %v1618 = vsel %vm325, %v1531, 0
      %v1620 = vsel %vm325, %v1532, 0
      %v1622 = vsel %vm325, %v1533, 0
      %v1624 = vsel %vm325, %v1534, 0
      %v1626 = vsel %vm325, %v1535, 0
      %v1628 = vsel %vm325, %v1536, 0
      %v1630 = vsel %vm325, %v1537, 0
      %v1632 = vsel %vm325, %v1538, 0
      %v1634 = vsel %vm325, %v1539, 0
      %1636 = vmatprep.subr.mxu0 0.0
      %1637 = vmatpush1.msra.mxu0 %v289
      %1638 = vmatprep.subr.mxu0 0.0
      %1639 = vmatpush1.msra.mxu0 %v290
      %1640 = vmatprep.subr.mxu0 0.0
      %1641 = vmatpush1.msra.mxu0 %v291
      %1642 = vmatprep.subr.mxu0 0.0
      %1643 = vmatpush1.msra.mxu0 %v292
      %1644 = vmatprep.subr.mxu0 0.0
      %1645 = vmatpush1.msra.mxu0 0.0
      %1646 = vmatprep.subr.mxu0 0.0
      %1647 = vmatpush1.msra.mxu0 0.0
      %1648 = vmatprep.subr.mxu0 0.0
      %1649 = vmatpush1.msra.mxu0 0.0
      %1650 = vmatprep.subr.mxu0 0.0
      %1651 = vmatpush1.msra.mxu0 0.0
      %1652 = vmatprep.subr.mxu0 0.0
      %1653 = vmatpush1.msra.mxu0 0.0
      %1654 = vmatprep.subr.mxu0 0.0
      %1655 = vmatpush1.msra.mxu0 0.0
      %1656 = vmatprep.subr.mxu0 0.0
      %1657 = vmatpush1.msra.mxu0 0.0
      %1658 = vmatprep.subr.mxu0 0.0
      %1659 = vmatpush1.msra.mxu0 0.0
      %1660 = vmatprep.subr.mxu0 0.0
      %1661 = vmatpush1.msra.mxu0 0.0
      %1662 = vmatprep.subr.mxu0 0.0
      %1663 = vmatpush1.msra.mxu0 0.0
      %1664 = vmatprep.subr.mxu0 0.0
      %1665 = vmatpush1.msra.mxu0 0.0
      %1666 = vmatprep.subr.mxu0 0.0
      %1667 = vmatpush1.msra.mxu0 0.0
      %1668 = vmatprep.subr.mxu0 0.0
      %1669 = vmatpush1.msra.mxu0 0.0
      %1670 = vmatprep.subr.mxu0 0.0
      %1671 = vmatpush1.msra.mxu0 0.0
      %1672 = vmatprep.subr.mxu0 0.0
      %1673 = vmatpush1.msra.mxu0 0.0
      %1674 = vmatprep.subr.mxu0 0.0
      %1675 = vmatpush1.msra.mxu0 0.0
      %1676 = vmatprep.subr.mxu0 0.0
      %1677 = vmatpush1.msra.mxu0 0.0
      %1678 = vmatprep.subr.mxu0 0.0
      %1679 = vmatpush1.msra.mxu0 0.0
      %1680 = vmatprep.subr.mxu0 0.0
      %1681 = vmatpush1.msra.mxu0 0.0
      %1682 = vmatprep.subr.mxu0 0.0
      %1683 = vmatpush1.msra.mxu0 0.0
      %1684 = vmatprep.subr.mxu0 0.0
      %1685 = vmatpush1.msra.mxu0 0.0
      %1686 = vmatprep.subr.mxu0 0.0
      %1687 = vmatpush1.msra.mxu0 0.0
      %1688 = vmatprep.subr.mxu0 0.0
      %1689 = vmatpush1.msra.mxu0 0.0
      %1690 = vmatprep.subr.mxu0 0.0
      %1691 = vmatpush1.msra.mxu0 0.0
      %1692 = vmatprep.subr.mxu0 0.0
      %1693 = vmatpush1.msra.mxu0 0.0
      %1694 = vmatprep.subr.mxu0 0.0
      %1695 = vmatpush1.msra.mxu0 0.0
      %1696 = vmatprep.subr.mxu0 0.0
      %1697 = vmatpush1.msra.mxu0 0.0
      %1698 = vmatprep.subr.mxu0 0.0
      %1699 = vmatpush1.msra.mxu0 0.0
      %1700 = vmatprep.mubr.f32.mxu0 0.0
      %1701 = vmatmul.mubr.f32.gmra.mrb[0].mxu0 %v1604
      %v1702 = vpop.f32.mrb[0].mxu0
      %v1703 = vadd.f32 %v1557, %v1702
      %v1704 = vpop.f32.mrb[0].mxu0
      %1705 = vmatprep.mubr.f32.mxu0 0.0
      %1706 = vmatmul.mubr.f32.gmra.mrb[0].mxu0 %v1606
      %v1707 = vpop.f32.mrb[0].mxu0
      %v1708 = vadd.f32 %v1559, %v1707
      %v1709 = vpop.f32.mrb[0].mxu0
      %1710 = vmatprep.mubr.f32.mxu0 0.0
      %1711 = vmatmul.mubr.f32.gmra.mrb[0].mxu0 %v1608
      %v1712 = vpop.f32.mrb[0].mxu0
      %v1713 = vadd.f32 %v1561, %v1712
      %v1714 = vpop.f32.mrb[0].mxu0
      %1715 = vmatprep.mubr.f32.mxu0 0.0
      %1716 = vmatmul.mubr.f32.gmra.mrb[0].mxu0 %v1610
      %v1717 = vpop.f32.mrb[0].mxu0
      %v1718 = vadd.f32 %v1563, %v1717
      %v1719 = vpop.f32.mrb[0].mxu0
      %1720 = vmatprep.mubr.f32.mxu0 0.0
      %1721 = vmatmul.mubr.f32.gmra.mrb[0].mxu0 %v1612
      %v1722 = vpop.f32.mrb[0].mxu0
      %v1723 = vadd.f32 %v1565, %v1722
      %v1724 = vpop.f32.mrb[0].mxu0
      %1725 = vmatprep.mubr.f32.mxu0 0.0
      %1726 = vmatmul.mubr.f32.gmra.mrb[0].mxu0 %v1614
      %v1727 = vpop.f32.mrb[0].mxu0
      %v1728 = vadd.f32 %v1567, %v1727
      %v1729 = vpop.f32.mrb[0].mxu0
      %1730 = vmatprep.mubr.f32.mxu0 0.0
      %1731 = vmatmul.mubr.f32.gmra.mrb[0].mxu0 %v1616
      %v1732 = vpop.f32.mrb[0].mxu0
      %v1733 = vadd.f32 %v1569, %v1732
      %v1734 = vpop.f32.mrb[0].mxu0
      %1735 = vmatprep.mubr.f32.mxu0 0.0
      %1736 = vmatmul.mubr.f32.gmra.mrb[0].mxu0 %v1618
      %v1737 = vpop.f32.mrb[0].mxu0
      %v1738 = vadd.f32 %v1571, %v1737
      %v1739 = vpop.f32.mrb[0].mxu0
      %1740 = vmatprep.mubr.f32.mxu0 0.0
      %1741 = vmatmul.mubr.f32.gmra.mrb[0].mxu0 %v1620
      %v1742 = vpop.f32.mrb[0].mxu0
      %v1743 = vadd.f32 %v1573, %v1742
      %v1744 = vpop.f32.mrb[0].mxu0
      %1745 = vmatprep.mubr.f32.mxu0 0.0
      %1746 = vmatmul.mubr.f32.gmra.mrb[0].mxu0 %v1622
      %v1747 = vpop.f32.mrb[0].mxu0
      %v1748 = vadd.f32 %v1575, %v1747
      %v1749 = vpop.f32.mrb[0].mxu0
      %1750 = vmatprep.mubr.f32.mxu0 0.0
      %1751 = vmatmul.mubr.f32.gmra.mrb[0].mxu0 %v1624
      %v1752 = vpop.f32.mrb[0].mxu0
      %v1753 = vadd.f32 %v1577, %v1752
      %v1754 = vpop.f32.mrb[0].mxu0
      %1755 = vmatprep.mubr.f32.mxu0 0.0
      %1756 = vmatmul.mubr.f32.gmra.mrb[0].mxu0 %v1626
      %v1757 = vpop.f32.mrb[0].mxu0
      %v1758 = vadd.f32 %v1579, %v1757
      %v1759 = vpop.f32.mrb[0].mxu0
      %1760 = vmatprep.mubr.f32.mxu0 0.0
      %1761 = vmatmul.mubr.f32.gmra.mrb[0].mxu0 %v1628
      %v1762 = vpop.f32.mrb[0].mxu0
      %v1763 = vadd.f32 %v1581, %v1762
      %v1764 = vpop.f32.mrb[0].mxu0
      %1765 = vmatprep.mubr.f32.mxu0 0.0
      %1766 = vmatmul.mubr.f32.gmra.mrb[0].mxu0 %v1630
      %v1767 = vpop.f32.mrb[0].mxu0
      %v1768 = vadd.f32 %v1583, %v1767
      %v1769 = vpop.f32.mrb[0].mxu0
      %1770 = vmatprep.mubr.f32.mxu0 0.0
      %1771 = vmatmul.mubr.f32.gmra.mrb[0].mxu0 %v1632
      %v1772 = vpop.f32.mrb[0].mxu0
      %v1773 = vadd.f32 %v1585, %v1772
      %v1774 = vpop.f32.mrb[0].mxu0
      %1775 = vmatprep.mubr.f32.mxu0 0.0
      %1776 = vmatmul.mubr.f32.gmra.mrb[0].mxu0 %v1634
      %v1777 = vpop.f32.mrb[0].mxu0
      %v1778 = vadd.f32 %v1587, %v1777
      %v1779 = vpop.f32.mrb[0].mxu0
      %1780 = vdwg.mxu0
      %v1781 = vmax.f32 %v1703, 0.0
      %v1782 = vmax.f32 %v1708, 0.0
      %v1783 = vmax.f32 %v1713, 0.0
      %v1784 = vmax.f32 %v1718, 0.0
      %v1785 = vmax.f32 %v1723, 0.0
      %v1786 = vmax.f32 %v1728, 0.0
      %v1787 = vmax.f32 %v1733, 0.0
      %v1788 = vmax.f32 %v1738, 0.0
      %v1789 = vmax.f32 %v1743, 0.0
      %v1790 = vmax.f32 %v1748, 0.0
      %v1791 = vmax.f32 %v1753, 0.0
      %v1792 = vmax.f32 %v1758, 0.0
      %v1793 = vmax.f32 %v1763, 0.0
      %v1794 = vmax.f32 %v1768, 0.0
      %v1795 = vmax.f32 %v1773, 0.0
      %v1796 = vmax.f32 %v1778, 0.0
      %1801 = vrot.lane.b32.xlu0 %v1785, 1
      %v1802 = vpop.permute.xlu0 %1801
      %1803 = vrot.lane.b32.xlu0 %v1786, 1
      %v1804 = vpop.permute.xlu0 %1803
      %1805 = vrot.lane.b32.xlu0 %v1787, 1
      %v1806 = vpop.permute.xlu0 %1805
      %1807 = vrot.lane.b32.xlu0 %v1788, 1
      %v1808 = vpop.permute.xlu0 %1807
      %1817 = vrot.lane.b32.xlu0 %v1789, 2
      %v1818 = vpop.permute.xlu0 %1817
      %1819 = vrot.lane.b32.xlu0 %v1790, 2
      %v1820 = vpop.permute.xlu0 %1819
      %1821 = vrot.lane.b32.xlu0 %v1791, 2
      %v1822 = vpop.permute.xlu0 %1821
      %1823 = vrot.lane.b32.xlu0 %v1792, 2
      %v1824 = vpop.permute.xlu0 %1823
      %1833 = vrot.lane.b32.xlu0 %v1793, 3
      %v1834 = vpop.permute.xlu0 %1833
      %1835 = vrot.lane.b32.xlu0 %v1794, 3
      %v1836 = vpop.permute.xlu0 %1835
      %1837 = vrot.lane.b32.xlu0 %v1795, 3
      %v1838 = vpop.permute.xlu0 %1837
      %1839 = vrot.lane.b32.xlu0 %v1796, 3
      %v1840 = vpop.permute.xlu0 %1839
      %v1845 = vsel %vm1499, %v1781, %v1802
      %v1846 = vsel %vm1499, %v1782, %v1804
      %v1847 = vsel %vm1499, %v1783, %v1806
      %v1848 = vsel %vm1499, %v1784, %v1808
      %vm1849 = vcmask 15360
      %v1850 = vsel %vm1849, %v1845, %v1818
      %v1851 = vsel %vm1849, %v1846, %v1820
      %v1852 = vsel %vm1849, %v1847, %v1822
      %v1853 = vsel %vm1849, %v1848, %v1824
      %vm1854 = vcmask 23552
      %v1855 = vsel %vm1854, %v1850, %v1834
      %v1856 = vsel %vm1854, %v1851, %v1836
      %v1857 = vsel %vm1854, %v1852, %v1838
      %v1858 = vsel %vm1854, %v1853, %v1840
      %v1859 = vld [vmem:[%s2 + $0x80] sm:$0xff]
      %v1860 = vld [vmem:[%s2 + $0x88] sm:$0xff]
      %v1861 = vld [vmem:[%s2 + $0x90] sm:$0xff]
      %v1862 = vld [vmem:[%s2 + $0x98] sm:$0xff]
      %v1863 = vld [vmem:[%s2 + $0xa0] sm:$0xff]
      %v1864 = vld [vmem:[%s2 + $0xa8] sm:$0xff]
      %v1865 = vld [vmem:[%s2 + $0xb0] sm:$0xff]
      %v1866 = vld [vmem:[%s2 + $0xb8] sm:$0xff]
      %1868 = vset.pattern.permute.xlu0 32
      %1869 = vperm.xlu0 %1868, %v1859
      %v1870 = vpop.permute.xlu0 %1869
      %1873 = vset.pattern.permute.xlu0 32
      %1874 = vperm.xlu0 %1873, %v1860
      %v1875 = vpop.permute.xlu0 %1874
      %1878 = vset.pattern.permute.xlu0 32
      %1879 = vperm.xlu0 %1878, %v1861
      %v1880 = vpop.permute.xlu0 %1879
      %1883 = vset.pattern.permute.xlu0 32
      %1884 = vperm.xlu0 %1883, %v1862
      %v1885 = vpop.permute.xlu0 %1884
      %1888 = vset.pattern.permute.xlu0 32
      %1889 = vperm.xlu0 %1888, %v1863
      %v1890 = vpop.permute.xlu0 %1889
      %1893 = vset.pattern.permute.xlu0 32
      %1894 = vperm.xlu0 %1893, %v1864
      %v1895 = vpop.permute.xlu0 %1894
      %1898 = vset.pattern.permute.xlu0 32
      %1899 = vperm.xlu0 %1898, %v1865
      %v1900 = vpop.permute.xlu0 %1899
      %1903 = vset.pattern.permute.xlu0 32
      %1904 = vperm.xlu0 %1903, %v1866
      %v1905 = vpop.permute.xlu0 %1904
      %v1907 = vsel %vm325, %v1859, 0
      %v1909 = vsel %vm325, %v1860, 0
      %v1911 = vsel %vm325, %v1861, 0
      %v1913 = vsel %vm325, %v1862, 0
      %v1915 = vsel %vm325, %v1863, 0
      %v1917 = vsel %vm325, %v1864, 0
      %v1919 = vsel %vm325, %v1865, 0
      %v1921 = vsel %vm325, %v1866, 0
      %1923 = vmatprep.subr.mxu0 0.0
      %1924 = vmatpush1.msra.mxu0 %v1855
      %1925 = vmatprep.subr.mxu0 0.0
      %1926 = vmatpush1.msra.mxu0 %v1856
      %1927 = vmatprep.subr.mxu0 0.0
      %1928 = vmatpush1.msra.mxu0 %v1857
      %1929 = vmatprep.subr.mxu0 0.0
      %1930 = vmatpush1.msra.mxu0 %v1858
      %1931 = vmatprep.subr.mxu0 0.0
      %1932 = vmatpush1.msra.mxu0 0.0
      %1933 = vmatprep.subr.mxu0 0.0
      %1934 = vmatpush1.msra.mxu0 0.0
      %1935 = vmatprep.subr.mxu0 0.0
      %1936 = vmatpush1.msra.mxu0 0.0
      %1937 = vmatprep.subr.mxu0 0.0
      %1938 = vmatpush1.msra.mxu0 0.0
      %1939 = vmatprep.subr.mxu0 0.0
      %1940 = vmatpush1.msra.mxu0 0.0
      %1941 = vmatprep.subr.mxu0 0.0
      %1942 = vmatpush1.msra.mxu0 0.0
      %1943 = vmatprep.subr.mxu0 0.0
      %1944 = vmatpush1.msra.mxu0 0.0
      %1945 = vmatprep.subr.mxu0 0.0
      %1946 = vmatpush1.msra.mxu0 0.0
      %1947 = vmatprep.subr.mxu0 0.0
      %1948 = vmatpush1.msra.mxu0 0.0
      %1949 = vmatprep.subr.mxu0 0.0
      %1950 = vmatpush1.msra.mxu0 0.0
      %1951 = vmatprep.subr.mxu0 0.0
      %1952 = vmatpush1.msra.mxu0 0.0
      %1953 = vmatprep.subr.mxu0 0.0
      %1954 = vmatpush1.msra.mxu0 0.0
      %1955 = vmatprep.subr.mxu0 0.0
      %1956 = vmatpush1.msra.mxu0 0.0
      %1957 = vmatprep.subr.mxu0 0.0
      %1958 = vmatpush1.msra.mxu0 0.0
      %1959 = vmatprep.subr.mxu0 0.0
      %1960 = vmatpush1.msra.mxu0 0.0
      %1961 = vmatprep.subr.mxu0 0.0
      %1962 = vmatpush1.msra.mxu0 0.0
      %1963 = vmatprep.subr.mxu0 0.0
      %1964 = vmatpush1.msra.mxu0 0.0
      %1965 = vmatprep.subr.mxu0 0.0
      %1966 = vmatpush1.msra.mxu0 0.0
      %1967 = vmatprep.subr.mxu0 0.0
      %1968 = vmatpush1.msra.mxu0 0.0
      %1969 = vmatprep.subr.mxu0 0.0
      %1970 = vmatpush1.msra.mxu0 0.0
      %1971 = vmatprep.subr.mxu0 0.0
      %1972 = vmatpush1.msra.mxu0 0.0
      %1973 = vmatprep.subr.mxu0 0.0
      %1974 = vmatpush1.msra.mxu0 0.0
      %1975 = vmatprep.subr.mxu0 0.0
      %1976 = vmatpush1.msra.mxu0 0.0
      %1977 = vmatprep.subr.mxu0 0.0
      %1978 = vmatpush1.msra.mxu0 0.0
      %1979 = vmatprep.subr.mxu0 0.0
      %1980 = vmatpush1.msra.mxu0 0.0
      %1981 = vmatprep.subr.mxu0 0.0
      %1982 = vmatpush1.msra.mxu0 0.0
      %1983 = vmatprep.subr.mxu0 0.0
      %1984 = vmatpush1.msra.mxu0 0.0
      %1985 = vmatprep.subr.mxu0 0.0
      %1986 = vmatpush1.msra.mxu0 0.0
      %1987 = vmatprep.mubr.f32.mxu0 0.0
      %1988 = vmatmul.mubr.f32.gmra.mrb[0].mxu0 %v1907
      %v1989 = vpop.f32.mrb[0].mxu0
      %v1990 = vadd.f32 %v1870, %v1989
      %v1991 = vpop.f32.mrb[0].mxu0
      %1992 = vmatprep.mubr.f32.mxu0 0.0
      %1993 = vmatmul.mubr.f32.gmra.mrb[0].mxu0 %v1909
      %v1994 = vpop.f32.mrb[0].mxu0
      %v1995 = vadd.f32 %v1875, %v1994
      %v1996 = vpop.f32.mrb[0].mxu0
      %1997 = vmatprep.mubr.f32.mxu0 0.0
      %1998 = vmatmul.mubr.f32.gmra.mrb[0].mxu0 %v1911
      %v1999 = vpop.f32.mrb[0].mxu0
      %v2000 = vadd.f32 %v1880, %v1999
      %v2001 = vpop.f32.mrb[0].mxu0
      %2002 = vmatprep.mubr.f32.mxu0 0.0
      %2003 = vmatmul.mubr.f32.gmra.mrb[0].mxu0 %v1913
      %v2004 = vpop.f32.mrb[0].mxu0
      %v2005 = vadd.f32 %v1885, %v2004
      %v2006 = vpop.f32.mrb[0].mxu0
      %2007 = vmatprep.mubr.f32.mxu0 0.0
      %2008 = vmatmul.mubr.f32.gmra.mrb[0].mxu0 %v1915
      %v2009 = vpop.f32.mrb[0].mxu0
      %v2010 = vadd.f32 %v1890, %v2009
      %v2011 = vpop.f32.mrb[0].mxu0
      %2012 = vmatprep.mubr.f32.mxu0 0.0
      %2013 = vmatmul.mubr.f32.gmra.mrb[0].mxu0 %v1917
      %v2014 = vpop.f32.mrb[0].mxu0
      %v2015 = vadd.f32 %v1895, %v2014
      %v2016 = vpop.f32.mrb[0].mxu0
      %2017 = vmatprep.mubr.f32.mxu0 0.0
      %2018 = vmatmul.mubr.f32.gmra.mrb[0].mxu0 %v1919
      %v2019 = vpop.f32.mrb[0].mxu0
      %v2020 = vadd.f32 %v1900, %v2019
      %v2021 = vpop.f32.mrb[0].mxu0
      %2022 = vmatprep.mubr.f32.mxu0 0.0
      %2023 = vmatmul.mubr.f32.gmra.mrb[0].mxu0 %v1921
      %v2024 = vpop.f32.mrb[0].mxu0
      %v2025 = vadd.f32 %v1905, %v2024
      %v2026 = vpop.f32.mrb[0].mxu0
      %2027 = vdwg.mxu0
      %v2028 = vmax.f32 %v1990, 0.0
      %v2029 = vmax.f32 %v1995, 0.0
      %v2030 = vmax.f32 %v2000, 0.0
      %v2031 = vmax.f32 %v2005, 0.0
      %v2032 = vmax.f32 %v2010, 0.0
      %v2033 = vmax.f32 %v2015, 0.0
      %v2034 = vmax.f32 %v2020, 0.0
      %v2035 = vmax.f32 %v2025, 0.0
      %2038 = vrot.lane.b32.xlu0 %v2030, 4
      %v2039 = vpop.permute.xlu0 %2038
      %2040 = vrot.lane.b32.xlu0 %v2031, 4
      %v2041 = vpop.permute.xlu0 %2040
      %2046 = vrot.lane.b32.xlu0 %v2032, 8
      %v2047 = vpop.permute.xlu0 %2046
      %2048 = vrot.lane.b32.xlu0 %v2033, 8
      %v2049 = vpop.permute.xlu0 %2048
      %2054 = vrot.lane.b32.xlu0 %v2034, 12
      %v2055 = vpop.permute.xlu0 %2054
      %2056 = vrot.lane.b32.xlu0 %v2035, 12
      %v2057 = vpop.permute.xlu0 %2056
      %vm2060 = vcmask 31744
      %v2061 = vsel %vm2060, %v2028, %v2039
      %v2062 = vsel %vm2060, %v2029, %v2041
      %vm2063 = vcmask 64512
      %v2064 = vsel %vm2063, %v2061, %v2047
      %v2065 = vsel %vm2063, %v2062, %v2049
      %vm2066 = vcmask 97280
      %v2067 = vsel %vm2066, %v2064, %v2055
      %v2068 = vsel %vm2066, %v2065, %v2057
      %v2069 = vld [vmem:[%s2 + $0xc0] sm:$0xff]
      %v2070 = vld [vmem:[%s2 + $0xc8] sm:$0xff]
      %v2071 = vld [vmem:[%s2 + $0xd0] sm:$0xff]
      %v2072 = vld [vmem:[%s2 + $0xd8] sm:$0xff]
      %2074 = vset.pattern.permute.xlu0 32
      %2075 = vperm.xlu0 %2074, %v2069
      %v2076 = vpop.permute.xlu0 %2075
      %2079 = vset.pattern.permute.xlu0 32
      %2080 = vperm.xlu0 %2079, %v2070
      %v2081 = vpop.permute.xlu0 %2080
      %2084 = vset.pattern.permute.xlu0 32
      %2085 = vperm.xlu0 %2084, %v2071
      %v2086 = vpop.permute.xlu0 %2085
      %2089 = vset.pattern.permute.xlu0 32
      %2090 = vperm.xlu0 %2089, %v2072
      %v2091 = vpop.permute.xlu0 %2090
      %vm2093 = vcmask 130048
      %v2094 = vsel %vm2093, %v2069, 0
      %v2096 = vsel %vm2093, %v2070, 0
      %v2098 = vsel %vm2093, %v2071, 0
      %v2100 = vsel %vm2093, %v2072, 0
      %2102 = vmatprep.subr.mxu0 0.0
      %2103 = vmatpush1.msra.mxu0 %v2067
      %2104 = vmatprep.subr.mxu0 0.0
      %2105 = vmatpush1.msra.mxu0 %v2068
      %2106 = vmatprep.subr.mxu0 0.0
      %2107 = vmatpush1.msra.mxu0 0.0
      %2108 = vmatprep.subr.mxu0 0.0
      %2109 = vmatpush1.msra.mxu0 0.0
      %2110 = vmatprep.subr.mxu0 0.0
      %2111 = vmatpush1.msra.mxu0 0.0
      %2112 = vmatprep.subr.mxu0 0.0
      %2113 = vmatpush1.msra.mxu0 0.0
      %2114 = vmatprep.subr.mxu0 0.0
      %2115 = vmatpush1.msra.mxu0 0.0
      %2116 = vmatprep.subr.mxu0 0.0
      %2117 = vmatpush1.msra.mxu0 0.0
      %2118 = vmatprep.subr.mxu0 0.0
      %2119 = vmatpush1.msra.mxu0 0.0
      %2120 = vmatprep.subr.mxu0 0.0
      %2121 = vmatpush1.msra.mxu0 0.0
      %2122 = vmatprep.subr.mxu0 0.0
      %2123 = vmatpush1.msra.mxu0 0.0
      %2124 = vmatprep.subr.mxu0 0.0
      %2125 = vmatpush1.msra.mxu0 0.0
      %2126 = vmatprep.subr.mxu0 0.0
      %2127 = vmatpush1.msra.mxu0 0.0
      %2128 = vmatprep.subr.mxu0 0.0
      %2129 = vmatpush1.msra.mxu0 0.0
      %2130 = vmatprep.subr.mxu0 0.0
      %2131 = vmatpush1.msra.mxu0 0.0
      %2132 = vmatprep.subr.mxu0 0.0
      %2133 = vmatpush1.msra.mxu0 0.0
      %2134 = vmatprep.subr.mxu0 0.0
      %2135 = vmatpush1.msra.mxu0 0.0
      %2136 = vmatprep.subr.mxu0 0.0
      %2137 = vmatpush1.msra.mxu0 0.0
      %2138 = vmatprep.subr.mxu0 0.0
      %2139 = vmatpush1.msra.mxu0 0.0
      %2140 = vmatprep.subr.mxu0 0.0
      %2141 = vmatpush1.msra.mxu0 0.0
      %2142 = vmatprep.subr.mxu0 0.0
      %2143 = vmatpush1.msra.mxu0 0.0
      %2144 = vmatprep.subr.mxu0 0.0
      %2145 = vmatpush1.msra.mxu0 0.0
      %2146 = vmatprep.subr.mxu0 0.0
      %2147 = vmatpush1.msra.mxu0 0.0
      %2148 = vmatprep.subr.mxu0 0.0
      %2149 = vmatpush1.msra.mxu0 0.0
      %2150 = vmatprep.subr.mxu0 0.0
      %2151 = vmatpush1.msra.mxu0 0.0
      %2152 = vmatprep.subr.mxu0 0.0
      %2153 = vmatpush1.msra.mxu0 0.0
      %2154 = vmatprep.subr.mxu0 0.0
      %2155 = vmatpush1.msra.mxu0 0.0
      %2156 = vmatprep.subr.mxu0 0.0
      %2157 = vmatpush1.msra.mxu0 0.0
      %2158 = vmatprep.subr.mxu0 0.0
      %2159 = vmatpush1.msra.mxu0 0.0
      %2160 = vmatprep.subr.mxu0 0.0
      %2161 = vmatpush1.msra.mxu0 0.0
      %2162 = vmatprep.subr.mxu0 0.0
      %2163 = vmatpush1.msra.mxu0 0.0
      %2164 = vmatprep.subr.mxu0 0.0
      %2165 = vmatpush1.msra.mxu0 0.0
      %2166 = vmatprep.mubr.f32.mxu0 0.0
      %2167 = vmatmul.mubr.f32.gmra.mrb[0].mxu0 %v2094
      %v2168 = vpop.f32.mrb[0].mxu0
      %v2169 = vadd.f32 %v2076, %v2168
      %v2170 = vpop.f32.mrb[0].mxu0
      %2171 = vmatprep.mubr.f32.mxu0 0.0
      %2172 = vmatmul.mubr.f32.gmra.mrb[0].mxu0 %v2096
      %v2173 = vpop.f32.mrb[0].mxu0
      %v2174 = vadd.f32 %v2081, %v2173
      %v2175 = vpop.f32.mrb[0].mxu0
      %2176 = vmatprep.mubr.f32.mxu0 0.0
      %2177 = vmatmul.mubr.f32.gmra.mrb[0].mxu0 %v2098
      %v2178 = vpop.f32.mrb[0].mxu0
      %v2179 = vadd.f32 %v2086, %v2178
      %v2180 = vpop.f32.mrb[0].mxu0
      %2181 = vmatprep.mubr.f32.mxu0 0.0
      %2182 = vmatmul.mubr.f32.gmra.mrb[0].mxu0 %v2100
      %v2183 = vpop.f32.mrb[0].mxu0
      %v2184 = vadd.f32 %v2091, %v2183
      %v2185 = vpop.f32.mrb[0].mxu0
      %2186 = vdwg.mxu0
      %v2187 = vmax.f32 %v2169, 0.0
      %v2188 = vmax.f32 %v2174, 0.0
      %v2189 = vmax.f32 %v2179, 0.0
      %v2190 = vmax.f32 %v2184, 0.0
      %2192 = vrot.lane.b32.xlu0 %v2188, 16
      %v2193 = vpop.permute.xlu0 %2192
      %2196 = vrot.lane.b32.xlu0 %v2189, 32
      %v2197 = vpop.permute.xlu0 %2196
      %2200 = vrot.lane.b32.xlu0 %v2190, 48
      %v2201 = vpop.permute.xlu0 %2200
      %v2203 = vsel %vm2093, %v2187, %v2193
      %v2204 = vsel %vm325, %v2203, %v2197
      %vm2205 = vcmask 392192
      %v2206 = vsel %vm2205, %v2204, %v2201
      %v2207 = vld [vmem:[%s2 + $0xe0] sm:$0xff]
      %v2208 = vld [vmem:[%s2 + $0xe8] sm:$0xff]
      %v2209 = vld [vmem:[%s2 + $0xf0] sm:$0xff]
      %v2210 = vld [vmem:[%s2 + $0xf8] sm:$0xff]
      %2212 = vset.pattern.permute.xlu0 32
      %2213 = vperm.xlu0 %2212, %v2207
      %v2214 = vpop.permute.xlu0 %2213
      %2217 = vset.pattern.permute.xlu0 32
      %2218 = vperm.xlu0 %2217, %v2208
      %v2219 = vpop.permute.xlu0 %2218
      %2222 = vset.pattern.permute.xlu0 32
      %2223 = vperm.xlu0 %2222, %v2209
      %v2224 = vpop.permute.xlu0 %2223
      %2227 = vset.pattern.permute.xlu0 32
      %2228 = vperm.xlu0 %2227, %v2210
      %v2229 = vpop.permute.xlu0 %2228
      %v2231 = vsel %vm2063, %v2207, 0
      %v2233 = vsel %vm2063, %v2208, 0
      %v2235 = vsel %vm2063, %v2209, 0
      %v2237 = vsel %vm2063, %v2210, 0
      %2239 = vmatprep.subr.mxu0 0.0
      %2240 = vmatpush1.msra.mxu0 %v2206
      %2241 = vmatprep.subr.mxu0 0.0
      %2242 = vmatpush1.msra.mxu0 0.0
      %2243 = vmatprep.subr.mxu0 0.0
      %2244 = vmatpush1.msra.mxu0 0.0
      %2245 = vmatprep.subr.mxu0 0.0
      %2246 = vmatpush1.msra.mxu0 0.0
      %2247 = vmatprep.subr.mxu0 0.0
      %2248 = vmatpush1.msra.mxu0 0.0
      %2249 = vmatprep.subr.mxu0 0.0
      %2250 = vmatpush1.msra.mxu0 0.0
      %2251 = vmatprep.subr.mxu0 0.0
      %2252 = vmatpush1.msra.mxu0 0.0
      %2253 = vmatprep.subr.mxu0 0.0
      %2254 = vmatpush1.msra.mxu0 0.0
      %2255 = vmatprep.subr.mxu0 0.0
      %2256 = vmatpush1.msra.mxu0 0.0
      %2257 = vmatprep.subr.mxu0 0.0
      %2258 = vmatpush1.msra.mxu0 0.0
      %2259 = vmatprep.subr.mxu0 0.0
      %2260 = vmatpush1.msra.mxu0 0.0
      %2261 = vmatprep.subr.mxu0 0.0
      %2262 = vmatpush1.msra.mxu0 0.0
      %2263 = vmatprep.subr.mxu0 0.0
      %2264 = vmatpush1.msra.mxu0 0.0
      %2265 = vmatprep.subr.mxu0 0.0
      %2266 = vmatpush1.msra.mxu0 0.0
      %2267 = vmatprep.subr.mxu0 0.0
      %2268 = vmatpush1.msra.mxu0 0.0
      %2269 = vmatprep.subr.mxu0 0.0
      %2270 = vmatpush1.msra.mxu0 0.0
      %2271 = vmatprep.subr.mxu0 0.0
      %2272 = vmatpush1.msra.mxu0 0.0
      %2273 = vmatprep.subr.mxu0 0.0
      %2274 = vmatpush1.msra.mxu0 0.0
      %2275 = vmatprep.subr.mxu0 0.0
      %2276 = vmatpush1.msra.mxu0 0.0
      %2277 = vmatprep.subr.mxu0 0.0
      %2278 = vmatpush1.msra.mxu0 0.0
      %2279 = vmatprep.subr.mxu0 0.0
      %2280 = vmatpush1.msra.mxu0 0.0
      %2281 = vmatprep.subr.mxu0 0.0
      %2282 = vmatpush1.msra.mxu0 0.0
      %2283 = vmatprep.subr.mxu0 0.0
      %2284 = vmatpush1.msra.mxu0 0.0
      %2285 = vmatprep.subr.mxu0 0.0
      %2286 = vmatpush1.msra.mxu0 0.0
      %2287 = vmatprep.subr.mxu0 0.0
      %2288 = vmatpush1.msra.mxu0 0.0
      %2289 = vmatprep.subr.mxu0 0.0
      %2290 = vmatpush1.msra.mxu0 0.0
      %2291 = vmatprep.subr.mxu0 0.0
      %2292 = vmatpush1.msra.mxu0 0.0
      %2293 = vmatprep.subr.mxu0 0.0
      %2294 = vmatpush1.msra.mxu0 0.0
      %2295 = vmatprep.subr.mxu0 0.0
      %2296 = vmatpush1.msra.mxu0 0.0
      %2297 = vmatprep.subr.mxu0 0.0
      %2298 = vmatpush1.msra.mxu0 0.0
      %2299 = vmatprep.subr.mxu0 0.0
      %2300 = vmatpush1.msra.mxu0 0.0
      %2301 = vmatprep.subr.mxu0 0.0
      %2302 = vmatpush1.msra.mxu0 0.0
      %2303 = vmatprep.mubr.f32.mxu0 0.0
      %2304 = vmatmul.mubr.f32.gmra.mrb[0].mxu0 %v2231
      %v2305 = vpop.f32.mrb[0].mxu0
      %v2306 = vadd.f32 %v2214, %v2305
      %v2307 = vpop.f32.mrb[0].mxu0
      %2308 = vmatprep.mubr.f32.mxu0 0.0
      %2309 = vmatmul.mubr.f32.gmra.mrb[0].mxu0 %v2233
      %v2310 = vpop.f32.mrb[0].mxu0
      %v2311 = vadd.f32 %v2219, %v2310
      %v2312 = vpop.f32.mrb[0].mxu0
      %2313 = vmatprep.mubr.f32.mxu0 0.0
      %2314 = vmatmul.mubr.f32.gmra.mrb[0].mxu0 %v2235
      %v2315 = vpop.f32.mrb[0].mxu0
      %v2316 = vadd.f32 %v2224, %v2315
      %v2317 = vpop.f32.mrb[0].mxu0
      %2318 = vmatprep.mubr.f32.mxu0 0.0
      %2319 = vmatmul.mubr.f32.gmra.mrb[0].mxu0 %v2237
      %v2320 = vpop.f32.mrb[0].mxu0
      %v2321 = vadd.f32 %v2229, %v2320
      %v2322 = vpop.f32.mrb[0].mxu0
      %2323 = vdwg.mxu0
      %v2324 = vmax.f32 %v2306, 0.0
      %v2325 = vmax.f32 %v2311, 0.0
      %v2326 = vmax.f32 %v2316, 0.0
      %v2327 = vmax.f32 %v2321, 0.0
      %2329 = vrot.lane.b32.xlu0 %v2325, 64
      %v2330 = vpop.permute.xlu0 %2329
      %2333 = vrot.lane.b32.xlu0 %v2327, 64
      %v2334 = vpop.permute.xlu0 %2333
      %v2336 = vsel %vm888, %v2324, %v2330
      %v2337 = vsel %vm888, %v2326, %v2334
      %v2338 = vld [vmem:[%s2 + $0x140] sm:$0xff]
      %v2339 = vld [vmem:[%s2 + $0x148] sm:$0xff]
      %2341 = vset.pattern.permute.xlu0 32
      %2342 = vperm.xlu0 %2341, %v2338
      %v2343 = vpop.permute.xlu0 %2342
      %v2345 = vsel %vm2063, %v2338, 0
      %2347 = vmatprep.subr.mxu0 %v2337
      %2348 = vmatpush1.msra.mxu0 %v2336
      %2349 = vmatprep.subr.mxu0 0.0
      %2350 = vmatpush1.msra.mxu0 0.0
      %2351 = vmatprep.subr.mxu0 0.0
      %2352 = vmatpush1.msra.mxu0 0.0
      %2353 = vmatprep.subr.mxu0 0.0
      %2354 = vmatpush1.msra.mxu0 0.0
      %2355 = vmatprep.subr.mxu0 0.0
      %2356 = vmatpush1.msra.mxu0 0.0
      %2357 = vmatprep.subr.mxu0 0.0
      %2358 = vmatpush1.msra.mxu0 0.0
      %2359 = vmatprep.subr.mxu0 0.0
      %2360 = vmatpush1.msra.mxu0 0.0
      %2361 = vmatprep.subr.mxu0 0.0
      %2362 = vmatpush1.msra.mxu0 0.0
      %2363 = vmatprep.subr.mxu0 0.0
      %2364 = vmatpush1.msra.mxu0 0.0
      %2365 = vmatprep.subr.mxu0 0.0
      %2366 = vmatpush1.msra.mxu0 0.0
      %2367 = vmatprep.subr.mxu0 0.0
      %2368 = vmatpush1.msra.mxu0 0.0
      %2369 = vmatprep.subr.mxu0 0.0
      %2370 = vmatpush1.msra.mxu0 0.0
      %2371 = vmatprep.subr.mxu0 0.0
      %2372 = vmatpush1.msra.mxu0 0.0
      %2373 = vmatprep.subr.mxu0 0.0
      %2374 = vmatpush1.msra.mxu0 0.0
      %2375 = vmatprep.subr.mxu0 0.0
      %2376 = vmatpush1.msra.mxu0 0.0
      %2377 = vmatprep.subr.mxu0 0.0
      %2378 = vmatpush1.msra.mxu0 0.0
      %2379 = vmatprep.subr.mxu0 0.0
      %2380 = vmatpush1.msra.mxu0 0.0
      %2381 = vmatprep.subr.mxu0 0.0
      %2382 = vmatpush1.msra.mxu0 0.0
      %2383 = vmatprep.subr.mxu0 0.0
      %2384 = vmatpush1.msra.mxu0 0.0
      %2385 = vmatprep.subr.mxu0 0.0
      %2386 = vmatpush1.msra.mxu0 0.0
      %2387 = vmatprep.subr.mxu0 0.0
      %2388 = vmatpush1.msra.mxu0 0.0
      %2389 = vmatprep.subr.mxu0 0.0
      %2390 = vmatpush1.msra.mxu0 0.0
      %2391 = vmatprep.subr.mxu0 0.0
      %2392 = vmatpush1.msra.mxu0 0.0
      %2393 = vmatprep.subr.mxu0 0.0
      %2394 = vmatpush1.msra.mxu0 0.0
      %2395 = vmatprep.subr.mxu0 0.0
      %2396 = vmatpush1.msra.mxu0 0.0
      %2397 = vmatprep.subr.mxu0 0.0
      %2398 = vmatpush1.msra.mxu0 0.0
      %2399 = vmatprep.subr.mxu0 0.0
      %2400 = vmatpush1.msra.mxu0 0.0
      %2401 = vmatprep.subr.mxu0 0.0
      %2402 = vmatpush1.msra.mxu0 0.0
      %2403 = vmatprep.subr.mxu0 0.0
      %2404 = vmatpush1.msra.mxu0 0.0
      %2405 = vmatprep.subr.mxu0 0.0
      %2406 = vmatpush1.msra.mxu0 0.0
      %2407 = vmatprep.subr.mxu0 0.0
      %2408 = vmatpush1.msra.mxu0 0.0
      %2409 = vmatprep.subr.mxu0 0.0
      %2410 = vmatpush1.msra.mxu0 0.0
      %2411 = vmatprep.mubr.f32.mxu0 0.0
      %2412 = vmatmul.mubr.f32.gmra.mrb[0].mxu0 %v2345
      %v2413 = vpop.f32.mrb[0].mxu0
      %v2414 = vadd.f32 %v2343, %v2413
      %v2415 = vpop.f32.mrb[0].mxu0
      %v2416 = vadd.f32 %v2343, %v2415
      %2417 = vdwg.mxu0
      %v2418 = vmax.f32 %v2414, 0.0
      %v2419 = vmax.f32 %v2416, 0.0
      %2421 = vset.pattern.permute.xlu0 32
      %2422 = vperm.xlu0 %2421, %v2339
      %v2423 = vpop.permute.xlu0 %2422
      %v2425 = vsel %vm2063, %v2339, 0
      %2427 = vmatprep.subr.mxu0 %v2419
      %2428 = vmatpush1.msra.mxu0 %v2418
      %2429 = vmatprep.subr.mxu0 0.0
      %2430 = vmatpush1.msra.mxu0 0.0
      %2431 = vmatprep.subr.mxu0 0.0
      %2432 = vmatpush1.msra.mxu0 0.0
      %2433 = vmatprep.subr.mxu0 0.0
      %2434 = vmatpush1.msra.mxu0 0.0
      %2435 = vmatprep.subr.mxu0 0.0
      %2436 = vmatpush1.msra.mxu0 0.0
      %2437 = vmatprep.subr.mxu0 0.0
      %2438 = vmatpush1.msra.mxu0 0.0
      %2439 = vmatprep.subr.mxu0 0.0
      %2440 = vmatpush1.msra.mxu0 0.0
      %2441 = vmatprep.subr.mxu0 0.0
      %2442 = vmatpush1.msra.mxu0 0.0
      %2443 = vmatprep.subr.mxu0 0.0
      %2444 = vmatpush1.msra.mxu0 0.0
      %2445 = vmatprep.subr.mxu0 0.0
      %2446 = vmatpush1.msra.mxu0 0.0
      %2447 = vmatprep.subr.mxu0 0.0
      %2448 = vmatpush1.msra.mxu0 0.0
      %2449 = vmatprep.subr.mxu0 0.0
      %2450 = vmatpush1.msra.mxu0 0.0
      %2451 = vmatprep.subr.mxu0 0.0
      %2452 = vmatpush1.msra.mxu0 0.0
      %2453 = vmatprep.subr.mxu0 0.0
      %2454 = vmatpush1.msra.mxu0 0.0
      %2455 = vmatprep.subr.mxu0 0.0
      %2456 = vmatpush1.msra.mxu0 0.0
      %2457 = vmatprep.subr.mxu0 0.0
      %2458 = vmatpush1.msra.mxu0 0.0
      %2459 = vmatprep.subr.mxu0 0.0
      %2460 = vmatpush1.msra.mxu0 0.0
      %2461 = vmatprep.subr.mxu0 0.0
      %2462 = vmatpush1.msra.mxu0 0.0
      %2463 = vmatprep.subr.mxu0 0.0
      %2464 = vmatpush1.msra.mxu0 0.0
      %2465 = vmatprep.subr.mxu0 0.0
      %2466 = vmatpush1.msra.mxu0 0.0
      %2467 = vmatprep.subr.mxu0 0.0
      %2468 = vmatpush1.msra.mxu0 0.0
      %2469 = vmatprep.subr.mxu0 0.0
      %2470 = vmatpush1.msra.mxu0 0.0
      %2471 = vmatprep.subr.mxu0 0.0
      %2472 = vmatpush1.msra.mxu0 0.0
      %2473 = vmatprep.subr.mxu0 0.0
      %2474 = vmatpush1.msra.mxu0 0.0
      %2475 = vmatprep.subr.mxu0 0.0
      %2476 = vmatpush1.msra.mxu0 0.0
      %2477 = vmatprep.subr.mxu0 0.0
      %2478 = vmatpush1.msra.mxu0 0.0
      %2479 = vmatprep.subr.mxu0 0.0
      %2480 = vmatpush1.msra.mxu0 0.0
      %2481 = vmatprep.subr.mxu0 0.0
      %2482 = vmatpush1.msra.mxu0 0.0
      %2483 = vmatprep.subr.mxu0 0.0
      %2484 = vmatpush1.msra.mxu0 0.0
      %2485 = vmatprep.subr.mxu0 0.0
      %2486 = vmatpush1.msra.mxu0 0.0
      %2487 = vmatprep.subr.mxu0 0.0
      %2488 = vmatpush1.msra.mxu0 0.0
      %2489 = vmatprep.subr.mxu0 0.0
      %2490 = vmatpush1.msra.mxu0 0.0
      %2491 = vmatprep.mubr.f32.mxu0 0.0
      %2492 = vmatmul.mubr.f32.gmra.mrb[0].mxu0 %v2425
      %v2493 = vpop.f32.mrb[0].mxu0
      %v2494 = vadd.f32 %v2423, %v2493
      %v2495 = vpop.f32.mrb[0].mxu0
      %v2496 = vadd.f32 %v2423, %v2495
      %2497 = vdwg.mxu0
      %2498 = vst [vmem:[%s278] sm:$0xff] %v2494
      %2499 = vst [vmem:[%s278 + $0x8] sm:$0xff] %v2496
      %v2500 = vld [vmem:[%s2 + $0x100] sm:$0xff]
      %v2501 = vld [vmem:[%s2 + $0x108] sm:$0xff]
      %v2502 = vld [vmem:[%s2 + $0x110] sm:$0xff]
      %v2503 = vld [vmem:[%s2 + $0x118] sm:$0xff]
      %2505 = vset.pattern.permute.xlu0 32
      %2506 = vperm.xlu0 %2505, %v2500
      %v2507 = vpop.permute.xlu0 %2506
      %2510 = vset.pattern.permute.xlu0 32
      %2511 = vperm.xlu0 %2510, %v2501
      %v2512 = vpop.permute.xlu0 %2511
      %2515 = vset.pattern.permute.xlu0 32
      %2516 = vperm.xlu0 %2515, %v2502
      %v2517 = vpop.permute.xlu0 %2516
      %2520 = vset.pattern.permute.xlu0 32
      %2521 = vperm.xlu0 %2520, %v2503
      %v2522 = vpop.permute.xlu0 %2521
      %v2524 = vsel %vm2063, %v2500, 0
      %v2526 = vsel %vm2063, %v2501, 0
      %v2528 = vsel %vm2063, %v2502, 0
      %v2530 = vsel %vm2063, %v2503, 0
      %2532 = vmatprep.subr.mxu0 %v2337
      %2533 = vmatpush1.msra.mxu0 %v2336
      %2534 = vmatprep.subr.mxu0 0.0
      %2535 = vmatpush1.msra.mxu0 0.0
      %2536 = vmatprep.subr.mxu0 0.0
      %2537 = vmatpush1.msra.mxu0 0.0
      %2538 = vmatprep.subr.mxu0 0.0
      %2539 = vmatpush1.msra.mxu0 0.0
      %2540 = vmatprep.subr.mxu0 0.0
      %2541 = vmatpush1.msra.mxu0 0.0
      %2542 = vmatprep.subr.mxu0 0.0
      %2543 = vmatpush1.msra.mxu0 0.0
      %2544 = vmatprep.subr.mxu0 0.0
      %2545 = vmatpush1.msra.mxu0 0.0
      %2546 = vmatprep.subr.mxu0 0.0
      %2547 = vmatpush1.msra.mxu0 0.0
      %2548 = vmatprep.subr.mxu0 0.0
      %2549 = vmatpush1.msra.mxu0 0.0
      %2550 = vmatprep.subr.mxu0 0.0
      %2551 = vmatpush1.msra.mxu0 0.0
      %2552 = vmatprep.subr.mxu0 0.0
      %2553 = vmatpush1.msra.mxu0 0.0
      %2554 = vmatprep.subr.mxu0 0.0
      %2555 = vmatpush1.msra.mxu0 0.0
      %2556 = vmatprep.subr.mxu0 0.0
      %2557 = vmatpush1.msra.mxu0 0.0
      %2558 = vmatprep.subr.mxu0 0.0
      %2559 = vmatpush1.msra.mxu0 0.0
      %2560 = vmatprep.subr.mxu0 0.0
      %2561 = vmatpush1.msra.mxu0 0.0
      %2562 = vmatprep.subr.mxu0 0.0
      %2563 = vmatpush1.msra.mxu0 0.0
      %2564 = vmatprep.subr.mxu0 0.0
      %2565 = vmatpush1.msra.mxu0 0.0
      %2566 = vmatprep.subr.mxu0 0.0
      %2567 = vmatpush1.msra.mxu0 0.0
      %2568 = vmatprep.subr.mxu0 0.0
      %2569 = vmatpush1.msra.mxu0 0.0
      %2570 = vmatprep.subr.mxu0 0.0
      %2571 = vmatpush1.msra.mxu0 0.0
      %2572 = vmatprep.subr.mxu0 0.0
      %2573 = vmatpush1.msra.mxu0 0.0
      %2574 = vmatprep.subr.mxu0 0.0
      %2575 = vmatpush1.msra.mxu0 0.0
      %2576 = vmatprep.subr.mxu0 0.0
      %2577 = vmatpush1.msra.mxu0 0.0
      %2578 = vmatprep.subr.mxu0 0.0
      %2579 = vmatpush1.msra.mxu0 0.0
      %2580 = vmatprep.subr.mxu0 0.0
      %2581 = vmatpush1.msra.mxu0 0.0
      %2582 = vmatprep.subr.mxu0 0.0
      %2583 = vmatpush1.msra.mxu0 0.0
      %2584 = vmatprep.subr.mxu0 0.0
      %2585 = vmatpush1.msra.mxu0 0.0
      %2586 = vmatprep.subr.mxu0 0.0
      %2587 = vmatpush1.msra.mxu0 0.0
      %2588 = vmatprep.subr.mxu0 0.0
      %2589 = vmatpush1.msra.mxu0 0.0
      %2590 = vmatprep.subr.mxu0 0.0
      %2591 = vmatpush1.msra.mxu0 0.0
      %2592 = vmatprep.subr.mxu0 0.0
      %2593 = vmatpush1.msra.mxu0 0.0
      %2594 = vmatprep.subr.mxu0 0.0
      %2595 = vmatpush1.msra.mxu0 0.0
      %2596 = vmatprep.mubr.f32.mxu0 0.0
      %2597 = vmatmul.mubr.f32.gmra.mrb[0].mxu0 %v2524
      %v2598 = vpop.f32.mrb[0].mxu0
      %v2599 = vadd.f32 %v2507, %v2598
      %v2600 = vpop.f32.mrb[0].mxu0
      %v2601 = vadd.f32 %v2507, %v2600
      %2602 = vmatprep.mubr.f32.mxu0 0.0
      %2603 = vmatmul.mubr.f32.gmra.mrb[0].mxu0 %v2526
      %v2604 = vpop.f32.mrb[0].mxu0
      %v2605 = vadd.f32 %v2512, %v2604
      %v2606 = vpop.f32.mrb[0].mxu0
      %v2607 = vadd.f32 %v2512, %v2606
      %2608 = vmatprep.mubr.f32.mxu0 0.0
      %2609 = vmatmul.mubr.f32.gmra.mrb[0].mxu0 %v2528
      %v2610 = vpop.f32.mrb[0].mxu0
      %v2611 = vadd.f32 %v2517, %v2610
      %v2612 = vpop.f32.mrb[0].mxu0
      %v2613 = vadd.f32 %v2517, %v2612
      %2614 = vmatprep.mubr.f32.mxu0 0.0
      %2615 = vmatmul.mubr.f32.gmra.mrb[0].mxu0 %v2530
      %v2616 = vpop.f32.mrb[0].mxu0
      %v2617 = vadd.f32 %v2522, %v2616
      %v2618 = vpop.f32.mrb[0].mxu0
      %v2619 = vadd.f32 %v2522, %v2618
      %2620 = vdwg.mxu0
      %v2621 = vmax.f32 %v2599, 0.0
      %v2622 = vmax.f32 %v2601, 0.0
      %v2623 = vmax.f32 %v2605, 0.0
      %v2624 = vmax.f32 %v2607, 0.0
      %v2625 = vmax.f32 %v2611, 0.0
      %v2626 = vmax.f32 %v2613, 0.0
      %v2627 = vmax.f32 %v2617, 0.0
      %v2628 = vmax.f32 %v2619, 0.0
      %v2629 = vld [vmem:[%s2 + $0x150] sm:$0xff]
      %v2630 = vld [vmem:[%s2 + $0x158] sm:$0xff]
      %2632 = vset.pattern.permute.xlu0 32
      %2633 = vperm.xlu0 %2632, %v2629
      %v2634 = vpop.permute.xlu0 %2633
      %v2636 = vsel %vm2063, %v2629, 0
      %2638 = vmatprep.subr.mxu0 %v2622
      %2639 = vmatpush1.msra.mxu0 %v2621
      %2640 = vmatprep.subr.mxu0 0.0
      %2641 = vmatpush1.msra.mxu0 0.0
      %2642 = vmatprep.subr.mxu0 0.0
      %2643 = vmatpush1.msra.mxu0 0.0
      %2644 = vmatprep.subr.mxu0 0.0
      %2645 = vmatpush1.msra.mxu0 0.0
      %2646 = vmatprep.subr.mxu0 0.0
      %2647 = vmatpush1.msra.mxu0 0.0
      %2648 = vmatprep.subr.mxu0 0.0
      %2649 = vmatpush1.msra.mxu0 0.0
      %2650 = vmatprep.subr.mxu0 0.0
      %2651 = vmatpush1.msra.mxu0 0.0
      %2652 = vmatprep.subr.mxu0 0.0
      %2653 = vmatpush1.msra.mxu0 0.0
      %2654 = vmatprep.subr.mxu0 0.0
      %2655 = vmatpush1.msra.mxu0 0.0
      %2656 = vmatprep.subr.mxu0 0.0
      %2657 = vmatpush1.msra.mxu0 0.0
      %2658 = vmatprep.subr.mxu0 0.0
      %2659 = vmatpush1.msra.mxu0 0.0
      %2660 = vmatprep.subr.mxu0 0.0
      %2661 = vmatpush1.msra.mxu0 0.0
      %2662 = vmatprep.subr.mxu0 0.0
      %2663 = vmatpush1.msra.mxu0 0.0
      %2664 = vmatprep.subr.mxu0 0.0
      %2665 = vmatpush1.msra.mxu0 0.0
      %2666 = vmatprep.subr.mxu0 0.0
      %2667 = vmatpush1.msra.mxu0 0.0
      %2668 = vmatprep.subr.mxu0 0.0
      %2669 = vmatpush1.msra.mxu0 0.0
      %2670 = vmatprep.subr.mxu0 0.0
      %2671 = vmatpush1.msra.mxu0 0.0
      %2672 = vmatprep.subr.mxu0 0.0
      %2673 = vmatpush1.msra.mxu0 0.0
      %2674 = vmatprep.subr.mxu0 0.0
      %2675 = vmatpush1.msra.mxu0 0.0
      %2676 = vmatprep.subr.mxu0 0.0
      %2677 = vmatpush1.msra.mxu0 0.0
      %2678 = vmatprep.subr.mxu0 0.0
      %2679 = vmatpush1.msra.mxu0 0.0
      %2680 = vmatprep.subr.mxu0 0.0
      %2681 = vmatpush1.msra.mxu0 0.0
      %2682 = vmatprep.subr.mxu0 0.0
      %2683 = vmatpush1.msra.mxu0 0.0
      %2684 = vmatprep.subr.mxu0 0.0
      %2685 = vmatpush1.msra.mxu0 0.0
      %2686 = vmatprep.subr.mxu0 0.0
      %2687 = vmatpush1.msra.mxu0 0.0
      %2688 = vmatprep.subr.mxu0 0.0
      %2689 = vmatpush1.msra.mxu0 0.0
      %2690 = vmatprep.subr.mxu0 0.0
      %2691 = vmatpush1.msra.mxu0 0.0
      %2692 = vmatprep.subr.mxu0 0.0
      %2693 = vmatpush1.msra.mxu0 0.0
      %2694 = vmatprep.subr.mxu0 0.0
      %2695 = vmatpush1.msra.mxu0 0.0
      %2696 = vmatprep.subr.mxu0 0.0
      %2697 = vmatpush1.msra.mxu0 0.0
      %2698 = vmatprep.subr.mxu0 0.0
      %2699 = vmatpush1.msra.mxu0 0.0
      %2700 = vmatprep.subr.mxu0 0.0
      %2701 = vmatpush1.msra.mxu0 0.0
      %2702 = vmatprep.mubr.f32.mxu0 0.0
      %2703 = vmatmul.mubr.f32.gmra.mrb[0].mxu0 %v2636
      %v2704 = vpop.f32.mrb[0].mxu0
      %v2705 = vadd.f32 %v2634, %v2704
      %v2706 = vpop.f32.mrb[0].mxu0
      %v2707 = vadd.f32 %v2634, %v2706
      %2708 = vdwg.mxu0
      %2709 = vmatprep.subr.mxu0 %v2624
      %2710 = vmatpush1.msra.mxu0 %v2623
      %2711 = vmatprep.subr.mxu0 0.0
      %2712 = vmatpush1.msra.mxu0 0.0
      %2713 = vmatprep.subr.mxu0 0.0
      %2714 = vmatpush1.msra.mxu0 0.0
      %2715 = vmatprep.subr.mxu0 0.0
      %2716 = vmatpush1.msra.mxu0 0.0
      %2717 = vmatprep.subr.mxu0 0.0
      %2718 = vmatpush1.msra.mxu0 0.0
      %2719 = vmatprep.subr.mxu0 0.0
      %2720 = vmatpush1.msra.mxu0 0.0
      %2721 = vmatprep.subr.mxu0 0.0
      %2722 = vmatpush1.msra.mxu0 0.0
      %2723 = vmatprep.subr.mxu0 0.0
      %2724 = vmatpush1.msra.mxu0 0.0
      %2725 = vmatprep.subr.mxu0 0.0
      %2726 = vmatpush1.msra.mxu0 0.0
      %2727 = vmatprep.subr.mxu0 0.0
      %2728 = vmatpush1.msra.mxu0 0.0
      %2729 = vmatprep.subr.mxu0 0.0
      %2730 = vmatpush1.msra.mxu0 0.0
      %2731 = vmatprep.subr.mxu0 0.0
      %2732 = vmatpush1.msra.mxu0 0.0
      %2733 = vmatprep.subr.mxu0 0.0
      %2734 = vmatpush1.msra.mxu0 0.0
      %2735 = vmatprep.subr.mxu0 0.0
      %2736 = vmatpush1.msra.mxu0 0.0
      %2737 = vmatprep.subr.mxu0 0.0
      %2738 = vmatpush1.msra.mxu0 0.0
      %2739 = vmatprep.subr.mxu0 0.0
      %2740 = vmatpush1.msra.mxu0 0.0
      %2741 = vmatprep.subr.mxu0 0.0
      %2742 = vmatpush1.msra.mxu0 0.0
      %2743 = vmatprep.subr.mxu0 0.0
      %2744 = vmatpush1.msra.mxu0 0.0
      %2745 = vmatprep.subr.mxu0 0.0
      %2746 = vmatpush1.msra.mxu0 0.0
      %2747 = vmatprep.subr.mxu0 0.0
      %2748 = vmatpush1.msra.mxu0 0.0
      %2749 = vmatprep.subr.mxu0 0.0
      %2750 = vmatpush1.msra.mxu0 0.0
      %2751 = vmatprep.subr.mxu0 0.0
      %2752 = vmatpush1.msra.mxu0 0.0
      %2753 = vmatprep.subr.mxu0 0.0
      %2754 = vmatpush1.msra.mxu0 0.0
      %2755 = vmatprep.subr.mxu0 0.0
      %2756 = vmatpush1.msra.mxu0 0.0
      %2757 = vmatprep.subr.mxu0 0.0
      %2758 = vmatpush1.msra.mxu0 0.0
      %2759 = vmatprep.subr.mxu0 0.0
      %2760 = vmatpush1.msra.mxu0 0.0
      %2761 = vmatprep.subr.mxu0 0.0
      %2762 = vmatpush1.msra.mxu0 0.0
      %2763 = vmatprep.subr.mxu0 0.0
      %2764 = vmatpush1.msra.mxu0 0.0
      %2765 = vmatprep.subr.mxu0 0.0
      %2766 = vmatpush1.msra.mxu0 0.0
      %2767 = vmatprep.subr.mxu0 0.0
      %2768 = vmatpush1.msra.mxu0 0.0
      %2769 = vmatprep.subr.mxu0 0.0
      %2770 = vmatpush1.msra.mxu0 0.0
      %2771 = vmatprep.subr.mxu0 0.0
      %2772 = vmatpush1.msra.mxu0 0.0
      %2773 = vmatprep.mubr.f32.mxu0 0.0
      %2774 = vmatmul.mubr.f32.gmra.mrb[0].mxu0 %v2636
      %v2775 = vpop.f32.mrb[0].mxu0
      %v2776 = vadd.f32 %v2634, %v2775
      %v2777 = vpop.f32.mrb[0].mxu0
      %v2778 = vadd.f32 %v2634, %v2777
      %2779 = vdwg.mxu0
      %2780 = vmatprep.subr.mxu0 %v2626
      %2781 = vmatpush1.msra.mxu0 %v2625
      %2782 = vmatprep.subr.mxu0 0.0
      %2783 = vmatpush1.msra.mxu0 0.0
      %2784 = vmatprep.subr.mxu0 0.0
      %2785 = vmatpush1.msra.mxu0 0.0
      %2786 = vmatprep.subr.mxu0 0.0
      %2787 = vmatpush1.msra.mxu0 0.0
      %2788 = vmatprep.subr.mxu0 0.0
      %2789 = vmatpush1.msra.mxu0 0.0
      %2790 = vmatprep.subr.mxu0 0.0
      %2791 = vmatpush1.msra.mxu0 0.0
      %2792 = vmatprep.subr.mxu0 0.0
      %2793 = vmatpush1.msra.mxu0 0.0
      %2794 = vmatprep.subr.mxu0 0.0
      %2795 = vmatpush1.msra.mxu0 0.0
      %2796 = vmatprep.subr.mxu0 0.0
      %2797 = vmatpush1.msra.mxu0 0.0
      %2798 = vmatprep.subr.mxu0 0.0
      %2799 = vmatpush1.msra.mxu0 0.0
      %2800 = vmatprep.subr.mxu0 0.0
      %2801 = vmatpush1.msra.mxu0 0.0
      %2802 = vmatprep.subr.mxu0 0.0
      %2803 = vmatpush1.msra.mxu0 0.0
      %2804 = vmatprep.subr.mxu0 0.0
      %2805 = vmatpush1.msra.mxu0 0.0
      %2806 = vmatprep.subr.mxu0 0.0
      %2807 = vmatpush1.msra.mxu0 0.0
      %2808 = vmatprep.subr.mxu0 0.0
      %2809 = vmatpush1.msra.mxu0 0.0
      %2810 = vmatprep.subr.mxu0 0.0
      %2811 = vmatpush1.msra.mxu0 0.0
      %2812 = vmatprep.subr.mxu0 0.0
      %2813 = vmatpush1.msra.mxu0 0.0
      %2814 = vmatprep.subr.mxu0 0.0
      %2815 = vmatpush1.msra.mxu0 0.0
      %2816 = vmatprep.subr.mxu0 0.0
      %2817 = vmatpush1.msra.mxu0 0.0
      %2818 = vmatprep.subr.mxu0 0.0
      %2819 = vmatpush1.msra.mxu0 0.0
      %2820 = vmatprep.subr.mxu0 0.0
      %2821 = vmatpush1.msra.mxu0 0.0
      %2822 = vmatprep.subr.mxu0 0.0
      %2823 = vmatpush1.msra.mxu0 0.0
      %2824 = vmatprep.subr.mxu0 0.0
      %2825 = vmatpush1.msra.mxu0 0.0
      %2826 = vmatprep.subr.mxu0 0.0
      %2827 = vmatpush1.msra.mxu0 0.0
      %2828 = vmatprep.subr.mxu0 0.0
      %2829 = vmatpush1.msra.mxu0 0.0
      %2830 = vmatprep.subr.mxu0 0.0
      %2831 = vmatpush1.msra.mxu0 0.0
      %2832 = vmatprep.subr.mxu0 0.0
      %2833 = vmatpush1.msra.mxu0 0.0
      %2834 = vmatprep.subr.mxu0 0.0
      %2835 = vmatpush1.msra.mxu0 0.0
      %2836 = vmatprep.subr.mxu0 0.0
      %2837 = vmatpush1.msra.mxu0 0.0
      %2838 = vmatprep.subr.mxu0 0.0
      %2839 = vmatpush1.msra.mxu0 0.0
      %2840 = vmatprep.subr.mxu0 0.0
      %2841 = vmatpush1.msra.mxu0 0.0
      %2842 = vmatprep.subr.mxu0 0.0
      %2843 = vmatpush1.msra.mxu0 0.0
      %2844 = vmatprep.mubr.f32.mxu0 0.0
      %2845 = vmatmul.mubr.f32.gmra.mrb[0].mxu0 %v2636
      %v2846 = vpop.f32.mrb[0].mxu0
      %v2847 = vadd.f32 %v2634, %v2846
      %v2848 = vpop.f32.mrb[0].mxu0
      %v2849 = vadd.f32 %v2634, %v2848
      %2850 = vdwg.mxu0
      %2851 = vmatprep.subr.mxu0 %v2628
      %2852 = vmatpush1.msra.mxu0 %v2627
      %2853 = vmatprep.subr.mxu0 0.0
      %2854 = vmatpush1.msra.mxu0 0.0
      %2855 = vmatprep.subr.mxu0 0.0
      %2856 = vmatpush1.msra.mxu0 0.0
      %2857 = vmatprep.subr.mxu0 0.0
      %2858 = vmatpush1.msra.mxu0 0.0
      %2859 = vmatprep.subr.mxu0 0.0
      %2860 = vmatpush1.msra.mxu0 0.0
      %2861 = vmatprep.subr.mxu0 0.0
      %2862 = vmatpush1.msra.mxu0 0.0
      %2863 = vmatprep.subr.mxu0 0.0
      %2864 = vmatpush1.msra.mxu0 0.0
      %2865 = vmatprep.subr.mxu0 0.0
      %2866 = vmatpush1.msra.mxu0 0.0
      %2867 = vmatprep.subr.mxu0 0.0
      %2868 = vmatpush1.msra.mxu0 0.0
      %2869 = vmatprep.subr.mxu0 0.0
      %2870 = vmatpush1.msra.mxu0 0.0
      %2871 = vmatprep.subr.mxu0 0.0
      %2872 = vmatpush1.msra.mxu0 0.0
      %2873 = vmatprep.subr.mxu0 0.0
      %2874 = vmatpush1.msra.mxu0 0.0
      %2875 = vmatprep.subr.mxu0 0.0
      %2876 = vmatpush1.msra.mxu0 0.0
      %2877 = vmatprep.subr.mxu0 0.0
      %2878 = vmatpush1.msra.mxu0 0.0
      %2879 = vmatprep.subr.mxu0 0.0
      %2880 = vmatpush1.msra.mxu0 0.0
      %2881 = vmatprep.subr.mxu0 0.0
      %2882 = vmatpush1.msra.mxu0 0.0
      %2883 = vmatprep.subr.mxu0 0.0
      %2884 = vmatpush1.msra.mxu0 0.0
      %2885 = vmatprep.subr.mxu0 0.0
      %2886 = vmatpush1.msra.mxu0 0.0
      %2887 = vmatprep.subr.mxu0 0.0
      %2888 = vmatpush1.msra.mxu0 0.0
      %2889 = vmatprep.subr.mxu0 0.0
      %2890 = vmatpush1.msra.mxu0 0.0
      %2891 = vmatprep.subr.mxu0 0.0
      %2892 = vmatpush1.msra.mxu0 0.0
      %2893 = vmatprep.subr.mxu0 0.0
      %2894 = vmatpush1.msra.mxu0 0.0
      %2895 = vmatprep.subr.mxu0 0.0
      %2896 = vmatpush1.msra.mxu0 0.0
      %2897 = vmatprep.subr.mxu0 0.0
      %2898 = vmatpush1.msra.mxu0 0.0
      %2899 = vmatprep.subr.mxu0 0.0
      %2900 = vmatpush1.msra.mxu0 0.0
      %2901 = vmatprep.subr.mxu0 0.0
      %2902 = vmatpush1.msra.mxu0 0.0
      %2903 = vmatprep.subr.mxu0 0.0
      %2904 = vmatpush1.msra.mxu0 0.0
      %2905 = vmatprep.subr.mxu0 0.0
      %2906 = vmatpush1.msra.mxu0 0.0
      %2907 = vmatprep.subr.mxu0 0.0
      %2908 = vmatpush1.msra.mxu0 0.0
      %2909 = vmatprep.subr.mxu0 0.0
      %2910 = vmatpush1.msra.mxu0 0.0
      %2911 = vmatprep.subr.mxu0 0.0
      %2912 = vmatpush1.msra.mxu0 0.0
      %2913 = vmatprep.subr.mxu0 0.0
      %2914 = vmatpush1.msra.mxu0 0.0
      %2915 = vmatprep.mubr.f32.mxu0 0.0
      %2916 = vmatmul.mubr.f32.gmra.mrb[0].mxu0 %v2636
      %v2917 = vpop.f32.mrb[0].mxu0
      %v2918 = vadd.f32 %v2634, %v2917
      %v2919 = vpop.f32.mrb[0].mxu0
      %v2920 = vadd.f32 %v2634, %v2919
      %2921 = vdwg.mxu0
      %v2922 = vmax.f32 %v2705, 0.0
      %v2923 = vmax.f32 %v2707, 0.0
      %v2924 = vmax.f32 %v2776, 0.0
      %v2925 = vmax.f32 %v2778, 0.0
      %v2926 = vmax.f32 %v2847, 0.0
      %v2927 = vmax.f32 %v2849, 0.0
      %v2928 = vmax.f32 %v2918, 0.0
      %v2929 = vmax.f32 %v2920, 0.0
      %2931 = vset.pattern.permute.xlu0 32
      %2932 = vperm.xlu0 %2931, %v2630
      %v2933 = vpop.permute.xlu0 %2932
      %v2935 = vsel %vm2063, %v2630, 0
      %2937 = vmatprep.subr.mxu0 %v2923
      %2938 = vmatpush1.msra.mxu0 %v2922
      %2939 = vmatprep.subr.mxu0 0.0
      %2940 = vmatpush1.msra.mxu0 0.0
      %2941 = vmatprep.subr.mxu0 0.0
      %2942 = vmatpush1.msra.mxu0 0.0
      %2943 = vmatprep.subr.mxu0 0.0
      %2944 = vmatpush1.msra.mxu0 0.0
      %2945 = vmatprep.subr.mxu0 0.0
      %2946 = vmatpush1.msra.mxu0 0.0
      %2947 = vmatprep.subr.mxu0 0.0
      %2948 = vmatpush1.msra.mxu0 0.0
      %2949 = vmatprep.subr.mxu0 0.0
      %2950 = vmatpush1.msra.mxu0 0.0
      %2951 = vmatprep.subr.mxu0 0.0
      %2952 = vmatpush1.msra.mxu0 0.0
      %2953 = vmatprep.subr.mxu0 0.0
      %2954 = vmatpush1.msra.mxu0 0.0
      %2955 = vmatprep.subr.mxu0 0.0
      %2956 = vmatpush1.msra.mxu0 0.0
      %2957 = vmatprep.subr.mxu0 0.0
      %2958 = vmatpush1.msra.mxu0 0.0
      %2959 = vmatprep.subr.mxu0 0.0
      %2960 = vmatpush1.msra.mxu0 0.0
      %2961 = vmatprep.subr.mxu0 0.0
      %2962 = vmatpush1.msra.mxu0 0.0
      %2963 = vmatprep.subr.mxu0 0.0
      %2964 = vmatpush1.msra.mxu0 0.0
      %2965 = vmatprep.subr.mxu0 0.0
      %2966 = vmatpush1.msra.mxu0 0.0
      %2967 = vmatprep.subr.mxu0 0.0
      %2968 = vmatpush1.msra.mxu0 0.0
      %2969 = vmatprep.subr.mxu0 0.0
      %2970 = vmatpush1.msra.mxu0 0.0
      %2971 = vmatprep.subr.mxu0 0.0
      %2972 = vmatpush1.msra.mxu0 0.0
      %2973 = vmatprep.subr.mxu0 0.0
      %2974 = vmatpush1.msra.mxu0 0.0
      %2975 = vmatprep.subr.mxu0 0.0
      %2976 = vmatpush1.msra.mxu0 0.0
      %2977 = vmatprep.subr.mxu0 0.0
      %2978 = vmatpush1.msra.mxu0 0.0
      %2979 = vmatprep.subr.mxu0 0.0
      %2980 = vmatpush1.msra.mxu0 0.0
      %2981 = vmatprep.subr.mxu0 0.0
      %2982 = vmatpush1.msra.mxu0 0.0
      %2983 = vmatprep.subr.mxu0 0.0
      %2984 = vmatpush1.msra.mxu0 0.0
      %2985 = vmatprep.subr.mxu0 0.0
      %2986 = vmatpush1.msra.mxu0 0.0
      %2987 = vmatprep.subr.mxu0 0.0
      %2988 = vmatpush1.msra.mxu0 0.0
      %2989 = vmatprep.subr.mxu0 0.0
      %2990 = vmatpush1.msra.mxu0 0.0
      %2991 = vmatprep.subr.mxu0 0.0
      %2992 = vmatpush1.msra.mxu0 0.0
      %2993 = vmatprep.subr.mxu0 0.0
      %2994 = vmatpush1.msra.mxu0 0.0
      %2995 = vmatprep.subr.mxu0 0.0
      %2996 = vmatpush1.msra.mxu0 0.0
      %2997 = vmatprep.subr.mxu0 0.0
      %2998 = vmatpush1.msra.mxu0 0.0
      %2999 = vmatprep.subr.mxu0 0.0
      %3000 = vmatpush1.msra.mxu0 0.0
      %3001 = vmatprep.mubr.f32.mxu0 0.0
      %3002 = vmatmul.mubr.f32.gmra.mrb[0].mxu0 %v2935
      %v3003 = vpop.f32.mrb[0].mxu0
      %v3004 = vadd.f32 %v2933, %v3003
      %v3005 = vpop.f32.mrb[0].mxu0
      %v3006 = vadd.f32 %v2933, %v3005
      %3007 = vdwg.mxu0
      %3008 = vmatprep.subr.mxu0 %v2925
      %3009 = vmatpush1.msra.mxu0 %v2924
      %3010 = vmatprep.subr.mxu0 0.0
      %3011 = vmatpush1.msra.mxu0 0.0
      %3012 = vmatprep.subr.mxu0 0.0
      %3013 = vmatpush1.msra.mxu0 0.0
      %3014 = vmatprep.subr.mxu0 0.0
      %3015 = vmatpush1.msra.mxu0 0.0
      %3016 = vmatprep.subr.mxu0 0.0
      %3017 = vmatpush1.msra.mxu0 0.0
      %3018 = vmatprep.subr.mxu0 0.0
      %3019 = vmatpush1.msra.mxu0 0.0
      %3020 = vmatprep.subr.mxu0 0.0
      %3021 = vmatpush1.msra.mxu0 0.0
      %3022 = vmatprep.subr.mxu0 0.0
      %3023 = vmatpush1.msra.mxu0 0.0
      %3024 = vmatprep.subr.mxu0 0.0
      %3025 = vmatpush1.msra.mxu0 0.0
      %3026 = vmatprep.subr.mxu0 0.0
      %3027 = vmatpush1.msra.mxu0 0.0
      %3028 = vmatprep.subr.mxu0 0.0
      %3029 = vmatpush1.msra.mxu0 0.0
      %3030 = vmatprep.subr.mxu0 0.0
      %3031 = vmatpush1.msra.mxu0 0.0
      %3032 = vmatprep.subr.mxu0 0.0
      %3033 = vmatpush1.msra.mxu0 0.0
      %3034 = vmatprep.subr.mxu0 0.0
      %3035 = vmatpush1.msra.mxu0 0.0
      %3036 = vmatprep.subr.mxu0 0.0
      %3037 = vmatpush1.msra.mxu0 0.0
      %3038 = vmatprep.subr.mxu0 0.0
      %3039 = vmatpush1.msra.mxu0 0.0
      %3040 = vmatprep.subr.mxu0 0.0
      %3041 = vmatpush1.msra.mxu0 0.0
      %3042 = vmatprep.subr.mxu0 0.0
      %3043 = vmatpush1.msra.mxu0 0.0
      %3044 = vmatprep.subr.mxu0 0.0
      %3045 = vmatpush1.msra.mxu0 0.0
      %3046 = vmatprep.subr.mxu0 0.0
      %3047 = vmatpush1.msra.mxu0 0.0
      %3048 = vmatprep.subr.mxu0 0.0
      %3049 = vmatpush1.msra.mxu0 0.0
      %3050 = vmatprep.subr.mxu0 0.0
      %3051 = vmatpush1.msra.mxu0 0.0
      %3052 = vmatprep.subr.mxu0 0.0
      %3053 = vmatpush1.msra.mxu0 0.0
      %3054 = vmatprep.subr.mxu0 0.0
      %3055 = vmatpush1.msra.mxu0 0.0
      %3056 = vmatprep.subr.mxu0 0.0
      %3057 = vmatpush1.msra.mxu0 0.0
      %3058 = vmatprep.subr.mxu0 0.0
      %3059 = vmatpush1.msra.mxu0 0.0
      %3060 = vmatprep.subr.mxu0 0.0
      %3061 = vmatpush1.msra.mxu0 0.0
      %3062 = vmatprep.subr.mxu0 0.0
      %3063 = vmatpush1.msra.mxu0 0.0
      %3064 = vmatprep.subr.mxu0 0.0
      %3065 = vmatpush1.msra.mxu0 0.0
      %3066 = vmatprep.subr.mxu0 0.0
      %3067 = vmatpush1.msra.mxu0 0.0
      %3068 = vmatprep.subr.mxu0 0.0
      %3069 = vmatpush1.msra.mxu0 0.0
      %3070 = vmatprep.subr.mxu0 0.0
      %3071 = vmatpush1.msra.mxu0 0.0
      %3072 = vmatprep.mubr.f32.mxu0 0.0
      %3073 = vmatmul.mubr.f32.gmra.mrb[0].mxu0 %v2935
      %v3074 = vpop.f32.mrb[0].mxu0
      %v3075 = vadd.f32 %v2933, %v3074
      %v3076 = vpop.f32.mrb[0].mxu0
      %v3077 = vadd.f32 %v2933, %v3076
      %3078 = vdwg.mxu0
      %3079 = vmatprep.subr.mxu0 %v2927
      %3080 = vmatpush1.msra.mxu0 %v2926
      %3081 = vmatprep.subr.mxu0 0.0
      %3082 = vmatpush1.msra.mxu0 0.0
      %3083 = vmatprep.subr.mxu0 0.0
      %3084 = vmatpush1.msra.mxu0 0.0
      %3085 = vmatprep.subr.mxu0 0.0
      %3086 = vmatpush1.msra.mxu0 0.0
      %3087 = vmatprep.subr.mxu0 0.0
      %3088 = vmatpush1.msra.mxu0 0.0
      %3089 = vmatprep.subr.mxu0 0.0
      %3090 = vmatpush1.msra.mxu0 0.0
      %3091 = vmatprep.subr.mxu0 0.0
      %3092 = vmatpush1.msra.mxu0 0.0
      %3093 = vmatprep.subr.mxu0 0.0
      %3094 = vmatpush1.msra.mxu0 0.0
      %3095 = vmatprep.subr.mxu0 0.0
      %3096 = vmatpush1.msra.mxu0 0.0
      %3097 = vmatprep.subr.mxu0 0.0
      %3098 = vmatpush1.msra.mxu0 0.0
      %3099 = vmatprep.subr.mxu0 0.0
      %3100 = vmatpush1.msra.mxu0 0.0
      %3101 = vmatprep.subr.mxu0 0.0
      %3102 = vmatpush1.msra.mxu0 0.0
      %3103 = vmatprep.subr.mxu0 0.0
      %3104 = vmatpush1.msra.mxu0 0.0
      %3105 = vmatprep.subr.mxu0 0.0
      %3106 = vmatpush1.msra.mxu0 0.0
      %3107 = vmatprep.subr.mxu0 0.0
      %3108 = vmatpush1.msra.mxu0 0.0
      %3109 = vmatprep.subr.mxu0 0.0
      %3110 = vmatpush1.msra.mxu0 0.0
      %3111 = vmatprep.subr.mxu0 0.0
      %3112 = vmatpush1.msra.mxu0 0.0
      %3113 = vmatprep.subr.mxu0 0.0
      %3114 = vmatpush1.msra.mxu0 0.0
      %3115 = vmatprep.subr.mxu0 0.0
      %3116 = vmatpush1.msra.mxu0 0.0
      %3117 = vmatprep.subr.mxu0 0.0
      %3118 = vmatpush1.msra.mxu0 0.0
      %3119 = vmatprep.subr.mxu0 0.0
      %3120 = vmatpush1.msra.mxu0 0.0
      %3121 = vmatprep.subr.mxu0 0.0
      %3122 = vmatpush1.msra.mxu0 0.0
      %3123 = vmatprep.subr.mxu0 0.0
      %3124 = vmatpush1.msra.mxu0 0.0
      %3125 = vmatprep.subr.mxu0 0.0
      %3126 = vmatpush1.msra.mxu0 0.0
      %3127 = vmatprep.subr.mxu0 0.0
      %3128 = vmatpush1.msra.mxu0 0.0
      %3129 = vmatprep.subr.mxu0 0.0
      %3130 = vmatpush1.msra.mxu0 0.0
      %3131 = vmatprep.subr.mxu0 0.0
      %3132 = vmatpush1.msra.mxu0 0.0
      %3133 = vmatprep.subr.mxu0 0.0
      %3134 = vmatpush1.msra.mxu0 0.0
      %3135 = vmatprep.subr.mxu0 0.0
      %3136 = vmatpush1.msra.mxu0 0.0
      %3137 = vmatprep.subr.mxu0 0.0
      %3138 = vmatpush1.msra.mxu0 0.0
      %3139 = vmatprep.subr.mxu0 0.0
      %3140 = vmatpush1.msra.mxu0 0.0
      %3141 = vmatprep.subr.mxu0 0.0
      %3142 = vmatpush1.msra.mxu0 0.0
      %3143 = vmatprep.mubr.f32.mxu0 0.0
      %3144 = vmatmul.mubr.f32.gmra.mrb[0].mxu0 %v2935
      %v3145 = vpop.f32.mrb[0].mxu0
      %v3146 = vadd.f32 %v2933, %v3145
      %v3147 = vpop.f32.mrb[0].mxu0
      %v3148 = vadd.f32 %v2933, %v3147
      %3149 = vdwg.mxu0
      %3150 = vmatprep.subr.mxu0 %v2929
      %3151 = vmatpush1.msra.mxu0 %v2928
      %3152 = vmatprep.subr.mxu0 0.0
      %3153 = vmatpush1.msra.mxu0 0.0
      %3154 = vmatprep.subr.mxu0 0.0
      %3155 = vmatpush1.msra.mxu0 0.0
      %3156 = vmatprep.subr.mxu0 0.0
      %3157 = vmatpush1.msra.mxu0 0.0
      %3158 = vmatprep.subr.mxu0 0.0
      %3159 = vmatpush1.msra.mxu0 0.0
      %3160 = vmatprep.subr.mxu0 0.0
      %3161 = vmatpush1.msra.mxu0 0.0
      %3162 = vmatprep.subr.mxu0 0.0
      %3163 = vmatpush1.msra.mxu0 0.0
      %3164 = vmatprep.subr.mxu0 0.0
      %3165 = vmatpush1.msra.mxu0 0.0
      %3166 = vmatprep.subr.mxu0 0.0
      %3167 = vmatpush1.msra.mxu0 0.0
      %3168 = vmatprep.subr.mxu0 0.0
      %3169 = vmatpush1.msra.mxu0 0.0
      %3170 = vmatprep.subr.mxu0 0.0
      %3171 = vmatpush1.msra.mxu0 0.0
      %3172 = vmatprep.subr.mxu0 0.0
      %3173 = vmatpush1.msra.mxu0 0.0
      %3174 = vmatprep.subr.mxu0 0.0
      %3175 = vmatpush1.msra.mxu0 0.0
      %3176 = vmatprep.subr.mxu0 0.0
      %3177 = vmatpush1.msra.mxu0 0.0
      %3178 = vmatprep.subr.mxu0 0.0
      %3179 = vmatpush1.msra.mxu0 0.0
      %3180 = vmatprep.subr.mxu0 0.0
      %3181 = vmatpush1.msra.mxu0 0.0
      %3182 = vmatprep.subr.mxu0 0.0
      %3183 = vmatpush1.msra.mxu0 0.0
      %3184 = vmatprep.subr.mxu0 0.0
      %3185 = vmatpush1.msra.mxu0 0.0
      %3186 = vmatprep.subr.mxu0 0.0
      %3187 = vmatpush1.msra.mxu0 0.0
      %3188 = vmatprep.subr.mxu0 0.0
      %3189 = vmatpush1.msra.mxu0 0.0
      %3190 = vmatprep.subr.mxu0 0.0
      %3191 = vmatpush1.msra.mxu0 0.0
      %3192 = vmatprep.subr.mxu0 0.0
      %3193 = vmatpush1.msra.mxu0 0.0
      %3194 = vmatprep.subr.mxu0 0.0
      %3195 = vmatpush1.msra.mxu0 0.0
      %3196 = vmatprep.subr.mxu0 0.0
      %3197 = vmatpush1.msra.mxu0 0.0
      %3198 = vmatprep.subr.mxu0 0.0
      %3199 = vmatpush1.msra.mxu0 0.0
      %3200 = vmatprep.subr.mxu0 0.0
      %3201 = vmatpush1.msra.mxu0 0.0
      %3202 = vmatprep.subr.mxu0 0.0
      %3203 = vmatpush1.msra.mxu0 0.0
      %3204 = vmatprep.subr.mxu0 0.0
      %3205 = vmatpush1.msra.mxu0 0.0
      %3206 = vmatprep.subr.mxu0 0.0
      %3207 = vmatpush1.msra.mxu0 0.0
      %3208 = vmatprep.subr.mxu0 0.0
      %3209 = vmatpush1.msra.mxu0 0.0
      %3210 = vmatprep.subr.mxu0 0.0
      %3211 = vmatpush1.msra.mxu0 0.0
      %3212 = vmatprep.subr.mxu0 0.0
      %3213 = vmatpush1.msra.mxu0 0.0
      %3214 = vmatprep.mubr.f32.mxu0 0.0
      %3215 = vmatmul.mubr.f32.gmra.mrb[0].mxu0 %v2935
      %v3216 = vpop.f32.mrb[0].mxu0
      %v3217 = vadd.f32 %v2933, %v3216
      %v3218 = vpop.f32.mrb[0].mxu0
      %v3219 = vadd.f32 %v2933, %v3218
      %3220 = vdwg.mxu0
      %3221 = vst [vmem:[%s283] sm:$0xff] %v3004
      %3222 = vst [vmem:[%s283 + $0x8] sm:$0xff] %v3006
      %3223 = vst [vmem:[%s283 + $0x10] sm:$0xff] %v3075
      %3224 = vst [vmem:[%s283 + $0x18] sm:$0xff] %v3077
      %3225 = vst [vmem:[%s283 + $0x20] sm:$0xff] %v3146
      %3226 = vst [vmem:[%s283 + $0x28] sm:$0xff] %v3148
      %3227 = vst [vmem:[%s283 + $0x30] sm:$0xff] %v3217
      %3228 = vst [vmem:[%s283 + $0x38] sm:$0xff] %v3219
      %v3229 = vld [vmem:[%s2 + $0x120] sm:$0xff]
      %v3230 = vld [vmem:[%s2 + $0x128] sm:$0xff]
      %v3231 = vld [vmem:[%s2 + $0x130] sm:$0xff]
      %v3232 = vld [vmem:[%s2 + $0x138] sm:$0xff]
      %3234 = vset.pattern.permute.xlu0 32
      %3235 = vperm.xlu0 %3234, %v3229
      %v3236 = vpop.permute.xlu0 %3235
      %3239 = vset.pattern.permute.xlu0 32
      %3240 = vperm.xlu0 %3239, %v3230
      %v3241 = vpop.permute.xlu0 %3240
      %3244 = vset.pattern.permute.xlu0 32
      %3245 = vperm.xlu0 %3244, %v3231
      %v3246 = vpop.permute.xlu0 %3245
      %3249 = vset.pattern.permute.xlu0 32
      %3250 = vperm.xlu0 %3249, %v3232
      %v3251 = vpop.permute.xlu0 %3250
      %v3253 = vsel %vm2063, %v3229, 0
      %v3255 = vsel %vm2063, %v3230, 0
      %v3257 = vsel %vm2063, %v3231, 0
      %v3259 = vsel %vm2063, %v3232, 0
      %3261 = vmatprep.subr.mxu0 %v2622
      %3262 = vmatpush1.msra.mxu0 %v2621
      %3263 = vmatprep.subr.mxu0 0.0
      %3264 = vmatpush1.msra.mxu0 0.0
      %3265 = vmatprep.subr.mxu0 0.0
      %3266 = vmatpush1.msra.mxu0 0.0
      %3267 = vmatprep.subr.mxu0 0.0
      %3268 = vmatpush1.msra.mxu0 0.0
      %3269 = vmatprep.subr.mxu0 0.0
      %3270 = vmatpush1.msra.mxu0 0.0
      %3271 = vmatprep.subr.mxu0 0.0
      %3272 = vmatpush1.msra.mxu0 0.0
      %3273 = vmatprep.subr.mxu0 0.0
      %3274 = vmatpush1.msra.mxu0 0.0
      %3275 = vmatprep.subr.mxu0 0.0
      %3276 = vmatpush1.msra.mxu0 0.0
      %3277 = vmatprep.subr.mxu0 0.0
      %3278 = vmatpush1.msra.mxu0 0.0
      %3279 = vmatprep.subr.mxu0 0.0
      %3280 = vmatpush1.msra.mxu0 0.0
      %3281 = vmatprep.subr.mxu0 0.0
      %3282 = vmatpush1.msra.mxu0 0.0
      %3283 = vmatprep.subr.mxu0 0.0
      %3284 = vmatpush1.msra.mxu0 0.0
      %3285 = vmatprep.subr.mxu0 0.0
      %3286 = vmatpush1.msra.mxu0 0.0
      %3287 = vmatprep.subr.mxu0 0.0
      %3288 = vmatpush1.msra.mxu0 0.0
      %3289 = vmatprep.subr.mxu0 0.0
      %3290 = vmatpush1.msra.mxu0 0.0
      %3291 = vmatprep.subr.mxu0 0.0
      %3292 = vmatpush1.msra.mxu0 0.0
      %3293 = vmatprep.subr.mxu0 0.0
      %3294 = vmatpush1.msra.mxu0 0.0
      %3295 = vmatprep.subr.mxu0 0.0
      %3296 = vmatpush1.msra.mxu0 0.0
      %3297 = vmatprep.subr.mxu0 0.0
      %3298 = vmatpush1.msra.mxu0 0.0
      %3299 = vmatprep.subr.mxu0 0.0
      %3300 = vmatpush1.msra.mxu0 0.0
      %3301 = vmatprep.subr.mxu0 0.0
      %3302 = vmatpush1.msra.mxu0 0.0
      %3303 = vmatprep.subr.mxu0 0.0
      %3304 = vmatpush1.msra.mxu0 0.0
      %3305 = vmatprep.subr.mxu0 0.0
      %3306 = vmatpush1.msra.mxu0 0.0
      %3307 = vmatprep.subr.mxu0 0.0
      %3308 = vmatpush1.msra.mxu0 0.0
      %3309 = vmatprep.subr.mxu0 0.0
      %3310 = vmatpush1.msra.mxu0 0.0
      %3311 = vmatprep.subr.mxu0 0.0
      %3312 = vmatpush1.msra.mxu0 0.0
      %3313 = vmatprep.subr.mxu0 0.0
      %3314 = vmatpush1.msra.mxu0 0.0
      %3315 = vmatprep.subr.mxu0 0.0
      %3316 = vmatpush1.msra.mxu0 0.0
      %3317 = vmatprep.subr.mxu0 0.0
      %3318 = vmatpush1.msra.mxu0 0.0
      %3319 = vmatprep.subr.mxu0 0.0
      %3320 = vmatpush1.msra.mxu0 0.0
      %3321 = vmatprep.subr.mxu0 0.0
      %3322 = vmatpush1.msra.mxu0 0.0
      %3323 = vmatprep.subr.mxu0 0.0
      %3324 = vmatpush1.msra.mxu0 0.0
      %3325 = vmatprep.mubr.f32.mxu0 0.0
      %3326 = vmatmul.mubr.f32.gmra.mrb[0].mxu0 %v3253
      %v3327 = vpop.f32.mrb[0].mxu0
      %v3328 = vadd.f32 %v3236, %v3327
      %v3329 = vpop.f32.mrb[0].mxu0
      %v3330 = vadd.f32 %v3236, %v3329
      %3331 = vmatprep.mubr.f32.mxu0 0.0
      %3332 = vmatmul.mubr.f32.gmra.mrb[0].mxu0 %v3255
      %v3333 = vpop.f32.mrb[0].mxu0
      %v3334 = vadd.f32 %v3241, %v3333
      %v3335 = vpop.f32.mrb[0].mxu0
      %v3336 = vadd.f32 %v3241, %v3335
      %3337 = vmatprep.mubr.f32.mxu0 0.0
      %3338 = vmatmul.mubr.f32.gmra.mrb[0].mxu0 %v3257
      %v3339 = vpop.f32.mrb[0].mxu0
      %v3340 = vadd.f32 %v3246, %v3339
      %v3341 = vpop.f32.mrb[0].mxu0
      %v3342 = vadd.f32 %v3246, %v3341
      %3343 = vmatprep.mubr.f32.mxu0 0.0
      %3344 = vmatmul.mubr.f32.gmra.mrb[0].mxu0 %v3259
      %v3345 = vpop.f32.mrb[0].mxu0
      %v3346 = vadd.f32 %v3251, %v3345
      %v3347 = vpop.f32.mrb[0].mxu0
      %v3348 = vadd.f32 %v3251, %v3347
      %3349 = vdwg.mxu0
      %3350 = vmatprep.subr.mxu0 %v2624
      %3351 = vmatpush1.msra.mxu0 %v2623
      %3352 = vmatprep.subr.mxu0 0.0
      %3353 = vmatpush1.msra.mxu0 0.0
      %3354 = vmatprep.subr.mxu0 0.0
      %3355 = vmatpush1.msra.mxu0 0.0
      %3356 = vmatprep.subr.mxu0 0.0
      %3357 = vmatpush1.msra.mxu0 0.0
      %3358 = vmatprep.subr.mxu0 0.0
      %3359 = vmatpush1.msra.mxu0 0.0
      %3360 = vmatprep.subr.mxu0 0.0
      %3361 = vmatpush1.msra.mxu0 0.0
      %3362 = vmatprep.subr.mxu0 0.0
      %3363 = vmatpush1.msra.mxu0 0.0
      %3364 = vmatprep.subr.mxu0 0.0
      %3365 = vmatpush1.msra.mxu0 0.0
      %3366 = vmatprep.subr.mxu0 0.0
      %3367 = vmatpush1.msra.mxu0 0.0
      %3368 = vmatprep.subr.mxu0 0.0
      %3369 = vmatpush1.msra.mxu0 0.0
      %3370 = vmatprep.subr.mxu0 0.0
      %3371 = vmatpush1.msra.mxu0 0.0
      %3372 = vmatprep.subr.mxu0 0.0
      %3373 = vmatpush1.msra.mxu0 0.0
      %3374 = vmatprep.subr.mxu0 0.0
      %3375 = vmatpush1.msra.mxu0 0.0
      %3376 = vmatprep.subr.mxu0 0.0
      %3377 = vmatpush1.msra.mxu0 0.0
      %3378 = vmatprep.subr.mxu0 0.0
      %3379 = vmatpush1.msra.mxu0 0.0
      %3380 = vmatprep.subr.mxu0 0.0
      %3381 = vmatpush1.msra.mxu0 0.0
      %3382 = vmatprep.subr.mxu0 0.0
      %3383 = vmatpush1.msra.mxu0 0.0
      %3384 = vmatprep.subr.mxu0 0.0
      %3385 = vmatpush1.msra.mxu0 0.0
      %3386 = vmatprep.subr.mxu0 0.0
      %3387 = vmatpush1.msra.mxu0 0.0
      %3388 = vmatprep.subr.mxu0 0.0
      %3389 = vmatpush1.msra.mxu0 0.0
      %3390 = vmatprep.subr.mxu0 0.0
      %3391 = vmatpush1.msra.mxu0 0.0
      %3392 = vmatprep.subr.mxu0 0.0
      %3393 = vmatpush1.msra.mxu0 0.0
      %3394 = vmatprep.subr.mxu0 0.0
      %3395 = vmatpush1.msra.mxu0 0.0
      %3396 = vmatprep.subr.mxu0 0.0
      %3397 = vmatpush1.msra.mxu0 0.0
      %3398 = vmatprep.subr.mxu0 0.0
      %3399 = vmatpush1.msra.mxu0 0.0
      %3400 = vmatprep.subr.mxu0 0.0
      %3401 = vmatpush1.msra.mxu0 0.0
      %3402 = vmatprep.subr.mxu0 0.0
      %3403 = vmatpush1.msra.mxu0 0.0
      %3404 = vmatprep.subr.mxu0 0.0
      %3405 = vmatpush1.msra.mxu0 0.0
      %3406 = vmatprep.subr.mxu0 0.0
      %3407 = vmatpush1.msra.mxu0 0.0
      %3408 = vmatprep.subr.mxu0 0.0
      %3409 = vmatpush1.msra.mxu0 0.0
      %3410 = vmatprep.subr.mxu0 0.0
      %3411 = vmatpush1.msra.mxu0 0.0
      %3412 = vmatprep.subr.mxu0 0.0
      %3413 = vmatpush1.msra.mxu0 0.0
      %3414 = vmatprep.mubr.f32.mxu0 0.0
      %3415 = vmatmul.mubr.f32.gmra.mrb[0].mxu0 %v3253
      %v3416 = vpop.f32.mrb[0].mxu0
      %v3417 = vadd.f32 %v3236, %v3416
      %v3418 = vpop.f32.mrb[0].mxu0
      %v3419 = vadd.f32 %v3236, %v3418
      %3420 = vmatprep.mubr.f32.mxu0 0.0
      %3421 = vmatmul.mubr.f32.gmra.mrb[0].mxu0 %v3255
      %v3422 = vpop.f32.mrb[0].mxu0
      %v3423 = vadd.f32 %v3241, %v3422
      %v3424 = vpop.f32.mrb[0].mxu0
      %v3425 = vadd.f32 %v3241, %v3424
      %3426 = vmatprep.mubr.f32.mxu0 0.0
      %3427 = vmatmul.mubr.f32.gmra.mrb[0].mxu0 %v3257
      %v3428 = vpop.f32.mrb[0].mxu0
      %v3429 = vadd.f32 %v3246, %v3428
      %v3430 = vpop.f32.mrb[0].mxu0
      %v3431 = vadd.f32 %v3246, %v3430
      %3432 = vmatprep.mubr.f32.mxu0 0.0
      %3433 = vmatmul.mubr.f32.gmra.mrb[0].mxu0 %v3259
      %v3434 = vpop.f32.mrb[0].mxu0
      %v3435 = vadd.f32 %v3251, %v3434
      %v3436 = vpop.f32.mrb[0].mxu0
      %v3437 = vadd.f32 %v3251, %v3436
      %3438 = vdwg.mxu0
      %3439 = vmatprep.subr.mxu0 %v2626
      %3440 = vmatpush1.msra.mxu0 %v2625
      %3441 = vmatprep.subr.mxu0 0.0
      %3442 = vmatpush1.msra.mxu0 0.0
      %3443 = vmatprep.subr.mxu0 0.0
      %3444 = vmatpush1.msra.mxu0 0.0
      %3445 = vmatprep.subr.mxu0 0.0
      %3446 = vmatpush1.msra.mxu0 0.0
      %3447 = vmatprep.subr.mxu0 0.0
      %3448 = vmatpush1.msra.mxu0 0.0
      %3449 = vmatprep.subr.mxu0 0.0
      %3450 = vmatpush1.msra.mxu0 0.0
      %3451 = vmatprep.subr.mxu0 0.0
      %3452 = vmatpush1.msra.mxu0 0.0
      %3453 = vmatprep.subr.mxu0 0.0
      %3454 = vmatpush1.msra.mxu0 0.0
      %3455 = vmatprep.subr.mxu0 0.0
      %3456 = vmatpush1.msra.mxu0 0.0
      %3457 = vmatprep.subr.mxu0 0.0
      %3458 = vmatpush1.msra.mxu0 0.0
      %3459 = vmatprep.subr.mxu0 0.0
      %3460 = vmatpush1.msra.mxu0 0.0
      %3461 = vmatprep.subr.mxu0 0.0
      %3462 = vmatpush1.msra.mxu0 0.0
      %3463 = vmatprep.subr.mxu0 0.0
      %3464 = vmatpush1.msra.mxu0 0.0
      %3465 = vmatprep.subr.mxu0 0.0
      %3466 = vmatpush1.msra.mxu0 0.0
      %3467 = vmatprep.subr.mxu0 0.0
      %3468 = vmatpush1.msra.mxu0 0.0
      %3469 = vmatprep.subr.mxu0 0.0
      %3470 = vmatpush1.msra.mxu0 0.0
      %3471 = vmatprep.subr.mxu0 0.0
      %3472 = vmatpush1.msra.mxu0 0.0
      %3473 = vmatprep.subr.mxu0 0.0
      %3474 = vmatpush1.msra.mxu0 0.0
      %3475 = vmatprep.subr.mxu0 0.0
      %3476 = vmatpush1.msra.mxu0 0.0
      %3477 = vmatprep.subr.mxu0 0.0
      %3478 = vmatpush1.msra.mxu0 0.0
      %3479 = vmatprep.subr.mxu0 0.0
      %3480 = vmatpush1.msra.mxu0 0.0
      %3481 = vmatprep.subr.mxu0 0.0
      %3482 = vmatpush1.msra.mxu0 0.0
      %3483 = vmatprep.subr.mxu0 0.0
      %3484 = vmatpush1.msra.mxu0 0.0
      %3485 = vmatprep.subr.mxu0 0.0
      %3486 = vmatpush1.msra.mxu0 0.0
      %3487 = vmatprep.subr.mxu0 0.0
      %3488 = vmatpush1.msra.mxu0 0.0
      %3489 = vmatprep.subr.mxu0 0.0
      %3490 = vmatpush1.msra.mxu0 0.0
      %3491 = vmatprep.subr.mxu0 0.0
      %3492 = vmatpush1.msra.mxu0 0.0
      %3493 = vmatprep.subr.mxu0 0.0
      %3494 = vmatpush1.msra.mxu0 0.0
      %3495 = vmatprep.subr.mxu0 0.0
      %3496 = vmatpush1.msra.mxu0 0.0
      %3497 = vmatprep.subr.mxu0 0.0
      %3498 = vmatpush1.msra.mxu0 0.0
      %3499 = vmatprep.subr.mxu0 0.0
      %3500 = vmatpush1.msra.mxu0 0.0
      %3501 = vmatprep.subr.mxu0 0.0
      %3502 = vmatpush1.msra.mxu0 0.0
      %3503 = vmatprep.mubr.f32.mxu0 0.0
      %3504 = vmatmul.mubr.f32.gmra.mrb[0].mxu0 %v3253
      %v3505 = vpop.f32.mrb[0].mxu0
      %v3506 = vadd.f32 %v3236, %v3505
      %v3507 = vpop.f32.mrb[0].mxu0
      %v3508 = vadd.f32 %v3236, %v3507
      %3509 = vmatprep.mubr.f32.mxu0 0.0
      %3510 = vmatmul.mubr.f32.gmra.mrb[0].mxu0 %v3255
      %v3511 = vpop.f32.mrb[0].mxu0
      %v3512 = vadd.f32 %v3241, %v3511
      %v3513 = vpop.f32.mrb[0].mxu0
      %v3514 = vadd.f32 %v3241, %v3513
      %3515 = vmatprep.mubr.f32.mxu0 0.0
      %3516 = vmatmul.mubr.f32.gmra.mrb[0].mxu0 %v3257
      %v3517 = vpop.f32.mrb[0].mxu0
      %v3518 = vadd.f32 %v3246, %v3517
      %v3519 = vpop.f32.mrb[0].mxu0
      %v3520 = vadd.f32 %v3246, %v3519
      %3521 = vmatprep.mubr.f32.mxu0 0.0
      %3522 = vmatmul.mubr.f32.gmra.mrb[0].mxu0 %v3259
      %v3523 = vpop.f32.mrb[0].mxu0
      %v3524 = vadd.f32 %v3251, %v3523
      %v3525 = vpop.f32.mrb[0].mxu0
      %v3526 = vadd.f32 %v3251, %v3525
      %3527 = vdwg.mxu0
      %3528 = vmatprep.subr.mxu0 %v2628
      %3529 = vmatpush1.msra.mxu0 %v2627
      %3530 = vmatprep.subr.mxu0 0.0
      %3531 = vmatpush1.msra.mxu0 0.0
      %3532 = vmatprep.subr.mxu0 0.0
      %3533 = vmatpush1.msra.mxu0 0.0
      %3534 = vmatprep.subr.mxu0 0.0
      %3535 = vmatpush1.msra.mxu0 0.0
      %3536 = vmatprep.subr.mxu0 0.0
      %3537 = vmatpush1.msra.mxu0 0.0
      %3538 = vmatprep.subr.mxu0 0.0
      %3539 = vmatpush1.msra.mxu0 0.0
      %3540 = vmatprep.subr.mxu0 0.0
      %3541 = vmatpush1.msra.mxu0 0.0
      %3542 = vmatprep.subr.mxu0 0.0
      %3543 = vmatpush1.msra.mxu0 0.0
      %3544 = vmatprep.subr.mxu0 0.0
      %3545 = vmatpush1.msra.mxu0 0.0
      %3546 = vmatprep.subr.mxu0 0.0
      %3547 = vmatpush1.msra.mxu0 0.0
      %3548 = vmatprep.subr.mxu0 0.0
      %3549 = vmatpush1.msra.mxu0 0.0
      %3550 = vmatprep.subr.mxu0 0.0
      %3551 = vmatpush1.msra.mxu0 0.0
      %3552 = vmatprep.subr.mxu0 0.0
      %3553 = vmatpush1.msra.mxu0 0.0
      %3554 = vmatprep.subr.mxu0 0.0
      %3555 = vmatpush1.msra.mxu0 0.0
      %3556 = vmatprep.subr.mxu0 0.0
      %3557 = vmatpush1.msra.mxu0 0.0
      %3558 = vmatprep.subr.mxu0 0.0
      %3559 = vmatpush1.msra.mxu0 0.0
      %3560 = vmatprep.subr.mxu0 0.0
      %3561 = vmatpush1.msra.mxu0 0.0
      %3562 = vmatprep.subr.mxu0 0.0
      %3563 = vmatpush1.msra.mxu0 0.0
      %3564 = vmatprep.subr.mxu0 0.0
      %3565 = vmatpush1.msra.mxu0 0.0
      %3566 = vmatprep.subr.mxu0 0.0
      %3567 = vmatpush1.msra.mxu0 0.0
      %3568 = vmatprep.subr.mxu0 0.0
      %3569 = vmatpush1.msra.mxu0 0.0
      %3570 = vmatprep.subr.mxu0 0.0
      %3571 = vmatpush1.msra.mxu0 0.0
      %3572 = vmatprep.subr.mxu0 0.0
      %3573 = vmatpush1.msra.mxu0 0.0
      %3574 = vmatprep.subr.mxu0 0.0
      %3575 = vmatpush1.msra.mxu0 0.0
      %3576 = vmatprep.subr.mxu0 0.0
      %3577 = vmatpush1.msra.mxu0 0.0
      %3578 = vmatprep.subr.mxu0 0.0
      %3579 = vmatpush1.msra.mxu0 0.0
      %3580 = vmatprep.subr.mxu0 0.0
      %3581 = vmatpush1.msra.mxu0 0.0
      %3582 = vmatprep.subr.mxu0 0.0
      %3583 = vmatpush1.msra.mxu0 0.0
      %3584 = vmatprep.subr.mxu0 0.0
      %3585 = vmatpush1.msra.mxu0 0.0
      %3586 = vmatprep.subr.mxu0 0.0
      %3587 = vmatpush1.msra.mxu0 0.0
      %3588 = vmatprep.subr.mxu0 0.0
      %3589 = vmatpush1.msra.mxu0 0.0
      %3590 = vmatprep.subr.mxu0 0.0
      %3591 = vmatpush1.msra.mxu0 0.0
      %3592 = vmatprep.mubr.f32.mxu0 0.0
      %3593 = vmatmul.mubr.f32.gmra.mrb[0].mxu0 %v3253
      %v3594 = vpop.f32.mrb[0].mxu0
      %v3595 = vadd.f32 %v3236, %v3594
      %v3596 = vpop.f32.mrb[0].mxu0
      %v3597 = vadd.f32 %v3236, %v3596
      %3598 = vmatprep.mubr.f32.mxu0 0.0
      %3599 = vmatmul.mubr.f32.gmra.mrb[0].mxu0 %v3255
      %v3600 = vpop.f32.mrb[0].mxu0
      %v3601 = vadd.f32 %v3241, %v3600
      %v3602 = vpop.f32.mrb[0].mxu0
      %v3603 = vadd.f32 %v3241, %v3602
      %3604 = vmatprep.mubr.f32.mxu0 0.0
      %3605 = vmatmul.mubr.f32.gmra.mrb[0].mxu0 %v3257
      %v3606 = vpop.f32.mrb[0].mxu0
      %v3607 = vadd.f32 %v3246, %v3606
      %v3608 = vpop.f32.mrb[0].mxu0
      %v3609 = vadd.f32 %v3246, %v3608
      %3610 = vmatprep.mubr.f32.mxu0 0.0
      %3611 = vmatmul.mubr.f32.gmra.mrb[0].mxu0 %v3259
      %v3612 = vpop.f32.mrb[0].mxu0
      %v3613 = vadd.f32 %v3251, %v3612
      %v3614 = vpop.f32.mrb[0].mxu0
      %v3615 = vadd.f32 %v3251, %v3614
      %3616 = vdwg.mxu0
      %v3617 = vmax.f32 %v3328, 0.0
      %v3618 = vmax.f32 %v3330, 0.0
      %v3619 = vmax.f32 %v3417, 0.0
      %v3620 = vmax.f32 %v3419, 0.0
      %v3621 = vmax.f32 %v3506, 0.0
      %v3622 = vmax.f32 %v3508, 0.0
      %v3623 = vmax.f32 %v3595, 0.0
      %v3624 = vmax.f32 %v3597, 0.0
      %v3625 = vmax.f32 %v3334, 0.0
      %v3626 = vmax.f32 %v3336, 0.0
      %v3627 = vmax.f32 %v3423, 0.0
      %v3628 = vmax.f32 %v3425, 0.0
      %v3629 = vmax.f32 %v3512, 0.0
      %v3630 = vmax.f32 %v3514, 0.0
      %v3631 = vmax.f32 %v3601, 0.0
      %v3632 = vmax.f32 %v3603, 0.0
      %v3633 = vmax.f32 %v3340, 0.0
      %v3634 = vmax.f32 %v3342, 0.0
      %v3635 = vmax.f32 %v3429, 0.0
      %v3636 = vmax.f32 %v3431, 0.0
      %v3637 = vmax.f32 %v3518, 0.0
      %v3638 = vmax.f32 %v3520, 0.0
      %v3639 = vmax.f32 %v3607, 0.0
      %v3640 = vmax.f32 %v3609, 0.0
      %v3641 = vmax.f32 %v3346, 0.0
      %v3642 = vmax.f32 %v3348, 0.0
      %v3643 = vmax.f32 %v3435, 0.0
      %v3644 = vmax.f32 %v3437, 0.0
      %v3645 = vmax.f32 %v3524, 0.0
      %v3646 = vmax.f32 %v3526, 0.0
      %v3647 = vmax.f32 %v3613, 0.0
      %v3648 = vmax.f32 %v3615, 0.0
      %v3649 = vld [vmem:[%s2 + $0x160] sm:$0xff]
      %v3650 = vld [vmem:[%s2 + $0x168] sm:$0xff]
      %3652 = vset.pattern.permute.xlu0 32
      %3653 = vperm.xlu0 %3652, %v3649
      %v3654 = vpop.permute.xlu0 %3653
      %v3656 = vsel %vm2063, %v3649, 0
      %3658 = vmatprep.subr.mxu0 %v3618
      %3659 = vmatpush1.msra.mxu0 %v3617
      %3660 = vmatprep.subr.mxu0 0.0
      %3661 = vmatpush1.msra.mxu0 0.0
      %3662 = vmatprep.subr.mxu0 0.0
      %3663 = vmatpush1.msra.mxu0 0.0
      %3664 = vmatprep.subr.mxu0 0.0
      %3665 = vmatpush1.msra.mxu0 0.0
      %3666 = vmatprep.subr.mxu0 0.0
      %3667 = vmatpush1.msra.mxu0 0.0
      %3668 = vmatprep.subr.mxu0 0.0
      %3669 = vmatpush1.msra.mxu0 0.0
      %3670 = vmatprep.subr.mxu0 0.0
      %3671 = vmatpush1.msra.mxu0 0.0
      %3672 = vmatprep.subr.mxu0 0.0
      %3673 = vmatpush1.msra.mxu0 0.0
      %3674 = vmatprep.subr.mxu0 0.0
      %3675 = vmatpush1.msra.mxu0 0.0
      %3676 = vmatprep.subr.mxu0 0.0
      %3677 = vmatpush1.msra.mxu0 0.0
      %3678 = vmatprep.subr.mxu0 0.0
      %3679 = vmatpush1.msra.mxu0 0.0
      %3680 = vmatprep.subr.mxu0 0.0
      %3681 = vmatpush1.msra.mxu0 0.0
      %3682 = vmatprep.subr.mxu0 0.0
      %3683 = vmatpush1.msra.mxu0 0.0
      %3684 = vmatprep.subr.mxu0 0.0
      %3685 = vmatpush1.msra.mxu0 0.0
      %3686 = vmatprep.subr.mxu0 0.0
      %3687 = vmatpush1.msra.mxu0 0.0
      %3688 = vmatprep.subr.mxu0 0.0
      %3689 = vmatpush1.msra.mxu0 0.0
      %3690 = vmatprep.subr.mxu0 0.0
      %3691 = vmatpush1.msra.mxu0 0.0
      %3692 = vmatprep.subr.mxu0 0.0
      %3693 = vmatpush1.msra.mxu0 0.0
      %3694 = vmatprep.subr.mxu0 0.0
      %3695 = vmatpush1.msra.mxu0 0.0
      %3696 = vmatprep.subr.mxu0 0.0
      %3697 = vmatpush1.msra.mxu0 0.0
      %3698 = vmatprep.subr.mxu0 0.0
      %3699 = vmatpush1.msra.mxu0 0.0
      %3700 = vmatprep.subr.mxu0 0.0
      %3701 = vmatpush1.msra.mxu0 0.0
      %3702 = vmatprep.subr.mxu0 0.0
      %3703 = vmatpush1.msra.mxu0 0.0
      %3704 = vmatprep.subr.mxu0 0.0
      %3705 = vmatpush1.msra.mxu0 0.0
      %3706 = vmatprep.subr.mxu0 0.0
      %3707 = vmatpush1.msra.mxu0 0.0
      %3708 = vmatprep.subr.mxu0 0.0
      %3709 = vmatpush1.msra.mxu0 0.0
      %3710 = vmatprep.subr.mxu0 0.0
      %3711 = vmatpush1.msra.mxu0 0.0
      %3712 = vmatprep.subr.mxu0 0.0
      %3713 = vmatpush1.msra.mxu0 0.0
      %3714 = vmatprep.subr.mxu0 0.0
      %3715 = vmatpush1.msra.mxu0 0.0
      %3716 = vmatprep.subr.mxu0 0.0
      %3717 = vmatpush1.msra.mxu0 0.0
      %3718 = vmatprep.subr.mxu0 0.0
      %3719 = vmatpush1.msra.mxu0 0.0
      %3720 = vmatprep.subr.mxu0 0.0
      %3721 = vmatpush1.msra.mxu0 0.0
      %3722 = vmatprep.mubr.f32.mxu0 0.0
      %3723 = vmatmul.mubr.f32.gmra.mrb[0].mxu0 %v3656
      %v3724 = vpop.f32.mrb[0].mxu0
      %v3725 = vadd.f32 %v3654, %v3724
      %v3726 = vpop.f32.mrb[0].mxu0
      %v3727 = vadd.f32 %v3654, %v3726
      %3728 = vdwg.mxu0
      %3729 = vmatprep.subr.mxu0 %v3620
      %3730 = vmatpush1.msra.mxu0 %v3619
      %3731 = vmatprep.subr.mxu0 0.0
      %3732 = vmatpush1.msra.mxu0 0.0
      %3733 = vmatprep.subr.mxu0 0.0
      %3734 = vmatpush1.msra.mxu0 0.0
      %3735 = vmatprep.subr.mxu0 0.0
      %3736 = vmatpush1.msra.mxu0 0.0
      %3737 = vmatprep.subr.mxu0 0.0
      %3738 = vmatpush1.msra.mxu0 0.0
      %3739 = vmatprep.subr.mxu0 0.0
      %3740 = vmatpush1.msra.mxu0 0.0
      %3741 = vmatprep.subr.mxu0 0.0
      %3742 = vmatpush1.msra.mxu0 0.0
      %3743 = vmatprep.subr.mxu0 0.0
      %3744 = vmatpush1.msra.mxu0 0.0
      %3745 = vmatprep.subr.mxu0 0.0
      %3746 = vmatpush1.msra.mxu0 0.0
      %3747 = vmatprep.subr.mxu0 0.0
      %3748 = vmatpush1.msra.mxu0 0.0
      %3749 = vmatprep.subr.mxu0 0.0
      %3750 = vmatpush1.msra.mxu0 0.0
      %3751 = vmatprep.subr.mxu0 0.0
      %3752 = vmatpush1.msra.mxu0 0.0
      %3753 = vmatprep.subr.mxu0 0.0
      %3754 = vmatpush1.msra.mxu0 0.0
      %3755 = vmatprep.subr.mxu0 0.0
      %3756 = vmatpush1.msra.mxu0 0.0
      %3757 = vmatprep.subr.mxu0 0.0
      %3758 = vmatpush1.msra.mxu0 0.0
      %3759 = vmatprep.subr.mxu0 0.0
      %3760 = vmatpush1.msra.mxu0 0.0
      %3761 = vmatprep.subr.mxu0 0.0
      %3762 = vmatpush1.msra.mxu0 0.0
      %3763 = vmatprep.subr.mxu0 0.0
      %3764 = vmatpush1.msra.mxu0 0.0
      %3765 = vmatprep.subr.mxu0 0.0
      %3766 = vmatpush1.msra.mxu0 0.0
      %3767 = vmatprep.subr.mxu0 0.0
      %3768 = vmatpush1.msra.mxu0 0.0
      %3769 = vmatprep.subr.mxu0 0.0
      %3770 = vmatpush1.msra.mxu0 0.0
      %3771 = vmatprep.subr.mxu0 0.0
      %3772 = vmatpush1.msra.mxu0 0.0
      %3773 = vmatprep.subr.mxu0 0.0
      %3774 = vmatpush1.msra.mxu0 0.0
      %3775 = vmatprep.subr.mxu0 0.0
      %3776 = vmatpush1.msra.mxu0 0.0
      %3777 = vmatprep.subr.mxu0 0.0
      %3778 = vmatpush1.msra.mxu0 0.0
      %3779 = vmatprep.subr.mxu0 0.0
      %3780 = vmatpush1.msra.mxu0 0.0
      %3781 = vmatprep.subr.mxu0 0.0
      %3782 = vmatpush1.msra.mxu0 0.0
      %3783 = vmatprep.subr.mxu0 0.0
      %3784 = vmatpush1.msra.mxu0 0.0
      %3785 = vmatprep.subr.mxu0 0.0
      %3786 = vmatpush1.msra.mxu0 0.0
      %3787 = vmatprep.subr.mxu0 0.0
      %3788 = vmatpush1.msra.mxu0 0.0
      %3789 = vmatprep.subr.mxu0 0.0
      %3790 = vmatpush1.msra.mxu0 0.0
      %3791 = vmatprep.subr.mxu0 0.0
      %3792 = vmatpush1.msra.mxu0 0.0
      %3793 = vmatprep.mubr.f32.mxu0 0.0
      %3794 = vmatmul.mubr.f32.gmra.mrb[0].mxu0 %v3656
      %v3795 = vpop.f32.mrb[0].mxu0
      %v3796 = vadd.f32 %v3654, %v3795
      %v3797 = vpop.f32.mrb[0].mxu0
      %v3798 = vadd.f32 %v3654, %v3797
      %3799 = vdwg.mxu0
      %3800 = vmatprep.subr.mxu0 %v3622
      %3801 = vmatpush1.msra.mxu0 %v3621
      %3802 = vmatprep.subr.mxu0 0.0
      %3803 = vmatpush1.msra.mxu0 0.0
      %3804 = vmatprep.subr.mxu0 0.0
      %3805 = vmatpush1.msra.mxu0 0.0
      %3806 = vmatprep.subr.mxu0 0.0
      %3807 = vmatpush1.msra.mxu0 0.0
      %3808 = vmatprep.subr.mxu0 0.0
      %3809 = vmatpush1.msra.mxu0 0.0
      %3810 = vmatprep.subr.mxu0 0.0
      %3811 = vmatpush1.msra.mxu0 0.0
      %3812 = vmatprep.subr.mxu0 0.0
      %3813 = vmatpush1.msra.mxu0 0.0
      %3814 = vmatprep.subr.mxu0 0.0
      %3815 = vmatpush1.msra.mxu0 0.0
      %3816 = vmatprep.subr.mxu0 0.0
      %3817 = vmatpush1.msra.mxu0 0.0
      %3818 = vmatprep.subr.mxu0 0.0
      %3819 = vmatpush1.msra.mxu0 0.0
      %3820 = vmatprep.subr.mxu0 0.0
      %3821 = vmatpush1.msra.mxu0 0.0
      %3822 = vmatprep.subr.mxu0 0.0
      %3823 = vmatpush1.msra.mxu0 0.0
      %3824 = vmatprep.subr.mxu0 0.0
      %3825 = vmatpush1.msra.mxu0 0.0
      %3826 = vmatprep.subr.mxu0 0.0
      %3827 = vmatpush1.msra.mxu0 0.0
      %3828 = vmatprep.subr.mxu0 0.0
      %3829 = vmatpush1.msra.mxu0 0.0
      %3830 = vmatprep.subr.mxu0 0.0
      %3831 = vmatpush1.msra.mxu0 0.0
      %3832 = vmatprep.subr.mxu0 0.0
      %3833 = vmatpush1.msra.mxu0 0.0
      %3834 = vmatprep.subr.mxu0 0.0
      %3835 = vmatpush1.msra.mxu0 0.0
      %3836 = vmatprep.subr.mxu0 0.0
      %3837 = vmatpush1.msra.mxu0 0.0
      %3838 = vmatprep.subr.mxu0 0.0
      %3839 = vmatpush1.msra.mxu0 0.0
      %3840 = vmatprep.subr.mxu0 0.0
      %3841 = vmatpush1.msra.mxu0 0.0
      %3842 = vmatprep.subr.mxu0 0.0
      %3843 = vmatpush1.msra.mxu0 0.0
      %3844 = vmatprep.subr.mxu0 0.0
      %3845 = vmatpush1.msra.mxu0 0.0
      %3846 = vmatprep.subr.mxu0 0.0
      %3847 = vmatpush1.msra.mxu0 0.0
      %3848 = vmatprep.subr.mxu0 0.0
      %3849 = vmatpush1.msra.mxu0 0.0
      %3850 = vmatprep.subr.mxu0 0.0
      %3851 = vmatpush1.msra.mxu0 0.0
      %3852 = vmatprep.subr.mxu0 0.0
      %3853 = vmatpush1.msra.mxu0 0.0
      %3854 = vmatprep.subr.mxu0 0.0
      %3855 = vmatpush1.msra.mxu0 0.0
      %3856 = vmatprep.subr.mxu0 0.0
      %3857 = vmatpush1.msra.mxu0 0.0
      %3858 = vmatprep.subr.mxu0 0.0
      %3859 = vmatpush1.msra.mxu0 0.0
      %3860 = vmatprep.subr.mxu0 0.0
      %3861 = vmatpush1.msra.mxu0 0.0
      %3862 = vmatprep.subr.mxu0 0.0
      %3863 = vmatpush1.msra.mxu0 0.0
      %3864 = vmatprep.mubr.f32.mxu0 0.0
      %3865 = vmatmul.mubr.f32.gmra.mrb[0].mxu0 %v3656
      %v3866 = vpop.f32.mrb[0].mxu0
      %v3867 = vadd.f32 %v3654, %v3866
      %v3868 = vpop.f32.mrb[0].mxu0
      %v3869 = vadd.f32 %v3654, %v3868
      %3870 = vdwg.mxu0
      %3871 = vmatprep.subr.mxu0 %v3624
      %3872 = vmatpush1.msra.mxu0 %v3623
      %3873 = vmatprep.subr.mxu0 0.0
      %3874 = vmatpush1.msra.mxu0 0.0
      %3875 = vmatprep.subr.mxu0 0.0
      %3876 = vmatpush1.msra.mxu0 0.0
      %3877 = vmatprep.subr.mxu0 0.0
      %3878 = vmatpush1.msra.mxu0 0.0
      %3879 = vmatprep.subr.mxu0 0.0
      %3880 = vmatpush1.msra.mxu0 0.0
      %3881 = vmatprep.subr.mxu0 0.0
      %3882 = vmatpush1.msra.mxu0 0.0
      %3883 = vmatprep.subr.mxu0 0.0
      %3884 = vmatpush1.msra.mxu0 0.0
      %3885 = vmatprep.subr.mxu0 0.0
      %3886 = vmatpush1.msra.mxu0 0.0
      %3887 = vmatprep.subr.mxu0 0.0
      %3888 = vmatpush1.msra.mxu0 0.0
      %3889 = vmatprep.subr.mxu0 0.0
      %3890 = vmatpush1.msra.mxu0 0.0
      %3891 = vmatprep.subr.mxu0 0.0
      %3892 = vmatpush1.msra.mxu0 0.0
      %3893 = vmatprep.subr.mxu0 0.0
      %3894 = vmatpush1.msra.mxu0 0.0
      %3895 = vmatprep.subr.mxu0 0.0
      %3896 = vmatpush1.msra.mxu0 0.0
      %3897 = vmatprep.subr.mxu0 0.0
      %3898 = vmatpush1.msra.mxu0 0.0
      %3899 = vmatprep.subr.mxu0 0.0
      %3900 = vmatpush1.msra.mxu0 0.0
      %3901 = vmatprep.subr.mxu0 0.0
      %3902 = vmatpush1.msra.mxu0 0.0
      %3903 = vmatprep.subr.mxu0 0.0
      %3904 = vmatpush1.msra.mxu0 0.0
      %3905 = vmatprep.subr.mxu0 0.0
      %3906 = vmatpush1.msra.mxu0 0.0
      %3907 = vmatprep.subr.mxu0 0.0
      %3908 = vmatpush1.msra.mxu0 0.0
      %3909 = vmatprep.subr.mxu0 0.0
      %3910 = vmatpush1.msra.mxu0 0.0
      %3911 = vmatprep.subr.mxu0 0.0
      %3912 = vmatpush1.msra.mxu0 0.0
      %3913 = vmatprep.subr.mxu0 0.0
      %3914 = vmatpush1.msra.mxu0 0.0
      %3915 = vmatprep.subr.mxu0 0.0
      %3916 = vmatpush1.msra.mxu0 0.0
      %3917 = vmatprep.subr.mxu0 0.0
      %3918 = vmatpush1.msra.mxu0 0.0
      %3919 = vmatprep.subr.mxu0 0.0
      %3920 = vmatpush1.msra.mxu0 0.0
      %3921 = vmatprep.subr.mxu0 0.0
      %3922 = vmatpush1.msra.mxu0 0.0
      %3923 = vmatprep.subr.mxu0 0.0
      %3924 = vmatpush1.msra.mxu0 0.0
      %3925 = vmatprep.subr.mxu0 0.0
      %3926 = vmatpush1.msra.mxu0 0.0
      %3927 = vmatprep.subr.mxu0 0.0
      %3928 = vmatpush1.msra.mxu0 0.0
      %3929 = vmatprep.subr.mxu0 0.0
      %3930 = vmatpush1.msra.mxu0 0.0
      %3931 = vmatprep.subr.mxu0 0.0
      %3932 = vmatpush1.msra.mxu0 0.0
      %3933 = vmatprep.subr.mxu0 0.0
      %3934 = vmatpush1.msra.mxu0 0.0
      %3935 = vmatprep.mubr.f32.mxu0 0.0
      %3936 = vmatmul.mubr.f32.gmra.mrb[0].mxu0 %v3656
      %v3937 = vpop.f32.mrb[0].mxu0
      %v3938 = vadd.f32 %v3654, %v3937
      %v3939 = vpop.f32.mrb[0].mxu0
      %v3940 = vadd.f32 %v3654, %v3939
      %3941 = vdwg.mxu0
      %v3942 = vmax.f32 %v3725, 0.0
      %v3943 = vmax.f32 %v3727, 0.0
      %v3944 = vmax.f32 %v3796, 0.0
      %v3945 = vmax.f32 %v3798, 0.0
      %v3946 = vmax.f32 %v3867, 0.0
      %v3947 = vmax.f32 %v3869, 0.0
      %v3948 = vmax.f32 %v3938, 0.0
      %v3949 = vmax.f32 %v3940, 0.0
      %3951 = vset.pattern.permute.xlu0 32
      %3952 = vperm.xlu0 %3951, %v3650
      %v3953 = vpop.permute.xlu0 %3952
      %v3955 = vsel %vm2063, %v3650, 0
      %3957 = vmatprep.subr.mxu0 %v3943
      %3958 = vmatpush1.msra.mxu0 %v3942
      %3959 = vmatprep.subr.mxu0 0.0
      %3960 = vmatpush1.msra.mxu0 0.0
      %3961 = vmatprep.subr.mxu0 0.0
      %3962 = vmatpush1.msra.mxu0 0.0
      %3963 = vmatprep.subr.mxu0 0.0
      %3964 = vmatpush1.msra.mxu0 0.0
      %3965 = vmatprep.subr.mxu0 0.0
      %3966 = vmatpush1.msra.mxu0 0.0
      %3967 = vmatprep.subr.mxu0 0.0
      %3968 = vmatpush1.msra.mxu0 0.0
      %3969 = vmatprep.subr.mxu0 0.0
      %3970 = vmatpush1.msra.mxu0 0.0
      %3971 = vmatprep.subr.mxu0 0.0
      %3972 = vmatpush1.msra.mxu0 0.0
      %3973 = vmatprep.subr.mxu0 0.0
      %3974 = vmatpush1.msra.mxu0 0.0
      %3975 = vmatprep.subr.mxu0 0.0
      %3976 = vmatpush1.msra.mxu0 0.0
      %3977 = vmatprep.subr.mxu0 0.0
      %3978 = vmatpush1.msra.mxu0 0.0
      %3979 = vmatprep.subr.mxu0 0.0
      %3980 = vmatpush1.msra.mxu0 0.0
      %3981 = vmatprep.subr.mxu0 0.0
      %3982 = vmatpush1.msra.mxu0 0.0
      %3983 = vmatprep.subr.mxu0 0.0
      %3984 = vmatpush1.msra.mxu0 0.0
      %3985 = vmatprep.subr.mxu0 0.0
      %3986 = vmatpush1.msra.mxu0 0.0
      %3987 = vmatprep.subr.mxu0 0.0
      %3988 = vmatpush1.msra.mxu0 0.0
      %3989 = vmatprep.subr.mxu0 0.0
      %3990 = vmatpush1.msra.mxu0 0.0
      %3991 = vmatprep.subr.mxu0 0.0
      %3992 = vmatpush1.msra.mxu0 0.0
      %3993 = vmatprep.subr.mxu0 0.0
      %3994 = vmatpush1.msra.mxu0 0.0
      %3995 = vmatprep.subr.mxu0 0.0
      %3996 = vmatpush1.msra.mxu0 0.0
      %3997 = vmatprep.subr.mxu0 0.0
      %3998 = vmatpush1.msra.mxu0 0.0
      %3999 = vmatprep.subr.mxu0 0.0
      %4000 = vmatpush1.msra.mxu0 0.0
      %4001 = vmatprep.subr.mxu0 0.0
      %4002 = vmatpush1.msra.mxu0 0.0
      %4003 = vmatprep.subr.mxu0 0.0
      %4004 = vmatpush1.msra.mxu0 0.0
      %4005 = vmatprep.subr.mxu0 0.0
      %4006 = vmatpush1.msra.mxu0 0.0
      %4007 = vmatprep.subr.mxu0 0.0
      %4008 = vmatpush1.msra.mxu0 0.0
      %4009 = vmatprep.subr.mxu0 0.0
      %4010 = vmatpush1.msra.mxu0 0.0
      %4011 = vmatprep.subr.mxu0 0.0
      %4012 = vmatpush1.msra.mxu0 0.0
      %4013 = vmatprep.subr.mxu0 0.0
      %4014 = vmatpush1.msra.mxu0 0.0
      %4015 = vmatprep.subr.mxu0 0.0
      %4016 = vmatpush1.msra.mxu0 0.0
      %4017 = vmatprep.subr.mxu0 0.0
      %4018 = vmatpush1.msra.mxu0 0.0
      %4019 = vmatprep.subr.mxu0 0.0
      %4020 = vmatpush1.msra.mxu0 0.0
      %4021 = vmatprep.mubr.f32.mxu0 0.0
      %4022 = vmatmul.mubr.f32.gmra.mrb[0].mxu0 %v3955
      %v4023 = vpop.f32.mrb[0].mxu0
      %v4024 = vadd.f32 %v3953, %v4023
      %v4025 = vpop.f32.mrb[0].mxu0
      %v4026 = vadd.f32 %v3953, %v4025
      %4027 = vdwg.mxu0
      %4028 = vmatprep.subr.mxu0 %v3945
      %4029 = vmatpush1.msra.mxu0 %v3944
      %4030 = vmatprep.subr.mxu0 0.0
      %4031 = vmatpush1.msra.mxu0 0.0
      %4032 = vmatprep.subr.mxu0 0.0
      %4033 = vmatpush1.msra.mxu0 0.0
      %4034 = vmatprep.subr.mxu0 0.0
      %4035 = vmatpush1.msra.mxu0 0.0
      %4036 = vmatprep.subr.mxu0 0.0
      %4037 = vmatpush1.msra.mxu0 0.0
      %4038 = vmatprep.subr.mxu0 0.0
      %4039 = vmatpush1.msra.mxu0 0.0
      %4040 = vmatprep.subr.mxu0 0.0
      %4041 = vmatpush1.msra.mxu0 0.0
      %4042 = vmatprep.subr.mxu0 0.0
      %4043 = vmatpush1.msra.mxu0 0.0
      %4044 = vmatprep.subr.mxu0 0.0
      %4045 = vmatpush1.msra.mxu0 0.0
      %4046 = vmatprep.subr.mxu0 0.0
      %4047 = vmatpush1.msra.mxu0 0.0
      %4048 = vmatprep.subr.mxu0 0.0
      %4049 = vmatpush1.msra.mxu0 0.0
      %4050 = vmatprep.subr.mxu0 0.0
      %4051 = vmatpush1.msra.mxu0 0.0
      %4052 = vmatprep.subr.mxu0 0.0
      %4053 = vmatpush1.msra.mxu0 0.0
      %4054 = vmatprep.subr.mxu0 0.0
      %4055 = vmatpush1.msra.mxu0 0.0
      %4056 = vmatprep.subr.mxu0 0.0
      %4057 = vmatpush1.msra.mxu0 0.0
      %4058 = vmatprep.subr.mxu0 0.0
      %4059 = vmatpush1.msra.mxu0 0.0
      %4060 = vmatprep.subr.mxu0 0.0
      %4061 = vmatpush1.msra.mxu0 0.0
      %4062 = vmatprep.subr.mxu0 0.0
      %4063 = vmatpush1.msra.mxu0 0.0
      %4064 = vmatprep.subr.mxu0 0.0
      %4065 = vmatpush1.msra.mxu0 0.0
      %4066 = vmatprep.subr.mxu0 0.0
      %4067 = vmatpush1.msra.mxu0 0.0
      %4068 = vmatprep.subr.mxu0 0.0
      %4069 = vmatpush1.msra.mxu0 0.0
      %4070 = vmatprep.subr.mxu0 0.0
      %4071 = vmatpush1.msra.mxu0 0.0
      %4072 = vmatprep.subr.mxu0 0.0
      %4073 = vmatpush1.msra.mxu0 0.0
      %4074 = vmatprep.subr.mxu0 0.0
      %4075 = vmatpush1.msra.mxu0 0.0
      %4076 = vmatprep.subr.mxu0 0.0
      %4077 = vmatpush1.msra.mxu0 0.0
      %4078 = vmatprep.subr.mxu0 0.0
      %4079 = vmatpush1.msra.mxu0 0.0
      %4080 = vmatprep.subr.mxu0 0.0
      %4081 = vmatpush1.msra.mxu0 0.0
      %4082 = vmatprep.subr.mxu0 0.0
      %4083 = vmatpush1.msra.mxu0 0.0
      %4084 = vmatprep.subr.mxu0 0.0
      %4085 = vmatpush1.msra.mxu0 0.0
      %4086 = vmatprep.subr.mxu0 0.0
      %4087 = vmatpush1.msra.mxu0 0.0
      %4088 = vmatprep.subr.mxu0 0.0
      %4089 = vmatpush1.msra.mxu0 0.0
      %4090 = vmatprep.subr.mxu0 0.0
      %4091 = vmatpush1.msra.mxu0 0.0
      %4092 = vmatprep.mubr.f32.mxu0 0.0
      %4093 = vmatmul.mubr.f32.gmra.mrb[0].mxu0 %v3955
      %v4094 = vpop.f32.mrb[0].mxu0
      %v4095 = vadd.f32 %v3953, %v4094
      %v4096 = vpop.f32.mrb[0].mxu0
      %v4097 = vadd.f32 %v3953, %v4096
      %4098 = vdwg.mxu0
      %4099 = vmatprep.subr.mxu0 %v3947
      %4100 = vmatpush1.msra.mxu0 %v3946
      %4101 = vmatprep.subr.mxu0 0.0
      %4102 = vmatpush1.msra.mxu0 0.0
      %4103 = vmatprep.subr.mxu0 0.0
      %4104 = vmatpush1.msra.mxu0 0.0
      %4105 = vmatprep.subr.mxu0 0.0
      %4106 = vmatpush1.msra.mxu0 0.0
      %4107 = vmatprep.subr.mxu0 0.0
      %4108 = vmatpush1.msra.mxu0 0.0
      %4109 = vmatprep.subr.mxu0 0.0
      %4110 = vmatpush1.msra.mxu0 0.0
      %4111 = vmatprep.subr.mxu0 0.0
      %4112 = vmatpush1.msra.mxu0 0.0
      %4113 = vmatprep.subr.mxu0 0.0
      %4114 = vmatpush1.msra.mxu0 0.0
      %4115 = vmatprep.subr.mxu0 0.0
      %4116 = vmatpush1.msra.mxu0 0.0
      %4117 = vmatprep.subr.mxu0 0.0
      %4118 = vmatpush1.msra.mxu0 0.0
      %4119 = vmatprep.subr.mxu0 0.0
      %4120 = vmatpush1.msra.mxu0 0.0
      %4121 = vmatprep.subr.mxu0 0.0
      %4122 = vmatpush1.msra.mxu0 0.0
      %4123 = vmatprep.subr.mxu0 0.0
      %4124 = vmatpush1.msra.mxu0 0.0
      %4125 = vmatprep.subr.mxu0 0.0
      %4126 = vmatpush1.msra.mxu0 0.0
      %4127 = vmatprep.subr.mxu0 0.0
      %4128 = vmatpush1.msra.mxu0 0.0
      %4129 = vmatprep.subr.mxu0 0.0
      %4130 = vmatpush1.msra.mxu0 0.0
      %4131 = vmatprep.subr.mxu0 0.0
      %4132 = vmatpush1.msra.mxu0 0.0
      %4133 = vmatprep.subr.mxu0 0.0
      %4134 = vmatpush1.msra.mxu0 0.0
      %4135 = vmatprep.subr.mxu0 0.0
      %4136 = vmatpush1.msra.mxu0 0.0
      %4137 = vmatprep.subr.mxu0 0.0
      %4138 = vmatpush1.msra.mxu0 0.0
      %4139 = vmatprep.subr.mxu0 0.0
      %4140 = vmatpush1.msra.mxu0 0.0
      %4141 = vmatprep.subr.mxu0 0.0
      %4142 = vmatpush1.msra.mxu0 0.0
      %4143 = vmatprep.subr.mxu0 0.0
      %4144 = vmatpush1.msra.mxu0 0.0
      %4145 = vmatprep.subr.mxu0 0.0
      %4146 = vmatpush1.msra.mxu0 0.0
      %4147 = vmatprep.subr.mxu0 0.0
      %4148 = vmatpush1.msra.mxu0 0.0
      %4149 = vmatprep.subr.mxu0 0.0
      %4150 = vmatpush1.msra.mxu0 0.0
      %4151 = vmatprep.subr.mxu0 0.0
      %4152 = vmatpush1.msra.mxu0 0.0
      %4153 = vmatprep.subr.mxu0 0.0
      %4154 = vmatpush1.msra.mxu0 0.0
      %4155 = vmatprep.subr.mxu0 0.0
      %4156 = vmatpush1.msra.mxu0 0.0
      %4157 = vmatprep.subr.mxu0 0.0
      %4158 = vmatpush1.msra.mxu0 0.0
      %4159 = vmatprep.subr.mxu0 0.0
      %4160 = vmatpush1.msra.mxu0 0.0
      %4161 = vmatprep.subr.mxu0 0.0
      %4162 = vmatpush1.msra.mxu0 0.0
      %4163 = vmatprep.mubr.f32.mxu0 0.0
      %4164 = vmatmul.mubr.f32.gmra.mrb[0].mxu0 %v3955
      %v4165 = vpop.f32.mrb[0].mxu0
      %v4166 = vadd.f32 %v3953, %v4165
      %v4167 = vpop.f32.mrb[0].mxu0
      %v4168 = vadd.f32 %v3953, %v4167
      %4169 = vdwg.mxu0
      %4170 = vmatprep.subr.mxu0 %v3949
      %4171 = vmatpush1.msra.mxu0 %v3948
      %4172 = vmatprep.subr.mxu0 0.0
      %4173 = vmatpush1.msra.mxu0 0.0
      %4174 = vmatprep.subr.mxu0 0.0
      %4175 = vmatpush1.msra.mxu0 0.0
      %4176 = vmatprep.subr.mxu0 0.0
      %4177 = vmatpush1.msra.mxu0 0.0
      %4178 = vmatprep.subr.mxu0 0.0
      %4179 = vmatpush1.msra.mxu0 0.0
      %4180 = vmatprep.subr.mxu0 0.0
      %4181 = vmatpush1.msra.mxu0 0.0
      %4182 = vmatprep.subr.mxu0 0.0
      %4183 = vmatpush1.msra.mxu0 0.0
      %4184 = vmatprep.subr.mxu0 0.0
      %4185 = vmatpush1.msra.mxu0 0.0
      %4186 = vmatprep.subr.mxu0 0.0
      %4187 = vmatpush1.msra.mxu0 0.0
      %4188 = vmatprep.subr.mxu0 0.0
      %4189 = vmatpush1.msra.mxu0 0.0
      %4190 = vmatprep.subr.mxu0 0.0
      %4191 = vmatpush1.msra.mxu0 0.0
      %4192 = vmatprep.subr.mxu0 0.0
      %4193 = vmatpush1.msra.mxu0 0.0
      %4194 = vmatprep.subr.mxu0 0.0
      %4195 = vmatpush1.msra.mxu0 0.0
      %4196 = vmatprep.subr.mxu0 0.0
      %4197 = vmatpush1.msra.mxu0 0.0
      %4198 = vmatprep.subr.mxu0 0.0
      %4199 = vmatpush1.msra.mxu0 0.0
      %4200 = vmatprep.subr.mxu0 0.0
      %4201 = vmatpush1.msra.mxu0 0.0
      %4202 = vmatprep.subr.mxu0 0.0
      %4203 = vmatpush1.msra.mxu0 0.0
      %4204 = vmatprep.subr.mxu0 0.0
      %4205 = vmatpush1.msra.mxu0 0.0
      %4206 = vmatprep.subr.mxu0 0.0
      %4207 = vmatpush1.msra.mxu0 0.0
      %4208 = vmatprep.subr.mxu0 0.0
      %4209 = vmatpush1.msra.mxu0 0.0
      %4210 = vmatprep.subr.mxu0 0.0
      %4211 = vmatpush1.msra.mxu0 0.0
      %4212 = vmatprep.subr.mxu0 0.0
      %4213 = vmatpush1.msra.mxu0 0.0
      %4214 = vmatprep.subr.mxu0 0.0
      %4215 = vmatpush1.msra.mxu0 0.0
      %4216 = vmatprep.subr.mxu0 0.0
      %4217 = vmatpush1.msra.mxu0 0.0
      %4218 = vmatprep.subr.mxu0 0.0
      %4219 = vmatpush1.msra.mxu0 0.0
      %4220 = vmatprep.subr.mxu0 0.0
      %4221 = vmatpush1.msra.mxu0 0.0
      %4222 = vmatprep.subr.mxu0 0.0
      %4223 = vmatpush1.msra.mxu0 0.0
      %4224 = vmatprep.subr.mxu0 0.0
      %4225 = vmatpush1.msra.mxu0 0.0
      %4226 = vmatprep.subr.mxu0 0.0
      %4227 = vmatpush1.msra.mxu0 0.0
      %4228 = vmatprep.subr.mxu0 0.0
      %4229 = vmatpush1.msra.mxu0 0.0
      %4230 = vmatprep.subr.mxu0 0.0
      %4231 = vmatpush1.msra.mxu0 0.0
      %4232 = vmatprep.subr.mxu0 0.0
      %4233 = vmatpush1.msra.mxu0 0.0
      %4234 = vmatprep.mubr.f32.mxu0 0.0
      %4235 = vmatmul.mubr.f32.gmra.mrb[0].mxu0 %v3955
      %v4236 = vpop.f32.mrb[0].mxu0
      %v4237 = vadd.f32 %v3953, %v4236
      %v4238 = vpop.f32.mrb[0].mxu0
      %v4239 = vadd.f32 %v3953, %v4238
      %4240 = vdwg.mxu0
      %4241 = vst [vmem:[%s288] sm:$0xff] %v4024
      %4242 = vst [vmem:[%s288 + $0x8] sm:$0xff] %v4026
      %4243 = vst [vmem:[%s288 + $0x10] sm:$0xff] %v4095
      %4244 = vst [vmem:[%s288 + $0x18] sm:$0xff] %v4097
      %4245 = vst [vmem:[%s288 + $0x20] sm:$0xff] %v4166
      %4246 = vst [vmem:[%s288 + $0x28] sm:$0xff] %v4168
      %4247 = vst [vmem:[%s288 + $0x30] sm:$0xff] %v4237
      %4248 = vst [vmem:[%s288 + $0x38] sm:$0xff] %v4239
      %v4249 = vld [vmem:[%s2 + $0x160] sm:$0xff]
      %v4250 = vld [vmem:[%s2 + $0x168] sm:$0xff]
      %4252 = vset.pattern.permute.xlu0 32
      %4253 = vperm.xlu0 %4252, %v4249
      %v4254 = vpop.permute.xlu0 %4253
      %v4256 = vsel %vm2063, %v4249, 0
      %4258 = vmatprep.subr.mxu0 %v3626
      %4259 = vmatpush1.msra.mxu0 %v3625
      %4260 = vmatprep.subr.mxu0 0.0
      %4261 = vmatpush1.msra.mxu0 0.0
      %4262 = vmatprep.subr.mxu0 0.0
      %4263 = vmatpush1.msra.mxu0 0.0
      %4264 = vmatprep.subr.mxu0 0.0
      %4265 = vmatpush1.msra.mxu0 0.0
      %4266 = vmatprep.subr.mxu0 0.0
      %4267 = vmatpush1.msra.mxu0 0.0
      %4268 = vmatprep.subr.mxu0 0.0
      %4269 = vmatpush1.msra.mxu0 0.0
      %4270 = vmatprep.subr.mxu0 0.0
      %4271 = vmatpush1.msra.mxu0 0.0
      %4272 = vmatprep.subr.mxu0 0.0
      %4273 = vmatpush1.msra.mxu0 0.0
      %4274 = vmatprep.subr.mxu0 0.0
      %4275 = vmatpush1.msra.mxu0 0.0
      %4276 = vmatprep.subr.mxu0 0.0
      %4277 = vmatpush1.msra.mxu0 0.0
      %4278 = vmatprep.subr.mxu0 0.0
      %4279 = vmatpush1.msra.mxu0 0.0
      %4280 = vmatprep.subr.mxu0 0.0
      %4281 = vmatpush1.msra.mxu0 0.0
      %4282 = vmatprep.subr.mxu0 0.0
      %4283 = vmatpush1.msra.mxu0 0.0
      %4284 = vmatprep.subr.mxu0 0.0
      %4285 = vmatpush1.msra.mxu0 0.0
      %4286 = vmatprep.subr.mxu0 0.0
      %4287 = vmatpush1.msra.mxu0 0.0
      %4288 = vmatprep.subr.mxu0 0.0
      %4289 = vmatpush1.msra.mxu0 0.0
      %4290 = vmatprep.subr.mxu0 0.0
      %4291 = vmatpush1.msra.mxu0 0.0
      %4292 = vmatprep.subr.mxu0 0.0
      %4293 = vmatpush1.msra.mxu0 0.0
      %4294 = vmatprep.subr.mxu0 0.0
      %4295 = vmatpush1.msra.mxu0 0.0
      %4296 = vmatprep.subr.mxu0 0.0
      %4297 = vmatpush1.msra.mxu0 0.0
      %4298 = vmatprep.subr.mxu0 0.0
      %4299 = vmatpush1.msra.mxu0 0.0
      %4300 = vmatprep.subr.mxu0 0.0
      %4301 = vmatpush1.msra.mxu0 0.0
      %4302 = vmatprep.subr.mxu0 0.0
      %4303 = vmatpush1.msra.mxu0 0.0
      %4304 = vmatprep.subr.mxu0 0.0
      %4305 = vmatpush1.msra.mxu0 0.0
      %4306 = vmatprep.subr.mxu0 0.0
      %4307 = vmatpush1.msra.mxu0 0.0
      %4308 = vmatprep.subr.mxu0 0.0
      %4309 = vmatpush1.msra.mxu0 0.0
      %4310 = vmatprep.subr.mxu0 0.0
      %4311 = vmatpush1.msra.mxu0 0.0
      %4312 = vmatprep.subr.mxu0 0.0
      %4313 = vmatpush1.msra.mxu0 0.0
      %4314 = vmatprep.subr.mxu0 0.0
      %4315 = vmatpush1.msra.mxu0 0.0
      %4316 = vmatprep.subr.mxu0 0.0
      %4317 = vmatpush1.msra.mxu0 0.0
      %4318 = vmatprep.subr.mxu0 0.0
      %4319 = vmatpush1.msra.mxu0 0.0
      %4320 = vmatprep.subr.mxu0 0.0
      %4321 = vmatpush1.msra.mxu0 0.0
      %4322 = vmatprep.mubr.f32.mxu0 0.0
      %4323 = vmatmul.mubr.f32.gmra.mrb[0].mxu0 %v4256
      %v4324 = vpop.f32.mrb[0].mxu0
      %v4325 = vadd.f32 %v4254, %v4324
      %v4326 = vpop.f32.mrb[0].mxu0
      %v4327 = vadd.f32 %v4254, %v4326
      %4328 = vdwg.mxu0
      %4329 = vmatprep.subr.mxu0 %v3628
      %4330 = vmatpush1.msra.mxu0 %v3627
      %4331 = vmatprep.subr.mxu0 0.0
      %4332 = vmatpush1.msra.mxu0 0.0
      %4333 = vmatprep.subr.mxu0 0.0
      %4334 = vmatpush1.msra.mxu0 0.0
      %4335 = vmatprep.subr.mxu0 0.0
      %4336 = vmatpush1.msra.mxu0 0.0
      %4337 = vmatprep.subr.mxu0 0.0
      %4338 = vmatpush1.msra.mxu0 0.0
      %4339 = vmatprep.subr.mxu0 0.0
      %4340 = vmatpush1.msra.mxu0 0.0
      %4341 = vmatprep.subr.mxu0 0.0
      %4342 = vmatpush1.msra.mxu0 0.0
      %4343 = vmatprep.subr.mxu0 0.0
      %4344 = vmatpush1.msra.mxu0 0.0
      %4345 = vmatprep.subr.mxu0 0.0
      %4346 = vmatpush1.msra.mxu0 0.0
      %4347 = vmatprep.subr.mxu0 0.0
      %4348 = vmatpush1.msra.mxu0 0.0
      %4349 = vmatprep.subr.mxu0 0.0
      %4350 = vmatpush1.msra.mxu0 0.0
      %4351 = vmatprep.subr.mxu0 0.0
      %4352 = vmatpush1.msra.mxu0 0.0
      %4353 = vmatprep.subr.mxu0 0.0
      %4354 = vmatpush1.msra.mxu0 0.0
      %4355 = vmatprep.subr.mxu0 0.0
      %4356 = vmatpush1.msra.mxu0 0.0
      %4357 = vmatprep.subr.mxu0 0.0
      %4358 = vmatpush1.msra.mxu0 0.0
      %4359 = vmatprep.subr.mxu0 0.0
      %4360 = vmatpush1.msra.mxu0 0.0
      %4361 = vmatprep.subr.mxu0 0.0
      %4362 = vmatpush1.msra.mxu0 0.0
      %4363 = vmatprep.subr.mxu0 0.0
      %4364 = vmatpush1.msra.mxu0 0.0
      %4365 = vmatprep.subr.mxu0 0.0
      %4366 = vmatpush1.msra.mxu0 0.0
      %4367 = vmatprep.subr.mxu0 0.0
      %4368 = vmatpush1.msra.mxu0 0.0
      %4369 = vmatprep.subr.mxu0 0.0
      %4370 = vmatpush1.msra.mxu0 0.0
      %4371 = vmatprep.subr.mxu0 0.0
      %4372 = vmatpush1.msra.mxu0 0.0
      %4373 = vmatprep.subr.mxu0 0.0
      %4374 = vmatpush1.msra.mxu0 0.0
      %4375 = vmatprep.subr.mxu0 0.0
      %4376 = vmatpush1.msra.mxu0 0.0
      %4377 = vmatprep.subr.mxu0 0.0
      %4378 = vmatpush1.msra.mxu0 0.0
      %4379 = vmatprep.subr.mxu0 0.0
      %4380 = vmatpush1.msra.mxu0 0.0
      %4381 = vmatprep.subr.mxu0 0.0
      %4382 = vmatpush1.msra.mxu0 0.0
      %4383 = vmatprep.subr.mxu0 0.0
      %4384 = vmatpush1.msra.mxu0 0.0
      %4385 = vmatprep.subr.mxu0 0.0
      %4386 = vmatpush1.msra.mxu0 0.0
      %4387 = vmatprep.subr.mxu0 0.0
      %4388 = vmatpush1.msra.mxu0 0.0
      %4389 = vmatprep.subr.mxu0 0.0
      %4390 = vmatpush1.msra.mxu0 0.0
      %4391 = vmatprep.subr.mxu0 0.0
      %4392 = vmatpush1.msra.mxu0 0.0
      %4393 = vmatprep.mubr.f32.mxu0 0.0
      %4394 = vmatmul.mubr.f32.gmra.mrb[0].mxu0 %v4256
      %v4395 = vpop.f32.mrb[0].mxu0
      %v4396 = vadd.f32 %v4254, %v4395
      %v4397 = vpop.f32.mrb[0].mxu0
      %v4398 = vadd.f32 %v4254, %v4397
      %4399 = vdwg.mxu0
      %4400 = vmatprep.subr.mxu0 %v3630
      %4401 = vmatpush1.msra.mxu0 %v3629
      %4402 = vmatprep.subr.mxu0 0.0
      %4403 = vmatpush1.msra.mxu0 0.0
      %4404 = vmatprep.subr.mxu0 0.0
      %4405 = vmatpush1.msra.mxu0 0.0
      %4406 = vmatprep.subr.mxu0 0.0
      %4407 = vmatpush1.msra.mxu0 0.0
      %4408 = vmatprep.subr.mxu0 0.0
      %4409 = vmatpush1.msra.mxu0 0.0
      %4410 = vmatprep.subr.mxu0 0.0
      %4411 = vmatpush1.msra.mxu0 0.0
      %4412 = vmatprep.subr.mxu0 0.0
      %4413 = vmatpush1.msra.mxu0 0.0
      %4414 = vmatprep.subr.mxu0 0.0
      %4415 = vmatpush1.msra.mxu0 0.0
      %4416 = vmatprep.subr.mxu0 0.0
      %4417 = vmatpush1.msra.mxu0 0.0
      %4418 = vmatprep.subr.mxu0 0.0
      %4419 = vmatpush1.msra.mxu0 0.0
      %4420 = vmatprep.subr.mxu0 0.0
      %4421 = vmatpush1.msra.mxu0 0.0
      %4422 = vmatprep.subr.mxu0 0.0
      %4423 = vmatpush1.msra.mxu0 0.0
      %4424 = vmatprep.subr.mxu0 0.0
      %4425 = vmatpush1.msra.mxu0 0.0
      %4426 = vmatprep.subr.mxu0 0.0
      %4427 = vmatpush1.msra.mxu0 0.0
      %4428 = vmatprep.subr.mxu0 0.0
      %4429 = vmatpush1.msra.mxu0 0.0
      %4430 = vmatprep.subr.mxu0 0.0
      %4431 = vmatpush1.msra.mxu0 0.0
      %4432 = vmatprep.subr.mxu0 0.0
      %4433 = vmatpush1.msra.mxu0 0.0
      %4434 = vmatprep.subr.mxu0 0.0
      %4435 = vmatpush1.msra.mxu0 0.0
      %4436 = vmatprep.subr.mxu0 0.0
      %4437 = vmatpush1.msra.mxu0 0.0
      %4438 = vmatprep.subr.mxu0 0.0
      %4439 = vmatpush1.msra.mxu0 0.0
      %4440 = vmatprep.subr.mxu0 0.0
      %4441 = vmatpush1.msra.mxu0 0.0
      %4442 = vmatprep.subr.mxu0 0.0
      %4443 = vmatpush1.msra.mxu0 0.0
      %4444 = vmatprep.subr.mxu0 0.0
      %4445 = vmatpush1.msra.mxu0 0.0
      %4446 = vmatprep.subr.mxu0 0.0
      %4447 = vmatpush1.msra.mxu0 0.0
      %4448 = vmatprep.subr.mxu0 0.0
      %4449 = vmatpush1.msra.mxu0 0.0
      %4450 = vmatprep.subr.mxu0 0.0
      %4451 = vmatpush1.msra.mxu0 0.0
      %4452 = vmatprep.subr.mxu0 0.0
      %4453 = vmatpush1.msra.mxu0 0.0
      %4454 = vmatprep.subr.mxu0 0.0
      %4455 = vmatpush1.msra.mxu0 0.0
      %4456 = vmatprep.subr.mxu0 0.0
      %4457 = vmatpush1.msra.mxu0 0.0
      %4458 = vmatprep.subr.mxu0 0.0
      %4459 = vmatpush1.msra.mxu0 0.0
      %4460 = vmatprep.subr.mxu0 0.0
      %4461 = vmatpush1.msra.mxu0 0.0
      %4462 = vmatprep.subr.mxu0 0.0
      %4463 = vmatpush1.msra.mxu0 0.0
      %4464 = vmatprep.mubr.f32.mxu0 0.0
      %4465 = vmatmul.mubr.f32.gmra.mrb[0].mxu0 %v4256
      %v4466 = vpop.f32.mrb[0].mxu0
      %v4467 = vadd.f32 %v4254, %v4466
      %v4468 = vpop.f32.mrb[0].mxu0
      %v4469 = vadd.f32 %v4254, %v4468
      %4470 = vdwg.mxu0
      %4471 = vmatprep.subr.mxu0 %v3632
      %4472 = vmatpush1.msra.mxu0 %v3631
      %4473 = vmatprep.subr.mxu0 0.0
      %4474 = vmatpush1.msra.mxu0 0.0
      %4475 = vmatprep.subr.mxu0 0.0
      %4476 = vmatpush1.msra.mxu0 0.0
      %4477 = vmatprep.subr.mxu0 0.0
      %4478 = vmatpush1.msra.mxu0 0.0
      %4479 = vmatprep.subr.mxu0 0.0
      %4480 = vmatpush1.msra.mxu0 0.0
      %4481 = vmatprep.subr.mxu0 0.0
      %4482 = vmatpush1.msra.mxu0 0.0
      %4483 = vmatprep.subr.mxu0 0.0
      %4484 = vmatpush1.msra.mxu0 0.0
      %4485 = vmatprep.subr.mxu0 0.0
      %4486 = vmatpush1.msra.mxu0 0.0
      %4487 = vmatprep.subr.mxu0 0.0
      %4488 = vmatpush1.msra.mxu0 0.0
      %4489 = vmatprep.subr.mxu0 0.0
      %4490 = vmatpush1.msra.mxu0 0.0
      %4491 = vmatprep.subr.mxu0 0.0
      %4492 = vmatpush1.msra.mxu0 0.0
      %4493 = vmatprep.subr.mxu0 0.0
      %4494 = vmatpush1.msra.mxu0 0.0
      %4495 = vmatprep.subr.mxu0 0.0
      %4496 = vmatpush1.msra.mxu0 0.0
      %4497 = vmatprep.subr.mxu0 0.0
      %4498 = vmatpush1.msra.mxu0 0.0
      %4499 = vmatprep.subr.mxu0 0.0
      %4500 = vmatpush1.msra.mxu0 0.0
      %4501 = vmatprep.subr.mxu0 0.0
      %4502 = vmatpush1.msra.mxu0 0.0
      %4503 = vmatprep.subr.mxu0 0.0
      %4504 = vmatpush1.msra.mxu0 0.0
      %4505 = vmatprep.subr.mxu0 0.0
      %4506 = vmatpush1.msra.mxu0 0.0
      %4507 = vmatprep.subr.mxu0 0.0
      %4508 = vmatpush1.msra.mxu0 0.0
      %4509 = vmatprep.subr.mxu0 0.0
      %4510 = vmatpush1.msra.mxu0 0.0
      %4511 = vmatprep.subr.mxu0 0.0
      %4512 = vmatpush1.msra.mxu0 0.0
      %4513 = vmatprep.subr.mxu0 0.0
      %4514 = vmatpush1.msra.mxu0 0.0
      %4515 = vmatprep.subr.mxu0 0.0
      %4516 = vmatpush1.msra.mxu0 0.0
      %4517 = vmatprep.subr.mxu0 0.0
      %4518 = vmatpush1.msra.mxu0 0.0
      %4519 = vmatprep.subr.mxu0 0.0
      %4520 = vmatpush1.msra.mxu0 0.0
      %4521 = vmatprep.subr.mxu0 0.0
      %4522 = vmatpush1.msra.mxu0 0.0
      %4523 = vmatprep.subr.mxu0 0.0
      %4524 = vmatpush1.msra.mxu0 0.0
      %4525 = vmatprep.subr.mxu0 0.0
      %4526 = vmatpush1.msra.mxu0 0.0
      %4527 = vmatprep.subr.mxu0 0.0
      %4528 = vmatpush1.msra.mxu0 0.0
      %4529 = vmatprep.subr.mxu0 0.0
      %4530 = vmatpush1.msra.mxu0 0.0
      %4531 = vmatprep.subr.mxu0 0.0
      %4532 = vmatpush1.msra.mxu0 0.0
      %4533 = vmatprep.subr.mxu0 0.0
      %4534 = vmatpush1.msra.mxu0 0.0
      %4535 = vmatprep.mubr.f32.mxu0 0.0
      %4536 = vmatmul.mubr.f32.gmra.mrb[0].mxu0 %v4256
      %v4537 = vpop.f32.mrb[0].mxu0
      %v4538 = vadd.f32 %v4254, %v4537
      %v4539 = vpop.f32.mrb[0].mxu0
      %v4540 = vadd.f32 %v4254, %v4539
      %4541 = vdwg.mxu0
      %v4542 = vmax.f32 %v4325, 0.0
      %v4543 = vmax.f32 %v4327, 0.0
      %v4544 = vmax.f32 %v4396, 0.0
      %v4545 = vmax.f32 %v4398, 0.0
      %v4546 = vmax.f32 %v4467, 0.0
      %v4547 = vmax.f32 %v4469, 0.0
      %v4548 = vmax.f32 %v4538, 0.0
      %v4549 = vmax.f32 %v4540, 0.0
      %4551 = vset.pattern.permute.xlu0 32
      %4552 = vperm.xlu0 %4551, %v4250
      %v4553 = vpop.permute.xlu0 %4552
      %v4555 = vsel %vm2063, %v4250, 0
      %4557 = vmatprep.subr.mxu0 %v4543
      %4558 = vmatpush1.msra.mxu0 %v4542
      %4559 = vmatprep.subr.mxu0 0.0
      %4560 = vmatpush1.msra.mxu0 0.0
      %4561 = vmatprep.subr.mxu0 0.0
      %4562 = vmatpush1.msra.mxu0 0.0
      %4563 = vmatprep.subr.mxu0 0.0
      %4564 = vmatpush1.msra.mxu0 0.0
      %4565 = vmatprep.subr.mxu0 0.0
      %4566 = vmatpush1.msra.mxu0 0.0
      %4567 = vmatprep.subr.mxu0 0.0
      %4568 = vmatpush1.msra.mxu0 0.0
      %4569 = vmatprep.subr.mxu0 0.0
      %4570 = vmatpush1.msra.mxu0 0.0
      %4571 = vmatprep.subr.mxu0 0.0
      %4572 = vmatpush1.msra.mxu0 0.0
      %4573 = vmatprep.subr.mxu0 0.0
      %4574 = vmatpush1.msra.mxu0 0.0
      %4575 = vmatprep.subr.mxu0 0.0
      %4576 = vmatpush1.msra.mxu0 0.0
      %4577 = vmatprep.subr.mxu0 0.0
      %4578 = vmatpush1.msra.mxu0 0.0
      %4579 = vmatprep.subr.mxu0 0.0
      %4580 = vmatpush1.msra.mxu0 0.0
      %4581 = vmatprep.subr.mxu0 0.0
      %4582 = vmatpush1.msra.mxu0 0.0
      %4583 = vmatprep.subr.mxu0 0.0
      %4584 = vmatpush1.msra.mxu0 0.0
      %4585 = vmatprep.subr.mxu0 0.0
      %4586 = vmatpush1.msra.mxu0 0.0
      %4587 = vmatprep.subr.mxu0 0.0
      %4588 = vmatpush1.msra.mxu0 0.0
      %4589 = vmatprep.subr.mxu0 0.0
      %4590 = vmatpush1.msra.mxu0 0.0
      %4591 = vmatprep.subr.mxu0 0.0
      %4592 = vmatpush1.msra.mxu0 0.0
      %4593 = vmatprep.subr.mxu0 0.0
      %4594 = vmatpush1.msra.mxu0 0.0
      %4595 = vmatprep.subr.mxu0 0.0
      %4596 = vmatpush1.msra.mxu0 0.0
      %4597 = vmatprep.subr.mxu0 0.0
      %4598 = vmatpush1.msra.mxu0 0.0
      %4599 = vmatprep.subr.mxu0 0.0
      %4600 = vmatpush1.msra.mxu0 0.0
      %4601 = vmatprep.subr.mxu0 0.0
      %4602 = vmatpush1.msra.mxu0 0.0
      %4603 = vmatprep.subr.mxu0 0.0
      %4604 = vmatpush1.msra.mxu0 0.0
      %4605 = vmatprep.subr.mxu0 0.0
      %4606 = vmatpush1.msra.mxu0 0.0
      %4607 = vmatprep.subr.mxu0 0.0
      %4608 = vmatpush1.msra.mxu0 0.0
      %4609 = vmatprep.subr.mxu0 0.0
      %4610 = vmatpush1.msra.mxu0 0.0
      %4611 = vmatprep.subr.mxu0 0.0
      %4612 = vmatpush1.msra.mxu0 0.0
      %4613 = vmatprep.subr.mxu0 0.0
      %4614 = vmatpush1.msra.mxu0 0.0
      %4615 = vmatprep.subr.mxu0 0.0
      %4616 = vmatpush1.msra.mxu0 0.0
      %4617 = vmatprep.subr.mxu0 0.0
      %4618 = vmatpush1.msra.mxu0 0.0
      %4619 = vmatprep.subr.mxu0 0.0
      %4620 = vmatpush1.msra.mxu0 0.0
      %4621 = vmatprep.mubr.f32.mxu0 0.0
      %4622 = vmatmul.mubr.f32.gmra.mrb[0].mxu0 %v4555
      %v4623 = vpop.f32.mrb[0].mxu0
      %v4624 = vadd.f32 %v4553, %v4623
      %v4625 = vpop.f32.mrb[0].mxu0
      %v4626 = vadd.f32 %v4553, %v4625
      %4627 = vdwg.mxu0
      %4628 = vmatprep.subr.mxu0 %v4545
      %4629 = vmatpush1.msra.mxu0 %v4544
      %4630 = vmatprep.subr.mxu0 0.0
      %4631 = vmatpush1.msra.mxu0 0.0
      %4632 = vmatprep.subr.mxu0 0.0
      %4633 = vmatpush1.msra.mxu0 0.0
      %4634 = vmatprep.subr.mxu0 0.0
      %4635 = vmatpush1.msra.mxu0 0.0
      %4636 = vmatprep.subr.mxu0 0.0
      %4637 = vmatpush1.msra.mxu0 0.0
      %4638 = vmatprep.subr.mxu0 0.0
      %4639 = vmatpush1.msra.mxu0 0.0
      %4640 = vmatprep.subr.mxu0 0.0
      %4641 = vmatpush1.msra.mxu0 0.0
      %4642 = vmatprep.subr.mxu0 0.0
      %4643 = vmatpush1.msra.mxu0 0.0
      %4644 = vmatprep.subr.mxu0 0.0
      %4645 = vmatpush1.msra.mxu0 0.0
      %4646 = vmatprep.subr.mxu0 0.0
      %4647 = vmatpush1.msra.mxu0 0.0
      %4648 = vmatprep.subr.mxu0 0.0
      %4649 = vmatpush1.msra.mxu0 0.0
      %4650 = vmatprep.subr.mxu0 0.0
      %4651 = vmatpush1.msra.mxu0 0.0
      %4652 = vmatprep.subr.mxu0 0.0
      %4653 = vmatpush1.msra.mxu0 0.0
      %4654 = vmatprep.subr.mxu0 0.0
      %4655 = vmatpush1.msra.mxu0 0.0
      %4656 = vmatprep.subr.mxu0 0.0
      %4657 = vmatpush1.msra.mxu0 0.0
      %4658 = vmatprep.subr.mxu0 0.0
      %4659 = vmatpush1.msra.mxu0 0.0
      %4660 = vmatprep.subr.mxu0 0.0
      %4661 = vmatpush1.msra.mxu0 0.0
      %4662 = vmatprep.subr.mxu0 0.0
      %4663 = vmatpush1.msra.mxu0 0.0
      %4664 = vmatprep.subr.mxu0 0.0
      %4665 = vmatpush1.msra.mxu0 0.0
      %4666 = vmatprep.subr.mxu0 0.0
      %4667 = vmatpush1.msra.mxu0 0.0
      %4668 = vmatprep.subr.mxu0 0.0
      %4669 = vmatpush1.msra.mxu0 0.0
      %4670 = vmatprep.subr.mxu0 0.0
      %4671 = vmatpush1.msra.mxu0 0.0
      %4672 = vmatprep.subr.mxu0 0.0
      %4673 = vmatpush1.msra.mxu0 0.0
      %4674 = vmatprep.subr.mxu0 0.0
      %4675 = vmatpush1.msra.mxu0 0.0
      %4676 = vmatprep.subr.mxu0 0.0
      %4677 = vmatpush1.msra.mxu0 0.0
      %4678 = vmatprep.subr.mxu0 0.0
      %4679 = vmatpush1.msra.mxu0 0.0
      %4680 = vmatprep.subr.mxu0 0.0
      %4681 = vmatpush1.msra.mxu0 0.0
      %4682 = vmatprep.subr.mxu0 0.0
      %4683 = vmatpush1.msra.mxu0 0.0
      %4684 = vmatprep.subr.mxu0 0.0
      %4685 = vmatpush1.msra.mxu0 0.0
      %4686 = vmatprep.subr.mxu0 0.0
      %4687 = vmatpush1.msra.mxu0 0.0
      %4688 = vmatprep.subr.mxu0 0.0
      %4689 = vmatpush1.msra.mxu0 0.0
      %4690 = vmatprep.subr.mxu0 0.0
      %4691 = vmatpush1.msra.mxu0 0.0
      %4692 = vmatprep.mubr.f32.mxu0 0.0
      %4693 = vmatmul.mubr.f32.gmra.mrb[0].mxu0 %v4555
      %v4694 = vpop.f32.mrb[0].mxu0
      %v4695 = vadd.f32 %v4553, %v4694
      %v4696 = vpop.f32.mrb[0].mxu0
      %v4697 = vadd.f32 %v4553, %v4696
      %4698 = vdwg.mxu0
      %4699 = vmatprep.subr.mxu0 %v4547
      %4700 = vmatpush1.msra.mxu0 %v4546
      %4701 = vmatprep.subr.mxu0 0.0
      %4702 = vmatpush1.msra.mxu0 0.0
      %4703 = vmatprep.subr.mxu0 0.0
      %4704 = vmatpush1.msra.mxu0 0.0
      %4705 = vmatprep.subr.mxu0 0.0
      %4706 = vmatpush1.msra.mxu0 0.0
      %4707 = vmatprep.subr.mxu0 0.0
      %4708 = vmatpush1.msra.mxu0 0.0
      %4709 = vmatprep.subr.mxu0 0.0
      %4710 = vmatpush1.msra.mxu0 0.0
      %4711 = vmatprep.subr.mxu0 0.0
      %4712 = vmatpush1.msra.mxu0 0.0
      %4713 = vmatprep.subr.mxu0 0.0
      %4714 = vmatpush1.msra.mxu0 0.0
      %4715 = vmatprep.subr.mxu0 0.0
      %4716 = vmatpush1.msra.mxu0 0.0
      %4717 = vmatprep.subr.mxu0 0.0
      %4718 = vmatpush1.msra.mxu0 0.0
      %4719 = vmatprep.subr.mxu0 0.0
      %4720 = vmatpush1.msra.mxu0 0.0
      %4721 = vmatprep.subr.mxu0 0.0
      %4722 = vmatpush1.msra.mxu0 0.0
      %4723 = vmatprep.subr.mxu0 0.0
      %4724 = vmatpush1.msra.mxu0 0.0
      %4725 = vmatprep.subr.mxu0 0.0
      %4726 = vmatpush1.msra.mxu0 0.0
      %4727 = vmatprep.subr.mxu0 0.0
      %4728 = vmatpush1.msra.mxu0 0.0
      %4729 = vmatprep.subr.mxu0 0.0
      %4730 = vmatpush1.msra.mxu0 0.0
      %4731 = vmatprep.subr.mxu0 0.0
      %4732 = vmatpush1.msra.mxu0 0.0
      %4733 = vmatprep.subr.mxu0 0.0
      %4734 = vmatpush1.msra.mxu0 0.0
      %4735 = vmatprep.subr.mxu0 0.0
      %4736 = vmatpush1.msra.mxu0 0.0
      %4737 = vmatprep.subr.mxu0 0.0
      %4738 = vmatpush1.msra.mxu0 0.0
      %4739 = vmatprep.subr.mxu0 0.0
      %4740 = vmatpush1.msra.mxu0 0.0
      %4741 = vmatprep.subr.mxu0 0.0
      %4742 = vmatpush1.msra.mxu0 0.0
      %4743 = vmatprep.subr.mxu0 0.0
      %4744 = vmatpush1.msra.mxu0 0.0
      %4745 = vmatprep.subr.mxu0 0.0
      %4746 = vmatpush1.msra.mxu0 0.0
      %4747 = vmatprep.subr.mxu0 0.0
      %4748 = vmatpush1.msra.mxu0 0.0
      %4749 = vmatprep.subr.mxu0 0.0
      %4750 = vmatpush1.msra.mxu0 0.0
      %4751 = vmatprep.subr.mxu0 0.0
      %4752 = vmatpush1.msra.mxu0 0.0
      %4753 = vmatprep.subr.mxu0 0.0
      %4754 = vmatpush1.msra.mxu0 0.0
      %4755 = vmatprep.subr.mxu0 0.0
      %4756 = vmatpush1.msra.mxu0 0.0
      %4757 = vmatprep.subr.mxu0 0.0
      %4758 = vmatpush1.msra.mxu0 0.0
      %4759 = vmatprep.subr.mxu0 0.0
      %4760 = vmatpush1.msra.mxu0 0.0
      %4761 = vmatprep.subr.mxu0 0.0
      %4762 = vmatpush1.msra.mxu0 0.0
      %4763 = vmatprep.mubr.f32.mxu0 0.0
      %4764 = vmatmul.mubr.f32.gmra.mrb[0].mxu0 %v4555
      %v4765 = vpop.f32.mrb[0].mxu0
      %v4766 = vadd.f32 %v4553, %v4765
      %v4767 = vpop.f32.mrb[0].mxu0
      %v4768 = vadd.f32 %v4553, %v4767
      %4769 = vdwg.mxu0
      %4770 = vmatprep.subr.mxu0 %v4549
      %4771 = vmatpush1.msra.mxu0 %v4548
      %4772 = vmatprep.subr.mxu0 0.0
      %4773 = vmatpush1.msra.mxu0 0.0
      %4774 = vmatprep.subr.mxu0 0.0
      %4775 = vmatpush1.msra.mxu0 0.0
      %4776 = vmatprep.subr.mxu0 0.0
      %4777 = vmatpush1.msra.mxu0 0.0
      %4778 = vmatprep.subr.mxu0 0.0
      %4779 = vmatpush1.msra.mxu0 0.0
      %4780 = vmatprep.subr.mxu0 0.0
      %4781 = vmatpush1.msra.mxu0 0.0
      %4782 = vmatprep.subr.mxu0 0.0
      %4783 = vmatpush1.msra.mxu0 0.0
      %4784 = vmatprep.subr.mxu0 0.0
      %4785 = vmatpush1.msra.mxu0 0.0
      %4786 = vmatprep.subr.mxu0 0.0
      %4787 = vmatpush1.msra.mxu0 0.0
      %4788 = vmatprep.subr.mxu0 0.0
      %4789 = vmatpush1.msra.mxu0 0.0
      %4790 = vmatprep.subr.mxu0 0.0
      %4791 = vmatpush1.msra.mxu0 0.0
      %4792 = vmatprep.subr.mxu0 0.0
      %4793 = vmatpush1.msra.mxu0 0.0
      %4794 = vmatprep.subr.mxu0 0.0
      %4795 = vmatpush1.msra.mxu0 0.0
      %4796 = vmatprep.subr.mxu0 0.0
      %4797 = vmatpush1.msra.mxu0 0.0
      %4798 = vmatprep.subr.mxu0 0.0
      %4799 = vmatpush1.msra.mxu0 0.0
      %4800 = vmatprep.subr.mxu0 0.0
      %4801 = vmatpush1.msra.mxu0 0.0
      %4802 = vmatprep.subr.mxu0 0.0
      %4803 = vmatpush1.msra.mxu0 0.0
      %4804 = vmatprep.subr.mxu0 0.0
      %4805 = vmatpush1.msra.mxu0 0.0
      %4806 = vmatprep.subr.mxu0 0.0
      %4807 = vmatpush1.msra.mxu0 0.0
      %4808 = vmatprep.subr.mxu0 0.0
      %4809 = vmatpush1.msra.mxu0 0.0
      %4810 = vmatprep.subr.mxu0 0.0
      %4811 = vmatpush1.msra.mxu0 0.0
      %4812 = vmatprep.subr.mxu0 0.0
      %4813 = vmatpush1.msra.mxu0 0.0
      %4814 = vmatprep.subr.mxu0 0.0
      %4815 = vmatpush1.msra.mxu0 0.0
      %4816 = vmatprep.subr.mxu0 0.0
      %4817 = vmatpush1.msra.mxu0 0.0
      %4818 = vmatprep.subr.mxu0 0.0
      %4819 = vmatpush1.msra.mxu0 0.0
      %4820 = vmatprep.subr.mxu0 0.0
      %4821 = vmatpush1.msra.mxu0 0.0
      %4822 = vmatprep.subr.mxu0 0.0
      %4823 = vmatpush1.msra.mxu0 0.0
      %4824 = vmatprep.subr.mxu0 0.0
      %4825 = vmatpush1.msra.mxu0 0.0
      %4826 = vmatprep.subr.mxu0 0.0
      %4827 = vmatpush1.msra.mxu0 0.0
      %4828 = vmatprep.subr.mxu0 0.0
      %4829 = vmatpush1.msra.mxu0 0.0
      %4830 = vmatprep.subr.mxu0 0.0
      %4831 = vmatpush1.msra.mxu0 0.0
      %4832 = vmatprep.subr.mxu0 0.0
      %4833 = vmatpush1.msra.mxu0 0.0
      %4834 = vmatprep.mubr.f32.mxu0 0.0
      %4835 = vmatmul.mubr.f32.gmra.mrb[0].mxu0 %v4555
      %v4836 = vpop.f32.mrb[0].mxu0
      %v4837 = vadd.f32 %v4553, %v4836
      %v4838 = vpop.f32.mrb[0].mxu0
      %v4839 = vadd.f32 %v4553, %v4838
      %4840 = vdwg.mxu0
      %4841 = vst [vmem:[%s288 + $0x40] sm:$0xff] %v4624
      %4842 = vst [vmem:[%s288 + $0x48] sm:$0xff] %v4626
      %4843 = vst [vmem:[%s288 + $0x50] sm:$0xff] %v4695
      %4844 = vst [vmem:[%s288 + $0x58] sm:$0xff] %v4697
      %4845 = vst [vmem:[%s288 + $0x60] sm:$0xff] %v4766
      %4846 = vst [vmem:[%s288 + $0x68] sm:$0xff] %v4768
      %4847 = vst [vmem:[%s288 + $0x70] sm:$0xff] %v4837
      %4848 = vst [vmem:[%s288 + $0x78] sm:$0xff] %v4839
      %v4849 = vld [vmem:[%s2 + $0x160] sm:$0xff]
      %v4850 = vld [vmem:[%s2 + $0x168] sm:$0xff]
      %4852 = vset.pattern.permute.xlu0 32
      %4853 = vperm.xlu0 %4852, %v4849
      %v4854 = vpop.permute.xlu0 %4853
      %v4856 = vsel %vm2063, %v4849, 0
      %4858 = vmatprep.subr.mxu0 %v3634
      %4859 = vmatpush1.msra.mxu0 %v3633
      %4860 = vmatprep.subr.mxu0 0.0
      %4861 = vmatpush1.msra.mxu0 0.0
      %4862 = vmatprep.subr.mxu0 0.0
      %4863 = vmatpush1.msra.mxu0 0.0
      %4864 = vmatprep.subr.mxu0 0.0
      %4865 = vmatpush1.msra.mxu0 0.0
      %4866 = vmatprep.subr.mxu0 0.0
      %4867 = vmatpush1.msra.mxu0 0.0
      %4868 = vmatprep.subr.mxu0 0.0
      %4869 = vmatpush1.msra.mxu0 0.0
      %4870 = vmatprep.subr.mxu0 0.0
      %4871 = vmatpush1.msra.mxu0 0.0
      %4872 = vmatprep.subr.mxu0 0.0
      %4873 = vmatpush1.msra.mxu0 0.0
      %4874 = vmatprep.subr.mxu0 0.0
      %4875 = vmatpush1.msra.mxu0 0.0
      %4876 = vmatprep.subr.mxu0 0.0
      %4877 = vmatpush1.msra.mxu0 0.0
      %4878 = vmatprep.subr.mxu0 0.0
      %4879 = vmatpush1.msra.mxu0 0.0
      %4880 = vmatprep.subr.mxu0 0.0
      %4881 = vmatpush1.msra.mxu0 0.0
      %4882 = vmatprep.subr.mxu0 0.0
      %4883 = vmatpush1.msra.mxu0 0.0
      %4884 = vmatprep.subr.mxu0 0.0
      %4885 = vmatpush1.msra.mxu0 0.0
      %4886 = vmatprep.subr.mxu0 0.0
      %4887 = vmatpush1.msra.mxu0 0.0
      %4888 = vmatprep.subr.mxu0 0.0
      %4889 = vmatpush1.msra.mxu0 0.0
      %4890 = vmatprep.subr.mxu0 0.0
      %4891 = vmatpush1.msra.mxu0 0.0
      %4892 = vmatprep.subr.mxu0 0.0
      %4893 = vmatpush1.msra.mxu0 0.0
      %4894 = vmatprep.subr.mxu0 0.0
      %4895 = vmatpush1.msra.mxu0 0.0
      %4896 = vmatprep.subr.mxu0 0.0
      %4897 = vmatpush1.msra.mxu0 0.0
      %4898 = vmatprep.subr.mxu0 0.0
      %4899 = vmatpush1.msra.mxu0 0.0
      %4900 = vmatprep.subr.mxu0 0.0
      %4901 = vmatpush1.msra.mxu0 0.0
      %4902 = vmatprep.subr.mxu0 0.0
      %4903 = vmatpush1.msra.mxu0 0.0
      %4904 = vmatprep.subr.mxu0 0.0
      %4905 = vmatpush1.msra.mxu0 0.0
      %4906 = vmatprep.subr.mxu0 0.0
      %4907 = vmatpush1.msra.mxu0 0.0
      %4908 = vmatprep.subr.mxu0 0.0
      %4909 = vmatpush1.msra.mxu0 0.0
      %4910 = vmatprep.subr.mxu0 0.0
      %4911 = vmatpush1.msra.mxu0 0.0
      %4912 = vmatprep.subr.mxu0 0.0
      %4913 = vmatpush1.msra.mxu0 0.0
      %4914 = vmatprep.subr.mxu0 0.0
      %4915 = vmatpush1.msra.mxu0 0.0
      %4916 = vmatprep.subr.mxu0 0.0
      %4917 = vmatpush1.msra.mxu0 0.0
      %4918 = vmatprep.subr.mxu0 0.0
      %4919 = vmatpush1.msra.mxu0 0.0
      %4920 = vmatprep.subr.mxu0 0.0
      %4921 = vmatpush1.msra.mxu0 0.0
      %4922 = vmatprep.mubr.f32.mxu0 0.0
      %4923 = vmatmul.mubr.f32.gmra.mrb[0].mxu0 %v4856
      %v4924 = vpop.f32.mrb[0].mxu0
      %v4925 = vadd.f32 %v4854, %v4924
      %v4926 = vpop.f32.mrb[0].mxu0
      %v4927 = vadd.f32 %v4854, %v4926
      %4928 = vdwg.mxu0
      %4929 = vmatprep.subr.mxu0 %v3636
      %4930 = vmatpush1.msra.mxu0 %v3635
      %4931 = vmatprep.subr.mxu0 0.0
      %4932 = vmatpush1.msra.mxu0 0.0
      %4933 = vmatprep.subr.mxu0 0.0
      %4934 = vmatpush1.msra.mxu0 0.0
      %4935 = vmatprep.subr.mxu0 0.0
      %4936 = vmatpush1.msra.mxu0 0.0
      %4937 = vmatprep.subr.mxu0 0.0
      %4938 = vmatpush1.msra.mxu0 0.0
      %4939 = vmatprep.subr.mxu0 0.0
      %4940 = vmatpush1.msra.mxu0 0.0
      %4941 = vmatprep.subr.mxu0 0.0
      %4942 = vmatpush1.msra.mxu0 0.0
      %4943 = vmatprep.subr.mxu0 0.0
      %4944 = vmatpush1.msra.mxu0 0.0
      %4945 = vmatprep.subr.mxu0 0.0
      %4946 = vmatpush1.msra.mxu0 0.0
      %4947 = vmatprep.subr.mxu0 0.0
      %4948 = vmatpush1.msra.mxu0 0.0
      %4949 = vmatprep.subr.mxu0 0.0
      %4950 = vmatpush1.msra.mxu0 0.0
      %4951 = vmatprep.subr.mxu0 0.0
      %4952 = vmatpush1.msra.mxu0 0.0
      %4953 = vmatprep.subr.mxu0 0.0
      %4954 = vmatpush1.msra.mxu0 0.0
      %4955 = vmatprep.subr.mxu0 0.0
      %4956 = vmatpush1.msra.mxu0 0.0
      %4957 = vmatprep.subr.mxu0 0.0
      %4958 = vmatpush1.msra.mxu0 0.0
      %4959 = vmatprep.subr.mxu0 0.0
      %4960 = vmatpush1.msra.mxu0 0.0
      %4961 = vmatprep.subr.mxu0 0.0
      %4962 = vmatpush1.msra.mxu0 0.0
      %4963 = vmatprep.subr.mxu0 0.0
      %4964 = vmatpush1.msra.mxu0 0.0
      %4965 = vmatprep.subr.mxu0 0.0
      %4966 = vmatpush1.msra.mxu0 0.0
      %4967 = vmatprep.subr.mxu0 0.0
      %4968 = vmatpush1.msra.mxu0 0.0
      %4969 = vmatprep.subr.mxu0 0.0
      %4970 = vmatpush1.msra.mxu0 0.0
      %4971 = vmatprep.subr.mxu0 0.0
      %4972 = vmatpush1.msra.mxu0 0.0
      %4973 = vmatprep.subr.mxu0 0.0
      %4974 = vmatpush1.msra.mxu0 0.0
      %4975 = vmatprep.subr.mxu0 0.0
      %4976 = vmatpush1.msra.mxu0 0.0
      %4977 = vmatprep.subr.mxu0 0.0
      %4978 = vmatpush1.msra.mxu0 0.0
      %4979 = vmatprep.subr.mxu0 0.0
      %4980 = vmatpush1.msra.mxu0 0.0
      %4981 = vmatprep.subr.mxu0 0.0
      %4982 = vmatpush1.msra.mxu0 0.0
      %4983 = vmatprep.subr.mxu0 0.0
      %4984 = vmatpush1.msra.mxu0 0.0
      %4985 = vmatprep.subr.mxu0 0.0
      %4986 = vmatpush1.msra.mxu0 0.0
      %4987 = vmatprep.subr.mxu0 0.0
      %4988 = vmatpush1.msra.mxu0 0.0
      %4989 = vmatprep.subr.mxu0 0.0
      %4990 = vmatpush1.msra.mxu0 0.0
      %4991 = vmatprep.subr.mxu0 0.0
      %4992 = vmatpush1.msra.mxu0 0.0
      %4993 = vmatprep.mubr.f32.mxu0 0.0
      %4994 = vmatmul.mubr.f32.gmra.mrb[0].mxu0 %v4856
      %v4995 = vpop.f32.mrb[0].mxu0
      %v4996 = vadd.f32 %v4854, %v4995
      %v4997 = vpop.f32.mrb[0].mxu0
      %v4998 = vadd.f32 %v4854, %v4997
      %4999 = vdwg.mxu0
      %5000 = vmatprep.subr.mxu0 %v3638
      %5001 = vmatpush1.msra.mxu0 %v3637
      %5002 = vmatprep.subr.mxu0 0.0
      %5003 = vmatpush1.msra.mxu0 0.0
      %5004 = vmatprep.subr.mxu0 0.0
      %5005 = vmatpush1.msra.mxu0 0.0
      %5006 = vmatprep.subr.mxu0 0.0
      %5007 = vmatpush1.msra.mxu0 0.0
      %5008 = vmatprep.subr.mxu0 0.0
      %5009 = vmatpush1.msra.mxu0 0.0
      %5010 = vmatprep.subr.mxu0 0.0
      %5011 = vmatpush1.msra.mxu0 0.0
      %5012 = vmatprep.subr.mxu0 0.0
      %5013 = vmatpush1.msra.mxu0 0.0
      %5014 = vmatprep.subr.mxu0 0.0
      %5015 = vmatpush1.msra.mxu0 0.0
      %5016 = vmatprep.subr.mxu0 0.0
      %5017 = vmatpush1.msra.mxu0 0.0
      %5018 = vmatprep.subr.mxu0 0.0
      %5019 = vmatpush1.msra.mxu0 0.0
      %5020 = vmatprep.subr.mxu0 0.0
      %5021 = vmatpush1.msra.mxu0 0.0
      %5022 = vmatprep.subr.mxu0 0.0
      %5023 = vmatpush1.msra.mxu0 0.0
      %5024 = vmatprep.subr.mxu0 0.0
      %5025 = vmatpush1.msra.mxu0 0.0
      %5026 = vmatprep.subr.mxu0 0.0
      %5027 = vmatpush1.msra.mxu0 0.0
      %5028 = vmatprep.subr.mxu0 0.0
      %5029 = vmatpush1.msra.mxu0 0.0
      %5030 = vmatprep.subr.mxu0 0.0
      %5031 = vmatpush1.msra.mxu0 0.0
      %5032 = vmatprep.subr.mxu0 0.0
      %5033 = vmatpush1.msra.mxu0 0.0
      %5034 = vmatprep.subr.mxu0 0.0
      %5035 = vmatpush1.msra.mxu0 0.0
      %5036 = vmatprep.subr.mxu0 0.0
      %5037 = vmatpush1.msra.mxu0 0.0
      %5038 = vmatprep.subr.mxu0 0.0
      %5039 = vmatpush1.msra.mxu0 0.0
      %5040 = vmatprep.subr.mxu0 0.0
      %5041 = vmatpush1.msra.mxu0 0.0
      %5042 = vmatprep.subr.mxu0 0.0
      %5043 = vmatpush1.msra.mxu0 0.0
      %5044 = vmatprep.subr.mxu0 0.0
      %5045 = vmatpush1.msra.mxu0 0.0
      %5046 = vmatprep.subr.mxu0 0.0
      %5047 = vmatpush1.msra.mxu0 0.0
      %5048 = vmatprep.subr.mxu0 0.0
      %5049 = vmatpush1.msra.mxu0 0.0
      %5050 = vmatprep.subr.mxu0 0.0
      %5051 = vmatpush1.msra.mxu0 0.0
      %5052 = vmatprep.subr.mxu0 0.0
      %5053 = vmatpush1.msra.mxu0 0.0
      %5054 = vmatprep.subr.mxu0 0.0
      %5055 = vmatpush1.msra.mxu0 0.0
      %5056 = vmatprep.subr.mxu0 0.0
      %5057 = vmatpush1.msra.mxu0 0.0
      %5058 = vmatprep.subr.mxu0 0.0
      %5059 = vmatpush1.msra.mxu0 0.0
      %5060 = vmatprep.subr.mxu0 0.0
      %5061 = vmatpush1.msra.mxu0 0.0
      %5062 = vmatprep.subr.mxu0 0.0
      %5063 = vmatpush1.msra.mxu0 0.0
      %5064 = vmatprep.mubr.f32.mxu0 0.0
      %5065 = vmatmul.mubr.f32.gmra.mrb[0].mxu0 %v4856
      %v5066 = vpop.f32.mrb[0].mxu0
      %v5067 = vadd.f32 %v4854, %v5066
      %v5068 = vpop.f32.mrb[0].mxu0
      %v5069 = vadd.f32 %v4854, %v5068
      %5070 = vdwg.mxu0
      %5071 = vmatprep.subr.mxu0 %v3640
      %5072 = vmatpush1.msra.mxu0 %v3639
      %5073 = vmatprep.subr.mxu0 0.0
      %5074 = vmatpush1.msra.mxu0 0.0
      %5075 = vmatprep.subr.mxu0 0.0
      %5076 = vmatpush1.msra.mxu0 0.0
      %5077 = vmatprep.subr.mxu0 0.0
      %5078 = vmatpush1.msra.mxu0 0.0
      %5079 = vmatprep.subr.mxu0 0.0
      %5080 = vmatpush1.msra.mxu0 0.0
      %5081 = vmatprep.subr.mxu0 0.0
      %5082 = vmatpush1.msra.mxu0 0.0
      %5083 = vmatprep.subr.mxu0 0.0
      %5084 = vmatpush1.msra.mxu0 0.0
      %5085 = vmatprep.subr.mxu0 0.0
      %5086 = vmatpush1.msra.mxu0 0.0
      %5087 = vmatprep.subr.mxu0 0.0
      %5088 = vmatpush1.msra.mxu0 0.0
      %5089 = vmatprep.subr.mxu0 0.0
      %5090 = vmatpush1.msra.mxu0 0.0
      %5091 = vmatprep.subr.mxu0 0.0
      %5092 = vmatpush1.msra.mxu0 0.0
      %5093 = vmatprep.subr.mxu0 0.0
      %5094 = vmatpush1.msra.mxu0 0.0
      %5095 = vmatprep.subr.mxu0 0.0
      %5096 = vmatpush1.msra.mxu0 0.0
      %5097 = vmatprep.subr.mxu0 0.0
      %5098 = vmatpush1.msra.mxu0 0.0
      %5099 = vmatprep.subr.mxu0 0.0
      %5100 = vmatpush1.msra.mxu0 0.0
      %5101 = vmatprep.subr.mxu0 0.0
      %5102 = vmatpush1.msra.mxu0 0.0
      %5103 = vmatprep.subr.mxu0 0.0
      %5104 = vmatpush1.msra.mxu0 0.0
      %5105 = vmatprep.subr.mxu0 0.0
      %5106 = vmatpush1.msra.mxu0 0.0
      %5107 = vmatprep.subr.mxu0 0.0
      %5108 = vmatpush1.msra.mxu0 0.0
      %5109 = vmatprep.subr.mxu0 0.0
      %5110 = vmatpush1.msra.mxu0 0.0
      %5111 = vmatprep.subr.mxu0 0.0
      %5112 = vmatpush1.msra.mxu0 0.0
      %5113 = vmatprep.subr.mxu0 0.0
      %5114 = vmatpush1.msra.mxu0 0.0
      %5115 = vmatprep.subr.mxu0 0.0
      %5116 = vmatpush1.msra.mxu0 0.0
      %5117 = vmatprep.subr.mxu0 0.0
      %5118 = vmatpush1.msra.mxu0 0.0
      %5119 = vmatprep.subr.mxu0 0.0
      %5120 = vmatpush1.msra.mxu0 0.0
      %5121 = vmatprep.subr.mxu0 0.0
      %5122 = vmatpush1.msra.mxu0 0.0
      %5123 = vmatprep.subr.mxu0 0.0
      %5124 = vmatpush1.msra.mxu0 0.0
      %5125 = vmatprep.subr.mxu0 0.0
      %5126 = vmatpush1.msra.mxu0 0.0
      %5127 = vmatprep.subr.mxu0 0.0
      %5128 = vmatpush1.msra.mxu0 0.0
      %5129 = vmatprep.subr.mxu0 0.0
      %5130 = vmatpush1.msra.mxu0 0.0
      %5131 = vmatprep.subr.mxu0 0.0
      %5132 = vmatpush1.msra.mxu0 0.0
      %5133 = vmatprep.subr.mxu0 0.0
      %5134 = vmatpush1.msra.mxu0 0.0
      %5135 = vmatprep.mubr.f32.mxu0 0.0
      %5136 = vmatmul.mubr.f32.gmra.mrb[0].mxu0 %v4856
      %v5137 = vpop.f32.mrb[0].mxu0
      %v5138 = vadd.f32 %v4854, %v5137
      %v5139 = vpop.f32.mrb[0].mxu0
      %v5140 = vadd.f32 %v4854, %v5139
      %5141 = vdwg.mxu0
      %v5142 = vmax.f32 %v4925, 0.0
      %v5143 = vmax.f32 %v4927, 0.0
      %v5144 = vmax.f32 %v4996, 0.0
      %v5145 = vmax.f32 %v4998, 0.0
      %v5146 = vmax.f32 %v5067, 0.0
      %v5147 = vmax.f32 %v5069, 0.0
      %v5148 = vmax.f32 %v5138, 0.0
      %v5149 = vmax.f32 %v5140, 0.0
      %5151 = vset.pattern.permute.xlu0 32
      %5152 = vperm.xlu0 %5151, %v4850
      %v5153 = vpop.permute.xlu0 %5152
      %v5155 = vsel %vm2063, %v4850, 0
      %5157 = vmatprep.subr.mxu0 %v5143
      %5158 = vmatpush1.msra.mxu0 %v5142
      %5159 = vmatprep.subr.mxu0 0.0
      %5160 = vmatpush1.msra.mxu0 0.0
      %5161 = vmatprep.subr.mxu0 0.0
      %5162 = vmatpush1.msra.mxu0 0.0
      %5163 = vmatprep.subr.mxu0 0.0
      %5164 = vmatpush1.msra.mxu0 0.0
      %5165 = vmatprep.subr.mxu0 0.0
      %5166 = vmatpush1.msra.mxu0 0.0
      %5167 = vmatprep.subr.mxu0 0.0
      %5168 = vmatpush1.msra.mxu0 0.0
      %5169 = vmatprep.subr.mxu0 0.0
      %5170 = vmatpush1.msra.mxu0 0.0
      %5171 = vmatprep.subr.mxu0 0.0
      %5172 = vmatpush1.msra.mxu0 0.0
      %5173 = vmatprep.subr.mxu0 0.0
      %5174 = vmatpush1.msra.mxu0 0.0
      %5175 = vmatprep.subr.mxu0 0.0
      %5176 = vmatpush1.msra.mxu0 0.0
      %5177 = vmatprep.subr.mxu0 0.0
      %5178 = vmatpush1.msra.mxu0 0.0
      %5179 = vmatprep.subr.mxu0 0.0
      %5180 = vmatpush1.msra.mxu0 0.0
      %5181 = vmatprep.subr.mxu0 0.0
      %5182 = vmatpush1.msra.mxu0 0.0
      %5183 = vmatprep.subr.mxu0 0.0
      %5184 = vmatpush1.msra.mxu0 0.0
      %5185 = vmatprep.subr.mxu0 0.0
      %5186 = vmatpush1.msra.mxu0 0.0
      %5187 = vmatprep.subr.mxu0 0.0
      %5188 = vmatpush1.msra.mxu0 0.0
      %5189 = vmatprep.subr.mxu0 0.0
      %5190 = vmatpush1.msra.mxu0 0.0
      %5191 = vmatprep.subr.mxu0 0.0
      %5192 = vmatpush1.msra.mxu0 0.0
      %5193 = vmatprep.subr.mxu0 0.0
      %5194 = vmatpush1.msra.mxu0 0.0
      %5195 = vmatprep.subr.mxu0 0.0
      %5196 = vmatpush1.msra.mxu0 0.0
      %5197 = vmatprep.subr.mxu0 0.0
      %5198 = vmatpush1.msra.mxu0 0.0
      %5199 = vmatprep.subr.mxu0 0.0
      %5200 = vmatpush1.msra.mxu0 0.0
      %5201 = vmatprep.subr.mxu0 0.0
      %5202 = vmatpush1.msra.mxu0 0.0
      %5203 = vmatprep.subr.mxu0 0.0
      %5204 = vmatpush1.msra.mxu0 0.0
      %5205 = vmatprep.subr.mxu0 0.0
      %5206 = vmatpush1.msra.mxu0 0.0
      %5207 = vmatprep.subr.mxu0 0.0
      %5208 = vmatpush1.msra.mxu0 0.0
      %5209 = vmatprep.subr.mxu0 0.0
      %5210 = vmatpush1.msra.mxu0 0.0
      %5211 = vmatprep.subr.mxu0 0.0
      %5212 = vmatpush1.msra.mxu0 0.0
      %5213 = vmatprep.subr.mxu0 0.0
      %5214 = vmatpush1.msra.mxu0 0.0
      %5215 = vmatprep.subr.mxu0 0.0
      %5216 = vmatpush1.msra.mxu0 0.0
      %5217 = vmatprep.subr.mxu0 0.0
      %5218 = vmatpush1.msra.mxu0 0.0
      %5219 = vmatprep.subr.mxu0 0.0
      %5220 = vmatpush1.msra.mxu0 0.0
      %5221 = vmatprep.mubr.f32.mxu0 0.0
      %5222 = vmatmul.mubr.f32.gmra.mrb[0].mxu0 %v5155
      %v5223 = vpop.f32.mrb[0].mxu0
      %v5224 = vadd.f32 %v5153, %v5223
      %v5225 = vpop.f32.mrb[0].mxu0
      %v5226 = vadd.f32 %v5153, %v5225
      %5227 = vdwg.mxu0
      %5228 = vmatprep.subr.mxu0 %v5145
      %5229 = vmatpush1.msra.mxu0 %v5144
      %5230 = vmatprep.subr.mxu0 0.0
      %5231 = vmatpush1.msra.mxu0 0.0
      %5232 = vmatprep.subr.mxu0 0.0
      %5233 = vmatpush1.msra.mxu0 0.0
      %5234 = vmatprep.subr.mxu0 0.0
      %5235 = vmatpush1.msra.mxu0 0.0
      %5236 = vmatprep.subr.mxu0 0.0
      %5237 = vmatpush1.msra.mxu0 0.0
      %5238 = vmatprep.subr.mxu0 0.0
      %5239 = vmatpush1.msra.mxu0 0.0
      %5240 = vmatprep.subr.mxu0 0.0
      %5241 = vmatpush1.msra.mxu0 0.0
      %5242 = vmatprep.subr.mxu0 0.0
      %5243 = vmatpush1.msra.mxu0 0.0
      %5244 = vmatprep.subr.mxu0 0.0
      %5245 = vmatpush1.msra.mxu0 0.0
      %5246 = vmatprep.subr.mxu0 0.0
      %5247 = vmatpush1.msra.mxu0 0.0
      %5248 = vmatprep.subr.mxu0 0.0
      %5249 = vmatpush1.msra.mxu0 0.0
      %5250 = vmatprep.subr.mxu0 0.0
      %5251 = vmatpush1.msra.mxu0 0.0
      %5252 = vmatprep.subr.mxu0 0.0
      %5253 = vmatpush1.msra.mxu0 0.0
      %5254 = vmatprep.subr.mxu0 0.0
      %5255 = vmatpush1.msra.mxu0 0.0
      %5256 = vmatprep.subr.mxu0 0.0
      %5257 = vmatpush1.msra.mxu0 0.0
      %5258 = vmatprep.subr.mxu0 0.0
      %5259 = vmatpush1.msra.mxu0 0.0
      %5260 = vmatprep.subr.mxu0 0.0
      %5261 = vmatpush1.msra.mxu0 0.0
      %5262 = vmatprep.subr.mxu0 0.0
      %5263 = vmatpush1.msra.mxu0 0.0
      %5264 = vmatprep.subr.mxu0 0.0
      %5265 = vmatpush1.msra.mxu0 0.0
      %5266 = vmatprep.subr.mxu0 0.0
      %5267 = vmatpush1.msra.mxu0 0.0
      %5268 = vmatprep.subr.mxu0 0.0
      %5269 = vmatpush1.msra.mxu0 0.0
      %5270 = vmatprep.subr.mxu0 0.0
      %5271 = vmatpush1.msra.mxu0 0.0
      %5272 = vmatprep.subr.mxu0 0.0
      %5273 = vmatpush1.msra.mxu0 0.0
      %5274 = vmatprep.subr.mxu0 0.0
      %5275 = vmatpush1.msra.mxu0 0.0
      %5276 = vmatprep.subr.mxu0 0.0
      %5277 = vmatpush1.msra.mxu0 0.0
      %5278 = vmatprep.subr.mxu0 0.0
      %5279 = vmatpush1.msra.mxu0 0.0
      %5280 = vmatprep.subr.mxu0 0.0
      %5281 = vmatpush1.msra.mxu0 0.0
      %5282 = vmatprep.subr.mxu0 0.0
      %5283 = vmatpush1.msra.mxu0 0.0
      %5284 = vmatprep.subr.mxu0 0.0
      %5285 = vmatpush1.msra.mxu0 0.0
      %5286 = vmatprep.subr.mxu0 0.0
      %5287 = vmatpush1.msra.mxu0 0.0
      %5288 = vmatprep.subr.mxu0 0.0
      %5289 = vmatpush1.msra.mxu0 0.0
      %5290 = vmatprep.subr.mxu0 0.0
      %5291 = vmatpush1.msra.mxu0 0.0
      %5292 = vmatprep.mubr.f32.mxu0 0.0
      %5293 = vmatmul.mubr.f32.gmra.mrb[0].mxu0 %v5155
      %v5294 = vpop.f32.mrb[0].mxu0
      %v5295 = vadd.f32 %v5153, %v5294
      %v5296 = vpop.f32.mrb[0].mxu0
      %v5297 = vadd.f32 %v5153, %v5296
      %5298 = vdwg.mxu0
      %5299 = vmatprep.subr.mxu0 %v5147
      %5300 = vmatpush1.msra.mxu0 %v5146
      %5301 = vmatprep.subr.mxu0 0.0
      %5302 = vmatpush1.msra.mxu0 0.0
      %5303 = vmatprep.subr.mxu0 0.0
      %5304 = vmatpush1.msra.mxu0 0.0
      %5305 = vmatprep.subr.mxu0 0.0
      %5306 = vmatpush1.msra.mxu0 0.0
      %5307 = vmatprep.subr.mxu0 0.0
      %5308 = vmatpush1.msra.mxu0 0.0
      %5309 = vmatprep.subr.mxu0 0.0
      %5310 = vmatpush1.msra.mxu0 0.0
      %5311 = vmatprep.subr.mxu0 0.0
      %5312 = vmatpush1.msra.mxu0 0.0
      %5313 = vmatprep.subr.mxu0 0.0
      %5314 = vmatpush1.msra.mxu0 0.0
      %5315 = vmatprep.subr.mxu0 0.0
      %5316 = vmatpush1.msra.mxu0 0.0
      %5317 = vmatprep.subr.mxu0 0.0
      %5318 = vmatpush1.msra.mxu0 0.0
      %5319 = vmatprep.subr.mxu0 0.0
      %5320 = vmatpush1.msra.mxu0 0.0
      %5321 = vmatprep.subr.mxu0 0.0
      %5322 = vmatpush1.msra.mxu0 0.0
      %5323 = vmatprep.subr.mxu0 0.0
      %5324 = vmatpush1.msra.mxu0 0.0
      %5325 = vmatprep.subr.mxu0 0.0
      %5326 = vmatpush1.msra.mxu0 0.0
      %5327 = vmatprep.subr.mxu0 0.0
      %5328 = vmatpush1.msra.mxu0 0.0
      %5329 = vmatprep.subr.mxu0 0.0
      %5330 = vmatpush1.msra.mxu0 0.0
      %5331 = vmatprep.subr.mxu0 0.0
      %5332 = vmatpush1.msra.mxu0 0.0
      %5333 = vmatprep.subr.mxu0 0.0
      %5334 = vmatpush1.msra.mxu0 0.0
      %5335 = vmatprep.subr.mxu0 0.0
      %5336 = vmatpush1.msra.mxu0 0.0
      %5337 = vmatprep.subr.mxu0 0.0
      %5338 = vmatpush1.msra.mxu0 0.0
      %5339 = vmatprep.subr.mxu0 0.0
      %5340 = vmatpush1.msra.mxu0 0.0
      %5341 = vmatprep.subr.mxu0 0.0
      %5342 = vmatpush1.msra.mxu0 0.0
      %5343 = vmatprep.subr.mxu0 0.0
      %5344 = vmatpush1.msra.mxu0 0.0
      %5345 = vmatprep.subr.mxu0 0.0
      %5346 = vmatpush1.msra.mxu0 0.0
      %5347 = vmatprep.subr.mxu0 0.0
      %5348 = vmatpush1.msra.mxu0 0.0
      %5349 = vmatprep.subr.mxu0 0.0
      %5350 = vmatpush1.msra.mxu0 0.0
      %5351 = vmatprep.subr.mxu0 0.0
      %5352 = vmatpush1.msra.mxu0 0.0
      %5353 = vmatprep.subr.mxu0 0.0
      %5354 = vmatpush1.msra.mxu0 0.0
      %5355 = vmatprep.subr.mxu0 0.0
      %5356 = vmatpush1.msra.mxu0 0.0
      %5357 = vmatprep.subr.mxu0 0.0
      %5358 = vmatpush1.msra.mxu0 0.0
      %5359 = vmatprep.subr.mxu0 0.0
      %5360 = vmatpush1.msra.mxu0 0.0
      %5361 = vmatprep.subr.mxu0 0.0
      %5362 = vmatpush1.msra.mxu0 0.0
      %5363 = vmatprep.mubr.f32.mxu0 0.0
      %5364 = vmatmul.mubr.f32.gmra.mrb[0].mxu0 %v5155
      %v5365 = vpop.f32.mrb[0].mxu0
      %v5366 = vadd.f32 %v5153, %v5365
      %v5367 = vpop.f32.mrb[0].mxu0
      %v5368 = vadd.f32 %v5153, %v5367
      %5369 = vdwg.mxu0
      %5370 = vmatprep.subr.mxu0 %v5149
      %5371 = vmatpush1.msra.mxu0 %v5148
      %5372 = vmatprep.subr.mxu0 0.0
      %5373 = vmatpush1.msra.mxu0 0.0
      %5374 = vmatprep.subr.mxu0 0.0
      %5375 = vmatpush1.msra.mxu0 0.0
      %5376 = vmatprep.subr.mxu0 0.0
      %5377 = vmatpush1.msra.mxu0 0.0
      %5378 = vmatprep.subr.mxu0 0.0
      %5379 = vmatpush1.msra.mxu0 0.0
      %5380 = vmatprep.subr.mxu0 0.0
      %5381 = vmatpush1.msra.mxu0 0.0
      %5382 = vmatprep.subr.mxu0 0.0
      %5383 = vmatpush1.msra.mxu0 0.0
      %5384 = vmatprep.subr.mxu0 0.0
      %5385 = vmatpush1.msra.mxu0 0.0
      %5386 = vmatprep.subr.mxu0 0.0
      %5387 = vmatpush1.msra.mxu0 0.0
      %5388 = vmatprep.subr.mxu0 0.0
      %5389 = vmatpush1.msra.mxu0 0.0
      %5390 = vmatprep.subr.mxu0 0.0
      %5391 = vmatpush1.msra.mxu0 0.0
      %5392 = vmatprep.subr.mxu0 0.0
      %5393 = vmatpush1.msra.mxu0 0.0
      %5394 = vmatprep.subr.mxu0 0.0
      %5395 = vmatpush1.msra.mxu0 0.0
      %5396 = vmatprep.subr.mxu0 0.0
      %5397 = vmatpush1.msra.mxu0 0.0
      %5398 = vmatprep.subr.mxu0 0.0
      %5399 = vmatpush1.msra.mxu0 0.0
      %5400 = vmatprep.subr.mxu0 0.0
      %5401 = vmatpush1.msra.mxu0 0.0
      %5402 = vmatprep.subr.mxu0 0.0
      %5403 = vmatpush1.msra.mxu0 0.0
      %5404 = vmatprep.subr.mxu0 0.0
      %5405 = vmatpush1.msra.mxu0 0.0
      %5406 = vmatprep.subr.mxu0 0.0
      %5407 = vmatpush1.msra.mxu0 0.0
      %5408 = vmatprep.subr.mxu0 0.0
      %5409 = vmatpush1.msra.mxu0 0.0
      %5410 = vmatprep.subr.mxu0 0.0
      %5411 = vmatpush1.msra.mxu0 0.0
      %5412 = vmatprep.subr.mxu0 0.0
      %5413 = vmatpush1.msra.mxu0 0.0
      %5414 = vmatprep.subr.mxu0 0.0
      %5415 = vmatpush1.msra.mxu0 0.0
      %5416 = vmatprep.subr.mxu0 0.0
      %5417 = vmatpush1.msra.mxu0 0.0
      %5418 = vmatprep.subr.mxu0 0.0
      %5419 = vmatpush1.msra.mxu0 0.0
      %5420 = vmatprep.subr.mxu0 0.0
      %5421 = vmatpush1.msra.mxu0 0.0
      %5422 = vmatprep.subr.mxu0 0.0
      %5423 = vmatpush1.msra.mxu0 0.0
      %5424 = vmatprep.subr.mxu0 0.0
      %5425 = vmatpush1.msra.mxu0 0.0
      %5426 = vmatprep.subr.mxu0 0.0
      %5427 = vmatpush1.msra.mxu0 0.0
      %5428 = vmatprep.subr.mxu0 0.0
      %5429 = vmatpush1.msra.mxu0 0.0
      %5430 = vmatprep.subr.mxu0 0.0
      %5431 = vmatpush1.msra.mxu0 0.0
      %5432 = vmatprep.subr.mxu0 0.0
      %5433 = vmatpush1.msra.mxu0 0.0
      %5434 = vmatprep.mubr.f32.mxu0 0.0
      %5435 = vmatmul.mubr.f32.gmra.mrb[0].mxu0 %v5155
      %v5436 = vpop.f32.mrb[0].mxu0
      %v5437 = vadd.f32 %v5153, %v5436
      %v5438 = vpop.f32.mrb[0].mxu0
      %v5439 = vadd.f32 %v5153, %v5438
      %5440 = vdwg.mxu0
      %5441 = vst [vmem:[%s288 + $0x80] sm:$0xff] %v5224
      %5442 = vst [vmem:[%s288 + $0x88] sm:$0xff] %v5226
      %5443 = vst [vmem:[%s288 + $0x90] sm:$0xff] %v5295
      %5444 = vst [vmem:[%s288 + $0x98] sm:$0xff] %v5297
      %5445 = vst [vmem:[%s288 + $0xa0] sm:$0xff] %v5366
      %5446 = vst [vmem:[%s288 + $0xa8] sm:$0xff] %v5368
      %5447 = vst [vmem:[%s288 + $0xb0] sm:$0xff] %v5437
      %5448 = vst [vmem:[%s288 + $0xb8] sm:$0xff] %v5439
      %v5449 = vld [vmem:[%s2 + $0x160] sm:$0xff]
      %v5450 = vld [vmem:[%s2 + $0x168] sm:$0xff]
      %5452 = vset.pattern.permute.xlu0 32
      %5453 = vperm.xlu0 %5452, %v5449
      %v5454 = vpop.permute.xlu0 %5453
      %v5456 = vsel %vm2063, %v5449, 0
      %5458 = vmatprep.subr.mxu0 %v3642
      %5459 = vmatpush1.msra.mxu0 %v3641
      %5460 = vmatprep.subr.mxu0 0.0
      %5461 = vmatpush1.msra.mxu0 0.0
      %5462 = vmatprep.subr.mxu0 0.0
      %5463 = vmatpush1.msra.mxu0 0.0
      %5464 = vmatprep.subr.mxu0 0.0
      %5465 = vmatpush1.msra.mxu0 0.0
      %5466 = vmatprep.subr.mxu0 0.0
      %5467 = vmatpush1.msra.mxu0 0.0
      %5468 = vmatprep.subr.mxu0 0.0
      %5469 = vmatpush1.msra.mxu0 0.0
      %5470 = vmatprep.subr.mxu0 0.0
      %5471 = vmatpush1.msra.mxu0 0.0
      %5472 = vmatprep.subr.mxu0 0.0
      %5473 = vmatpush1.msra.mxu0 0.0
      %5474 = vmatprep.subr.mxu0 0.0
      %5475 = vmatpush1.msra.mxu0 0.0
      %5476 = vmatprep.subr.mxu0 0.0
      %5477 = vmatpush1.msra.mxu0 0.0
      %5478 = vmatprep.subr.mxu0 0.0
      %5479 = vmatpush1.msra.mxu0 0.0
      %5480 = vmatprep.subr.mxu0 0.0
      %5481 = vmatpush1.msra.mxu0 0.0
      %5482 = vmatprep.subr.mxu0 0.0
      %5483 = vmatpush1.msra.mxu0 0.0
      %5484 = vmatprep.subr.mxu0 0.0
      %5485 = vmatpush1.msra.mxu0 0.0
      %5486 = vmatprep.subr.mxu0 0.0
      %5487 = vmatpush1.msra.mxu0 0.0
      %5488 = vmatprep.subr.mxu0 0.0
      %5489 = vmatpush1.msra.mxu0 0.0
      %5490 = vmatprep.subr.mxu0 0.0
      %5491 = vmatpush1.msra.mxu0 0.0
      %5492 = vmatprep.subr.mxu0 0.0
      %5493 = vmatpush1.msra.mxu0 0.0
      %5494 = vmatprep.subr.mxu0 0.0
      %5495 = vmatpush1.msra.mxu0 0.0
      %5496 = vmatprep.subr.mxu0 0.0
      %5497 = vmatpush1.msra.mxu0 0.0
      %5498 = vmatprep.subr.mxu0 0.0
      %5499 = vmatpush1.msra.mxu0 0.0
      %5500 = vmatprep.subr.mxu0 0.0
      %5501 = vmatpush1.msra.mxu0 0.0
      %5502 = vmatprep.subr.mxu0 0.0
      %5503 = vmatpush1.msra.mxu0 0.0
      %5504 = vmatprep.subr.mxu0 0.0
      %5505 = vmatpush1.msra.mxu0 0.0
      %5506 = vmatprep.subr.mxu0 0.0
      %5507 = vmatpush1.msra.mxu0 0.0
      %5508 = vmatprep.subr.mxu0 0.0
      %5509 = vmatpush1.msra.mxu0 0.0
      %5510 = vmatprep.subr.mxu0 0.0
      %5511 = vmatpush1.msra.mxu0 0.0
      %5512 = vmatprep.subr.mxu0 0.0
      %5513 = vmatpush1.msra.mxu0 0.0
      %5514 = vmatprep.subr.mxu0 0.0
      %5515 = vmatpush1.msra.mxu0 0.0
      %5516 = vmatprep.subr.mxu0 0.0
      %5517 = vmatpush1.msra.mxu0 0.0
      %5518 = vmatprep.subr.mxu0 0.0
      %5519 = vmatpush1.msra.mxu0 0.0
      %5520 = vmatprep.subr.mxu0 0.0
      %5521 = vmatpush1.msra.mxu0 0.0
      %5522 = vmatprep.mubr.f32.mxu0 0.0
      %5523 = vmatmul.mubr.f32.gmra.mrb[0].mxu0 %v5456
      %v5524 = vpop.f32.mrb[0].mxu0
      %v5525 = vadd.f32 %v5454, %v5524
      %v5526 = vpop.f32.mrb[0].mxu0
      %v5527 = vadd.f32 %v5454, %v5526
      %5528 = vdwg.mxu0
      %5529 = vmatprep.subr.mxu0 %v3644
      %5530 = vmatpush1.msra.mxu0 %v3643
      %5531 = vmatprep.subr.mxu0 0.0
      %5532 = vmatpush1.msra.mxu0 0.0
      %5533 = vmatprep.subr.mxu0 0.0
      %5534 = vmatpush1.msra.mxu0 0.0
      %5535 = vmatprep.subr.mxu0 0.0
      %5536 = vmatpush1.msra.mxu0 0.0
      %5537 = vmatprep.subr.mxu0 0.0
      %5538 = vmatpush1.msra.mxu0 0.0
      %5539 = vmatprep.subr.mxu0 0.0
      %5540 = vmatpush1.msra.mxu0 0.0
      %5541 = vmatprep.subr.mxu0 0.0
      %5542 = vmatpush1.msra.mxu0 0.0
      %5543 = vmatprep.subr.mxu0 0.0
      %5544 = vmatpush1.msra.mxu0 0.0
      %5545 = vmatprep.subr.mxu0 0.0
      %5546 = vmatpush1.msra.mxu0 0.0
      %5547 = vmatprep.subr.mxu0 0.0
      %5548 = vmatpush1.msra.mxu0 0.0
      %5549 = vmatprep.subr.mxu0 0.0
      %5550 = vmatpush1.msra.mxu0 0.0
      %5551 = vmatprep.subr.mxu0 0.0
      %5552 = vmatpush1.msra.mxu0 0.0
      %5553 = vmatprep.subr.mxu0 0.0
      %5554 = vmatpush1.msra.mxu0 0.0
      %5555 = vmatprep.subr.mxu0 0.0
      %5556 = vmatpush1.msra.mxu0 0.0
      %5557 = vmatprep.subr.mxu0 0.0
      %5558 = vmatpush1.msra.mxu0 0.0
      %5559 = vmatprep.subr.mxu0 0.0
      %5560 = vmatpush1.msra.mxu0 0.0
      %5561 = vmatprep.subr.mxu0 0.0
      %5562 = vmatpush1.msra.mxu0 0.0
      %5563 = vmatprep.subr.mxu0 0.0
      %5564 = vmatpush1.msra.mxu0 0.0
      %5565 = vmatprep.subr.mxu0 0.0
      %5566 = vmatpush1.msra.mxu0 0.0
      %5567 = vmatprep.subr.mxu0 0.0
      %5568 = vmatpush1.msra.mxu0 0.0
      %5569 = vmatprep.subr.mxu0 0.0
      %5570 = vmatpush1.msra.mxu0 0.0
      %5571 = vmatprep.subr.mxu0 0.0
      %5572 = vmatpush1.msra.mxu0 0.0
      %5573 = vmatprep.subr.mxu0 0.0
      %5574 = vmatpush1.msra.mxu0 0.0
      %5575 = vmatprep.subr.mxu0 0.0
      %5576 = vmatpush1.msra.mxu0 0.0
      %5577 = vmatprep.subr.mxu0 0.0
      %5578 = vmatpush1.msra.mxu0 0.0
      %5579 = vmatprep.subr.mxu0 0.0
      %5580 = vmatpush1.msra.mxu0 0.0
      %5581 = vmatprep.subr.mxu0 0.0
      %5582 = vmatpush1.msra.mxu0 0.0
      %5583 = vmatprep.subr.mxu0 0.0
      %5584 = vmatpush1.msra.mxu0 0.0
      %5585 = vmatprep.subr.mxu0 0.0
      %5586 = vmatpush1.msra.mxu0 0.0
      %5587 = vmatprep.subr.mxu0 0.0
      %5588 = vmatpush1.msra.mxu0 0.0
      %5589 = vmatprep.subr.mxu0 0.0
      %5590 = vmatpush1.msra.mxu0 0.0
      %5591 = vmatprep.subr.mxu0 0.0
      %5592 = vmatpush1.msra.mxu0 0.0
      %5593 = vmatprep.mubr.f32.mxu0 0.0
      %5594 = vmatmul.mubr.f32.gmra.mrb[0].mxu0 %v5456
      %v5595 = vpop.f32.mrb[0].mxu0
      %v5596 = vadd.f32 %v5454, %v5595
      %v5597 = vpop.f32.mrb[0].mxu0
      %v5598 = vadd.f32 %v5454, %v5597
      %5599 = vdwg.mxu0
      %5600 = vmatprep.subr.mxu0 %v3646
      %5601 = vmatpush1.msra.mxu0 %v3645
      %5602 = vmatprep.subr.mxu0 0.0
      %5603 = vmatpush1.msra.mxu0 0.0
      %5604 = vmatprep.subr.mxu0 0.0
      %5605 = vmatpush1.msra.mxu0 0.0
      %5606 = vmatprep.subr.mxu0 0.0
      %5607 = vmatpush1.msra.mxu0 0.0
      %5608 = vmatprep.subr.mxu0 0.0
      %5609 = vmatpush1.msra.mxu0 0.0
      %5610 = vmatprep.subr.mxu0 0.0
      %5611 = vmatpush1.msra.mxu0 0.0
      %5612 = vmatprep.subr.mxu0 0.0
      %5613 = vmatpush1.msra.mxu0 0.0
      %5614 = vmatprep.subr.mxu0 0.0
      %5615 = vmatpush1.msra.mxu0 0.0
      %5616 = vmatprep.subr.mxu0 0.0
      %5617 = vmatpush1.msra.mxu0 0.0
      %5618 = vmatprep.subr.mxu0 0.0
      %5619 = vmatpush1.msra.mxu0 0.0
      %5620 = vmatprep.subr.mxu0 0.0
      %5621 = vmatpush1.msra.mxu0 0.0
      %5622 = vmatprep.subr.mxu0 0.0
      %5623 = vmatpush1.msra.mxu0 0.0
      %5624 = vmatprep.subr.mxu0 0.0
      %5625 = vmatpush1.msra.mxu0 0.0
      %5626 = vmatprep.subr.mxu0 0.0
      %5627 = vmatpush1.msra.mxu0 0.0
      %5628 = vmatprep.subr.mxu0 0.0
      %5629 = vmatpush1.msra.mxu0 0.0
      %5630 = vmatprep.subr.mxu0 0.0
      %5631 = vmatpush1.msra.mxu0 0.0
      %5632 = vmatprep.subr.mxu0 0.0
      %5633 = vmatpush1.msra.mxu0 0.0
      %5634 = vmatprep.subr.mxu0 0.0
      %5635 = vmatpush1.msra.mxu0 0.0
      %5636 = vmatprep.subr.mxu0 0.0
      %5637 = vmatpush1.msra.mxu0 0.0
      %5638 = vmatprep.subr.mxu0 0.0
      %5639 = vmatpush1.msra.mxu0 0.0
      %5640 = vmatprep.subr.mxu0 0.0
      %5641 = vmatpush1.msra.mxu0 0.0
      %5642 = vmatprep.subr.mxu0 0.0
      %5643 = vmatpush1.msra.mxu0 0.0
      %5644 = vmatprep.subr.mxu0 0.0
      %5645 = vmatpush1.msra.mxu0 0.0
      %5646 = vmatprep.subr.mxu0 0.0
      %5647 = vmatpush1.msra.mxu0 0.0
      %5648 = vmatprep.subr.mxu0 0.0
      %5649 = vmatpush1.msra.mxu0 0.0
      %5650 = vmatprep.subr.mxu0 0.0
      %5651 = vmatpush1.msra.mxu0 0.0
      %5652 = vmatprep.subr.mxu0 0.0
      %5653 = vmatpush1.msra.mxu0 0.0
      %5654 = vmatprep.subr.mxu0 0.0
      %5655 = vmatpush1.msra.mxu0 0.0
      %5656 = vmatprep.subr.mxu0 0.0
      %5657 = vmatpush1.msra.mxu0 0.0
      %5658 = vmatprep.subr.mxu0 0.0
      %5659 = vmatpush1.msra.mxu0 0.0
      %5660 = vmatprep.subr.mxu0 0.0
      %5661 = vmatpush1.msra.mxu0 0.0
      %5662 = vmatprep.subr.mxu0 0.0
      %5663 = vmatpush1.msra.mxu0 0.0
      %5664 = vmatprep.mubr.f32.mxu0 0.0
      %5665 = vmatmul.mubr.f32.gmra.mrb[0].mxu0 %v5456
      %v5666 = vpop.f32.mrb[0].mxu0
      %v5667 = vadd.f32 %v5454, %v5666
      %v5668 = vpop.f32.mrb[0].mxu0
      %v5669 = vadd.f32 %v5454, %v5668
      %5670 = vdwg.mxu0
      %5671 = vmatprep.subr.mxu0 %v3648
      %5672 = vmatpush1.msra.mxu0 %v3647
      %5673 = vmatprep.subr.mxu0 0.0
      %5674 = vmatpush1.msra.mxu0 0.0
      %5675 = vmatprep.subr.mxu0 0.0
      %5676 = vmatpush1.msra.mxu0 0.0
      %5677 = vmatprep.subr.mxu0 0.0
      %5678 = vmatpush1.msra.mxu0 0.0
      %5679 = vmatprep.subr.mxu0 0.0
      %5680 = vmatpush1.msra.mxu0 0.0
      %5681 = vmatprep.subr.mxu0 0.0
      %5682 = vmatpush1.msra.mxu0 0.0
      %5683 = vmatprep.subr.mxu0 0.0
      %5684 = vmatpush1.msra.mxu0 0.0
      %5685 = vmatprep.subr.mxu0 0.0
      %5686 = vmatpush1.msra.mxu0 0.0
      %5687 = vmatprep.subr.mxu0 0.0
      %5688 = vmatpush1.msra.mxu0 0.0
      %5689 = vmatprep.subr.mxu0 0.0
      %5690 = vmatpush1.msra.mxu0 0.0
      %5691 = vmatprep.subr.mxu0 0.0
      %5692 = vmatpush1.msra.mxu0 0.0
      %5693 = vmatprep.subr.mxu0 0.0
      %5694 = vmatpush1.msra.mxu0 0.0
      %5695 = vmatprep.subr.mxu0 0.0
      %5696 = vmatpush1.msra.mxu0 0.0
      %5697 = vmatprep.subr.mxu0 0.0
      %5698 = vmatpush1.msra.mxu0 0.0
      %5699 = vmatprep.subr.mxu0 0.0
      %5700 = vmatpush1.msra.mxu0 0.0
      %5701 = vmatprep.subr.mxu0 0.0
      %5702 = vmatpush1.msra.mxu0 0.0
      %5703 = vmatprep.subr.mxu0 0.0
      %5704 = vmatpush1.msra.mxu0 0.0
      %5705 = vmatprep.subr.mxu0 0.0
      %5706 = vmatpush1.msra.mxu0 0.0
      %5707 = vmatprep.subr.mxu0 0.0
      %5708 = vmatpush1.msra.mxu0 0.0
      %5709 = vmatprep.subr.mxu0 0.0
      %5710 = vmatpush1.msra.mxu0 0.0
      %5711 = vmatprep.subr.mxu0 0.0
      %5712 = vmatpush1.msra.mxu0 0.0
      %5713 = vmatprep.subr.mxu0 0.0
      %5714 = vmatpush1.msra.mxu0 0.0
      %5715 = vmatprep.subr.mxu0 0.0
      %5716 = vmatpush1.msra.mxu0 0.0
      %5717 = vmatprep.subr.mxu0 0.0
      %5718 = vmatpush1.msra.mxu0 0.0
      %5719 = vmatprep.subr.mxu0 0.0
      %5720 = vmatpush1.msra.mxu0 0.0
      %5721 = vmatprep.subr.mxu0 0.0
      %5722 = vmatpush1.msra.mxu0 0.0
      %5723 = vmatprep.subr.mxu0 0.0
      %5724 = vmatpush1.msra.mxu0 0.0
      %5725 = vmatprep.subr.mxu0 0.0
      %5726 = vmatpush1.msra.mxu0 0.0
      %5727 = vmatprep.subr.mxu0 0.0
      %5728 = vmatpush1.msra.mxu0 0.0
      %5729 = vmatprep.subr.mxu0 0.0
      %5730 = vmatpush1.msra.mxu0 0.0
      %5731 = vmatprep.subr.mxu0 0.0
      %5732 = vmatpush1.msra.mxu0 0.0
      %5733 = vmatprep.subr.mxu0 0.0
      %5734 = vmatpush1.msra.mxu0 0.0
      %5735 = vmatprep.mubr.f32.mxu0 0.0
      %5736 = vmatmul.mubr.f32.gmra.mrb[0].mxu0 %v5456
      %v5737 = vpop.f32.mrb[0].mxu0
      %v5738 = vadd.f32 %v5454, %v5737
      %v5739 = vpop.f32.mrb[0].mxu0
      %v5740 = vadd.f32 %v5454, %v5739
      %5741 = vdwg.mxu0
      %v5742 = vmax.f32 %v5525, 0.0
      %v5743 = vmax.f32 %v5527, 0.0
      %v5744 = vmax.f32 %v5596, 0.0
      %v5745 = vmax.f32 %v5598, 0.0
      %v5746 = vmax.f32 %v5667, 0.0
      %v5747 = vmax.f32 %v5669, 0.0
      %v5748 = vmax.f32 %v5738, 0.0
      %v5749 = vmax.f32 %v5740, 0.0
      %5751 = vset.pattern.permute.xlu0 32
      %5752 = vperm.xlu0 %5751, %v5450
      %v5753 = vpop.permute.xlu0 %5752
      %v5755 = vsel %vm2063, %v5450, 0
      %5757 = vmatprep.subr.mxu0 %v5743
      %5758 = vmatpush1.msra.mxu0 %v5742
      %5759 = vmatprep.subr.mxu0 0.0
      %5760 = vmatpush1.msra.mxu0 0.0
      %5761 = vmatprep.subr.mxu0 0.0
      %5762 = vmatpush1.msra.mxu0 0.0
      %5763 = vmatprep.subr.mxu0 0.0
      %5764 = vmatpush1.msra.mxu0 0.0
      %5765 = vmatprep.subr.mxu0 0.0
      %5766 = vmatpush1.msra.mxu0 0.0
      %5767 = vmatprep.subr.mxu0 0.0
      %5768 = vmatpush1.msra.mxu0 0.0
      %5769 = vmatprep.subr.mxu0 0.0
      %5770 = vmatpush1.msra.mxu0 0.0
      %5771 = vmatprep.subr.mxu0 0.0
      %5772 = vmatpush1.msra.mxu0 0.0
      %5773 = vmatprep.subr.mxu0 0.0
      %5774 = vmatpush1.msra.mxu0 0.0
      %5775 = vmatprep.subr.mxu0 0.0
      %5776 = vmatpush1.msra.mxu0 0.0
      %5777 = vmatprep.subr.mxu0 0.0
      %5778 = vmatpush1.msra.mxu0 0.0
      %5779 = vmatprep.subr.mxu0 0.0
      %5780 = vmatpush1.msra.mxu0 0.0
      %5781 = vmatprep.subr.mxu0 0.0
      %5782 = vmatpush1.msra.mxu0 0.0
      %5783 = vmatprep.subr.mxu0 0.0
      %5784 = vmatpush1.msra.mxu0 0.0
      %5785 = vmatprep.subr.mxu0 0.0
      %5786 = vmatpush1.msra.mxu0 0.0
      %5787 = vmatprep.subr.mxu0 0.0
      %5788 = vmatpush1.msra.mxu0 0.0
      %5789 = vmatprep.subr.mxu0 0.0
      %5790 = vmatpush1.msra.mxu0 0.0
      %5791 = vmatprep.subr.mxu0 0.0
      %5792 = vmatpush1.msra.mxu0 0.0
      %5793 = vmatprep.subr.mxu0 0.0
      %5794 = vmatpush1.msra.mxu0 0.0
      %5795 = vmatprep.subr.mxu0 0.0
      %5796 = vmatpush1.msra.mxu0 0.0
      %5797 = vmatprep.subr.mxu0 0.0
      %5798 = vmatpush1.msra.mxu0 0.0
      %5799 = vmatprep.subr.mxu0 0.0
      %5800 = vmatpush1.msra.mxu0 0.0
      %5801 = vmatprep.subr.mxu0 0.0
      %5802 = vmatpush1.msra.mxu0 0.0
      %5803 = vmatprep.subr.mxu0 0.0
      %5804 = vmatpush1.msra.mxu0 0.0
      %5805 = vmatprep.subr.mxu0 0.0
      %5806 = vmatpush1.msra.mxu0 0.0
      %5807 = vmatprep.subr.mxu0 0.0
      %5808 = vmatpush1.msra.mxu0 0.0
      %5809 = vmatprep.subr.mxu0 0.0
      %5810 = vmatpush1.msra.mxu0 0.0
      %5811 = vmatprep.subr.mxu0 0.0
      %5812 = vmatpush1.msra.mxu0 0.0
      %5813 = vmatprep.subr.mxu0 0.0
      %5814 = vmatpush1.msra.mxu0 0.0
      %5815 = vmatprep.subr.mxu0 0.0
      %5816 = vmatpush1.msra.mxu0 0.0
      %5817 = vmatprep.subr.mxu0 0.0
      %5818 = vmatpush1.msra.mxu0 0.0
      %5819 = vmatprep.subr.mxu0 0.0
      %5820 = vmatpush1.msra.mxu0 0.0
      %5821 = vmatprep.mubr.f32.mxu0 0.0
      %5822 = vmatmul.mubr.f32.gmra.mrb[0].mxu0 %v5755
      %v5823 = vpop.f32.mrb[0].mxu0
      %v5824 = vadd.f32 %v5753, %v5823
      %v5825 = vpop.f32.mrb[0].mxu0
      %v5826 = vadd.f32 %v5753, %v5825
      %5827 = vdwg.mxu0
      %5828 = vmatprep.subr.mxu0 %v5745
      %5829 = vmatpush1.msra.mxu0 %v5744
      %5830 = vmatprep.subr.mxu0 0.0
      %5831 = vmatpush1.msra.mxu0 0.0
      %5832 = vmatprep.subr.mxu0 0.0
      %5833 = vmatpush1.msra.mxu0 0.0
      %5834 = vmatprep.subr.mxu0 0.0
      %5835 = vmatpush1.msra.mxu0 0.0
      %5836 = vmatprep.subr.mxu0 0.0
      %5837 = vmatpush1.msra.mxu0 0.0
      %5838 = vmatprep.subr.mxu0 0.0
      %5839 = vmatpush1.msra.mxu0 0.0
      %5840 = vmatprep.subr.mxu0 0.0
      %5841 = vmatpush1.msra.mxu0 0.0
      %5842 = vmatprep.subr.mxu0 0.0
      %5843 = vmatpush1.msra.mxu0 0.0
      %5844 = vmatprep.subr.mxu0 0.0
      %5845 = vmatpush1.msra.mxu0 0.0
      %5846 = vmatprep.subr.mxu0 0.0
      %5847 = vmatpush1.msra.mxu0 0.0
      %5848 = vmatprep.subr.mxu0 0.0
      %5849 = vmatpush1.msra.mxu0 0.0
      %5850 = vmatprep.subr.mxu0 0.0
      %5851 = vmatpush1.msra.mxu0 0.0
      %5852 = vmatprep.subr.mxu0 0.0
      %5853 = vmatpush1.msra.mxu0 0.0
      %5854 = vmatprep.subr.mxu0 0.0
      %5855 = vmatpush1.msra.mxu0 0.0
      %5856 = vmatprep.subr.mxu0 0.0
      %5857 = vmatpush1.msra.mxu0 0.0
      %5858 = vmatprep.subr.mxu0 0.0
      %5859 = vmatpush1.msra.mxu0 0.0
      %5860 = vmatprep.subr.mxu0 0.0
      %5861 = vmatpush1.msra.mxu0 0.0
      %5862 = vmatprep.subr.mxu0 0.0
      %5863 = vmatpush1.msra.mxu0 0.0
      %5864 = vmatprep.subr.mxu0 0.0
      %5865 = vmatpush1.msra.mxu0 0.0
      %5866 = vmatprep.subr.mxu0 0.0
      %5867 = vmatpush1.msra.mxu0 0.0
      %5868 = vmatprep.subr.mxu0 0.0
      %5869 = vmatpush1.msra.mxu0 0.0
      %5870 = vmatprep.subr.mxu0 0.0
      %5871 = vmatpush1.msra.mxu0 0.0
      %5872 = vmatprep.subr.mxu0 0.0
      %5873 = vmatpush1.msra.mxu0 0.0
      %5874 = vmatprep.subr.mxu0 0.0
      %5875 = vmatpush1.msra.mxu0 0.0
      %5876 = vmatprep.subr.mxu0 0.0
      %5877 = vmatpush1.msra.mxu0 0.0
      %5878 = vmatprep.subr.mxu0 0.0
      %5879 = vmatpush1.msra.mxu0 0.0
      %5880 = vmatprep.subr.mxu0 0.0
      %5881 = vmatpush1.msra.mxu0 0.0
      %5882 = vmatprep.subr.mxu0 0.0
      %5883 = vmatpush1.msra.mxu0 0.0
      %5884 = vmatprep.subr.mxu0 0.0
      %5885 = vmatpush1.msra.mxu0 0.0
      %5886 = vmatprep.subr.mxu0 0.0
      %5887 = vmatpush1.msra.mxu0 0.0
      %5888 = vmatprep.subr.mxu0 0.0
      %5889 = vmatpush1.msra.mxu0 0.0
      %5890 = vmatprep.subr.mxu0 0.0
      %5891 = vmatpush1.msra.mxu0 0.0
      %5892 = vmatprep.mubr.f32.mxu0 0.0
      %5893 = vmatmul.mubr.f32.gmra.mrb[0].mxu0 %v5755
      %v5894 = vpop.f32.mrb[0].mxu0
      %v5895 = vadd.f32 %v5753, %v5894
      %v5896 = vpop.f32.mrb[0].mxu0
      %v5897 = vadd.f32 %v5753, %v5896
      %5898 = vdwg.mxu0
      %5899 = vmatprep.subr.mxu0 %v5747
      %5900 = vmatpush1.msra.mxu0 %v5746
      %5901 = vmatprep.subr.mxu0 0.0
      %5902 = vmatpush1.msra.mxu0 0.0
      %5903 = vmatprep.subr.mxu0 0.0
      %5904 = vmatpush1.msra.mxu0 0.0
      %5905 = vmatprep.subr.mxu0 0.0
      %5906 = vmatpush1.msra.mxu0 0.0
      %5907 = vmatprep.subr.mxu0 0.0
      %5908 = vmatpush1.msra.mxu0 0.0
      %5909 = vmatprep.subr.mxu0 0.0
      %5910 = vmatpush1.msra.mxu0 0.0
      %5911 = vmatprep.subr.mxu0 0.0
      %5912 = vmatpush1.msra.mxu0 0.0
      %5913 = vmatprep.subr.mxu0 0.0
      %5914 = vmatpush1.msra.mxu0 0.0
      %5915 = vmatprep.subr.mxu0 0.0
      %5916 = vmatpush1.msra.mxu0 0.0
      %5917 = vmatprep.subr.mxu0 0.0
      %5918 = vmatpush1.msra.mxu0 0.0
      %5919 = vmatprep.subr.mxu0 0.0
      %5920 = vmatpush1.msra.mxu0 0.0
      %5921 = vmatprep.subr.mxu0 0.0
      %5922 = vmatpush1.msra.mxu0 0.0
      %5923 = vmatprep.subr.mxu0 0.0
      %5924 = vmatpush1.msra.mxu0 0.0
      %5925 = vmatprep.subr.mxu0 0.0
      %5926 = vmatpush1.msra.mxu0 0.0
      %5927 = vmatprep.subr.mxu0 0.0
      %5928 = vmatpush1.msra.mxu0 0.0
      %5929 = vmatprep.subr.mxu0 0.0
      %5930 = vmatpush1.msra.mxu0 0.0
      %5931 = vmatprep.subr.mxu0 0.0
      %5932 = vmatpush1.msra.mxu0 0.0
      %5933 = vmatprep.subr.mxu0 0.0
      %5934 = vmatpush1.msra.mxu0 0.0
      %5935 = vmatprep.subr.mxu0 0.0
      %5936 = vmatpush1.msra.mxu0 0.0
      %5937 = vmatprep.subr.mxu0 0.0
      %5938 = vmatpush1.msra.mxu0 0.0
      %5939 = vmatprep.subr.mxu0 0.0
      %5940 = vmatpush1.msra.mxu0 0.0
      %5941 = vmatprep.subr.mxu0 0.0
      %5942 = vmatpush1.msra.mxu0 0.0
      %5943 = vmatprep.subr.mxu0 0.0
      %5944 = vmatpush1.msra.mxu0 0.0
      %5945 = vmatprep.subr.mxu0 0.0
      %5946 = vmatpush1.msra.mxu0 0.0
      %5947 = vmatprep.subr.mxu0 0.0
      %5948 = vmatpush1.msra.mxu0 0.0
      %5949 = vmatprep.subr.mxu0 0.0
      %5950 = vmatpush1.msra.mxu0 0.0
      %5951 = vmatprep.subr.mxu0 0.0
      %5952 = vmatpush1.msra.mxu0 0.0
      %5953 = vmatprep.subr.mxu0 0.0
      %5954 = vmatpush1.msra.mxu0 0.0
      %5955 = vmatprep.subr.mxu0 0.0
      %5956 = vmatpush1.msra.mxu0 0.0
      %5957 = vmatprep.subr.mxu0 0.0
      %5958 = vmatpush1.msra.mxu0 0.0
      %5959 = vmatprep.subr.mxu0 0.0
      %5960 = vmatpush1.msra.mxu0 0.0
      %5961 = vmatprep.subr.mxu0 0.0
      %5962 = vmatpush1.msra.mxu0 0.0
      %5963 = vmatprep.mubr.f32.mxu0 0.0
      %5964 = vmatmul.mubr.f32.gmra.mrb[0].mxu0 %v5755
      %v5965 = vpop.f32.mrb[0].mxu0
      %v5966 = vadd.f32 %v5753, %v5965
      %v5967 = vpop.f32.mrb[0].mxu0
      %v5968 = vadd.f32 %v5753, %v5967
      %5969 = vdwg.mxu0
      %5970 = vmatprep.subr.mxu0 %v5749
      %5971 = vmatpush1.msra.mxu0 %v5748
      %5972 = vmatprep.subr.mxu0 0.0
      %5973 = vmatpush1.msra.mxu0 0.0
      %5974 = vmatprep.subr.mxu0 0.0
      %5975 = vmatpush1.msra.mxu0 0.0
      %5976 = vmatprep.subr.mxu0 0.0
      %5977 = vmatpush1.msra.mxu0 0.0
      %5978 = vmatprep.subr.mxu0 0.0
      %5979 = vmatpush1.msra.mxu0 0.0
      %5980 = vmatprep.subr.mxu0 0.0
      %5981 = vmatpush1.msra.mxu0 0.0
      %5982 = vmatprep.subr.mxu0 0.0
      %5983 = vmatpush1.msra.mxu0 0.0
      %5984 = vmatprep.subr.mxu0 0.0
      %5985 = vmatpush1.msra.mxu0 0.0
      %5986 = vmatprep.subr.mxu0 0.0
      %5987 = vmatpush1.msra.mxu0 0.0
      %5988 = vmatprep.subr.mxu0 0.0
      %5989 = vmatpush1.msra.mxu0 0.0
      %5990 = vmatprep.subr.mxu0 0.0
      %5991 = vmatpush1.msra.mxu0 0.0
      %5992 = vmatprep.subr.mxu0 0.0
      %5993 = vmatpush1.msra.mxu0 0.0
      %5994 = vmatprep.subr.mxu0 0.0
      %5995 = vmatpush1.msra.mxu0 0.0
      %5996 = vmatprep.subr.mxu0 0.0
      %5997 = vmatpush1.msra.mxu0 0.0
      %5998 = vmatprep.subr.mxu0 0.0
      %5999 = vmatpush1.msra.mxu0 0.0
      %6000 = vmatprep.subr.mxu0 0.0
      %6001 = vmatpush1.msra.mxu0 0.0
      %6002 = vmatprep.subr.mxu0 0.0
      %6003 = vmatpush1.msra.mxu0 0.0
      %6004 = vmatprep.subr.mxu0 0.0
      %6005 = vmatpush1.msra.mxu0 0.0
      %6006 = vmatprep.subr.mxu0 0.0
      %6007 = vmatpush1.msra.mxu0 0.0
      %6008 = vmatprep.subr.mxu0 0.0
      %6009 = vmatpush1.msra.mxu0 0.0
      %6010 = vmatprep.subr.mxu0 0.0
      %6011 = vmatpush1.msra.mxu0 0.0
      %6012 = vmatprep.subr.mxu0 0.0
      %6013 = vmatpush1.msra.mxu0 0.0
      %6014 = vmatprep.subr.mxu0 0.0
      %6015 = vmatpush1.msra.mxu0 0.0
      %6016 = vmatprep.subr.mxu0 0.0
      %6017 = vmatpush1.msra.mxu0 0.0
      %6018 = vmatprep.subr.mxu0 0.0
      %6019 = vmatpush1.msra.mxu0 0.0
      %6020 = vmatprep.subr.mxu0 0.0
      %6021 = vmatpush1.msra.mxu0 0.0
      %6022 = vmatprep.subr.mxu0 0.0
      %6023 = vmatpush1.msra.mxu0 0.0
      %6024 = vmatprep.subr.mxu0 0.0
      %6025 = vmatpush1.msra.mxu0 0.0
      %6026 = vmatprep.subr.mxu0 0.0
      %6027 = vmatpush1.msra.mxu0 0.0
      %6028 = vmatprep.subr.mxu0 0.0
      %6029 = vmatpush1.msra.mxu0 0.0
      %6030 = vmatprep.subr.mxu0 0.0
      %6031 = vmatpush1.msra.mxu0 0.0
      %6032 = vmatprep.subr.mxu0 0.0
      %6033 = vmatpush1.msra.mxu0 0.0
      %6034 = vmatprep.mubr.f32.mxu0 0.0
      %6035 = vmatmul.mubr.f32.gmra.mrb[0].mxu0 %v5755
      %v6036 = vpop.f32.mrb[0].mxu0
      %v6037 = vadd.f32 %v5753, %v6036
      %v6038 = vpop.f32.mrb[0].mxu0
      %v6039 = vadd.f32 %v5753, %v6038
      %6040 = vdwg.mxu0
      %6041 = vst [vmem:[%s288 + $0xc0] sm:$0xff] %v5824
      %6042 = vst [vmem:[%s288 + $0xc8] sm:$0xff] %v5826
      %6043 = vst [vmem:[%s288 + $0xd0] sm:$0xff] %v5895
      %6044 = vst [vmem:[%s288 + $0xd8] sm:$0xff] %v5897
      %6045 = vst [vmem:[%s288 + $0xe0] sm:$0xff] %v5966
      %6046 = vst [vmem:[%s288 + $0xe8] sm:$0xff] %v5968
      %6047 = vst [vmem:[%s288 + $0xf0] sm:$0xff] %v6037
      %6048 = vst [vmem:[%s288 + $0xf8] sm:$0xff] %v6039
      %p6049 = scmp.lt.s32.totalorder %s18, 1
      %s6050 = scalar_select %p6049, %s18, 1
      %s6051 = smul.addr %s6050, 24
      %s6052 = smul.addr %s6051, 8
      %s6053 = scalar_lea.vmem %s3, %s6052
      %p6054 = scmp.lt.s32.totalorder %s18, 1
      %s6055 = scalar_select %p6054, %s18, 1
      %s6056 = smul.addr %s6055, 2
      %s6057 = smul.addr %s6056, 8
      %s6058 = scalar_lea.vmem %s4, %s6057
      %p6059 = scmp.lt.s32.totalorder %s18, 1
      %s6060 = scalar_select %p6059, %s18, 1
      %s6061 = smul.addr %s6060, 8
      %s6062 = smul.addr %s6061, 8
      %s6063 = scalar_lea.vmem %s5, %s6062
      %p6064 = scmp.lt.s32.totalorder %s18, 1
      %s6065 = scalar_select %p6064, %s18, 1
      %s6066 = smul.addr %s6065, 32
      %s6067 = smul.addr %s6066, 8
      %s6068 = scalar_lea.vmem %s6, %s6067
      // Predicated region
      $region33: #{decoder_forward.1} parent=31 // pred_check
        %p6069 = pneg %p104
      $region34: #{decoder_forward.1} parent=31 // pred_check_branch
        %6071 = sbr.rel (%p6069) target = $region36
      $region35: #{decoder_forward.1} parent=31 // pred_region
        _
      $region36: #{decoder_forward.1} parent=31 // pred_fallthru
        _
      // Predicated region
      $region37: #{decoder_forward.1} parent=31 // pred_check
        %p6072 = pneg %p130
      $region38: #{decoder_forward.1} parent=31 // pred_check_branch
        %6074 = sbr.rel (%p6072) target = $region40
      $region39: #{decoder_forward.1} parent=31 // pred_region
        _
      $region40: #{decoder_forward.1} parent=31 // pred_fallthru
        _
      // Predicated region
      $region41: #{decoder_forward.1} parent=31 // pred_check
        %p6075 = pneg %p156
      $region42: #{decoder_forward.1} parent=31 // pred_check_branch
        %6077 = sbr.rel (%p6075) target = $region44
      $region43: #{decoder_forward.1} parent=31 // pred_region
        _
      $region44: #{decoder_forward.1} parent=31 // pred_fallthru
        _
      // Predicated region
      $region45: #{decoder_forward.1} parent=31 // pred_check
        %p6078 = pneg %p182
      $region46: #{decoder_forward.1} parent=31 // pred_check_branch
        %6080 = sbr.rel (%p6078) target = $region48
      $region47: #{decoder_forward.1} parent=31 // pred_region
        _
      $region48: #{decoder_forward.1} parent=31 // pred_fallthru
        _
    $region32: #{decoder_forward.1} parent=5 // pred_fallthru
      _
    %p6081 = scmp.le.s32.totalorder 2, %s13
    // Predicated region
    $region49: #{decoder_forward.1} parent=5 // pred_check
      %p6082 = pneg %p6081
    $region50: #{decoder_forward.1} parent=5 // pred_check_branch
      %6084 = sbr.rel (%p6082) target = $region52
    $region51: #{decoder_forward.1} parent=5 // pred_region
      %s6085 = ssub.s32 %s13, 2
      // Predicated region
      $region53: #{decoder_forward.1} parent=51 // pred_check
        %p6086 = pneg %p110
      $region54: #{decoder_forward.1} parent=51 // pred_check_branch
        %6088 = sbr.rel (%p6086) target = $region56
      $region55: #{decoder_forward.1} parent=51 // pred_region
        %p6089 = scmp.lt.s32.totalorder %s19, 1
        %s6090 = scalar_select %p6089, %s19, 1
        %s6091 = smul.addr %s6090, 24
        %s6092 = smul.addr %s6091, 8
        %s6093 = scalar_lea.vmem %s3, %s6092
      $region56: #{decoder_forward.1} parent=51 // pred_fallthru
        _
      // Predicated region
      $region57: #{decoder_forward.1} parent=51 // pred_check
        %p6094 = pneg %p136
      $region58: #{decoder_forward.1} parent=51 // pred_check_branch
        %6096 = sbr.rel (%p6094) target = $region60
      $region59: #{decoder_forward.1} parent=51 // pred_region
        %p6097 = scmp.lt.s32.totalorder %s19, 1
        %s6098 = scalar_select %p6097, %s19, 1
        %s6099 = smul.addr %s6098, 2
        %s6100 = smul.addr %s6099, 8
        %s6101 = scalar_lea.vmem %s4, %s6100
      $region60: #{decoder_forward.1} parent=51 // pred_fallthru
        _
      // Predicated region
      $region61: #{decoder_forward.1} parent=51 // pred_check
        %p6102 = pneg %p162
      $region62: #{decoder_forward.1} parent=51 // pred_check_branch
        %6104 = sbr.rel (%p6102) target = $region64
      $region63: #{decoder_forward.1} parent=51 // pred_region
        %p6105 = scmp.lt.s32.totalorder %s19, 1
        %s6106 = scalar_select %p6105, %s19, 1
        %s6107 = smul.addr %s6106, 8
        %s6108 = smul.addr %s6107, 8
        %s6109 = scalar_lea.vmem %s5, %s6108
      $region64: #{decoder_forward.1} parent=51 // pred_fallthru
        _
      // Predicated region
      $region65: #{decoder_forward.1} parent=51 // pred_check
        %p6110 = pneg %p188
      $region66: #{decoder_forward.1} parent=51 // pred_check_branch
        %6112 = sbr.rel (%p6110) target = $region68
      $region67: #{decoder_forward.1} parent=51 // pred_region
        %p6113 = scmp.lt.s32.totalorder %s19, 1
        %s6114 = scalar_select %p6113, %s19, 1
        %s6115 = smul.addr %s6114, 32
        %s6116 = smul.addr %s6115, 8
        %s6117 = scalar_lea.vmem %s6, %s6116
      $region68: #{decoder_forward.1} parent=51 // pred_fallthru
        _
    $region52: #{decoder_forward.1} parent=5 // pred_fallthru
      _
  $region6: #{decoder_forward.1} parent=0 // loop_footer
    %s17 = sadd.s32 1, %s13
  $region7: #{decoder_forward.1} parent=0 // loop_footer_branch
    %12 = sbr.rel target = $region3
  $region8: #{decoder_forward.1} parent=0 // loop_exit
    _

</llo_original>
